<compile_context>
chip_gen: v6e
topology: v6e:2x2x1
jax: 0.10.0
libtpu: 0.0.40
codegen_flags: <defaults>
</compile_context>

<pallas_src>
import functools

import jax
import jax.numpy as jnp
from jax.experimental import pallas as pl
from jax.experimental.pallas import tpu as pltpu


# ----------------------------------------------------------------------------
# Helpers
# ----------------------------------------------------------------------------
def _round_up(x, m):
    return ((x + m - 1) // m) * m


def _pick_tile(dim, max_tile, align):
    """Largest tile <= max_tile that is a multiple of `align` and divides the
    padded dimension.  Returns (tile, padded_dim)."""
    dp = _round_up(dim, align)
    cands = [t for t in range(align, min(max_tile, dp) + 1, align) if dp % t == 0]
    if cands:
        return cands[-1], dp
    return max_tile, _round_up(dp, max_tile)   # unreachable in practice


# ----------------------------------------------------------------------------
# Pallas kernels
# ----------------------------------------------------------------------------
def _matmul_shift_kernel(a_ref, b_ref, t_ref, o_ref, acc_ref, *, relu):
    """Tiled (M, N, K) matmul: acc += a @ b, epilogue adds shift (+ ReLU)."""
    k = pl.program_id(2)

    @pl.when(k == 0)
    def _():
        acc_ref[...] = jnp.zeros_like(acc_ref)

    acc_ref[...] += jnp.dot(
        a_ref[...], b_ref[...], preferred_element_type=jnp.float32
    )

    @pl.when(k == pl.num_programs(2) - 1)
    def _():
        out = acc_ref[...] + t_ref[...]
        if relu:
            out = jnp.maximum(out, 0.0)
        o_ref[...] = out.astype(o_ref.dtype)


def _max_window_kernel(x_ref, o_ref):
    """x: (K, tm, C) stacked window taps -> elementwise max over K."""
    o_ref[...] = jnp.max(x_ref[...], axis=0)


# ----------------------------------------------------------------------------
# Pallas wrappers
# ----------------------------------------------------------------------------
def matmul_shift(a, b, shift, relu, *, max_tm=512, max_tn=256, max_tk=512):
    """act((a @ b) + shift).  a:(M,K), b:(K,N), shift:(N,).

    MXU runs on bf16 operands with an f32 accumulator; BN scale is expected to
    be pre-folded into `b`, so only the shift is applied in the epilogue.
    """
    M, K = a.shape
    K2, N = b.shape
    assert K == K2

    tm, Mp = _pick_tile(M, max_tm, 8)
    tn, Np = _pick_tile(N, max_tn, 128)
    tk, Kp = _pick_tile(K, max_tk, 128)

    # Zero-padding K contributes zeros to the dot product; padded M rows and
    # N columns are sliced off below.
    a_p = jnp.pad(a, ((0, Mp - M), (0, Kp - K))).astype(jnp.bfloat16)
    b_p = jnp.pad(b, ((0, Kp - K), (0, Np - N))).astype(jnp.bfloat16)
    t_p = jnp.pad(shift, (0, Np - N)).reshape(1, Np).astype(jnp.float32)

    grid = (Mp // tm, Np // tn, Kp // tk)
    out = pl.pallas_call(
        functools.partial(_matmul_shift_kernel, relu=relu),
        out_shape=jax.ShapeDtypeStruct((Mp, Np), jnp.float32),
        grid_spec=pltpu.PrefetchScalarGridSpec(
            num_scalar_prefetch=0,
            grid=grid,
            in_specs=[
                pl.BlockSpec((tm, tk), lambda i, j, k: (i, k)),
                pl.BlockSpec((tk, tn), lambda i, j, k: (k, j)),
                pl.BlockSpec((1, tn), lambda i, j, k: (0, j)),
            ],
            out_specs=pl.BlockSpec((tm, tn), lambda i, j, k: (i, j)),
            scratch_shapes=[pltpu.VMEM((tm, tn), jnp.float32)],
        ),
        compiler_params=pltpu.CompilerParams(
            dimension_semantics=("parallel", "parallel", "arbitrary")
        ),
    )(a_p, b_p, t_p)
    return out[:M, :N]


def max_pool3_s2(x):
    """F.max_pool2d(x, kernel_size=3, stride=2) on an NHWC tensor."""
    N, H, W, C = x.shape
    OH = (H - 3) // 2 + 1
    OW = (W - 3) // 2 + 1
    # TODO(synk): replace the 9x window-tap stack with in-kernel windowed DMA
    # over the NHWC tensor to avoid duplicating the activation in HBM.
    cols = [
        x[:, i:i + 2 * OH - 1:2, j:j + 2 * OW - 1:2, :]
        for i in range(3) for j in range(3)
    ]
    p = jnp.stack(cols, axis=0).reshape(9, N * OH * OW, C)

    M = N * OH * OW
    tm, Mp = _pick_tile(M, 512, 8)
    Cp = _round_up(C, 128)
    p = jnp.pad(p, ((0, 0), (0, Mp - M), (0, Cp - C)))

    out = pl.pallas_call(
        _max_window_kernel,
        out_shape=jax.ShapeDtypeStruct((Mp, Cp), jnp.float32),
        grid_spec=pltpu.PrefetchScalarGridSpec(
            num_scalar_prefetch=0,
            grid=(Mp // tm,),
            in_specs=[pl.BlockSpec((9, tm, Cp), lambda m: (0, m, 0))],
            out_specs=pl.BlockSpec((tm, Cp), lambda m: (m, 0)),
        ),
        compiler_params=pltpu.CompilerParams(dimension_semantics=("parallel",)),
    )(p)
    return out[:M, :C].reshape(N, OH, OW, C)


# ----------------------------------------------------------------------------
# Conv + BN(eval) + ReLU  (NHWC)
# ----------------------------------------------------------------------------
def _bn_scale_shift(p):
    scale = p["gamma"] * jax.lax.rsqrt(p["var"] + 1e-3)
    shift = p["beta"] - p["mean"] * scale
    return scale, shift


def _im2col_nhwc(x, kh, kw, sh, sw, ph, pw):
    """NHWC im2col -> (N*OH*OW, kh*kw*C) with column order (ki, kj, cin)."""
    N, H, W, C = x.shape
    xp = jnp.pad(x, ((0, 0), (ph, ph), (pw, pw), (0, 0)))
    OH = (H + 2 * ph - kh) // sh + 1
    OW = (W + 2 * pw - kw) // sw + 1
    # TODO(synk): for large models, stream (ki, kj) windows via the K grid
    # axis with in-kernel DMA instead of materializing kh*kw copies in HBM.
    cols = [
        xp[:, i:i + (OH - 1) * sh + 1:sh, j:j + (OW - 1) * sw + 1:sw, :]
        for i in range(kh) for j in range(kw)
    ]
    a = jnp.concatenate(cols, axis=-1).reshape(N * OH * OW, kh * kw * C)
    return a, OH, OW


def conv_bn_relu(x, p, stride=(1, 1), padding=(0, 0)):
    """BasicConv2d on an NHWC tensor: conv(no bias) + BN(eps=1e-3, eval) + ReLU."""
    w = p["w"]                       # (Cout, Cin, kh, kw)  (PyTorch layout)
    Cout, Cin, kh, kw = w.shape
    sh, sw = stride
    ph, pw = padding
    N = x.shape[0]

    a, OH, OW = _im2col_nhwc(x, kh, kw, sh, sw, ph, pw)
    scale, shift = _bn_scale_shift(p)
    # Rows ordered (ki, kj, cin) to match the NHWC patch order; BN scale is
    # folded into the weight columns at trace time (params are jit constants).
    bm = w.transpose(2, 3, 1, 0).reshape(kh * kw * Cin, Cout) * scale[None, :]
    y = matmul_shift(a, bm, shift, relu=True)
    return y.reshape(N, OH, OW, Cout)


def fused_1x1_heads(x, p_list):
    """Several 1x1 BasicConv2d sharing the same input -> one fused matmul."""
    N, H, W, C = x.shape
    a = x.reshape(N * H * W, C)
    bms, shifts, couts = [], [], []
    for p in p_list:
        w = p["w"]                   # (Cout, Cin, 1, 1)
        scale, shift = _bn_scale_shift(p)
        bms.append(w.reshape(w.shape[0], C).T * scale[None, :])
        shifts.append(shift)
        couts.append(w.shape[0])
    bm = jnp.concatenate(bms, axis=1)
    shift = jnp.concatenate(shifts)
    y = matmul_shift(a, bm, shift, relu=True).reshape(N, H, W, sum(couts))
    outs, off = [], 0
    for c in couts:
        outs.append(y[..., off:off + c])
        off += c
    return outs


# ----------------------------------------------------------------------------
# InceptionD forward
# ----------------------------------------------------------------------------
def inception_d(x_nchw, params):
    x = jnp.transpose(x_nchw, (0, 2, 3, 1))           # NCHW -> NHWC once

    # Both branch heads are 1x1 convs (Cout=32 each) on the same input:
    # fuse into a single 64-wide matmul so MXU lanes are not 75% padding.
    b3, b7 = fused_1x1_heads(x, [params["b3_1"], params["b7_1"]])

    b3 = conv_bn_relu(b3, params["b3_2"], stride=(2, 2))           # 32 -> 64, /2

    b7 = conv_bn_relu(b7, params["b7_2"], padding=(0, 3))          # 1x7, 32 -> 64
    b7 = conv_bn_relu(b7, params["b7_3"], padding=(3, 0))          # 7x1, 64 -> 128
    b7 = conv_bn_relu(b7, params["b7_4"], stride=(2, 2))           # 3x3, 128 -> 192, /2

    bp = max_pool3_s2(x)                                           # Cin, /2

    out = jnp.concatenate([b3, b7, bp], axis=-1)      # channel concat (NHWC)
    return jnp.transpose(out, (0, 3, 1, 2))           # NHWC -> NCHW once


# ----------------------------------------------------------------------------
# Deterministic parameter init (truncnorm(-2, 2) * 0.1, BN gamma=1 / beta=0,
# running mean=0 / var=1 -> eval-mode BN).
# ----------------------------------------------------------------------------
def init_params(key, in_channels):
    keys = iter(jax.random.split(key, 16))

    def bc(cin, cout, kh, kw):
        w = 0.1 * jax.random.truncated_normal(
            next(keys), -2.0, 2.0, (cout, cin, kh, kw), jnp.float32
        )
        return {
            "w": w,
            "gamma": jnp.ones((cout,), jnp.float32),
            "beta": jnp.zeros((cout,), jnp.float32),
            "mean": jnp.zeros((cout,), jnp.float32),
            "var": jnp.ones((cout,), jnp.float32),
        }

    return {
        "b3_1": bc(in_channels, 32, 1, 1),
        "b3_2": bc(32, 64, 3, 3),
        "b7_1": bc(in_channels, 32, 1, 1),
        "b7_2": bc(32, 64, 1, 7),
        "b7_3": bc(64, 128, 7, 1),
        "b7_4": bc(128, 192, 3, 3),
    }


if __name__ == "__main__":
    root = jax.random.PRNGKey(0)
    k_param, k_x = jax.random.split(root)

    in_channels = 64
    params = init_params(k_param, in_channels)

    # Small NCHW input: batch=2, 64 channels, 16x16 spatial.
    x = jax.random.normal(k_x, (2, in_channels, 16, 16), jnp.float32)

    fwd = jax.jit(lambda inp: inception_d(inp, params))
    out = fwd(x)
    jax.block_until_ready(out)

    # Channels: 64 (branch3x3) + 192 (branch7x7x3) + in_channels (pool branch).
    assert out.shape == (2, 64 + 192 + in_channels, 7, 7), out.shape
    print("KERNEL_OK")
</pallas_src>

<mosaic_0001>
module attributes {stable_mosaic.version = 11 : i64} {
  func.func @_matmul_shift_kernel(%arg0: i32, %arg1: i32, %arg2: i32, %arg3: memref<512x128xbf16, #tpu.memory_space<vmem>>, %arg4: memref<128x128xbf16, #tpu.memory_space<vmem>>, %arg5: memref<1x128xf32, #tpu.memory_space<vmem>>, %arg6: memref<512x128xf32, #tpu.memory_space<vmem>>, %arg7: memref<512x128xf32, #tpu.memory_space<vmem>>) attributes {dimension_semantics = [#tpu.dimension_semantics<parallel>, #tpu.dimension_semantics<parallel>, #tpu.dimension_semantics<arbitrary>], iteration_bounds = array<i64: 1, 1, 1>, scalar_prefetch = 0 : i64, scratch_operands = 1 : i64, tpu.core_type = #tpu.core_type<tc>, window_params = [{transform_indices = @transform_0, window_bounds = array<i64: 512, 128>}, {transform_indices = @transform_1, window_bounds = array<i64: 128, 128>}, {transform_indices = @transform_2, window_bounds = array<i64: 1, 128>}, {transform_indices = @transform_3, window_bounds = array<i64: 512, 128>}]} {
    %c0_i32 = arith.constant 0 : i32
    %0 = arith.cmpi eq, %arg2, %c0_i32 : i32
    %1 = arith.extui %0 : i1 to i32
    %c0_i32_0 = arith.constant 0 : i32
    %2 = arith.cmpi ne, %1, %c0_i32_0 : i32
    scf.if %2 {
      %cst_10 = arith.constant 0.000000e+00 : f32
      %12 = vector.broadcast %cst_10 : f32 to vector<512x128xf32>
      %c0_11 = arith.constant 0 : index
      %c0_12 = arith.constant 0 : index
      %13 = vector.load %arg7[%c0_11, %c0_12] : memref<512x128xf32, #tpu.memory_space<vmem>>, vector<512x128xf32>
      tpu.vector_store %arg7[%c0_11, %c0_12], %12 {strides = array<i32>} : memref<512x128xf32, #tpu.memory_space<vmem>>, vector<512x128xf32>,
    } else {
    }
    %c0 = arith.constant 0 : index
    %c0_1 = arith.constant 0 : index
    %3 = vector.load %arg7[%c0, %c0_1] : memref<512x128xf32, #tpu.memory_space<vmem>>, vector<512x128xf32>
    %c0_2 = arith.constant 0 : index
    %c0_3 = arith.constant 0 : index
    %4 = vector.load %arg3[%c0_2, %c0_3] : memref<512x128xbf16, #tpu.memory_space<vmem>>, vector<512x128xbf16>
    %c0_4 = arith.constant 0 : index
    %c0_5 = arith.constant 0 : index
    %5 = vector.load %arg4[%c0_4, %c0_5] : memref<128x128xbf16, #tpu.memory_space<vmem>>, vector<128x128xbf16>
    %cst = arith.constant dense<0.000000e+00> : vector<512x128xf32>
    %6 = tpu.matmul %4, %5, %cst {dimension_numbers = #tpu.dot_dimension_numbers<[1], [0], [0], [1], [0, 0, 1, 1], [], []>} : vector<512x128xbf16>, vector<128x128xbf16>, vector<512x128xf32> -> vector<512x128xf32>
    %7 = arith.addf %3, %6 : vector<512x128xf32>
    %c0_6 = arith.constant 0 : index
    %c0_7 = arith.constant 0 : index
    %8 = vector.load %arg7[%c0_6, %c0_7] : memref<512x128xf32, #tpu.memory_space<vmem>>, vector<512x128xf32>
    tpu.vector_store %arg7[%c0_6, %c0_7], %7 {strides = array<i32>} : memref<512x128xf32, #tpu.memory_space<vmem>>, vector<512x128xf32>,
    %c0_i32_8 = arith.constant 0 : i32
    %9 = arith.cmpi eq, %arg2, %c0_i32_8 : i32
    %10 = arith.extui %9 : i1 to i32
    %c0_i32_9 = arith.constant 0 : i32
    %11 = arith.cmpi ne, %10, %c0_i32_9 : i32
    scf.if %11 {
      %c0_10 = arith.constant 0 : index
      %c0_11 = arith.constant 0 : index
      %12 = vector.load %arg7[%c0_10, %c0_11] : memref<512x128xf32, #tpu.memory_space<vmem>>, vector<512x128xf32>
      %c0_12 = arith.constant 0 : index
      %c0_13 = arith.constant 0 : index
      %13 = vector.load %arg5[%c0_12, %c0_13] : memref<1x128xf32, #tpu.memory_space<vmem>>, vector<1x128xf32>
      %14 = vector.broadcast %13 : vector<1x128xf32> to vector<512x128xf32>
      %15 = arith.addf %12, %14 : vector<512x128xf32>
      %cst_14 = arith.constant 0.000000e+00 : f32
      %16 = vector.broadcast %cst_14 : f32 to vector<512x128xf32>
      %17 = arith.maximumf %15, %16 : vector<512x128xf32>
      %c0_15 = arith.constant 0 : index
      %c0_16 = arith.constant 0 : index
      %18 = vector.load %arg6[%c0_15, %c0_16] : memref<512x128xf32, #tpu.memory_space<vmem>>, vector<512x128xf32>
      tpu.vector_store %arg6[%c0_15, %c0_16], %17 {strides = array<i32>} : memref<512x128xf32, #tpu.memory_space<vmem>>, vector<512x128xf32>,
    } else {
    }
    return
  }
  func.func @transform_0(%arg0: i32, %arg1: i32, %arg2: i32) -> (i32, i32) {
    %c0_i32 = arith.constant 0 : i32
    return %arg0, %arg2 : i32, i32
  }
  func.func @transform_1(%arg0: i32, %arg1: i32, %arg2: i32) -> (i32, i32) {
    %c0_i32 = arith.constant 0 : i32
    return %arg2, %arg1 : i32, i32
  }
  func.func @transform_2(%arg0: i32, %arg1: i32, %arg2: i32) -> (i32, i32) {
    %c0_i32 = arith.constant 0 : i32
    %c0_i32_0 = arith.constant 0 : i32
    return %c0_i32, %arg1 : i32, i32
  }
  func.func @transform_3(%arg0: i32, %arg1: i32, %arg2: i32) -> (i32, i32) {
    %c0_i32 = arith.constant 0 : i32
    return %arg0, %arg1 : i32, i32
  }
}

module attributes {stable_mosaic.version = 11 : i64} {
  func.func @_matmul_shift_kernel(%arg0: i32, %arg1: i32, %arg2: i32, %arg3: memref<512x256xbf16, #tpu.memory_space<vmem>>, %arg4: memref<256x128xbf16, #tpu.memory_space<vmem>>, %arg5: memref<1x128xf32, #tpu.memory_space<vmem>>, %arg6: memref<512x128xf32, #tpu.memory_space<vmem>>, %arg7: memref<512x128xf32, #tpu.memory_space<vmem>>) attributes {dimension_semantics = [#tpu.dimension_semantics<parallel>, #tpu.dimension_semantics<parallel>, #tpu.dimension_semantics<arbitrary>], iteration_bounds = array<i64: 1, 1, 1>, scalar_prefetch = 0 : i64, scratch_operands = 1 : i64, tpu.core_type = #tpu.core_type<tc>, window_params = [{transform_indices = @transform_0, window_bounds = array<i64: 512, 256>}, {transform_indices = @transform_1, window_bounds = array<i64: 256, 128>}, {transform_indices = @transform_2, window_bounds = array<i64: 1, 128>}, {transform_indices = @transform_3, window_bounds = array<i64: 512, 128>}]} {
    %c0_i32 = arith.constant 0 : i32
    %0 = arith.cmpi eq, %arg2, %c0_i32 : i32
    %1 = arith.extui %0 : i1 to i32
    %c0_i32_0 = arith.constant 0 : i32
    %2 = arith.cmpi ne, %1, %c0_i32_0 : i32
    scf.if %2 {
      %cst_10 = arith.constant 0.000000e+00 : f32
      %12 = vector.broadcast %cst_10 : f32 to vector<512x128xf32>
      %c0_11 = arith.constant 0 : index
      %c0_12 = arith.constant 0 : index
      %13 = vector.load %arg7[%c0_11, %c0_12] : memref<512x128xf32, #tpu.memory_space<vmem>>, vector<512x128xf32>
      tpu.vector_store %arg7[%c0_11, %c0_12], %12 {strides = array<i32>} : memref<512x128xf32, #tpu.memory_space<vmem>>, vector<512x128xf32>,
    } else {
    }
    %c0 = arith.constant 0 : index
    %c0_1 = arith.constant 0 : index
    %3 = vector.load %arg7[%c0, %c0_1] : memref<512x128xf32, #tpu.memory_space<vmem>>, vector<512x128xf32>
    %c0_2 = arith.constant 0 : index
    %c0_3 = arith.constant 0 : index
    %4 = vector.load %arg3[%c0_2, %c0_3] : memref<512x256xbf16, #tpu.memory_space<vmem>>, vector<512x256xbf16>
    %c0_4 = arith.constant 0 : index
    %c0_5 = arith.constant 0 : index
    %5 = vector.load %arg4[%c0_4, %c0_5] : memref<256x128xbf16, #tpu.memory_space<vmem>>, vector<256x128xbf16>
    %cst = arith.constant dense<0.000000e+00> : vector<512x128xf32>
    %6 = tpu.matmul %4, %5, %cst {dimension_numbers = #tpu.dot_dimension_numbers<[1], [0], [0], [1], [0, 0, 1, 1], [], []>} : vector<512x256xbf16>, vector<256x128xbf16>, vector<512x128xf32> -> vector<512x128xf32>
    %7 = arith.addf %3, %6 : vector<512x128xf32>
    %c0_6 = arith.constant 0 : index
    %c0_7 = arith.constant 0 : index
    %8 = vector.load %arg7[%c0_6, %c0_7] : memref<512x128xf32, #tpu.memory_space<vmem>>, vector<512x128xf32>
    tpu.vector_store %arg7[%c0_6, %c0_7], %7 {strides = array<i32>} : memref<512x128xf32, #tpu.memory_space<vmem>>, vector<512x128xf32>,
    %c0_i32_8 = arith.constant 0 : i32
    %9 = arith.cmpi eq, %arg2, %c0_i32_8 : i32
    %10 = arith.extui %9 : i1 to i32
    %c0_i32_9 = arith.constant 0 : i32
    %11 = arith.cmpi ne, %10, %c0_i32_9 : i32
    scf.if %11 {
      %c0_10 = arith.constant 0 : index
      %c0_11 = arith.constant 0 : index
      %12 = vector.load %arg7[%c0_10, %c0_11] : memref<512x128xf32, #tpu.memory_space<vmem>>, vector<512x128xf32>
      %c0_12 = arith.constant 0 : index
      %c0_13 = arith.constant 0 : index
      %13 = vector.load %arg5[%c0_12, %c0_13] : memref<1x128xf32, #tpu.memory_space<vmem>>, vector<1x128xf32>
      %14 = vector.broadcast %13 : vector<1x128xf32> to vector<512x128xf32>
      %15 = arith.addf %12, %14 : vector<512x128xf32>
      %cst_14 = arith.constant 0.000000e+00 : f32
      %16 = vector.broadcast %cst_14 : f32 to vector<512x128xf32>
      %17 = arith.maximumf %15, %16 : vector<512x128xf32>
      %c0_15 = arith.constant 0 : index
      %c0_16 = arith.constant 0 : index
      %18 = vector.load %arg6[%c0_15, %c0_16] : memref<512x128xf32, #tpu.memory_space<vmem>>, vector<512x128xf32>
      tpu.vector_store %arg6[%c0_15, %c0_16], %17 {strides = array<i32>} : memref<512x128xf32, #tpu.memory_space<vmem>>, vector<512x128xf32>,
    } else {
    }
    return
  }
  func.func @transform_0(%arg0: i32, %arg1: i32, %arg2: i32) -> (i32, i32) {
    %c0_i32 = arith.constant 0 : i32
    return %arg0, %arg2 : i32, i32
  }
  func.func @transform_1(%arg0: i32, %arg1: i32, %arg2: i32) -> (i32, i32) {
    %c0_i32 = arith.constant 0 : i32
    return %arg2, %arg1 : i32, i32
  }
  func.func @transform_2(%arg0: i32, %arg1: i32, %arg2: i32) -> (i32, i32) {
    %c0_i32 = arith.constant 0 : i32
    %c0_i32_0 = arith.constant 0 : i32
    return %c0_i32, %arg1 : i32, i32
  }
  func.func @transform_3(%arg0: i32, %arg1: i32, %arg2: i32) -> (i32, i32) {
    %c0_i32 = arith.constant 0 : i32
    return %arg0, %arg1 : i32, i32
  }
}

module attributes {stable_mosaic.version = 11 : i64} {
  func.func @_matmul_shift_kernel(%arg0: i32, %arg1: i32, %arg2: i32, %arg3: memref<512x512xbf16, #tpu.memory_space<vmem>>, %arg4: memref<512x128xbf16, #tpu.memory_space<vmem>>, %arg5: memref<1x128xf32, #tpu.memory_space<vmem>>, %arg6: memref<512x128xf32, #tpu.memory_space<vmem>>, %arg7: memref<512x128xf32, #tpu.memory_space<vmem>>) attributes {dimension_semantics = [#tpu.dimension_semantics<parallel>, #tpu.dimension_semantics<parallel>, #tpu.dimension_semantics<arbitrary>], iteration_bounds = array<i64: 1, 1, 1>, scalar_prefetch = 0 : i64, scratch_operands = 1 : i64, tpu.core_type = #tpu.core_type<tc>, window_params = [{transform_indices = @transform_0, window_bounds = array<i64: 512, 512>}, {transform_indices = @transform_1, window_bounds = array<i64: 512, 128>}, {transform_indices = @transform_2, window_bounds = array<i64: 1, 128>}, {transform_indices = @transform_3, window_bounds = array<i64: 512, 128>}]} {
    %c0_i32 = arith.constant 0 : i32
    %0 = arith.cmpi eq, %arg2, %c0_i32 : i32
    %1 = arith.extui %0 : i1 to i32
    %c0_i32_0 = arith.constant 0 : i32
    %2 = arith.cmpi ne, %1, %c0_i32_0 : i32
    scf.if %2 {
      %cst_10 = arith.constant 0.000000e+00 : f32
      %12 = vector.broadcast %cst_10 : f32 to vector<512x128xf32>
      %c0_11 = arith.constant 0 : index
      %c0_12 = arith.constant 0 : index
      %13 = vector.load %arg7[%c0_11, %c0_12] : memref<512x128xf32, #tpu.memory_space<vmem>>, vector<512x128xf32>
      tpu.vector_store %arg7[%c0_11, %c0_12], %12 {strides = array<i32>} : memref<512x128xf32, #tpu.memory_space<vmem>>, vector<512x128xf32>,
    } else {
    }
    %c0 = arith.constant 0 : index
    %c0_1 = arith.constant 0 : index
    %3 = vector.load %arg7[%c0, %c0_1] : memref<512x128xf32, #tpu.memory_space<vmem>>, vector<512x128xf32>
    %c0_2 = arith.constant 0 : index
    %c0_3 = arith.constant 0 : index
    %4 = vector.load %arg3[%c0_2, %c0_3] : memref<512x512xbf16, #tpu.memory_space<vmem>>, vector<512x512xbf16>
    %c0_4 = arith.constant 0 : index
    %c0_5 = arith.constant 0 : index
    %5 = vector.load %arg4[%c0_4, %c0_5] : memref<512x128xbf16, #tpu.memory_space<vmem>>, vector<512x128xbf16>
    %cst = arith.constant dense<0.000000e+00> : vector<512x128xf32>
    %6 = tpu.matmul %4, %5, %cst {dimension_numbers = #tpu.dot_dimension_numbers<[1], [0], [0], [1], [0, 0, 1, 1], [], []>} : vector<512x512xbf16>, vector<512x128xbf16>, vector<512x128xf32> -> vector<512x128xf32>
    %7 = arith.addf %3, %6 : vector<512x128xf32>
    %c0_6 = arith.constant 0 : index
    %c0_7 = arith.constant 0 : index
    %8 = vector.load %arg7[%c0_6, %c0_7] : memref<512x128xf32, #tpu.memory_space<vmem>>, vector<512x128xf32>
    tpu.vector_store %arg7[%c0_6, %c0_7], %7 {strides = array<i32>} : memref<512x128xf32, #tpu.memory_space<vmem>>, vector<512x128xf32>,
    %c0_i32_8 = arith.constant 0 : i32
    %9 = arith.cmpi eq, %arg2, %c0_i32_8 : i32
    %10 = arith.extui %9 : i1 to i32
    %c0_i32_9 = arith.constant 0 : i32
    %11 = arith.cmpi ne, %10, %c0_i32_9 : i32
    scf.if %11 {
      %c0_10 = arith.constant 0 : index
      %c0_11 = arith.constant 0 : index
      %12 = vector.load %arg7[%c0_10, %c0_11] : memref<512x128xf32, #tpu.memory_space<vmem>>, vector<512x128xf32>
      %c0_12 = arith.constant 0 : index
      %c0_13 = arith.constant 0 : index
      %13 = vector.load %arg5[%c0_12, %c0_13] : memref<1x128xf32, #tpu.memory_space<vmem>>, vector<1x128xf32>
      %14 = vector.broadcast %13 : vector<1x128xf32> to vector<512x128xf32>
      %15 = arith.addf %12, %14 : vector<512x128xf32>
      %cst_14 = arith.constant 0.000000e+00 : f32
      %16 = vector.broadcast %cst_14 : f32 to vector<512x128xf32>
      %17 = arith.maximumf %15, %16 : vector<512x128xf32>
      %c0_15 = arith.constant 0 : index
      %c0_16 = arith.constant 0 : index
      %18 = vector.load %arg6[%c0_15, %c0_16] : memref<512x128xf32, #tpu.memory_space<vmem>>, vector<512x128xf32>
      tpu.vector_store %arg6[%c0_15, %c0_16], %17 {strides = array<i32>} : memref<512x128xf32, #tpu.memory_space<vmem>>, vector<512x128xf32>,
    } else {
    }
    return
  }
  func.func @transform_0(%arg0: i32, %arg1: i32, %arg2: i32) -> (i32, i32) {
    %c0_i32 = arith.constant 0 : i32
    return %arg0, %arg2 : i32, i32
  }
  func.func @transform_1(%arg0: i32, %arg1: i32, %arg2: i32) -> (i32, i32) {
    %c0_i32 = arith.constant 0 : i32
    return %arg2, %arg1 : i32, i32
  }
  func.func @transform_2(%arg0: i32, %arg1: i32, %arg2: i32) -> (i32, i32) {
    %c0_i32 = arith.constant 0 : i32
    %c0_i32_0 = arith.constant 0 : i32
    return %c0_i32, %arg1 : i32, i32
  }
  func.func @transform_3(%arg0: i32, %arg1: i32, %arg2: i32) -> (i32, i32) {
    %c0_i32 = arith.constant 0 : i32
    return %arg0, %arg1 : i32, i32
  }
}

module attributes {stable_mosaic.version = 11 : i64} {
  func.func @_matmul_shift_kernel(%arg0: i32, %arg1: i32, %arg2: i32, %arg3: memref<104x384xbf16, #tpu.memory_space<vmem>>, %arg4: memref<384x256xbf16, #tpu.memory_space<vmem>>, %arg5: memref<1x256xf32, #tpu.memory_space<vmem>>, %arg6: memref<104x256xf32, #tpu.memory_space<vmem>>, %arg7: memref<104x256xf32, #tpu.memory_space<vmem>>) attributes {dimension_semantics = [#tpu.dimension_semantics<parallel>, #tpu.dimension_semantics<parallel>, #tpu.dimension_semantics<arbitrary>], iteration_bounds = array<i64: 1, 1, 3>, scalar_prefetch = 0 : i64, scratch_operands = 1 : i64, tpu.core_type = #tpu.core_type<tc>, window_params = [{transform_indices = @transform_0, window_bounds = array<i64: 104, 384>}, {transform_indices = @transform_1, window_bounds = array<i64: 384, 256>}, {transform_indices = @transform_2, window_bounds = array<i64: 1, 256>}, {transform_indices = @transform_3, window_bounds = array<i64: 104, 256>}]} {
    %c0_i32 = arith.constant 0 : i32
    %0 = arith.cmpi eq, %arg2, %c0_i32 : i32
    %1 = arith.extui %0 : i1 to i32
    %c0_i32_0 = arith.constant 0 : i32
    %2 = arith.cmpi ne, %1, %c0_i32_0 : i32
    scf.if %2 {
      %cst_9 = arith.constant 0.000000e+00 : f32
      %12 = vector.broadcast %cst_9 : f32 to vector<104x256xf32>
      %c0_10 = arith.constant 0 : index
      %c0_11 = arith.constant 0 : index
      %13 = vector.load %arg7[%c0_10, %c0_11] : memref<104x256xf32, #tpu.memory_space<vmem>>, vector<104x256xf32>
      tpu.vector_store %arg7[%c0_10, %c0_11], %12 {strides = array<i32>} : memref<104x256xf32, #tpu.memory_space<vmem>>, vector<104x256xf32>,
    } else {
    }
    %c0 = arith.constant 0 : index
    %c0_1 = arith.constant 0 : index
    %3 = vector.load %arg7[%c0, %c0_1] : memref<104x256xf32, #tpu.memory_space<vmem>>, vector<104x256xf32>
    %c0_2 = arith.constant 0 : index
    %c0_3 = arith.constant 0 : index
    %4 = vector.load %arg3[%c0_2, %c0_3] : memref<104x384xbf16, #tpu.memory_space<vmem>>, vector<104x384xbf16>
    %c0_4 = arith.constant 0 : index
    %c0_5 = arith.constant 0 : index
    %5 = vector.load %arg4[%c0_4, %c0_5] : memref<384x256xbf16, #tpu.memory_space<vmem>>, vector<384x256xbf16>
    %cst = arith.constant dense<0.000000e+00> : vector<104x256xf32>
    %6 = tpu.matmul %4, %5, %cst {dimension_numbers = #tpu.dot_dimension_numbers<[1], [0], [0], [1], [0, 0, 1, 1], [], []>} : vector<104x384xbf16>, vector<384x256xbf16>, vector<104x256xf32> -> vector<104x256xf32>
    %7 = arith.addf %3, %6 : vector<104x256xf32>
    %c0_6 = arith.constant 0 : index
    %c0_7 = arith.constant 0 : index
    %8 = vector.load %arg7[%c0_6, %c0_7] : memref<104x256xf32, #tpu.memory_space<vmem>>, vector<104x256xf32>
    tpu.vector_store %arg7[%c0_6, %c0_7], %7 {strides = array<i32>} : memref<104x256xf32, #tpu.memory_space<vmem>>, vector<104x256xf32>,
    %c2_i32 = arith.constant 2 : i32
    %9 = arith.cmpi eq, %arg2, %c2_i32 : i32
    %10 = arith.extui %9 : i1 to i32
    %c0_i32_8 = arith.constant 0 : i32
    %11 = arith.cmpi ne, %10, %c0_i32_8 : i32
    scf.if %11 {
      %c0_9 = arith.constant 0 : index
      %c0_10 = arith.constant 0 : index
      %12 = vector.load %arg7[%c0_9, %c0_10] : memref<104x256xf32, #tpu.memory_space<vmem>>, vector<104x256xf32>
      %c0_11 = arith.constant 0 : index
      %c0_12 = arith.constant 0 : index
      %13 = vector.load %arg5[%c0_11, %c0_12] : memref<1x256xf32, #tpu.memory_space<vmem>>, vector<1x256xf32>
      %14 = vector.broadcast %13 : vector<1x256xf32> to vector<104x256xf32>
      %15 = arith.addf %12, %14 : vector<104x256xf32>
      %cst_13 = arith.constant 0.000000e+00 : f32
      %16 = vector.broadcast %cst_13 : f32 to vector<104x256xf32>
      %17 = arith.maximumf %15, %16 : vector<104x256xf32>
      %c0_14 = arith.constant 0 : index
      %c0_15 = arith.constant 0 : index
      %18 = vector.load %arg6[%c0_14, %c0_15] : memref<104x256xf32, #tpu.memory_space<vmem>>, vector<104x256xf32>
      tpu.vector_store %arg6[%c0_14, %c0_15], %17 {strides = array<i32>} : memref<104x256xf32, #tpu.memory_space<vmem>>, vector<104x256xf32>,
    } else {
    }
    return
  }
  func.func @transform_0(%arg0: i32, %arg1: i32, %arg2: i32) -> (i32, i32) {
    %c0_i32 = arith.constant 0 : i32
    return %arg0, %arg2 : i32, i32
  }
  func.func @transform_1(%arg0: i32, %arg1: i32, %arg2: i32) -> (i32, i32) {
    %c0_i32 = arith.constant 0 : i32
    return %arg2, %arg1 : i32, i32
  }
  func.func @transform_2(%arg0: i32, %arg1: i32, %arg2: i32) -> (i32, i32) {
    %c0_i32 = arith.constant 0 : i32
    %c0_i32_0 = arith.constant 0 : i32
    return %c0_i32, %arg1 : i32, i32
  }
  func.func @transform_3(%arg0: i32, %arg1: i32, %arg2: i32) -> (i32, i32) {
    %c0_i32 = arith.constant 0 : i32
    return %arg0, %arg1 : i32, i32
  }
}

module attributes {stable_mosaic.version = 11 : i64} {
  func.func @_matmul_shift_kernel(%arg0: i32, %arg1: i32, %arg2: i32, %arg3: memref<104x384xbf16, #tpu.memory_space<vmem>>, %arg4: memref<384x128xbf16, #tpu.memory_space<vmem>>, %arg5: memref<1x128xf32, #tpu.memory_space<vmem>>, %arg6: memref<104x128xf32, #tpu.memory_space<vmem>>, %arg7: memref<104x128xf32, #tpu.memory_space<vmem>>) attributes {dimension_semantics = [#tpu.dimension_semantics<parallel>, #tpu.dimension_semantics<parallel>, #tpu.dimension_semantics<arbitrary>], iteration_bounds = array<i64: 1, 1, 1>, scalar_prefetch = 0 : i64, scratch_operands = 1 : i64, tpu.core_type = #tpu.core_type<tc>, window_params = [{transform_indices = @transform_0, window_bounds = array<i64: 104, 384>}, {transform_indices = @transform_1, window_bounds = array<i64: 384, 128>}, {transform_indices = @transform_2, window_bounds = array<i64: 1, 128>}, {transform_indices = @transform_3, window_bounds = array<i64: 104, 128>}]} {
    %c0_i32 = arith.constant 0 : i32
    %0 = arith.cmpi eq, %arg2, %c0_i32 : i32
    %1 = arith.extui %0 : i1 to i32
    %c0_i32_0 = arith.constant 0 : i32
    %2 = arith.cmpi ne, %1, %c0_i32_0 : i32
    scf.if %2 {
      %cst_10 = arith.constant 0.000000e+00 : f32
      %12 = vector.broadcast %cst_10 : f32 to vector<104x128xf32>
      %c0_11 = arith.constant 0 : index
      %c0_12 = arith.constant 0 : index
      %13 = vector.load %arg7[%c0_11, %c0_12] : memref<104x128xf32, #tpu.memory_space<vmem>>, vector<104x128xf32>
      tpu.vector_store %arg7[%c0_11, %c0_12], %12 {strides = array<i32>} : memref<104x128xf32, #tpu.memory_space<vmem>>, vector<104x128xf32>,
    } else {
    }
    %c0 = arith.constant 0 : index
    %c0_1 = arith.constant 0 : index
    %3 = vector.load %arg7[%c0, %c0_1] : memref<104x128xf32, #tpu.memory_space<vmem>>, vector<104x128xf32>
    %c0_2 = arith.constant 0 : index
    %c0_3 = arith.constant 0 : index
    %4 = vector.load %arg3[%c0_2, %c0_3] : memref<104x384xbf16, #tpu.memory_space<vmem>>, vector<104x384xbf16>
    %c0_4 = arith.constant 0 : index
    %c0_5 = arith.constant 0 : index
    %5 = vector.load %arg4[%c0_4, %c0_5] : memref<384x128xbf16, #tpu.memory_space<vmem>>, vector<384x128xbf16>
    %cst = arith.constant dense<0.000000e+00> : vector<104x128xf32>
    %6 = tpu.matmul %4, %5, %cst {dimension_numbers = #tpu.dot_dimension_numbers<[1], [0], [0], [1], [0, 0, 1, 1], [], []>} : vector<104x384xbf16>, vector<384x128xbf16>, vector<104x128xf32> -> vector<104x128xf32>
    %7 = arith.addf %3, %6 : vector<104x128xf32>
    %c0_6 = arith.constant 0 : index
    %c0_7 = arith.constant 0 : index
    %8 = vector.load %arg7[%c0_6, %c0_7] : memref<104x128xf32, #tpu.memory_space<vmem>>, vector<104x128xf32>
    tpu.vector_store %arg7[%c0_6, %c0_7], %7 {strides = array<i32>} : memref<104x128xf32, #tpu.memory_space<vmem>>, vector<104x128xf32>,
    %c0_i32_8 = arith.constant 0 : i32
    %9 = arith.cmpi eq, %arg2, %c0_i32_8 : i32
    %10 = arith.extui %9 : i1 to i32
    %c0_i32_9 = arith.constant 0 : i32
    %11 = arith.cmpi ne, %10, %c0_i32_9 : i32
    scf.if %11 {
      %c0_10 = arith.constant 0 : index
      %c0_11 = arith.constant 0 : index
      %12 = vector.load %arg7[%c0_10, %c0_11] : memref<104x128xf32, #tpu.memory_space<vmem>>, vector<104x128xf32>
      %c0_12 = arith.constant 0 : index
      %c0_13 = arith.constant 0 : index
      %13 = vector.load %arg5[%c0_12, %c0_13] : memref<1x128xf32, #tpu.memory_space<vmem>>, vector<1x128xf32>
      %14 = vector.broadcast %13 : vector<1x128xf32> to vector<104x128xf32>
      %15 = arith.addf %12, %14 : vector<104x128xf32>
      %cst_14 = arith.constant 0.000000e+00 : f32
      %16 = vector.broadcast %cst_14 : f32 to vector<104x128xf32>
      %17 = arith.maximumf %15, %16 : vector<104x128xf32>
      %c0_15 = arith.constant 0 : index
      %c0_16 = arith.constant 0 : index
      %18 = vector.load %arg6[%c0_15, %c0_16] : memref<104x128xf32, #tpu.memory_space<vmem>>, vector<104x128xf32>
      tpu.vector_store %arg6[%c0_15, %c0_16], %17 {strides = array<i32>} : memref<104x128xf32, #tpu.memory_space<vmem>>, vector<104x128xf32>,
    } else {
    }
    return
  }
  func.func @transform_0(%arg0: i32, %arg1: i32, %arg2: i32) -> (i32, i32) {
    %c0_i32 = arith.constant 0 : i32
    return %arg0, %arg2 : i32, i32
  }
  func.func @transform_1(%arg0: i32, %arg1: i32, %arg2: i32) -> (i32, i32) {
    %c0_i32 = arith.constant 0 : i32
    return %arg2, %arg1 : i32, i32
  }
  func.func @transform_2(%arg0: i32, %arg1: i32, %arg2: i32) -> (i32, i32) {
    %c0_i32 = arith.constant 0 : i32
    %c0_i32_0 = arith.constant 0 : i32
    return %c0_i32, %arg1 : i32, i32
  }
  func.func @transform_3(%arg0: i32, %arg1: i32, %arg2: i32) -> (i32, i32) {
    %c0_i32 = arith.constant 0 : i32
    return %arg0, %arg1 : i32, i32
  }
}

module attributes {stable_mosaic.version = 11 : i64} {
  func.func @_max_window_kernel(%arg0: i32, %arg1: memref<9x104x128xf32, #tpu.memory_space<vmem>>, %arg2: memref<104x128xf32, #tpu.memory_space<vmem>>) attributes {dimension_semantics = [#tpu.dimension_semantics<parallel>], iteration_bounds = array<i64: 1>, scalar_prefetch = 0 : i64, scratch_operands = 0 : i64, tpu.core_type = #tpu.core_type<tc>, window_params = [{transform_indices = @transform_0, window_bounds = array<i64: 9, 104, 128>}, {transform_indices = @transform_1, window_bounds = array<i64: 104, 128>}]} {
    %c0 = arith.constant 0 : index
    %c0_0 = arith.constant 0 : index
    %c0_1 = arith.constant 0 : index
    %0 = vector.load %arg1[%c0, %c0_0, %c0_1] : memref<9x104x128xf32, #tpu.memory_space<vmem>>, vector<9x104x128xf32>
    %cst = arith.constant dense<0xFF800000> : vector<104x128xf32>
    %1 = vector.multi_reduction <maximumf>, %0, %cst [0] : vector<9x104x128xf32> to vector<104x128xf32>
    %c0_2 = arith.constant 0 : index
    %c0_3 = arith.constant 0 : index
    %2 = vector.load %arg2[%c0_2, %c0_3] : memref<104x128xf32, #tpu.memory_space<vmem>>, vector<104x128xf32>
    tpu.vector_store %arg2[%c0_2, %c0_3], %1 {strides = array<i32>} : memref<104x128xf32, #tpu.memory_space<vmem>>, vector<104x128xf32>,
    return
  }
  func.func @transform_0(%arg0: i32) -> (i32, i32, i32) {
    %c0_i32 = arith.constant 0 : i32
    %c0_i32_0 = arith.constant 0 : i32
    %c0_i32_1 = arith.constant 0 : i32
    return %c0_i32, %arg0, %c0_i32_0 : i32, i32, i32
  }
  func.func @transform_1(%arg0: i32) -> (i32, i32) {
    %c0_i32 = arith.constant 0 : i32
    %c0_i32_0 = arith.constant 0 : i32
    return %arg0, %c0_i32 : i32, i32
  }
}

</mosaic_0001>

<llo_original>
// kernel: _lambda_.6
$region0: #{_lambda_.6}
  #allocation0 [shape = 'u32[]', space=smem, size = 0x4, offset = 0x4, fixed_abs, tag = 'smem constant byte address 0x4 - core index']
  #allocation1 [shape = 'u32[144,128]{1,0:T(1,128)}', space=vmem, size = 0x12000, scoped, tag = 'internal scratch']
  #allocation2 [shape = 'f32[512,128]{1,0:T(8,128)}', space=vmem, size = 0x40000, scoped, tag = 'scratch operand']
  %s0 = inlined_call_operand.vmem [shape: bf16[512,128], index: 0, kind: input, shape index: {}]
  %s1 = inlined_call_operand.vmem [shape: bf16[128,128], index: 1, kind: input, shape index: {}]
  %s2 = inlined_call_operand.vmem [shape: f32[1,128], index: 2, kind: input, shape index: {}]
  %s3 = inlined_call_operand.vmem [shape: f32[512,128], index: 3, kind: output, shape index: {}]
  %s4 = sld [smem:[#allocation0]]
  $region30: #{_lambda_.6} parent=0
    _
  %s6 = ssub.s32 1, %s4
  %s7 = scalar_select 0, %s6, %s4
  // Predicated region
  $region2: #{_lambda_.6} parent=0 // pred_check
    _
  $region3: #{_lambda_.6} parent=0 // pred_check_branch
    %9 = sbr.rel (0) target = $region5
  $region4: #{_lambda_.6} parent=0 // pred_region
    _
  $region5: #{_lambda_.6} parent=0 // pred_fallthru
    _
  // Predicated region
  $region6: #{_lambda_.6} parent=0 // pred_check
    _
  $region7: #{_lambda_.6} parent=0 // pred_check_branch
    %11 = sbr.rel (0) target = $region9
  $region8: #{_lambda_.6} parent=0 // pred_region
    _
  $region9: #{_lambda_.6} parent=0 // pred_fallthru
    _
  // Predicated region
  $region10: #{_lambda_.6} parent=0 // pred_check
    _
  $region11: #{_lambda_.6} parent=0 // pred_check_branch
    %13 = sbr.rel (0) target = $region13
  $region12: #{_lambda_.6} parent=0 // pred_region
    _
  $region13: #{_lambda_.6} parent=0 // pred_fallthru
    _
  %p15 = scmp.eq.s32.totalorder 0, 0
  // Predicated region
  $region14: #{_lambda_.6} parent=0 // pred_check
    %p16 = pneg %p15
  $region15: #{_lambda_.6} parent=0 // pred_check_branch
    %18 = sbr.rel (%p16) target = $region17
  $region16: #{_lambda_.6} parent=0 // pred_region
    %19 = vst [vmem:[#allocation2] sm:$0xff] 0.0
    %20 = vst [vmem:[#allocation2 + $0x8] sm:$0xff] 0.0
    %21 = vst [vmem:[#allocation2 + $0x10] sm:$0xff] 0.0
    %22 = vst [vmem:[#allocation2 + $0x18] sm:$0xff] 0.0
    %23 = vst [vmem:[#allocation2 + $0x20] sm:$0xff] 0.0
    %24 = vst [vmem:[#allocation2 + $0x28] sm:$0xff] 0.0
    %25 = vst [vmem:[#allocation2 + $0x30] sm:$0xff] 0.0
    %26 = vst [vmem:[#allocation2 + $0x38] sm:$0xff] 0.0
    %27 = vst [vmem:[#allocation2 + $0x40] sm:$0xff] 0.0
    %28 = vst [vmem:[#allocation2 + $0x48] sm:$0xff] 0.0
    %29 = vst [vmem:[#allocation2 + $0x50] sm:$0xff] 0.0
    %30 = vst [vmem:[#allocation2 + $0x58] sm:$0xff] 0.0
    %31 = vst [vmem:[#allocation2 + $0x60] sm:$0xff] 0.0
    %32 = vst [vmem:[#allocation2 + $0x68] sm:$0xff] 0.0
    %33 = vst [vmem:[#allocation2 + $0x70] sm:$0xff] 0.0
    %34 = vst [vmem:[#allocation2 + $0x78] sm:$0xff] 0.0
    %35 = vst [vmem:[#allocation2 + $0x80] sm:$0xff] 0.0
    %36 = vst [vmem:[#allocation2 + $0x88] sm:$0xff] 0.0
    %37 = vst [vmem:[#allocation2 + $0x90] sm:$0xff] 0.0
    %38 = vst [vmem:[#allocation2 + $0x98] sm:$0xff] 0.0
    %39 = vst [vmem:[#allocation2 + $0xa0] sm:$0xff] 0.0
    %40 = vst [vmem:[#allocation2 + $0xa8] sm:$0xff] 0.0
    %41 = vst [vmem:[#allocation2 + $0xb0] sm:$0xff] 0.0
    %42 = vst [vmem:[#allocation2 + $0xb8] sm:$0xff] 0.0
    %43 = vst [vmem:[#allocation2 + $0xc0] sm:$0xff] 0.0
    %44 = vst [vmem:[#allocation2 + $0xc8] sm:$0xff] 0.0
    %45 = vst [vmem:[#allocation2 + $0xd0] sm:$0xff] 0.0
    %46 = vst [vmem:[#allocation2 + $0xd8] sm:$0xff] 0.0
    %47 = vst [vmem:[#allocation2 + $0xe0] sm:$0xff] 0.0
    %48 = vst [vmem:[#allocation2 + $0xe8] sm:$0xff] 0.0
    %49 = vst [vmem:[#allocation2 + $0xf0] sm:$0xff] 0.0
    %50 = vst [vmem:[#allocation2 + $0xf8] sm:$0xff] 0.0
    %51 = vst [vmem:[#allocation2 + $0x100] sm:$0xff] 0.0
    %52 = vst [vmem:[#allocation2 + $0x108] sm:$0xff] 0.0
    %53 = vst [vmem:[#allocation2 + $0x110] sm:$0xff] 0.0
    %54 = vst [vmem:[#allocation2 + $0x118] sm:$0xff] 0.0
    %55 = vst [vmem:[#allocation2 + $0x120] sm:$0xff] 0.0
    %56 = vst [vmem:[#allocation2 + $0x128] sm:$0xff] 0.0
    %57 = vst [vmem:[#allocation2 + $0x130] sm:$0xff] 0.0
    %58 = vst [vmem:[#allocation2 + $0x138] sm:$0xff] 0.0
    %59 = vst [vmem:[#allocation2 + $0x140] sm:$0xff] 0.0
    %60 = vst [vmem:[#allocation2 + $0x148] sm:$0xff] 0.0
    %61 = vst [vmem:[#allocation2 + $0x150] sm:$0xff] 0.0
    %62 = vst [vmem:[#allocation2 + $0x158] sm:$0xff] 0.0
    %63 = vst [vmem:[#allocation2 + $0x160] sm:$0xff] 0.0
    %64 = vst [vmem:[#allocation2 + $0x168] sm:$0xff] 0.0
    %65 = vst [vmem:[#allocation2 + $0x170] sm:$0xff] 0.0
    %66 = vst [vmem:[#allocation2 + $0x178] sm:$0xff] 0.0
    %67 = vst [vmem:[#allocation2 + $0x180] sm:$0xff] 0.0
    %68 = vst [vmem:[#allocation2 + $0x188] sm:$0xff] 0.0
    %69 = vst [vmem:[#allocation2 + $0x190] sm:$0xff] 0.0
    %70 = vst [vmem:[#allocation2 + $0x198] sm:$0xff] 0.0
    %71 = vst [vmem:[#allocation2 + $0x1a0] sm:$0xff] 0.0
    %72 = vst [vmem:[#allocation2 + $0x1a8] sm:$0xff] 0.0
    %73 = vst [vmem:[#allocation2 + $0x1b0] sm:$0xff] 0.0
    %74 = vst [vmem:[#allocation2 + $0x1b8] sm:$0xff] 0.0
    %75 = vst [vmem:[#allocation2 + $0x1c0] sm:$0xff] 0.0
    %76 = vst [vmem:[#allocation2 + $0x1c8] sm:$0xff] 0.0
    %77 = vst [vmem:[#allocation2 + $0x1d0] sm:$0xff] 0.0
    %78 = vst [vmem:[#allocation2 + $0x1d8] sm:$0xff] 0.0
    %79 = vst [vmem:[#allocation2 + $0x1e0] sm:$0xff] 0.0
    %80 = vst [vmem:[#allocation2 + $0x1e8] sm:$0xff] 0.0
    %81 = vst [vmem:[#allocation2 + $0x1f0] sm:$0xff] 0.0
    %82 = vst [vmem:[#allocation2 + $0x1f8] sm:$0xff] 0.0
  $region17: #{_lambda_.6} parent=0 // pred_fallthru
    _
  %v83 = vld [vmem:[#allocation2] sm:$0xff]
  %v84 = vld [vmem:[#allocation2 + $0x8] sm:$0xff]
  %v85 = vld [vmem:[#allocation2 + $0x10] sm:$0xff]
  %v86 = vld [vmem:[#allocation2 + $0x18] sm:$0xff]
  %v87 = vld [vmem:[#allocation2 + $0x20] sm:$0xff]
  %v88 = vld [vmem:[#allocation2 + $0x28] sm:$0xff]
  %v89 = vld [vmem:[#allocation2 + $0x30] sm:$0xff]
  %v90 = vld [vmem:[#allocation2 + $0x38] sm:$0xff]
  %v91 = vld [vmem:[#allocation2 + $0x40] sm:$0xff]
  %v92 = vld [vmem:[#allocation2 + $0x48] sm:$0xff]
  %v93 = vld [vmem:[#allocation2 + $0x50] sm:$0xff]
  %v94 = vld [vmem:[#allocation2 + $0x58] sm:$0xff]
  %v95 = vld [vmem:[#allocation2 + $0x60] sm:$0xff]
  %v96 = vld [vmem:[#allocation2 + $0x68] sm:$0xff]
  %v97 = vld [vmem:[#allocation2 + $0x70] sm:$0xff]
  %v98 = vld [vmem:[#allocation2 + $0x78] sm:$0xff]
  %v99 = vld [vmem:[#allocation2 + $0x80] sm:$0xff]
  %v100 = vld [vmem:[#allocation2 + $0x88] sm:$0xff]
  %v101 = vld [vmem:[#allocation2 + $0x90] sm:$0xff]
  %v102 = vld [vmem:[#allocation2 + $0x98] sm:$0xff]
  %v103 = vld [vmem:[#allocation2 + $0xa0] sm:$0xff]
  %v104 = vld [vmem:[#allocation2 + $0xa8] sm:$0xff]
  %v105 = vld [vmem:[#allocation2 + $0xb0] sm:$0xff]
  %v106 = vld [vmem:[#allocation2 + $0xb8] sm:$0xff]
  %v107 = vld [vmem:[#allocation2 + $0xc0] sm:$0xff]
  %v108 = vld [vmem:[#allocation2 + $0xc8] sm:$0xff]
  %v109 = vld [vmem:[#allocation2 + $0xd0] sm:$0xff]
  %v110 = vld [vmem:[#allocation2 + $0xd8] sm:$0xff]
  %v111 = vld [vmem:[#allocation2 + $0xe0] sm:$0xff]
  %v112 = vld [vmem:[#allocation2 + $0xe8] sm:$0xff]
  %v113 = vld [vmem:[#allocation2 + $0xf0] sm:$0xff]
  %v114 = vld [vmem:[#allocation2 + $0xf8] sm:$0xff]
  %v115 = vld [vmem:[#allocation2 + $0x100] sm:$0xff]
  %v116 = vld [vmem:[#allocation2 + $0x108] sm:$0xff]
  %v117 = vld [vmem:[#allocation2 + $0x110] sm:$0xff]
  %v118 = vld [vmem:[#allocation2 + $0x118] sm:$0xff]
  %v119 = vld [vmem:[#allocation2 + $0x120] sm:$0xff]
  %v120 = vld [vmem:[#allocation2 + $0x128] sm:$0xff]
  %v121 = vld [vmem:[#allocation2 + $0x130] sm:$0xff]
  %v122 = vld [vmem:[#allocation2 + $0x138] sm:$0xff]
  %v123 = vld [vmem:[#allocation2 + $0x140] sm:$0xff]
  %v124 = vld [vmem:[#allocation2 + $0x148] sm:$0xff]
  %v125 = vld [vmem:[#allocation2 + $0x150] sm:$0xff]
  %v126 = vld [vmem:[#allocation2 + $0x158] sm:$0xff]
  %v127 = vld [vmem:[#allocation2 + $0x160] sm:$0xff]
  %v128 = vld [vmem:[#allocation2 + $0x168] sm:$0xff]
  %v129 = vld [vmem:[#allocation2 + $0x170] sm:$0xff]
  %v130 = vld [vmem:[#allocation2 + $0x178] sm:$0xff]
  %v131 = vld [vmem:[#allocation2 + $0x180] sm:$0xff]
  %v132 = vld [vmem:[#allocation2 + $0x188] sm:$0xff]
  %v133 = vld [vmem:[#allocation2 + $0x190] sm:$0xff]
  %v134 = vld [vmem:[#allocation2 + $0x198] sm:$0xff]
  %v135 = vld [vmem:[#allocation2 + $0x1a0] sm:$0xff]
  %v136 = vld [vmem:[#allocation2 + $0x1a8] sm:$0xff]
  %v137 = vld [vmem:[#allocation2 + $0x1b0] sm:$0xff]
  %v138 = vld [vmem:[#allocation2 + $0x1b8] sm:$0xff]
  %v139 = vld [vmem:[#allocation2 + $0x1c0] sm:$0xff]
  %v140 = vld [vmem:[#allocation2 + $0x1c8] sm:$0xff]
  %v141 = vld [vmem:[#allocation2 + $0x1d0] sm:$0xff]
  %v142 = vld [vmem:[#allocation2 + $0x1d8] sm:$0xff]
  %v143 = vld [vmem:[#allocation2 + $0x1e0] sm:$0xff]
  %v144 = vld [vmem:[#allocation2 + $0x1e8] sm:$0xff]
  %v145 = vld [vmem:[#allocation2 + $0x1f0] sm:$0xff]
  %v146 = vld [vmem:[#allocation2 + $0x1f8] sm:$0xff]
  %v147 = vld [vmem:[%s0] sm:$0xf]
  %v148 = vld [vmem:[%s0 + $0x4] sm:$0xf]
  %v149 = vld [vmem:[%s0 + $0x8] sm:$0xf]
  %v150 = vld [vmem:[%s0 + $0xc] sm:$0xf]
  %v151 = vld [vmem:[%s0 + $0x10] sm:$0xf]
  %v152 = vld [vmem:[%s0 + $0x14] sm:$0xf]
  %v153 = vld [vmem:[%s0 + $0x18] sm:$0xf]
  %v154 = vld [vmem:[%s0 + $0x1c] sm:$0xf]
  %v155 = vld [vmem:[%s0 + $0x20] sm:$0xf]
  %v156 = vld [vmem:[%s0 + $0x24] sm:$0xf]
  %v157 = vld [vmem:[%s0 + $0x28] sm:$0xf]
  %v158 = vld [vmem:[%s0 + $0x2c] sm:$0xf]
  %v159 = vld [vmem:[%s0 + $0x30] sm:$0xf]
  %v160 = vld [vmem:[%s0 + $0x34] sm:$0xf]
  %v161 = vld [vmem:[%s0 + $0x38] sm:$0xf]
  %v162 = vld [vmem:[%s0 + $0x3c] sm:$0xf]
  %v163 = vld [vmem:[%s0 + $0x40] sm:$0xf]
  %v164 = vld [vmem:[%s0 + $0x44] sm:$0xf]
  %v165 = vld [vmem:[%s0 + $0x48] sm:$0xf]
  %v166 = vld [vmem:[%s0 + $0x4c] sm:$0xf]
  %v167 = vld [vmem:[%s0 + $0x50] sm:$0xf]
  %v168 = vld [vmem:[%s0 + $0x54] sm:$0xf]
  %v169 = vld [vmem:[%s0 + $0x58] sm:$0xf]
  %v170 = vld [vmem:[%s0 + $0x5c] sm:$0xf]
  %v171 = vld [vmem:[%s0 + $0x60] sm:$0xf]
  %v172 = vld [vmem:[%s0 + $0x64] sm:$0xf]
  %v173 = vld [vmem:[%s0 + $0x68] sm:$0xf]
  %v174 = vld [vmem:[%s0 + $0x6c] sm:$0xf]
  %v175 = vld [vmem:[%s0 + $0x70] sm:$0xf]
  %v176 = vld [vmem:[%s0 + $0x74] sm:$0xf]
  %v177 = vld [vmem:[%s0 + $0x78] sm:$0xf]
  %v178 = vld [vmem:[%s0 + $0x7c] sm:$0xf]
  %v179 = vld [vmem:[%s0 + $0x80] sm:$0xf]
  %v180 = vld [vmem:[%s0 + $0x84] sm:$0xf]
  %v181 = vld [vmem:[%s0 + $0x88] sm:$0xf]
  %v182 = vld [vmem:[%s0 + $0x8c] sm:$0xf]
  %v183 = vld [vmem:[%s0 + $0x90] sm:$0xf]
  %v184 = vld [vmem:[%s0 + $0x94] sm:$0xf]
  %v185 = vld [vmem:[%s0 + $0x98] sm:$0xf]
  %v186 = vld [vmem:[%s0 + $0x9c] sm:$0xf]
  %v187 = vld [vmem:[%s0 + $0xa0] sm:$0xf]
  %v188 = vld [vmem:[%s0 + $0xa4] sm:$0xf]
  %v189 = vld [vmem:[%s0 + $0xa8] sm:$0xf]
  %v190 = vld [vmem:[%s0 + $0xac] sm:$0xf]
  %v191 = vld [vmem:[%s0 + $0xb0] sm:$0xf]
  %v192 = vld [vmem:[%s0 + $0xb4] sm:$0xf]
  %v193 = vld [vmem:[%s0 + $0xb8] sm:$0xf]
  %v194 = vld [vmem:[%s0 + $0xbc] sm:$0xf]
  %v195 = vld [vmem:[%s0 + $0xc0] sm:$0xf]
  %v196 = vld [vmem:[%s0 + $0xc4] sm:$0xf]
  %v197 = vld [vmem:[%s0 + $0xc8] sm:$0xf]
  %v198 = vld [vmem:[%s0 + $0xcc] sm:$0xf]
  %v199 = vld [vmem:[%s0 + $0xd0] sm:$0xf]
  %v200 = vld [vmem:[%s0 + $0xd4] sm:$0xf]
  %v201 = vld [vmem:[%s0 + $0xd8] sm:$0xf]
  %v202 = vld [vmem:[%s0 + $0xdc] sm:$0xf]
  %v203 = vld [vmem:[%s0 + $0xe0] sm:$0xf]
  %v204 = vld [vmem:[%s0 + $0xe4] sm:$0xf]
  %v205 = vld [vmem:[%s0 + $0xe8] sm:$0xf]
  %v206 = vld [vmem:[%s0 + $0xec] sm:$0xf]
  %v207 = vld [vmem:[%s0 + $0xf0] sm:$0xf]
  %v208 = vld [vmem:[%s0 + $0xf4] sm:$0xf]
  %v209 = vld [vmem:[%s0 + $0xf8] sm:$0xf]
  %v210 = vld [vmem:[%s0 + $0xfc] sm:$0xf]
  %v211 = vld [vmem:[%s1] sm:$0xf]
  %v212 = vld [vmem:[%s1 + $0x4] sm:$0xf]
  %v213 = vld [vmem:[%s1 + $0x8] sm:$0xf]
  %v214 = vld [vmem:[%s1 + $0xc] sm:$0xf]
  %v215 = vld [vmem:[%s1 + $0x10] sm:$0xf]
  %v216 = vld [vmem:[%s1 + $0x14] sm:$0xf]
  %v217 = vld [vmem:[%s1 + $0x18] sm:$0xf]
  %v218 = vld [vmem:[%s1 + $0x1c] sm:$0xf]
  %v219 = vld [vmem:[%s1 + $0x20] sm:$0xf]
  %v220 = vld [vmem:[%s1 + $0x24] sm:$0xf]
  %v221 = vld [vmem:[%s1 + $0x28] sm:$0xf]
  %v222 = vld [vmem:[%s1 + $0x2c] sm:$0xf]
  %v223 = vld [vmem:[%s1 + $0x30] sm:$0xf]
  %v224 = vld [vmem:[%s1 + $0x34] sm:$0xf]
  %v225 = vld [vmem:[%s1 + $0x38] sm:$0xf]
  %v226 = vld [vmem:[%s1 + $0x3c] sm:$0xf]
  %v291 = vunpack.c.l.b16 %v147
  %v292 = vunpack.c.l.b16 %v148
  %v293 = vunpack.c.l.b16 %v149
  %v294 = vunpack.c.l.b16 %v150
  %v295 = vunpack.c.l.b16 %v151
  %v296 = vunpack.c.l.b16 %v152
  %v297 = vunpack.c.l.b16 %v153
  %v298 = vunpack.c.l.b16 %v154
  %v299 = vunpack.c.l.b16 %v155
  %v300 = vunpack.c.l.b16 %v156
  %v301 = vunpack.c.l.b16 %v157
  %v302 = vunpack.c.l.b16 %v158
  %v303 = vunpack.c.l.b16 %v159
  %v304 = vunpack.c.l.b16 %v160
  %v305 = vunpack.c.l.b16 %v161
  %v306 = vunpack.c.l.b16 %v162
  %v307 = vunpack.c.l.b16 %v163
  %v308 = vunpack.c.l.b16 %v164
  %v309 = vunpack.c.l.b16 %v165
  %v310 = vunpack.c.l.b16 %v166
  %v311 = vunpack.c.l.b16 %v167
  %v312 = vunpack.c.l.b16 %v168
  %v313 = vunpack.c.l.b16 %v169
  %v314 = vunpack.c.l.b16 %v170
  %v315 = vunpack.c.l.b16 %v171
  %v316 = vunpack.c.l.b16 %v172
  %v317 = vunpack.c.l.b16 %v173
  %v318 = vunpack.c.l.b16 %v174
  %v319 = vunpack.c.l.b16 %v175
  %v320 = vunpack.c.l.b16 %v176
  %v321 = vunpack.c.l.b16 %v177
  %v322 = vunpack.c.l.b16 %v178
  %v323 = vunpack.c.l.b16 %v179
  %v324 = vunpack.c.l.b16 %v180
  %v325 = vunpack.c.l.b16 %v181
  %v326 = vunpack.c.l.b16 %v182
  %v327 = vunpack.c.l.b16 %v183
  %v328 = vunpack.c.l.b16 %v184
  %v329 = vunpack.c.l.b16 %v185
  %v330 = vunpack.c.l.b16 %v186
  %v331 = vunpack.c.l.b16 %v187
  %v332 = vunpack.c.l.b16 %v188
  %v333 = vunpack.c.l.b16 %v189
  %v334 = vunpack.c.l.b16 %v190
  %v335 = vunpack.c.l.b16 %v191
  %v336 = vunpack.c.l.b16 %v192
  %v337 = vunpack.c.l.b16 %v193
  %v338 = vunpack.c.l.b16 %v194
  %v339 = vunpack.c.l.b16 %v195
  %v340 = vunpack.c.l.b16 %v196
  %v341 = vunpack.c.l.b16 %v197
  %v342 = vunpack.c.l.b16 %v198
  %v343 = vunpack.c.l.b16 %v199
  %v344 = vunpack.c.l.b16 %v200
  %v345 = vunpack.c.l.b16 %v201
  %v346 = vunpack.c.l.b16 %v202
  %v347 = vunpack.c.l.b16 %v203
  %v348 = vunpack.c.l.b16 %v204
  %v349 = vunpack.c.l.b16 %v205
  %v350 = vunpack.c.l.b16 %v206
  %v351 = vunpack.c.l.b16 %v207
  %v352 = vunpack.c.l.b16 %v208
  %v353 = vunpack.c.l.b16 %v209
  %v354 = vunpack.c.l.b16 %v210
  %v355 = vpack.c.b16 %v292, %v291
  %v356 = vpack.c.b16 %v294, %v293
  %v357 = vpack.c.b16 %v296, %v295
  %v358 = vpack.c.b16 %v298, %v297
  %v359 = vpack.c.b16 %v300, %v299
  %v360 = vpack.c.b16 %v302, %v301
  %v361 = vpack.c.b16 %v304, %v303
  %v362 = vpack.c.b16 %v306, %v305
  %v363 = vpack.c.b16 %v308, %v307
  %v364 = vpack.c.b16 %v310, %v309
  %v365 = vpack.c.b16 %v312, %v311
  %v366 = vpack.c.b16 %v314, %v313
  %v367 = vpack.c.b16 %v316, %v315
  %v368 = vpack.c.b16 %v318, %v317
  %v369 = vpack.c.b16 %v320, %v319
  %v370 = vpack.c.b16 %v322, %v321
  %v371 = vpack.c.b16 %v324, %v323
  %v372 = vpack.c.b16 %v326, %v325
  %v373 = vpack.c.b16 %v328, %v327
  %v374 = vpack.c.b16 %v330, %v329
  %v375 = vpack.c.b16 %v332, %v331
  %v376 = vpack.c.b16 %v334, %v333
  %v377 = vpack.c.b16 %v336, %v335
  %v378 = vpack.c.b16 %v338, %v337
  %v379 = vpack.c.b16 %v340, %v339
  %v380 = vpack.c.b16 %v342, %v341
  %v381 = vpack.c.b16 %v344, %v343
  %v382 = vpack.c.b16 %v346, %v345
  %v383 = vpack.c.b16 %v348, %v347
  %v384 = vpack.c.b16 %v350, %v349
  %v385 = vpack.c.b16 %v352, %v351
  %v386 = vpack.c.b16 %v354, %v353
  %v435 = vunpack.c.l.b16 %v211
  %v436 = vunpack.c.l.b16 %v212
  %v437 = vunpack.c.l.b16 %v213
  %v438 = vunpack.c.l.b16 %v214
  %v439 = vunpack.c.l.b16 %v215
  %v440 = vunpack.c.l.b16 %v216
  %v441 = vunpack.c.l.b16 %v217
  %v442 = vunpack.c.l.b16 %v218
  %v443 = vunpack.c.l.b16 %v219
  %v444 = vunpack.c.l.b16 %v220
  %v445 = vunpack.c.l.b16 %v221
  %v446 = vunpack.c.l.b16 %v222
  %v447 = vunpack.c.l.b16 %v223
  %v448 = vunpack.c.l.b16 %v224
  %v449 = vunpack.c.l.b16 %v225
  %v450 = vunpack.c.l.b16 %v226
  %v451 = vpack.c.b16 %v436, %v435
  %v452 = vpack.c.b16 %v438, %v437
  %v453 = vpack.c.b16 %v440, %v439
  %v454 = vpack.c.b16 %v442, %v441
  %v455 = vpack.c.b16 %v444, %v443
  %v456 = vpack.c.b16 %v446, %v445
  %v457 = vpack.c.b16 %v448, %v447
  %v458 = vpack.c.b16 %v450, %v449
  %467 = vmatprep.subr.bf16.mxu0 0
  %468 = vmatpush1.bf16.msra.mxu0 %v458
  %469 = vmatprep.subr.bf16.mxu0 0
  %470 = vmatpush1.bf16.msra.mxu0 %v457
  %471 = vmatprep.subr.bf16.mxu0 0
  %472 = vmatpush1.bf16.msra.mxu0 %v456
  %473 = vmatprep.subr.bf16.mxu0 0
  %474 = vmatpush1.bf16.msra.mxu0 %v455
  %475 = vmatprep.subr.bf16.mxu0 0
  %476 = vmatpush1.bf16.msra.mxu0 %v454
  %477 = vmatprep.subr.bf16.mxu0 0
  %478 = vmatpush1.bf16.msra.mxu0 %v453
  %479 = vmatprep.subr.bf16.mxu0 0
  %480 = vmatpush1.bf16.msra.mxu0 %v452
  %481 = vmatprep.subr.bf16.mxu0 0
  %482 = vmatpush1.bf16.msra.mxu0 %v451
  %483 = vmatprep.subr.bf16.mxu0 0
  %484 = vmatpush2.bf16.msra.mxu0 0
  %485 = vmatprep.subr.bf16.mxu0 0
  %486 = vmatpush2.bf16.msra.mxu0 0
  %487 = vmatprep.subr.bf16.mxu0 0
  %488 = vmatpush2.bf16.msra.mxu0 0
  %489 = vmatprep.subr.bf16.mxu0 0
  %490 = vmatpush2.bf16.msra.mxu0 0
  %491 = vmatprep.subr.bf16.mxu0 0
  %492 = vmatpush2.bf16.msra.mxu0 0
  %493 = vmatprep.subr.bf16.mxu0 0
  %494 = vmatpush2.bf16.msra.mxu0 0
  %495 = vmatprep.subr.bf16.mxu0 0
  %496 = vmatpush2.bf16.msra.mxu0 0
  %497 = vmatprep.subr.bf16.mxu0 0
  %498 = vmatpush2.bf16.msra.mxu0 0
  %499 = vmatprep.mubr.bf16.mxu0 0
  %500 = vmatmul.mubr.bf16.gmra.mxu0 %v355
  %v501 = vpop.f32.mrf.mxu0
  %v502 = vadd.f32 0.0, %v501
  %v503 = vpop.f32.mrf.mxu0
  %v504 = vpop.f32.mrf.mxu0
  %v505 = vadd.f32 0.0, %v504
  %v506 = vpop.f32.mrf.mxu0
  %507 = vmatprep.mubr.bf16.mxu0 0
  %508 = vmatmul.mubr.bf16.gmra.mxu0 %v356
  %v509 = vpop.f32.mrf.mxu0
  %v510 = vadd.f32 0.0, %v509
  %v511 = vpop.f32.mrf.mxu0
  %v512 = vpop.f32.mrf.mxu0
  %v513 = vadd.f32 0.0, %v512
  %v514 = vpop.f32.mrf.mxu0
  %515 = vmatprep.mubr.bf16.mxu0 0
  %516 = vmatmul.mubr.bf16.gmra.mxu0 %v357
  %v517 = vpop.f32.mrf.mxu0
  %v518 = vadd.f32 0.0, %v517
  %v519 = vpop.f32.mrf.mxu0
  %v520 = vpop.f32.mrf.mxu0
  %v521 = vadd.f32 0.0, %v520
  %v522 = vpop.f32.mrf.mxu0
  %523 = vmatprep.mubr.bf16.mxu0 0
  %524 = vmatmul.mubr.bf16.gmra.mxu0 %v358
  %v525 = vpop.f32.mrf.mxu0
  %v526 = vadd.f32 0.0, %v525
  %v527 = vpop.f32.mrf.mxu0
  %v528 = vpop.f32.mrf.mxu0
  %v529 = vadd.f32 0.0, %v528
  %v530 = vpop.f32.mrf.mxu0
  %531 = vmatprep.mubr.bf16.mxu0 0
  %532 = vmatmul.mubr.bf16.gmra.mxu0 %v359
  %v533 = vpop.f32.mrf.mxu0
  %v534 = vadd.f32 0.0, %v533
  %v535 = vpop.f32.mrf.mxu0
  %v536 = vpop.f32.mrf.mxu0
  %v537 = vadd.f32 0.0, %v536
  %v538 = vpop.f32.mrf.mxu0
  %539 = vmatprep.mubr.bf16.mxu0 0
  %540 = vmatmul.mubr.bf16.gmra.mxu0 %v360
  %v541 = vpop.f32.mrf.mxu0
  %v542 = vadd.f32 0.0, %v541
  %v543 = vpop.f32.mrf.mxu0
  %v544 = vpop.f32.mrf.mxu0
  %v545 = vadd.f32 0.0, %v544
  %v546 = vpop.f32.mrf.mxu0
  %547 = vmatprep.mubr.bf16.mxu0 0
  %548 = vmatmul.mubr.bf16.gmra.mxu0 %v361
  %v549 = vpop.f32.mrf.mxu0
  %v550 = vadd.f32 0.0, %v549
  %v551 = vpop.f32.mrf.mxu0
  %v552 = vpop.f32.mrf.mxu0
  %v553 = vadd.f32 0.0, %v552
  %v554 = vpop.f32.mrf.mxu0
  %555 = vmatprep.mubr.bf16.mxu0 0
  %556 = vmatmul.mubr.bf16.gmra.mxu0 %v362
  %v557 = vpop.f32.mrf.mxu0
  %v558 = vadd.f32 0.0, %v557
  %v559 = vpop.f32.mrf.mxu0
  %v560 = vpop.f32.mrf.mxu0
  %v561 = vadd.f32 0.0, %v560
  %v562 = vpop.f32.mrf.mxu0
  %563 = vmatprep.mubr.bf16.mxu0 0
  %564 = vmatmul.mubr.bf16.gmra.mxu0 %v363
  %v565 = vpop.f32.mrf.mxu0
  %v566 = vadd.f32 0.0, %v565
  %v567 = vpop.f32.mrf.mxu0
  %v568 = vpop.f32.mrf.mxu0
  %v569 = vadd.f32 0.0, %v568
  %v570 = vpop.f32.mrf.mxu0
  %571 = vmatprep.mubr.bf16.mxu0 0
  %572 = vmatmul.mubr.bf16.gmra.mxu0 %v364
  %v573 = vpop.f32.mrf.mxu0
  %v574 = vadd.f32 0.0, %v573
  %v575 = vpop.f32.mrf.mxu0
  %v576 = vpop.f32.mrf.mxu0
  %v577 = vadd.f32 0.0, %v576
  %v578 = vpop.f32.mrf.mxu0
  %579 = vmatprep.mubr.bf16.mxu0 0
  %580 = vmatmul.mubr.bf16.gmra.mxu0 %v365
  %v581 = vpop.f32.mrf.mxu0
  %v582 = vadd.f32 0.0, %v581
  %v583 = vpop.f32.mrf.mxu0
  %v584 = vpop.f32.mrf.mxu0
  %v585 = vadd.f32 0.0, %v584
  %v586 = vpop.f32.mrf.mxu0
  %587 = vmatprep.mubr.bf16.mxu0 0
  %588 = vmatmul.mubr.bf16.gmra.mxu0 %v366
  %v589 = vpop.f32.mrf.mxu0
  %v590 = vadd.f32 0.0, %v589
  %v591 = vpop.f32.mrf.mxu0
  %v592 = vpop.f32.mrf.mxu0
  %v593 = vadd.f32 0.0, %v592
  %v594 = vpop.f32.mrf.mxu0
  %595 = vmatprep.mubr.bf16.mxu0 0
  %596 = vmatmul.mubr.bf16.gmra.mxu0 %v367
  %v597 = vpop.f32.mrf.mxu0
  %v598 = vadd.f32 0.0, %v597
  %v599 = vpop.f32.mrf.mxu0
  %v600 = vpop.f32.mrf.mxu0
  %v601 = vadd.f32 0.0, %v600
  %v602 = vpop.f32.mrf.mxu0
  %603 = vmatprep.mubr.bf16.mxu0 0
  %604 = vmatmul.mubr.bf16.gmra.mxu0 %v368
  %v605 = vpop.f32.mrf.mxu0
  %v606 = vadd.f32 0.0, %v605
  %v607 = vpop.f32.mrf.mxu0
  %v608 = vpop.f32.mrf.mxu0
  %v609 = vadd.f32 0.0, %v608
  %v610 = vpop.f32.mrf.mxu0
  %611 = vmatprep.mubr.bf16.mxu0 0
  %612 = vmatmul.mubr.bf16.gmra.mxu0 %v369
  %v613 = vpop.f32.mrf.mxu0
  %v614 = vadd.f32 0.0, %v613
  %v615 = vpop.f32.mrf.mxu0
  %v616 = vpop.f32.mrf.mxu0
  %v617 = vadd.f32 0.0, %v616
  %v618 = vpop.f32.mrf.mxu0
  %619 = vmatprep.mubr.bf16.mxu0 0
  %620 = vmatmul.mubr.bf16.gmra.mxu0 %v370
  %v621 = vpop.f32.mrf.mxu0
  %v622 = vadd.f32 0.0, %v621
  %v623 = vpop.f32.mrf.mxu0
  %v624 = vpop.f32.mrf.mxu0
  %v625 = vadd.f32 0.0, %v624
  %v626 = vpop.f32.mrf.mxu0
  %627 = vmatprep.mubr.bf16.mxu0 0
  %628 = vmatmul.mubr.bf16.gmra.mxu0 %v371
  %v629 = vpop.f32.mrf.mxu0
  %v630 = vadd.f32 0.0, %v629
  %v631 = vpop.f32.mrf.mxu0
  %v632 = vpop.f32.mrf.mxu0
  %v633 = vadd.f32 0.0, %v632
  %v634 = vpop.f32.mrf.mxu0
  %635 = vmatprep.mubr.bf16.mxu0 0
  %636 = vmatmul.mubr.bf16.gmra.mxu0 %v372
  %v637 = vpop.f32.mrf.mxu0
  %v638 = vadd.f32 0.0, %v637
  %v639 = vpop.f32.mrf.mxu0
  %v640 = vpop.f32.mrf.mxu0
  %v641 = vadd.f32 0.0, %v640
  %v642 = vpop.f32.mrf.mxu0
  %643 = vmatprep.mubr.bf16.mxu0 0
  %644 = vmatmul.mubr.bf16.gmra.mxu0 %v373
  %v645 = vpop.f32.mrf.mxu0
  %v646 = vadd.f32 0.0, %v645
  %v647 = vpop.f32.mrf.mxu0
  %v648 = vpop.f32.mrf.mxu0
  %v649 = vadd.f32 0.0, %v648
  %v650 = vpop.f32.mrf.mxu0
  %651 = vmatprep.mubr.bf16.mxu0 0
  %652 = vmatmul.mubr.bf16.gmra.mxu0 %v374
  %v653 = vpop.f32.mrf.mxu0
  %v654 = vadd.f32 0.0, %v653
  %v655 = vpop.f32.mrf.mxu0
  %v656 = vpop.f32.mrf.mxu0
  %v657 = vadd.f32 0.0, %v656
  %v658 = vpop.f32.mrf.mxu0
  %659 = vmatprep.mubr.bf16.mxu0 0
  %660 = vmatmul.mubr.bf16.gmra.mxu0 %v375
  %v661 = vpop.f32.mrf.mxu0
  %v662 = vadd.f32 0.0, %v661
  %v663 = vpop.f32.mrf.mxu0
  %v664 = vpop.f32.mrf.mxu0
  %v665 = vadd.f32 0.0, %v664
  %v666 = vpop.f32.mrf.mxu0
  %667 = vmatprep.mubr.bf16.mxu0 0
  %668 = vmatmul.mubr.bf16.gmra.mxu0 %v376
  %v669 = vpop.f32.mrf.mxu0
  %v670 = vadd.f32 0.0, %v669
  %v671 = vpop.f32.mrf.mxu0
  %v672 = vpop.f32.mrf.mxu0
  %v673 = vadd.f32 0.0, %v672
  %v674 = vpop.f32.mrf.mxu0
  %675 = vmatprep.mubr.bf16.mxu0 0
  %676 = vmatmul.mubr.bf16.gmra.mxu0 %v377
  %v677 = vpop.f32.mrf.mxu0
  %v678 = vadd.f32 0.0, %v677
  %v679 = vpop.f32.mrf.mxu0
  %v680 = vpop.f32.mrf.mxu0
  %v681 = vadd.f32 0.0, %v680
  %v682 = vpop.f32.mrf.mxu0
  %683 = vmatprep.mubr.bf16.mxu0 0
  %684 = vmatmul.mubr.bf16.gmra.mxu0 %v378
  %v685 = vpop.f32.mrf.mxu0
  %v686 = vadd.f32 0.0, %v685
  %v687 = vpop.f32.mrf.mxu0
  %v688 = vpop.f32.mrf.mxu0
  %v689 = vadd.f32 0.0, %v688
  %v690 = vpop.f32.mrf.mxu0
  %691 = vmatprep.mubr.bf16.mxu0 0
  %692 = vmatmul.mubr.bf16.gmra.mxu0 %v379
  %v693 = vpop.f32.mrf.mxu0
  %v694 = vadd.f32 0.0, %v693
  %v695 = vpop.f32.mrf.mxu0
  %v696 = vpop.f32.mrf.mxu0
  %v697 = vadd.f32 0.0, %v696
  %v698 = vpop.f32.mrf.mxu0
  %699 = vmatprep.mubr.bf16.mxu0 0
  %700 = vmatmul.mubr.bf16.gmra.mxu0 %v380
  %v701 = vpop.f32.mrf.mxu0
  %v702 = vadd.f32 0.0, %v701
  %v703 = vpop.f32.mrf.mxu0
  %v704 = vpop.f32.mrf.mxu0
  %v705 = vadd.f32 0.0, %v704
  %v706 = vpop.f32.mrf.mxu0
  %707 = vmatprep.mubr.bf16.mxu0 0
  %708 = vmatmul.mubr.bf16.gmra.mxu0 %v381
  %v709 = vpop.f32.mrf.mxu0
  %v710 = vadd.f32 0.0, %v709
  %v711 = vpop.f32.mrf.mxu0
  %v712 = vpop.f32.mrf.mxu0
  %v713 = vadd.f32 0.0, %v712
  %v714 = vpop.f32.mrf.mxu0
  %715 = vmatprep.mubr.bf16.mxu0 0
  %716 = vmatmul.mubr.bf16.gmra.mxu0 %v382
  %v717 = vpop.f32.mrf.mxu0
  %v718 = vadd.f32 0.0, %v717
  %v719 = vpop.f32.mrf.mxu0
  %v720 = vpop.f32.mrf.mxu0
  %v721 = vadd.f32 0.0, %v720
  %v722 = vpop.f32.mrf.mxu0
  %723 = vmatprep.mubr.bf16.mxu0 0
  %724 = vmatmul.mubr.bf16.gmra.mxu0 %v383
  %v725 = vpop.f32.mrf.mxu0
  %v726 = vadd.f32 0.0, %v725
  %v727 = vpop.f32.mrf.mxu0
  %v728 = vpop.f32.mrf.mxu0
  %v729 = vadd.f32 0.0, %v728
  %v730 = vpop.f32.mrf.mxu0
  %731 = vmatprep.mubr.bf16.mxu0 0
  %732 = vmatmul.mubr.bf16.gmra.mxu0 %v384
  %v733 = vpop.f32.mrf.mxu0
  %v734 = vadd.f32 0.0, %v733
  %v735 = vpop.f32.mrf.mxu0
  %v736 = vpop.f32.mrf.mxu0
  %v737 = vadd.f32 0.0, %v736
  %v738 = vpop.f32.mrf.mxu0
  %739 = vmatprep.mubr.bf16.mxu0 0
  %740 = vmatmul.mubr.bf16.gmra.mxu0 %v385
  %v741 = vpop.f32.mrf.mxu0
  %v742 = vadd.f32 0.0, %v741
  %v743 = vpop.f32.mrf.mxu0
  %v744 = vpop.f32.mrf.mxu0
  %v745 = vadd.f32 0.0, %v744
  %v746 = vpop.f32.mrf.mxu0
  %747 = vmatprep.mubr.bf16.mxu0 0
  %748 = vmatmul.mubr.bf16.gmra.mxu0 %v386
  %v749 = vpop.f32.mrf.mxu0
  %v750 = vadd.f32 0.0, %v749
  %v751 = vpop.f32.mrf.mxu0
  %v752 = vpop.f32.mrf.mxu0
  %v753 = vadd.f32 0.0, %v752
  %v754 = vpop.f32.mrf.mxu0
  %755 = vdwg.mxu0
  %v756 = vadd.f32 %v83, %v502
  %v757 = vadd.f32 %v84, %v505
  %v758 = vadd.f32 %v85, %v510
  %v759 = vadd.f32 %v86, %v513
  %v760 = vadd.f32 %v87, %v518
  %v761 = vadd.f32 %v88, %v521
  %v762 = vadd.f32 %v89, %v526
  %v763 = vadd.f32 %v90, %v529
  %v764 = vadd.f32 %v91, %v534
  %v765 = vadd.f32 %v92, %v537
  %v766 = vadd.f32 %v93, %v542
  %v767 = vadd.f32 %v94, %v545
  %v768 = vadd.f32 %v95, %v550
  %v769 = vadd.f32 %v96, %v553
  %v770 = vadd.f32 %v97, %v558
  %v771 = vadd.f32 %v98, %v561
  %v772 = vadd.f32 %v99, %v566
  %v773 = vadd.f32 %v100, %v569
  %v774 = vadd.f32 %v101, %v574
  %v775 = vadd.f32 %v102, %v577
  %v776 = vadd.f32 %v103, %v582
  %v777 = vadd.f32 %v104, %v585
  %v778 = vadd.f32 %v105, %v590
  %v779 = vadd.f32 %v106, %v593
  %v780 = vadd.f32 %v107, %v598
  %v781 = vadd.f32 %v108, %v601
  %v782 = vadd.f32 %v109, %v606
  %v783 = vadd.f32 %v110, %v609
  %v784 = vadd.f32 %v111, %v614
  %v785 = vadd.f32 %v112, %v617
  %v786 = vadd.f32 %v113, %v622
  %v787 = vadd.f32 %v114, %v625
  %v788 = vadd.f32 %v115, %v630
  %v789 = vadd.f32 %v116, %v633
  %v790 = vadd.f32 %v117, %v638
  %v791 = vadd.f32 %v118, %v641
  %v792 = vadd.f32 %v119, %v646
  %v793 = vadd.f32 %v120, %v649
  %v794 = vadd.f32 %v121, %v654
  %v795 = vadd.f32 %v122, %v657
  %v796 = vadd.f32 %v123, %v662
  %v797 = vadd.f32 %v124, %v665
  %v798 = vadd.f32 %v125, %v670
  %v799 = vadd.f32 %v126, %v673
  %v800 = vadd.f32 %v127, %v678
  %v801 = vadd.f32 %v128, %v681
  %v802 = vadd.f32 %v129, %v686
  %v803 = vadd.f32 %v130, %v689
  %v804 = vadd.f32 %v131, %v694
  %v805 = vadd.f32 %v132, %v697
  %v806 = vadd.f32 %v133, %v702
  %v807 = vadd.f32 %v134, %v705
  %v808 = vadd.f32 %v135, %v710
  %v809 = vadd.f32 %v136, %v713
  %v810 = vadd.f32 %v137, %v718
  %v811 = vadd.f32 %v138, %v721
  %v812 = vadd.f32 %v139, %v726
  %v813 = vadd.f32 %v140, %v729
  %v814 = vadd.f32 %v141, %v734
  %v815 = vadd.f32 %v142, %v737
  %v816 = vadd.f32 %v143, %v742
  %v817 = vadd.f32 %v144, %v745
  %v818 = vadd.f32 %v145, %v750
  %v819 = vadd.f32 %v146, %v753
  %820 = vst [vmem:[#allocation2] sm:$0xff] %v756
  %821 = vst [vmem:[#allocation2 + $0x8] sm:$0xff] %v757
  %822 = vst [vmem:[#allocation2 + $0x10] sm:$0xff] %v758
  %823 = vst [vmem:[#allocation2 + $0x18] sm:$0xff] %v759
  %824 = vst [vmem:[#allocation2 + $0x20] sm:$0xff] %v760
  %825 = vst [vmem:[#allocation2 + $0x28] sm:$0xff] %v761
  %826 = vst [vmem:[#allocation2 + $0x30] sm:$0xff] %v762
  %827 = vst [vmem:[#allocation2 + $0x38] sm:$0xff] %v763
  %828 = vst [vmem:[#allocation2 + $0x40] sm:$0xff] %v764
  %829 = vst [vmem:[#allocation2 + $0x48] sm:$0xff] %v765
  %830 = vst [vmem:[#allocation2 + $0x50] sm:$0xff] %v766
  %831 = vst [vmem:[#allocation2 + $0x58] sm:$0xff] %v767
  %832 = vst [vmem:[#allocation2 + $0x60] sm:$0xff] %v768
  %833 = vst [vmem:[#allocation2 + $0x68] sm:$0xff] %v769
  %834 = vst [vmem:[#allocation2 + $0x70] sm:$0xff] %v770
  %835 = vst [vmem:[#allocation2 + $0x78] sm:$0xff] %v771
  %836 = vst [vmem:[#allocation2 + $0x80] sm:$0xff] %v772
  %837 = vst [vmem:[#allocation2 + $0x88] sm:$0xff] %v773
  %838 = vst [vmem:[#allocation2 + $0x90] sm:$0xff] %v774
  %839 = vst [vmem:[#allocation2 + $0x98] sm:$0xff] %v775
  %840 = vst [vmem:[#allocation2 + $0xa0] sm:$0xff] %v776
  %841 = vst [vmem:[#allocation2 + $0xa8] sm:$0xff] %v777
  %842 = vst [vmem:[#allocation2 + $0xb0] sm:$0xff] %v778
  %843 = vst [vmem:[#allocation2 + $0xb8] sm:$0xff] %v779
  %844 = vst [vmem:[#allocation2 + $0xc0] sm:$0xff] %v780
  %845 = vst [vmem:[#allocation2 + $0xc8] sm:$0xff] %v781
  %846 = vst [vmem:[#allocation2 + $0xd0] sm:$0xff] %v782
  %847 = vst [vmem:[#allocation2 + $0xd8] sm:$0xff] %v783
  %848 = vst [vmem:[#allocation2 + $0xe0] sm:$0xff] %v784
  %849 = vst [vmem:[#allocation2 + $0xe8] sm:$0xff] %v785
  %850 = vst [vmem:[#allocation2 + $0xf0] sm:$0xff] %v786
  %851 = vst [vmem:[#allocation2 + $0xf8] sm:$0xff] %v787
  %852 = vst [vmem:[#allocation2 + $0x100] sm:$0xff] %v788
  %853 = vst [vmem:[#allocation2 + $0x108] sm:$0xff] %v789
  %854 = vst [vmem:[#allocation2 + $0x110] sm:$0xff] %v790
  %855 = vst [vmem:[#allocation2 + $0x118] sm:$0xff] %v791
  %856 = vst [vmem:[#allocation2 + $0x120] sm:$0xff] %v792
  %857 = vst [vmem:[#allocation2 + $0x128] sm:$0xff] %v793
  %858 = vst [vmem:[#allocation2 + $0x130] sm:$0xff] %v794
  %859 = vst [vmem:[#allocation2 + $0x138] sm:$0xff] %v795
  %860 = vst [vmem:[#allocation2 + $0x140] sm:$0xff] %v796
  %861 = vst [vmem:[#allocation2 + $0x148] sm:$0xff] %v797
  %862 = vst [vmem:[#allocation2 + $0x150] sm:$0xff] %v798
  %863 = vst [vmem:[#allocation2 + $0x158] sm:$0xff] %v799
  %864 = vst [vmem:[#allocation2 + $0x160] sm:$0xff] %v800
  %865 = vst [vmem:[#allocation2 + $0x168] sm:$0xff] %v801
  %866 = vst [vmem:[#allocation2 + $0x170] sm:$0xff] %v802
  %867 = vst [vmem:[#allocation2 + $0x178] sm:$0xff] %v803
  %868 = vst [vmem:[#allocation2 + $0x180] sm:$0xff] %v804
  %869 = vst [vmem:[#allocation2 + $0x188] sm:$0xff] %v805
  %870 = vst [vmem:[#allocation2 + $0x190] sm:$0xff] %v806
  %871 = vst [vmem:[#allocation2 + $0x198] sm:$0xff] %v807
  %872 = vst [vmem:[#allocation2 + $0x1a0] sm:$0xff] %v808
  %873 = vst [vmem:[#allocation2 + $0x1a8] sm:$0xff] %v809
  %874 = vst [vmem:[#allocation2 + $0x1b0] sm:$0xff] %v810
  %875 = vst [vmem:[#allocation2 + $0x1b8] sm:$0xff] %v811
  %876 = vst [vmem:[#allocation2 + $0x1c0] sm:$0xff] %v812
  %877 = vst [vmem:[#allocation2 + $0x1c8] sm:$0xff] %v813
  %878 = vst [vmem:[#allocation2 + $0x1d0] sm:$0xff] %v814
  %879 = vst [vmem:[#allocation2 + $0x1d8] sm:$0xff] %v815
  %880 = vst [vmem:[#allocation2 + $0x1e0] sm:$0xff] %v816
  %881 = vst [vmem:[#allocation2 + $0x1e8] sm:$0xff] %v817
  %882 = vst [vmem:[#allocation2 + $0x1f0] sm:$0xff] %v818
  %883 = vst [vmem:[#allocation2 + $0x1f8] sm:$0xff] %v819
  // Predicated region
  $region18: #{_lambda_.6} parent=0 // pred_check
    %p884 = pneg %p15
  $region19: #{_lambda_.6} parent=0 // pred_check_branch
    %886 = sbr.rel (%p884) target = $region21
  $region20: #{_lambda_.6} parent=0 // pred_region
    %v887 = vld [vmem:[#allocation2] sm:$0xff]
    %v888 = vld [vmem:[#allocation2 + $0x8] sm:$0xff]
    %v889 = vld [vmem:[#allocation2 + $0x10] sm:$0xff]
    %v890 = vld [vmem:[#allocation2 + $0x18] sm:$0xff]
    %v891 = vld [vmem:[#allocation2 + $0x20] sm:$0xff]
    %v892 = vld [vmem:[#allocation2 + $0x28] sm:$0xff]
    %v893 = vld [vmem:[#allocation2 + $0x30] sm:$0xff]
    %v894 = vld [vmem:[#allocation2 + $0x38] sm:$0xff]
    %v895 = vld [vmem:[#allocation2 + $0x40] sm:$0xff]
    %v896 = vld [vmem:[#allocation2 + $0x48] sm:$0xff]
    %v897 = vld [vmem:[#allocation2 + $0x50] sm:$0xff]
    %v898 = vld [vmem:[#allocation2 + $0x58] sm:$0xff]
    %v899 = vld [vmem:[#allocation2 + $0x60] sm:$0xff]
    %v900 = vld [vmem:[#allocation2 + $0x68] sm:$0xff]
    %v901 = vld [vmem:[#allocation2 + $0x70] sm:$0xff]
    %v902 = vld [vmem:[#allocation2 + $0x78] sm:$0xff]
    %v903 = vld [vmem:[#allocation2 + $0x80] sm:$0xff]
    %v904 = vld [vmem:[#allocation2 + $0x88] sm:$0xff]
    %v905 = vld [vmem:[#allocation2 + $0x90] sm:$0xff]
    %v906 = vld [vmem:[#allocation2 + $0x98] sm:$0xff]
    %v907 = vld [vmem:[#allocation2 + $0xa0] sm:$0xff]
    %v908 = vld [vmem:[#allocation2 + $0xa8] sm:$0xff]
    %v909 = vld [vmem:[#allocation2 + $0xb0] sm:$0xff]
    %v910 = vld [vmem:[#allocation2 + $0xb8] sm:$0xff]
    %v911 = vld [vmem:[#allocation2 + $0xc0] sm:$0xff]
    %v912 = vld [vmem:[#allocation2 + $0xc8] sm:$0xff]
    %v913 = vld [vmem:[#allocation2 + $0xd0] sm:$0xff]
    %v914 = vld [vmem:[#allocation2 + $0xd8] sm:$0xff]
    %v915 = vld [vmem:[#allocation2 + $0xe0] sm:$0xff]
    %v916 = vld [vmem:[#allocation2 + $0xe8] sm:$0xff]
    %v917 = vld [vmem:[#allocation2 + $0xf0] sm:$0xff]
    %v918 = vld [vmem:[#allocation2 + $0xf8] sm:$0xff]
    %v919 = vld [vmem:[#allocation2 + $0x100] sm:$0xff]
    %v920 = vld [vmem:[#allocation2 + $0x108] sm:$0xff]
    %v921 = vld [vmem:[#allocation2 + $0x110] sm:$0xff]
    %v922 = vld [vmem:[#allocation2 + $0x118] sm:$0xff]
    %v923 = vld [vmem:[#allocation2 + $0x120] sm:$0xff]
    %v924 = vld [vmem:[#allocation2 + $0x128] sm:$0xff]
    %v925 = vld [vmem:[#allocation2 + $0x130] sm:$0xff]
    %v926 = vld [vmem:[#allocation2 + $0x138] sm:$0xff]
    %v927 = vld [vmem:[#allocation2 + $0x140] sm:$0xff]
    %v928 = vld [vmem:[#allocation2 + $0x148] sm:$0xff]
    %v929 = vld [vmem:[#allocation2 + $0x150] sm:$0xff]
    %v930 = vld [vmem:[#allocation2 + $0x158] sm:$0xff]
    %v931 = vld [vmem:[#allocation2 + $0x160] sm:$0xff]
    %v932 = vld [vmem:[#allocation2 + $0x168] sm:$0xff]
    %v933 = vld [vmem:[#allocation2 + $0x170] sm:$0xff]
    %v934 = vld [vmem:[#allocation2 + $0x178] sm:$0xff]
    %v935 = vld [vmem:[#allocation2 + $0x180] sm:$0xff]
    %v936 = vld [vmem:[#allocation2 + $0x188] sm:$0xff]
    %v937 = vld [vmem:[#allocation2 + $0x190] sm:$0xff]
    %v938 = vld [vmem:[#allocation2 + $0x198] sm:$0xff]
    %v939 = vld [vmem:[#allocation2 + $0x1a0] sm:$0xff]
    %v940 = vld [vmem:[#allocation2 + $0x1a8] sm:$0xff]
    %v941 = vld [vmem:[#allocation2 + $0x1b0] sm:$0xff]
    %v942 = vld [vmem:[#allocation2 + $0x1b8] sm:$0xff]
    %v943 = vld [vmem:[#allocation2 + $0x1c0] sm:$0xff]
    %v944 = vld [vmem:[#allocation2 + $0x1c8] sm:$0xff]
    %v945 = vld [vmem:[#allocation2 + $0x1d0] sm:$0xff]
    %v946 = vld [vmem:[#allocation2 + $0x1d8] sm:$0xff]
    %v947 = vld [vmem:[#allocation2 + $0x1e0] sm:$0xff]
    %v948 = vld [vmem:[#allocation2 + $0x1e8] sm:$0xff]
    %v949 = vld [vmem:[#allocation2 + $0x1f0] sm:$0xff]
    %v950 = vld [vmem:[#allocation2 + $0x1f8] sm:$0xff]
    %v951 = vld [vmem:[%s2] sm:$0x1]
    %v953 = vlaneseq
    %v954 = vshrl.u32 %v953, 7
    %v955 = vsub.s32 0, %v954
    %v956 = vrot.slane %v951, %v955
    %v958 = vadd.f32 %v887, %v956
    %v959 = vadd.f32 %v888, %v956
    %v960 = vadd.f32 %v889, %v956
    %v961 = vadd.f32 %v890, %v956
    %v962 = vadd.f32 %v891, %v956
    %v963 = vadd.f32 %v892, %v956
    %v964 = vadd.f32 %v893, %v956
    %v965 = vadd.f32 %v894, %v956
    %v966 = vadd.f32 %v895, %v956
    %v967 = vadd.f32 %v896, %v956
    %v968 = vadd.f32 %v897, %v956
    %v969 = vadd.f32 %v898, %v956
    %v970 = vadd.f32 %v899, %v956
    %v971 = vadd.f32 %v900, %v956
    %v972 = vadd.f32 %v901, %v956
    %v973 = vadd.f32 %v902, %v956
    %v974 = vadd.f32 %v903, %v956
    %v975 = vadd.f32 %v904, %v956
    %v976 = vadd.f32 %v905, %v956
    %v977 = vadd.f32 %v906, %v956
    %v978 = vadd.f32 %v907, %v956
    %v979 = vadd.f32 %v908, %v956
    %v980 = vadd.f32 %v909, %v956
    %v981 = vadd.f32 %v910, %v956
    %v982 = vadd.f32 %v911, %v956
    %v983 = vadd.f32 %v912, %v956
    %v984 = vadd.f32 %v913, %v956
    %v985 = vadd.f32 %v914, %v956
    %v986 = vadd.f32 %v915, %v956
    %v987 = vadd.f32 %v916, %v956
    %v988 = vadd.f32 %v917, %v956
    %v989 = vadd.f32 %v918, %v956
    %v990 = vadd.f32 %v919, %v956
    %v991 = vadd.f32 %v920, %v956
    %v992 = vadd.f32 %v921, %v956
    %v993 = vadd.f32 %v922, %v956
    %v994 = vadd.f32 %v923, %v956
    %v995 = vadd.f32 %v924, %v956
    %v996 = vadd.f32 %v925, %v956
    %v997 = vadd.f32 %v926, %v956
    %v998 = vadd.f32 %v927, %v956
    %v999 = vadd.f32 %v928, %v956
    %v1000 = vadd.f32 %v929, %v956
    %v1001 = vadd.f32 %v930, %v956
    %v1002 = vadd.f32 %v931, %v956
    %v1003 = vadd.f32 %v932, %v956
    %v1004 = vadd.f32 %v933, %v956
    %v1005 = vadd.f32 %v934, %v956
    %v1006 = vadd.f32 %v935, %v956
    %v1007 = vadd.f32 %v936, %v956
    %v1008 = vadd.f32 %v937, %v956
    %v1009 = vadd.f32 %v938, %v956
    %v1010 = vadd.f32 %v939, %v956
    %v1011 = vadd.f32 %v940, %v956
    %v1012 = vadd.f32 %v941, %v956
    %v1013 = vadd.f32 %v942, %v956
    %v1014 = vadd.f32 %v943, %v956
    %v1015 = vadd.f32 %v944, %v956
    %v1016 = vadd.f32 %v945, %v956
    %v1017 = vadd.f32 %v946, %v956
    %v1018 = vadd.f32 %v947, %v956
    %v1019 = vadd.f32 %v948, %v956
    %v1020 = vadd.f32 %v949, %v956
    %v1021 = vadd.f32 %v950, %v956
    %v1022 = vmax.f32 %v958, 0.0
    %v1023 = vmax.f32 %v959, 0.0
    %v1024 = vmax.f32 %v960, 0.0
    %v1025 = vmax.f32 %v961, 0.0
    %v1026 = vmax.f32 %v962, 0.0
    %v1027 = vmax.f32 %v963, 0.0
    %v1028 = vmax.f32 %v964, 0.0
    %v1029 = vmax.f32 %v965, 0.0
    %v1030 = vmax.f32 %v966, 0.0
    %v1031 = vmax.f32 %v967, 0.0
    %v1032 = vmax.f32 %v968, 0.0
    %v1033 = vmax.f32 %v969, 0.0
    %v1034 = vmax.f32 %v970, 0.0
    %v1035 = vmax.f32 %v971, 0.0
    %v1036 = vmax.f32 %v972, 0.0
    %v1037 = vmax.f32 %v973, 0.0
    %v1038 = vmax.f32 %v974, 0.0
    %v1039 = vmax.f32 %v975, 0.0
    %v1040 = vmax.f32 %v976, 0.0
    %v1041 = vmax.f32 %v977, 0.0
    %v1042 = vmax.f32 %v978, 0.0
    %v1043 = vmax.f32 %v979, 0.0
    %v1044 = vmax.f32 %v980, 0.0
    %v1045 = vmax.f32 %v981, 0.0
    %v1046 = vmax.f32 %v982, 0.0
    %v1047 = vmax.f32 %v983, 0.0
    %v1048 = vmax.f32 %v984, 0.0
    %v1049 = vmax.f32 %v985, 0.0
    %v1050 = vmax.f32 %v986, 0.0
    %v1051 = vmax.f32 %v987, 0.0
    %v1052 = vmax.f32 %v988, 0.0
    %v1053 = vmax.f32 %v989, 0.0
    %v1054 = vmax.f32 %v990, 0.0
    %v1055 = vmax.f32 %v991, 0.0
    %v1056 = vmax.f32 %v992, 0.0
    %v1057 = vmax.f32 %v993, 0.0
    %v1058 = vmax.f32 %v994, 0.0
    %v1059 = vmax.f32 %v995, 0.0
    %v1060 = vmax.f32 %v996, 0.0
    %v1061 = vmax.f32 %v997, 0.0
    %v1062 = vmax.f32 %v998, 0.0
    %v1063 = vmax.f32 %v999, 0.0
    %v1064 = vmax.f32 %v1000, 0.0
    %v1065 = vmax.f32 %v1001, 0.0
    %v1066 = vmax.f32 %v1002, 0.0
    %v1067 = vmax.f32 %v1003, 0.0
    %v1068 = vmax.f32 %v1004, 0.0
    %v1069 = vmax.f32 %v1005, 0.0
    %v1070 = vmax.f32 %v1006, 0.0
    %v1071 = vmax.f32 %v1007, 0.0
    %v1072 = vmax.f32 %v1008, 0.0
    %v1073 = vmax.f32 %v1009, 0.0
    %v1074 = vmax.f32 %v1010, 0.0
    %v1075 = vmax.f32 %v1011, 0.0
    %v1076 = vmax.f32 %v1012, 0.0
    %v1077 = vmax.f32 %v1013, 0.0
    %v1078 = vmax.f32 %v1014, 0.0
    %v1079 = vmax.f32 %v1015, 0.0
    %v1080 = vmax.f32 %v1016, 0.0
    %v1081 = vmax.f32 %v1017, 0.0
    %v1082 = vmax.f32 %v1018, 0.0
    %v1083 = vmax.f32 %v1019, 0.0
    %v1084 = vmax.f32 %v1020, 0.0
    %v1085 = vmax.f32 %v1021, 0.0
    %1086 = vst [vmem:[%s3] sm:$0xff] %v1022
    %1087 = vst [vmem:[%s3 + $0x8] sm:$0xff] %v1023
    %1088 = vst [vmem:[%s3 + $0x10] sm:$0xff] %v1024
    %1089 = vst [vmem:[%s3 + $0x18] sm:$0xff] %v1025
    %1090 = vst [vmem:[%s3 + $0x20] sm:$0xff] %v1026
    %1091 = vst [vmem:[%s3 + $0x28] sm:$0xff] %v1027
    %1092 = vst [vmem:[%s3 + $0x30] sm:$0xff] %v1028
    %1093 = vst [vmem:[%s3 + $0x38] sm:$0xff] %v1029
    %1094 = vst [vmem:[%s3 + $0x40] sm:$0xff] %v1030
    %1095 = vst [vmem:[%s3 + $0x48] sm:$0xff] %v1031
    %1096 = vst [vmem:[%s3 + $0x50] sm:$0xff] %v1032
    %1097 = vst [vmem:[%s3 + $0x58] sm:$0xff] %v1033
    %1098 = vst [vmem:[%s3 + $0x60] sm:$0xff] %v1034
    %1099 = vst [vmem:[%s3 + $0x68] sm:$0xff] %v1035
    %1100 = vst [vmem:[%s3 + $0x70] sm:$0xff] %v1036
    %1101 = vst [vmem:[%s3 + $0x78] sm:$0xff] %v1037
    %1102 = vst [vmem:[%s3 + $0x80] sm:$0xff] %v1038
    %1103 = vst [vmem:[%s3 + $0x88] sm:$0xff] %v1039
    %1104 = vst [vmem:[%s3 + $0x90] sm:$0xff] %v1040
    %1105 = vst [vmem:[%s3 + $0x98] sm:$0xff] %v1041
    %1106 = vst [vmem:[%s3 + $0xa0] sm:$0xff] %v1042
    %1107 = vst [vmem:[%s3 + $0xa8] sm:$0xff] %v1043
    %1108 = vst [vmem:[%s3 + $0xb0] sm:$0xff] %v1044
    %1109 = vst [vmem:[%s3 + $0xb8] sm:$0xff] %v1045
    %1110 = vst [vmem:[%s3 + $0xc0] sm:$0xff] %v1046
    %1111 = vst [vmem:[%s3 + $0xc8] sm:$0xff] %v1047
    %1112 = vst [vmem:[%s3 + $0xd0] sm:$0xff] %v1048
    %1113 = vst [vmem:[%s3 + $0xd8] sm:$0xff] %v1049
    %1114 = vst [vmem:[%s3 + $0xe0] sm:$0xff] %v1050
    %1115 = vst [vmem:[%s3 + $0xe8] sm:$0xff] %v1051
    %1116 = vst [vmem:[%s3 + $0xf0] sm:$0xff] %v1052
    %1117 = vst [vmem:[%s3 + $0xf8] sm:$0xff] %v1053
    %1118 = vst [vmem:[%s3 + $0x100] sm:$0xff] %v1054
    %1119 = vst [vmem:[%s3 + $0x108] sm:$0xff] %v1055
    %1120 = vst [vmem:[%s3 + $0x110] sm:$0xff] %v1056
    %1121 = vst [vmem:[%s3 + $0x118] sm:$0xff] %v1057
    %1122 = vst [vmem:[%s3 + $0x120] sm:$0xff] %v1058
    %1123 = vst [vmem:[%s3 + $0x128] sm:$0xff] %v1059
    %1124 = vst [vmem:[%s3 + $0x130] sm:$0xff] %v1060
    %1125 = vst [vmem:[%s3 + $0x138] sm:$0xff] %v1061
    %1126 = vst [vmem:[%s3 + $0x140] sm:$0xff] %v1062
    %1127 = vst [vmem:[%s3 + $0x148] sm:$0xff] %v1063
    %1128 = vst [vmem:[%s3 + $0x150] sm:$0xff] %v1064
    %1129 = vst [vmem:[%s3 + $0x158] sm:$0xff] %v1065
    %1130 = vst [vmem:[%s3 + $0x160] sm:$0xff] %v1066
    %1131 = vst [vmem:[%s3 + $0x168] sm:$0xff] %v1067
    %1132 = vst [vmem:[%s3 + $0x170] sm:$0xff] %v1068
    %1133 = vst [vmem:[%s3 + $0x178] sm:$0xff] %v1069
    %1134 = vst [vmem:[%s3 + $0x180] sm:$0xff] %v1070
    %1135 = vst [vmem:[%s3 + $0x188] sm:$0xff] %v1071
    %1136 = vst [vmem:[%s3 + $0x190] sm:$0xff] %v1072
    %1137 = vst [vmem:[%s3 + $0x198] sm:$0xff] %v1073
    %1138 = vst [vmem:[%s3 + $0x1a0] sm:$0xff] %v1074
    %1139 = vst [vmem:[%s3 + $0x1a8] sm:$0xff] %v1075
    %1140 = vst [vmem:[%s3 + $0x1b0] sm:$0xff] %v1076
    %1141 = vst [vmem:[%s3 + $0x1b8] sm:$0xff] %v1077
    %1142 = vst [vmem:[%s3 + $0x1c0] sm:$0xff] %v1078
    %1143 = vst [vmem:[%s3 + $0x1c8] sm:$0xff] %v1079
    %1144 = vst [vmem:[%s3 + $0x1d0] sm:$0xff] %v1080
    %1145 = vst [vmem:[%s3 + $0x1d8] sm:$0xff] %v1081
    %1146 = vst [vmem:[%s3 + $0x1e0] sm:$0xff] %v1082
    %1147 = vst [vmem:[%s3 + $0x1e8] sm:$0xff] %v1083
    %1148 = vst [vmem:[%s3 + $0x1f0] sm:$0xff] %v1084
    %1149 = vst [vmem:[%s3 + $0x1f8] sm:$0xff] %v1085
  $region21: #{_lambda_.6} parent=0 // pred_fallthru
    _
  // Predicated region
  $region22: #{_lambda_.6} parent=0 // pred_check
    _
  $region23: #{_lambda_.6} parent=0 // pred_check_branch
    %1151 = sbr.rel (0) target = $region25
  $region24: #{_lambda_.6} parent=0 // pred_region
    _
  $region25: #{_lambda_.6} parent=0 // pred_fallthru
    _
  // Predicated region
  $region26: #{_lambda_.6} parent=0 // pred_check
    _
  $region27: #{_lambda_.6} parent=0 // pred_check_branch
    %1153 = sbr.rel (0) target = $region29
  $region28: #{_lambda_.6} parent=0 // pred_region
    _
  $region29: #{_lambda_.6} parent=0 // pred_fallthru
    _

// kernel: _lambda_.8
$region0: #{_lambda_.8}
  #allocation0 [shape = 'u32[]', space=smem, size = 0x4, offset = 0x4, fixed_abs, tag = 'smem constant byte address 0x4 - core index']
  #allocation1 [shape = 'u32[144,128]{1,0:T(1,128)}', space=vmem, size = 0x12000, scoped, tag = 'internal scratch']
  #allocation2 [shape = 'f32[512,128]{1,0:T(8,128)}', space=vmem, size = 0x40000, scoped, tag = 'scratch operand']
  %s0 = inlined_call_operand.vmem [shape: bf16[512,256], index: 0, kind: input, shape index: {}]
  %s1 = inlined_call_operand.vmem [shape: bf16[256,128], index: 1, kind: input, shape index: {}]
  %s2 = inlined_call_operand.vmem [shape: f32[1,128], index: 2, kind: input, shape index: {}]
  %s3 = inlined_call_operand.vmem [shape: f32[512,128], index: 3, kind: output, shape index: {}]
  %s4 = sld [smem:[#allocation0]]
  $region30: #{_lambda_.8} parent=0
    _
  %s6 = ssub.s32 1, %s4
  %s7 = scalar_select 0, %s6, %s4
  // Predicated region
  $region2: #{_lambda_.8} parent=0 // pred_check
    _
  $region3: #{_lambda_.8} parent=0 // pred_check_branch
    %9 = sbr.rel (0) target = $region5
  $region4: #{_lambda_.8} parent=0 // pred_region
    _
  $region5: #{_lambda_.8} parent=0 // pred_fallthru
    _
  // Predicated region
  $region6: #{_lambda_.8} parent=0 // pred_check
    _
  $region7: #{_lambda_.8} parent=0 // pred_check_branch
    %11 = sbr.rel (0) target = $region9
  $region8: #{_lambda_.8} parent=0 // pred_region
    _
  $region9: #{_lambda_.8} parent=0 // pred_fallthru
    _
  // Predicated region
  $region10: #{_lambda_.8} parent=0 // pred_check
    _
  $region11: #{_lambda_.8} parent=0 // pred_check_branch
    %13 = sbr.rel (0) target = $region13
  $region12: #{_lambda_.8} parent=0 // pred_region
    _
  $region13: #{_lambda_.8} parent=0 // pred_fallthru
    _
  %p15 = scmp.eq.s32.totalorder 0, 0
  // Predicated region
  $region14: #{_lambda_.8} parent=0 // pred_check
    %p16 = pneg %p15
  $region15: #{_lambda_.8} parent=0 // pred_check_branch
    %18 = sbr.rel (%p16) target = $region17
  $region16: #{_lambda_.8} parent=0 // pred_region
    %19 = vst [vmem:[#allocation2] sm:$0xff] 0.0
    %20 = vst [vmem:[#allocation2 + $0x8] sm:$0xff] 0.0
    %21 = vst [vmem:[#allocation2 + $0x10] sm:$0xff] 0.0
    %22 = vst [vmem:[#allocation2 + $0x18] sm:$0xff] 0.0
    %23 = vst [vmem:[#allocation2 + $0x20] sm:$0xff] 0.0
    %24 = vst [vmem:[#allocation2 + $0x28] sm:$0xff] 0.0
    %25 = vst [vmem:[#allocation2 + $0x30] sm:$0xff] 0.0
    %26 = vst [vmem:[#allocation2 + $0x38] sm:$0xff] 0.0
    %27 = vst [vmem:[#allocation2 + $0x40] sm:$0xff] 0.0
    %28 = vst [vmem:[#allocation2 + $0x48] sm:$0xff] 0.0
    %29 = vst [vmem:[#allocation2 + $0x50] sm:$0xff] 0.0
    %30 = vst [vmem:[#allocation2 + $0x58] sm:$0xff] 0.0
    %31 = vst [vmem:[#allocation2 + $0x60] sm:$0xff] 0.0
    %32 = vst [vmem:[#allocation2 + $0x68] sm:$0xff] 0.0
    %33 = vst [vmem:[#allocation2 + $0x70] sm:$0xff] 0.0
    %34 = vst [vmem:[#allocation2 + $0x78] sm:$0xff] 0.0
    %35 = vst [vmem:[#allocation2 + $0x80] sm:$0xff] 0.0
    %36 = vst [vmem:[#allocation2 + $0x88] sm:$0xff] 0.0
    %37 = vst [vmem:[#allocation2 + $0x90] sm:$0xff] 0.0
    %38 = vst [vmem:[#allocation2 + $0x98] sm:$0xff] 0.0
    %39 = vst [vmem:[#allocation2 + $0xa0] sm:$0xff] 0.0
    %40 = vst [vmem:[#allocation2 + $0xa8] sm:$0xff] 0.0
    %41 = vst [vmem:[#allocation2 + $0xb0] sm:$0xff] 0.0
    %42 = vst [vmem:[#allocation2 + $0xb8] sm:$0xff] 0.0
    %43 = vst [vmem:[#allocation2 + $0xc0] sm:$0xff] 0.0
    %44 = vst [vmem:[#allocation2 + $0xc8] sm:$0xff] 0.0
    %45 = vst [vmem:[#allocation2 + $0xd0] sm:$0xff] 0.0
    %46 = vst [vmem:[#allocation2 + $0xd8] sm:$0xff] 0.0
    %47 = vst [vmem:[#allocation2 + $0xe0] sm:$0xff] 0.0
    %48 = vst [vmem:[#allocation2 + $0xe8] sm:$0xff] 0.0
    %49 = vst [vmem:[#allocation2 + $0xf0] sm:$0xff] 0.0
    %50 = vst [vmem:[#allocation2 + $0xf8] sm:$0xff] 0.0
    %51 = vst [vmem:[#allocation2 + $0x100] sm:$0xff] 0.0
    %52 = vst [vmem:[#allocation2 + $0x108] sm:$0xff] 0.0
    %53 = vst [vmem:[#allocation2 + $0x110] sm:$0xff] 0.0
    %54 = vst [vmem:[#allocation2 + $0x118] sm:$0xff] 0.0
    %55 = vst [vmem:[#allocation2 + $0x120] sm:$0xff] 0.0
    %56 = vst [vmem:[#allocation2 + $0x128] sm:$0xff] 0.0
    %57 = vst [vmem:[#allocation2 + $0x130] sm:$0xff] 0.0
    %58 = vst [vmem:[#allocation2 + $0x138] sm:$0xff] 0.0
    %59 = vst [vmem:[#allocation2 + $0x140] sm:$0xff] 0.0
    %60 = vst [vmem:[#allocation2 + $0x148] sm:$0xff] 0.0
    %61 = vst [vmem:[#allocation2 + $0x150] sm:$0xff] 0.0
    %62 = vst [vmem:[#allocation2 + $0x158] sm:$0xff] 0.0
    %63 = vst [vmem:[#allocation2 + $0x160] sm:$0xff] 0.0
    %64 = vst [vmem:[#allocation2 + $0x168] sm:$0xff] 0.0
    %65 = vst [vmem:[#allocation2 + $0x170] sm:$0xff] 0.0
    %66 = vst [vmem:[#allocation2 + $0x178] sm:$0xff] 0.0
    %67 = vst [vmem:[#allocation2 + $0x180] sm:$0xff] 0.0
    %68 = vst [vmem:[#allocation2 + $0x188] sm:$0xff] 0.0
    %69 = vst [vmem:[#allocation2 + $0x190] sm:$0xff] 0.0
    %70 = vst [vmem:[#allocation2 + $0x198] sm:$0xff] 0.0
    %71 = vst [vmem:[#allocation2 + $0x1a0] sm:$0xff] 0.0
    %72 = vst [vmem:[#allocation2 + $0x1a8] sm:$0xff] 0.0
    %73 = vst [vmem:[#allocation2 + $0x1b0] sm:$0xff] 0.0
    %74 = vst [vmem:[#allocation2 + $0x1b8] sm:$0xff] 0.0
    %75 = vst [vmem:[#allocation2 + $0x1c0] sm:$0xff] 0.0
    %76 = vst [vmem:[#allocation2 + $0x1c8] sm:$0xff] 0.0
    %77 = vst [vmem:[#allocation2 + $0x1d0] sm:$0xff] 0.0
    %78 = vst [vmem:[#allocation2 + $0x1d8] sm:$0xff] 0.0
    %79 = vst [vmem:[#allocation2 + $0x1e0] sm:$0xff] 0.0
    %80 = vst [vmem:[#allocation2 + $0x1e8] sm:$0xff] 0.0
    %81 = vst [vmem:[#allocation2 + $0x1f0] sm:$0xff] 0.0
    %82 = vst [vmem:[#allocation2 + $0x1f8] sm:$0xff] 0.0
  $region17: #{_lambda_.8} parent=0 // pred_fallthru
    _
  %v83 = vld [vmem:[#allocation2] sm:$0xff]
  %v84 = vld [vmem:[#allocation2 + $0x8] sm:$0xff]
  %v85 = vld [vmem:[#allocation2 + $0x10] sm:$0xff]
  %v86 = vld [vmem:[#allocation2 + $0x18] sm:$0xff]
  %v87 = vld [vmem:[#allocation2 + $0x20] sm:$0xff]
  %v88 = vld [vmem:[#allocation2 + $0x28] sm:$0xff]
  %v89 = vld [vmem:[#allocation2 + $0x30] sm:$0xff]
  %v90 = vld [vmem:[#allocation2 + $0x38] sm:$0xff]
  %v91 = vld [vmem:[#allocation2 + $0x40] sm:$0xff]
  %v92 = vld [vmem:[#allocation2 + $0x48] sm:$0xff]
  %v93 = vld [vmem:[#allocation2 + $0x50] sm:$0xff]
  %v94 = vld [vmem:[#allocation2 + $0x58] sm:$0xff]
  %v95 = vld [vmem:[#allocation2 + $0x60] sm:$0xff]
  %v96 = vld [vmem:[#allocation2 + $0x68] sm:$0xff]
  %v97 = vld [vmem:[#allocation2 + $0x70] sm:$0xff]
  %v98 = vld [vmem:[#allocation2 + $0x78] sm:$0xff]
  %v99 = vld [vmem:[#allocation2 + $0x80] sm:$0xff]
  %v100 = vld [vmem:[#allocation2 + $0x88] sm:$0xff]
  %v101 = vld [vmem:[#allocation2 + $0x90] sm:$0xff]
  %v102 = vld [vmem:[#allocation2 + $0x98] sm:$0xff]
  %v103 = vld [vmem:[#allocation2 + $0xa0] sm:$0xff]
  %v104 = vld [vmem:[#allocation2 + $0xa8] sm:$0xff]
  %v105 = vld [vmem:[#allocation2 + $0xb0] sm:$0xff]
  %v106 = vld [vmem:[#allocation2 + $0xb8] sm:$0xff]
  %v107 = vld [vmem:[#allocation2 + $0xc0] sm:$0xff]
  %v108 = vld [vmem:[#allocation2 + $0xc8] sm:$0xff]
  %v109 = vld [vmem:[#allocation2 + $0xd0] sm:$0xff]
  %v110 = vld [vmem:[#allocation2 + $0xd8] sm:$0xff]
  %v111 = vld [vmem:[#allocation2 + $0xe0] sm:$0xff]
  %v112 = vld [vmem:[#allocation2 + $0xe8] sm:$0xff]
  %v113 = vld [vmem:[#allocation2 + $0xf0] sm:$0xff]
  %v114 = vld [vmem:[#allocation2 + $0xf8] sm:$0xff]
  %v115 = vld [vmem:[#allocation2 + $0x100] sm:$0xff]
  %v116 = vld [vmem:[#allocation2 + $0x108] sm:$0xff]
  %v117 = vld [vmem:[#allocation2 + $0x110] sm:$0xff]
  %v118 = vld [vmem:[#allocation2 + $0x118] sm:$0xff]
  %v119 = vld [vmem:[#allocation2 + $0x120] sm:$0xff]
  %v120 = vld [vmem:[#allocation2 + $0x128] sm:$0xff]
  %v121 = vld [vmem:[#allocation2 + $0x130] sm:$0xff]
  %v122 = vld [vmem:[#allocation2 + $0x138] sm:$0xff]
  %v123 = vld [vmem:[#allocation2 + $0x140] sm:$0xff]
  %v124 = vld [vmem:[#allocation2 + $0x148] sm:$0xff]
  %v125 = vld [vmem:[#allocation2 + $0x150] sm:$0xff]
  %v126 = vld [vmem:[#allocation2 + $0x158] sm:$0xff]
  %v127 = vld [vmem:[#allocation2 + $0x160] sm:$0xff]
  %v128 = vld [vmem:[#allocation2 + $0x168] sm:$0xff]
  %v129 = vld [vmem:[#allocation2 + $0x170] sm:$0xff]
  %v130 = vld [vmem:[#allocation2 + $0x178] sm:$0xff]
  %v131 = vld [vmem:[#allocation2 + $0x180] sm:$0xff]
  %v132 = vld [vmem:[#allocation2 + $0x188] sm:$0xff]
  %v133 = vld [vmem:[#allocation2 + $0x190] sm:$0xff]
  %v134 = vld [vmem:[#allocation2 + $0x198] sm:$0xff]
  %v135 = vld [vmem:[#allocation2 + $0x1a0] sm:$0xff]
  %v136 = vld [vmem:[#allocation2 + $0x1a8] sm:$0xff]
  %v137 = vld [vmem:[#allocation2 + $0x1b0] sm:$0xff]
  %v138 = vld [vmem:[#allocation2 + $0x1b8] sm:$0xff]
  %v139 = vld [vmem:[#allocation2 + $0x1c0] sm:$0xff]
  %v140 = vld [vmem:[#allocation2 + $0x1c8] sm:$0xff]
  %v141 = vld [vmem:[#allocation2 + $0x1d0] sm:$0xff]
  %v142 = vld [vmem:[#allocation2 + $0x1d8] sm:$0xff]
  %v143 = vld [vmem:[#allocation2 + $0x1e0] sm:$0xff]
  %v144 = vld [vmem:[#allocation2 + $0x1e8] sm:$0xff]
  %v145 = vld [vmem:[#allocation2 + $0x1f0] sm:$0xff]
  %v146 = vld [vmem:[#allocation2 + $0x1f8] sm:$0xff]
  %v147 = vld [vmem:[%s0] sm:$0xff]
  %v148 = vld [vmem:[%s0 + $0x8] sm:$0xff]
  %v149 = vld [vmem:[%s0 + $0x10] sm:$0xff]
  %v150 = vld [vmem:[%s0 + $0x18] sm:$0xff]
  %v151 = vld [vmem:[%s0 + $0x20] sm:$0xff]
  %v152 = vld [vmem:[%s0 + $0x28] sm:$0xff]
  %v153 = vld [vmem:[%s0 + $0x30] sm:$0xff]
  %v154 = vld [vmem:[%s0 + $0x38] sm:$0xff]
  %v155 = vld [vmem:[%s0 + $0x40] sm:$0xff]
  %v156 = vld [vmem:[%s0 + $0x48] sm:$0xff]
  %v157 = vld [vmem:[%s0 + $0x50] sm:$0xff]
  %v158 = vld [vmem:[%s0 + $0x58] sm:$0xff]
  %v159 = vld [vmem:[%s0 + $0x60] sm:$0xff]
  %v160 = vld [vmem:[%s0 + $0x68] sm:$0xff]
  %v161 = vld [vmem:[%s0 + $0x70] sm:$0xff]
  %v162 = vld [vmem:[%s0 + $0x78] sm:$0xff]
  %v163 = vld [vmem:[%s0 + $0x80] sm:$0xff]
  %v164 = vld [vmem:[%s0 + $0x88] sm:$0xff]
  %v165 = vld [vmem:[%s0 + $0x90] sm:$0xff]
  %v166 = vld [vmem:[%s0 + $0x98] sm:$0xff]
  %v167 = vld [vmem:[%s0 + $0xa0] sm:$0xff]
  %v168 = vld [vmem:[%s0 + $0xa8] sm:$0xff]
  %v169 = vld [vmem:[%s0 + $0xb0] sm:$0xff]
  %v170 = vld [vmem:[%s0 + $0xb8] sm:$0xff]
  %v171 = vld [vmem:[%s0 + $0xc0] sm:$0xff]
  %v172 = vld [vmem:[%s0 + $0xc8] sm:$0xff]
  %v173 = vld [vmem:[%s0 + $0xd0] sm:$0xff]
  %v174 = vld [vmem:[%s0 + $0xd8] sm:$0xff]
  %v175 = vld [vmem:[%s0 + $0xe0] sm:$0xff]
  %v176 = vld [vmem:[%s0 + $0xe8] sm:$0xff]
  %v177 = vld [vmem:[%s0 + $0xf0] sm:$0xff]
  %v178 = vld [vmem:[%s0 + $0xf8] sm:$0xff]
  %v179 = vld [vmem:[%s0 + $0x100] sm:$0xff]
  %v180 = vld [vmem:[%s0 + $0x108] sm:$0xff]
  %v181 = vld [vmem:[%s0 + $0x110] sm:$0xff]
  %v182 = vld [vmem:[%s0 + $0x118] sm:$0xff]
  %v183 = vld [vmem:[%s0 + $0x120] sm:$0xff]
  %v184 = vld [vmem:[%s0 + $0x128] sm:$0xff]
  %v185 = vld [vmem:[%s0 + $0x130] sm:$0xff]
  %v186 = vld [vmem:[%s0 + $0x138] sm:$0xff]
  %v187 = vld [vmem:[%s0 + $0x140] sm:$0xff]
  %v188 = vld [vmem:[%s0 + $0x148] sm:$0xff]
  %v189 = vld [vmem:[%s0 + $0x150] sm:$0xff]
  %v190 = vld [vmem:[%s0 + $0x158] sm:$0xff]
  %v191 = vld [vmem:[%s0 + $0x160] sm:$0xff]
  %v192 = vld [vmem:[%s0 + $0x168] sm:$0xff]
  %v193 = vld [vmem:[%s0 + $0x170] sm:$0xff]
  %v194 = vld [vmem:[%s0 + $0x178] sm:$0xff]
  %v195 = vld [vmem:[%s0 + $0x180] sm:$0xff]
  %v196 = vld [vmem:[%s0 + $0x188] sm:$0xff]
  %v197 = vld [vmem:[%s0 + $0x190] sm:$0xff]
  %v198 = vld [vmem:[%s0 + $0x198] sm:$0xff]
  %v199 = vld [vmem:[%s0 + $0x1a0] sm:$0xff]
  %v200 = vld [vmem:[%s0 + $0x1a8] sm:$0xff]
  %v201 = vld [vmem:[%s0 + $0x1b0] sm:$0xff]
  %v202 = vld [vmem:[%s0 + $0x1b8] sm:$0xff]
  %v203 = vld [vmem:[%s0 + $0x1c0] sm:$0xff]
  %v204 = vld [vmem:[%s0 + $0x1c8] sm:$0xff]
  %v205 = vld [vmem:[%s0 + $0x1d0] sm:$0xff]
  %v206 = vld [vmem:[%s0 + $0x1d8] sm:$0xff]
  %v207 = vld [vmem:[%s0 + $0x1e0] sm:$0xff]
  %v208 = vld [vmem:[%s0 + $0x1e8] sm:$0xff]
  %v209 = vld [vmem:[%s0 + $0x1f0] sm:$0xff]
  %v210 = vld [vmem:[%s0 + $0x1f8] sm:$0xff]
  %v211 = vld [vmem:[%s1] sm:$0xf]
  %v212 = vld [vmem:[%s1 + $0x4] sm:$0xf]
  %v213 = vld [vmem:[%s1 + $0x8] sm:$0xf]
  %v214 = vld [vmem:[%s1 + $0xc] sm:$0xf]
  %v215 = vld [vmem:[%s1 + $0x10] sm:$0xf]
  %v216 = vld [vmem:[%s1 + $0x14] sm:$0xf]
  %v217 = vld [vmem:[%s1 + $0x18] sm:$0xf]
  %v218 = vld [vmem:[%s1 + $0x1c] sm:$0xf]
  %v219 = vld [vmem:[%s1 + $0x20] sm:$0xf]
  %v220 = vld [vmem:[%s1 + $0x24] sm:$0xf]
  %v221 = vld [vmem:[%s1 + $0x28] sm:$0xf]
  %v222 = vld [vmem:[%s1 + $0x2c] sm:$0xf]
  %v223 = vld [vmem:[%s1 + $0x30] sm:$0xf]
  %v224 = vld [vmem:[%s1 + $0x34] sm:$0xf]
  %v225 = vld [vmem:[%s1 + $0x38] sm:$0xf]
  %v226 = vld [vmem:[%s1 + $0x3c] sm:$0xf]
  %v227 = vld [vmem:[%s1 + $0x40] sm:$0xf]
  %v228 = vld [vmem:[%s1 + $0x44] sm:$0xf]
  %v229 = vld [vmem:[%s1 + $0x48] sm:$0xf]
  %v230 = vld [vmem:[%s1 + $0x4c] sm:$0xf]
  %v231 = vld [vmem:[%s1 + $0x50] sm:$0xf]
  %v232 = vld [vmem:[%s1 + $0x54] sm:$0xf]
  %v233 = vld [vmem:[%s1 + $0x58] sm:$0xf]
  %v234 = vld [vmem:[%s1 + $0x5c] sm:$0xf]
  %v235 = vld [vmem:[%s1 + $0x60] sm:$0xf]
  %v236 = vld [vmem:[%s1 + $0x64] sm:$0xf]
  %v237 = vld [vmem:[%s1 + $0x68] sm:$0xf]
  %v238 = vld [vmem:[%s1 + $0x6c] sm:$0xf]
  %v239 = vld [vmem:[%s1 + $0x70] sm:$0xf]
  %v240 = vld [vmem:[%s1 + $0x74] sm:$0xf]
  %v241 = vld [vmem:[%s1 + $0x78] sm:$0xf]
  %v242 = vld [vmem:[%s1 + $0x7c] sm:$0xf]
  %v307 = vunpack.c.l.b16 %v147
  %v308 = vunpack.c.h.b16 %v147
  %v309 = vunpack.c.l.b16 %v148
  %v310 = vunpack.c.h.b16 %v148
  %v311 = vunpack.c.l.b16 %v149
  %v312 = vunpack.c.h.b16 %v149
  %v313 = vunpack.c.l.b16 %v150
  %v314 = vunpack.c.h.b16 %v150
  %v315 = vunpack.c.l.b16 %v151
  %v316 = vunpack.c.h.b16 %v151
  %v317 = vunpack.c.l.b16 %v152
  %v318 = vunpack.c.h.b16 %v152
  %v319 = vunpack.c.l.b16 %v153
  %v320 = vunpack.c.h.b16 %v153
  %v321 = vunpack.c.l.b16 %v154
  %v322 = vunpack.c.h.b16 %v154
  %v323 = vunpack.c.l.b16 %v155
  %v324 = vunpack.c.h.b16 %v155
  %v325 = vunpack.c.l.b16 %v156
  %v326 = vunpack.c.h.b16 %v156
  %v327 = vunpack.c.l.b16 %v157
  %v328 = vunpack.c.h.b16 %v157
  %v329 = vunpack.c.l.b16 %v158
  %v330 = vunpack.c.h.b16 %v158
  %v331 = vunpack.c.l.b16 %v159
  %v332 = vunpack.c.h.b16 %v159
  %v333 = vunpack.c.l.b16 %v160
  %v334 = vunpack.c.h.b16 %v160
  %v335 = vunpack.c.l.b16 %v161
  %v336 = vunpack.c.h.b16 %v161
  %v337 = vunpack.c.l.b16 %v162
  %v338 = vunpack.c.h.b16 %v162
  %v339 = vunpack.c.l.b16 %v163
  %v340 = vunpack.c.h.b16 %v163
  %v341 = vunpack.c.l.b16 %v164
  %v342 = vunpack.c.h.b16 %v164
  %v343 = vunpack.c.l.b16 %v165
  %v344 = vunpack.c.h.b16 %v165
  %v345 = vunpack.c.l.b16 %v166
  %v346 = vunpack.c.h.b16 %v166
  %v347 = vunpack.c.l.b16 %v167
  %v348 = vunpack.c.h.b16 %v167
  %v349 = vunpack.c.l.b16 %v168
  %v350 = vunpack.c.h.b16 %v168
  %v351 = vunpack.c.l.b16 %v169
  %v352 = vunpack.c.h.b16 %v169
  %v353 = vunpack.c.l.b16 %v170
  %v354 = vunpack.c.h.b16 %v170
  %v355 = vunpack.c.l.b16 %v171
  %v356 = vunpack.c.h.b16 %v171
  %v357 = vunpack.c.l.b16 %v172
  %v358 = vunpack.c.h.b16 %v172
  %v359 = vunpack.c.l.b16 %v173
  %v360 = vunpack.c.h.b16 %v173
  %v361 = vunpack.c.l.b16 %v174
  %v362 = vunpack.c.h.b16 %v174
  %v363 = vunpack.c.l.b16 %v175
  %v364 = vunpack.c.h.b16 %v175
  %v365 = vunpack.c.l.b16 %v176
  %v366 = vunpack.c.h.b16 %v176
  %v367 = vunpack.c.l.b16 %v177
  %v368 = vunpack.c.h.b16 %v177
  %v369 = vunpack.c.l.b16 %v178
  %v370 = vunpack.c.h.b16 %v178
  %v371 = vunpack.c.l.b16 %v179
  %v372 = vunpack.c.h.b16 %v179
  %v373 = vunpack.c.l.b16 %v180
  %v374 = vunpack.c.h.b16 %v180
  %v375 = vunpack.c.l.b16 %v181
  %v376 = vunpack.c.h.b16 %v181
  %v377 = vunpack.c.l.b16 %v182
  %v378 = vunpack.c.h.b16 %v182
  %v379 = vunpack.c.l.b16 %v183
  %v380 = vunpack.c.h.b16 %v183
  %v381 = vunpack.c.l.b16 %v184
  %v382 = vunpack.c.h.b16 %v184
  %v383 = vunpack.c.l.b16 %v185
  %v384 = vunpack.c.h.b16 %v185
  %v385 = vunpack.c.l.b16 %v186
  %v386 = vunpack.c.h.b16 %v186
  %v387 = vunpack.c.l.b16 %v187
  %v388 = vunpack.c.h.b16 %v187
  %v389 = vunpack.c.l.b16 %v188
  %v390 = vunpack.c.h.b16 %v188
  %v391 = vunpack.c.l.b16 %v189
  %v392 = vunpack.c.h.b16 %v189
  %v393 = vunpack.c.l.b16 %v190
  %v394 = vunpack.c.h.b16 %v190
  %v395 = vunpack.c.l.b16 %v191
  %v396 = vunpack.c.h.b16 %v191
  %v397 = vunpack.c.l.b16 %v192
  %v398 = vunpack.c.h.b16 %v192
  %v399 = vunpack.c.l.b16 %v193
  %v400 = vunpack.c.h.b16 %v193
  %v401 = vunpack.c.l.b16 %v194
  %v402 = vunpack.c.h.b16 %v194
  %v403 = vunpack.c.l.b16 %v195
  %v404 = vunpack.c.h.b16 %v195
  %v405 = vunpack.c.l.b16 %v196
  %v406 = vunpack.c.h.b16 %v196
  %v407 = vunpack.c.l.b16 %v197
  %v408 = vunpack.c.h.b16 %v197
  %v409 = vunpack.c.l.b16 %v198
  %v410 = vunpack.c.h.b16 %v198
  %v411 = vunpack.c.l.b16 %v199
  %v412 = vunpack.c.h.b16 %v199
  %v413 = vunpack.c.l.b16 %v200
  %v414 = vunpack.c.h.b16 %v200
  %v415 = vunpack.c.l.b16 %v201
  %v416 = vunpack.c.h.b16 %v201
  %v417 = vunpack.c.l.b16 %v202
  %v418 = vunpack.c.h.b16 %v202
  %v419 = vunpack.c.l.b16 %v203
  %v420 = vunpack.c.h.b16 %v203
  %v421 = vunpack.c.l.b16 %v204
  %v422 = vunpack.c.h.b16 %v204
  %v423 = vunpack.c.l.b16 %v205
  %v424 = vunpack.c.h.b16 %v205
  %v425 = vunpack.c.l.b16 %v206
  %v426 = vunpack.c.h.b16 %v206
  %v427 = vunpack.c.l.b16 %v207
  %v428 = vunpack.c.h.b16 %v207
  %v429 = vunpack.c.l.b16 %v208
  %v430 = vunpack.c.h.b16 %v208
  %v431 = vunpack.c.l.b16 %v209
  %v432 = vunpack.c.h.b16 %v209
  %v433 = vunpack.c.l.b16 %v210
  %v434 = vunpack.c.h.b16 %v210
  %v435 = vpack.c.b16 %v309, %v307
  %v436 = vpack.c.b16 %v310, %v308
  %v437 = vpack.c.b16 %v313, %v311
  %v438 = vpack.c.b16 %v314, %v312
  %v439 = vpack.c.b16 %v317, %v315
  %v440 = vpack.c.b16 %v318, %v316
  %v441 = vpack.c.b16 %v321, %v319
  %v442 = vpack.c.b16 %v322, %v320
  %v443 = vpack.c.b16 %v325, %v323
  %v444 = vpack.c.b16 %v326, %v324
  %v445 = vpack.c.b16 %v329, %v327
  %v446 = vpack.c.b16 %v330, %v328
  %v447 = vpack.c.b16 %v333, %v331
  %v448 = vpack.c.b16 %v334, %v332
  %v449 = vpack.c.b16 %v337, %v335
  %v450 = vpack.c.b16 %v338, %v336
  %v451 = vpack.c.b16 %v341, %v339
  %v452 = vpack.c.b16 %v342, %v340
  %v453 = vpack.c.b16 %v345, %v343
  %v454 = vpack.c.b16 %v346, %v344
  %v455 = vpack.c.b16 %v349, %v347
  %v456 = vpack.c.b16 %v350, %v348
  %v457 = vpack.c.b16 %v353, %v351
  %v458 = vpack.c.b16 %v354, %v352
  %v459 = vpack.c.b16 %v357, %v355
  %v460 = vpack.c.b16 %v358, %v356
  %v461 = vpack.c.b16 %v361, %v359
  %v462 = vpack.c.b16 %v362, %v360
  %v463 = vpack.c.b16 %v365, %v363
  %v464 = vpack.c.b16 %v366, %v364
  %v465 = vpack.c.b16 %v369, %v367
  %v466 = vpack.c.b16 %v370, %v368
  %v467 = vpack.c.b16 %v373, %v371
  %v468 = vpack.c.b16 %v374, %v372
  %v469 = vpack.c.b16 %v377, %v375
  %v470 = vpack.c.b16 %v378, %v376
  %v471 = vpack.c.b16 %v381, %v379
  %v472 = vpack.c.b16 %v382, %v380
  %v473 = vpack.c.b16 %v385, %v383
  %v474 = vpack.c.b16 %v386, %v384
  %v475 = vpack.c.b16 %v389, %v387
  %v476 = vpack.c.b16 %v390, %v388
  %v477 = vpack.c.b16 %v393, %v391
  %v478 = vpack.c.b16 %v394, %v392
  %v479 = vpack.c.b16 %v397, %v395
  %v480 = vpack.c.b16 %v398, %v396
  %v481 = vpack.c.b16 %v401, %v399
  %v482 = vpack.c.b16 %v402, %v400
  %v483 = vpack.c.b16 %v405, %v403
  %v484 = vpack.c.b16 %v406, %v404
  %v485 = vpack.c.b16 %v409, %v407
  %v486 = vpack.c.b16 %v410, %v408
  %v487 = vpack.c.b16 %v413, %v411
  %v488 = vpack.c.b16 %v414, %v412
  %v489 = vpack.c.b16 %v417, %v415
  %v490 = vpack.c.b16 %v418, %v416
  %v491 = vpack.c.b16 %v421, %v419
  %v492 = vpack.c.b16 %v422, %v420
  %v493 = vpack.c.b16 %v425, %v423
  %v494 = vpack.c.b16 %v426, %v424
  %v495 = vpack.c.b16 %v429, %v427
  %v496 = vpack.c.b16 %v430, %v428
  %v497 = vpack.c.b16 %v433, %v431
  %v498 = vpack.c.b16 %v434, %v432
  %v595 = vunpack.c.l.b16 %v211
  %v596 = vunpack.c.l.b16 %v212
  %v597 = vunpack.c.l.b16 %v213
  %v598 = vunpack.c.l.b16 %v214
  %v599 = vunpack.c.l.b16 %v215
  %v600 = vunpack.c.l.b16 %v216
  %v601 = vunpack.c.l.b16 %v217
  %v602 = vunpack.c.l.b16 %v218
  %v603 = vunpack.c.l.b16 %v219
  %v604 = vunpack.c.l.b16 %v220
  %v605 = vunpack.c.l.b16 %v221
  %v606 = vunpack.c.l.b16 %v222
  %v607 = vunpack.c.l.b16 %v223
  %v608 = vunpack.c.l.b16 %v224
  %v609 = vunpack.c.l.b16 %v225
  %v610 = vunpack.c.l.b16 %v226
  %v611 = vunpack.c.l.b16 %v227
  %v612 = vunpack.c.l.b16 %v228
  %v613 = vunpack.c.l.b16 %v229
  %v614 = vunpack.c.l.b16 %v230
  %v615 = vunpack.c.l.b16 %v231
  %v616 = vunpack.c.l.b16 %v232
  %v617 = vunpack.c.l.b16 %v233
  %v618 = vunpack.c.l.b16 %v234
  %v619 = vunpack.c.l.b16 %v235
  %v620 = vunpack.c.l.b16 %v236
  %v621 = vunpack.c.l.b16 %v237
  %v622 = vunpack.c.l.b16 %v238
  %v623 = vunpack.c.l.b16 %v239
  %v624 = vunpack.c.l.b16 %v240
  %v625 = vunpack.c.l.b16 %v241
  %v626 = vunpack.c.l.b16 %v242
  %v627 = vpack.c.b16 %v596, %v595
  %v628 = vpack.c.b16 %v598, %v597
  %v629 = vpack.c.b16 %v600, %v599
  %v630 = vpack.c.b16 %v602, %v601
  %v631 = vpack.c.b16 %v604, %v603
  %v632 = vpack.c.b16 %v606, %v605
  %v633 = vpack.c.b16 %v608, %v607
  %v634 = vpack.c.b16 %v610, %v609
  %v635 = vpack.c.b16 %v612, %v611
  %v636 = vpack.c.b16 %v614, %v613
  %v637 = vpack.c.b16 %v616, %v615
  %v638 = vpack.c.b16 %v618, %v617
  %v639 = vpack.c.b16 %v620, %v619
  %v640 = vpack.c.b16 %v622, %v621
  %v641 = vpack.c.b16 %v624, %v623
  %v642 = vpack.c.b16 %v626, %v625
  %659 = vmatprep.subr.bf16.mxu0 0
  %660 = vmatpush1.bf16.msra.mxu0 %v634
  %661 = vmatprep.subr.bf16.mxu0 0
  %662 = vmatpush1.bf16.msra.mxu0 %v633
  %663 = vmatprep.subr.bf16.mxu0 0
  %664 = vmatpush1.bf16.msra.mxu0 %v632
  %665 = vmatprep.subr.bf16.mxu0 0
  %666 = vmatpush1.bf16.msra.mxu0 %v631
  %667 = vmatprep.subr.bf16.mxu0 0
  %668 = vmatpush1.bf16.msra.mxu0 %v630
  %669 = vmatprep.subr.bf16.mxu0 0
  %670 = vmatpush1.bf16.msra.mxu0 %v629
  %671 = vmatprep.subr.bf16.mxu0 0
  %672 = vmatpush1.bf16.msra.mxu0 %v628
  %673 = vmatprep.subr.bf16.mxu0 0
  %674 = vmatpush1.bf16.msra.mxu0 %v627
  %675 = vmatprep.subr.bf16.mxu0 0
  %676 = vmatpush2.bf16.msra.mxu0 %v642
  %677 = vmatprep.subr.bf16.mxu0 0
  %678 = vmatpush2.bf16.msra.mxu0 %v641
  %679 = vmatprep.subr.bf16.mxu0 0
  %680 = vmatpush2.bf16.msra.mxu0 %v640
  %681 = vmatprep.subr.bf16.mxu0 0
  %682 = vmatpush2.bf16.msra.mxu0 %v639
  %683 = vmatprep.subr.bf16.mxu0 0
  %684 = vmatpush2.bf16.msra.mxu0 %v638
  %685 = vmatprep.subr.bf16.mxu0 0
  %686 = vmatpush2.bf16.msra.mxu0 %v637
  %687 = vmatprep.subr.bf16.mxu0 0
  %688 = vmatpush2.bf16.msra.mxu0 %v636
  %689 = vmatprep.subr.bf16.mxu0 0
  %690 = vmatpush2.bf16.msra.mxu0 %v635
  %691 = vmatprep.mubr.bf16.mxu0 %v436
  %692 = vmatmul.mubr.bf16.gmra.mxu0 %v435
  %v693 = vpop.f32.mrf.mxu0
  %v694 = vadd.f32 0.0, %v693
  %v695 = vpop.f32.mrf.mxu0
  %v696 = vpop.f32.mrf.mxu0
  %v697 = vadd.f32 0.0, %v696
  %v698 = vpop.f32.mrf.mxu0
  %699 = vmatprep.mubr.bf16.mxu0 %v438
  %700 = vmatmul.mubr.bf16.gmra.mxu0 %v437
  %v701 = vpop.f32.mrf.mxu0
  %v702 = vadd.f32 0.0, %v701
  %v703 = vpop.f32.mrf.mxu0
  %v704 = vpop.f32.mrf.mxu0
  %v705 = vadd.f32 0.0, %v704
  %v706 = vpop.f32.mrf.mxu0
  %707 = vmatprep.mubr.bf16.mxu0 %v440
  %708 = vmatmul.mubr.bf16.gmra.mxu0 %v439
  %v709 = vpop.f32.mrf.mxu0
  %v710 = vadd.f32 0.0, %v709
  %v711 = vpop.f32.mrf.mxu0
  %v712 = vpop.f32.mrf.mxu0
  %v713 = vadd.f32 0.0, %v712
  %v714 = vpop.f32.mrf.mxu0
  %715 = vmatprep.mubr.bf16.mxu0 %v442
  %716 = vmatmul.mubr.bf16.gmra.mxu0 %v441
  %v717 = vpop.f32.mrf.mxu0
  %v718 = vadd.f32 0.0, %v717
  %v719 = vpop.f32.mrf.mxu0
  %v720 = vpop.f32.mrf.mxu0
  %v721 = vadd.f32 0.0, %v720
  %v722 = vpop.f32.mrf.mxu0
  %723 = vmatprep.mubr.bf16.mxu0 %v444
  %724 = vmatmul.mubr.bf16.gmra.mxu0 %v443
  %v725 = vpop.f32.mrf.mxu0
  %v726 = vadd.f32 0.0, %v725
  %v727 = vpop.f32.mrf.mxu0
  %v728 = vpop.f32.mrf.mxu0
  %v729 = vadd.f32 0.0, %v728
  %v730 = vpop.f32.mrf.mxu0
  %731 = vmatprep.mubr.bf16.mxu0 %v446
  %732 = vmatmul.mubr.bf16.gmra.mxu0 %v445
  %v733 = vpop.f32.mrf.mxu0
  %v734 = vadd.f32 0.0, %v733
  %v735 = vpop.f32.mrf.mxu0
  %v736 = vpop.f32.mrf.mxu0
  %v737 = vadd.f32 0.0, %v736
  %v738 = vpop.f32.mrf.mxu0
  %739 = vmatprep.mubr.bf16.mxu0 %v448
  %740 = vmatmul.mubr.bf16.gmra.mxu0 %v447
  %v741 = vpop.f32.mrf.mxu0
  %v742 = vadd.f32 0.0, %v741
  %v743 = vpop.f32.mrf.mxu0
  %v744 = vpop.f32.mrf.mxu0
  %v745 = vadd.f32 0.0, %v744
  %v746 = vpop.f32.mrf.mxu0
  %747 = vmatprep.mubr.bf16.mxu0 %v450
  %748 = vmatmul.mubr.bf16.gmra.mxu0 %v449
  %v749 = vpop.f32.mrf.mxu0
  %v750 = vadd.f32 0.0, %v749
  %v751 = vpop.f32.mrf.mxu0
  %v752 = vpop.f32.mrf.mxu0
  %v753 = vadd.f32 0.0, %v752
  %v754 = vpop.f32.mrf.mxu0
  %755 = vmatprep.mubr.bf16.mxu0 %v452
  %756 = vmatmul.mubr.bf16.gmra.mxu0 %v451
  %v757 = vpop.f32.mrf.mxu0
  %v758 = vadd.f32 0.0, %v757
  %v759 = vpop.f32.mrf.mxu0
  %v760 = vpop.f32.mrf.mxu0
  %v761 = vadd.f32 0.0, %v760
  %v762 = vpop.f32.mrf.mxu0
  %763 = vmatprep.mubr.bf16.mxu0 %v454
  %764 = vmatmul.mubr.bf16.gmra.mxu0 %v453
  %v765 = vpop.f32.mrf.mxu0
  %v766 = vadd.f32 0.0, %v765
  %v767 = vpop.f32.mrf.mxu0
  %v768 = vpop.f32.mrf.mxu0
  %v769 = vadd.f32 0.0, %v768
  %v770 = vpop.f32.mrf.mxu0
  %771 = vmatprep.mubr.bf16.mxu0 %v456
  %772 = vmatmul.mubr.bf16.gmra.mxu0 %v455
  %v773 = vpop.f32.mrf.mxu0
  %v774 = vadd.f32 0.0, %v773
  %v775 = vpop.f32.mrf.mxu0
  %v776 = vpop.f32.mrf.mxu0
  %v777 = vadd.f32 0.0, %v776
  %v778 = vpop.f32.mrf.mxu0
  %779 = vmatprep.mubr.bf16.mxu0 %v458
  %780 = vmatmul.mubr.bf16.gmra.mxu0 %v457
  %v781 = vpop.f32.mrf.mxu0
  %v782 = vadd.f32 0.0, %v781
  %v783 = vpop.f32.mrf.mxu0
  %v784 = vpop.f32.mrf.mxu0
  %v785 = vadd.f32 0.0, %v784
  %v786 = vpop.f32.mrf.mxu0
  %787 = vmatprep.mubr.bf16.mxu0 %v460
  %788 = vmatmul.mubr.bf16.gmra.mxu0 %v459
  %v789 = vpop.f32.mrf.mxu0
  %v790 = vadd.f32 0.0, %v789
  %v791 = vpop.f32.mrf.mxu0
  %v792 = vpop.f32.mrf.mxu0
  %v793 = vadd.f32 0.0, %v792
  %v794 = vpop.f32.mrf.mxu0
  %795 = vmatprep.mubr.bf16.mxu0 %v462
  %796 = vmatmul.mubr.bf16.gmra.mxu0 %v461
  %v797 = vpop.f32.mrf.mxu0
  %v798 = vadd.f32 0.0, %v797
  %v799 = vpop.f32.mrf.mxu0
  %v800 = vpop.f32.mrf.mxu0
  %v801 = vadd.f32 0.0, %v800
  %v802 = vpop.f32.mrf.mxu0
  %803 = vmatprep.mubr.bf16.mxu0 %v464
  %804 = vmatmul.mubr.bf16.gmra.mxu0 %v463
  %v805 = vpop.f32.mrf.mxu0
  %v806 = vadd.f32 0.0, %v805
  %v807 = vpop.f32.mrf.mxu0
  %v808 = vpop.f32.mrf.mxu0
  %v809 = vadd.f32 0.0, %v808
  %v810 = vpop.f32.mrf.mxu0
  %811 = vmatprep.mubr.bf16.mxu0 %v466
  %812 = vmatmul.mubr.bf16.gmra.mxu0 %v465
  %v813 = vpop.f32.mrf.mxu0
  %v814 = vadd.f32 0.0, %v813
  %v815 = vpop.f32.mrf.mxu0
  %v816 = vpop.f32.mrf.mxu0
  %v817 = vadd.f32 0.0, %v816
  %v818 = vpop.f32.mrf.mxu0
  %819 = vmatprep.mubr.bf16.mxu0 %v468
  %820 = vmatmul.mubr.bf16.gmra.mxu0 %v467
  %v821 = vpop.f32.mrf.mxu0
  %v822 = vadd.f32 0.0, %v821
  %v823 = vpop.f32.mrf.mxu0
  %v824 = vpop.f32.mrf.mxu0
  %v825 = vadd.f32 0.0, %v824
  %v826 = vpop.f32.mrf.mxu0
  %827 = vmatprep.mubr.bf16.mxu0 %v470
  %828 = vmatmul.mubr.bf16.gmra.mxu0 %v469
  %v829 = vpop.f32.mrf.mxu0
  %v830 = vadd.f32 0.0, %v829
  %v831 = vpop.f32.mrf.mxu0
  %v832 = vpop.f32.mrf.mxu0
  %v833 = vadd.f32 0.0, %v832
  %v834 = vpop.f32.mrf.mxu0
  %835 = vmatprep.mubr.bf16.mxu0 %v472
  %836 = vmatmul.mubr.bf16.gmra.mxu0 %v471
  %v837 = vpop.f32.mrf.mxu0
  %v838 = vadd.f32 0.0, %v837
  %v839 = vpop.f32.mrf.mxu0
  %v840 = vpop.f32.mrf.mxu0
  %v841 = vadd.f32 0.0, %v840
  %v842 = vpop.f32.mrf.mxu0
  %843 = vmatprep.mubr.bf16.mxu0 %v474
  %844 = vmatmul.mubr.bf16.gmra.mxu0 %v473
  %v845 = vpop.f32.mrf.mxu0
  %v846 = vadd.f32 0.0, %v845
  %v847 = vpop.f32.mrf.mxu0
  %v848 = vpop.f32.mrf.mxu0
  %v849 = vadd.f32 0.0, %v848
  %v850 = vpop.f32.mrf.mxu0
  %851 = vmatprep.mubr.bf16.mxu0 %v476
  %852 = vmatmul.mubr.bf16.gmra.mxu0 %v475
  %v853 = vpop.f32.mrf.mxu0
  %v854 = vadd.f32 0.0, %v853
  %v855 = vpop.f32.mrf.mxu0
  %v856 = vpop.f32.mrf.mxu0
  %v857 = vadd.f32 0.0, %v856
  %v858 = vpop.f32.mrf.mxu0
  %859 = vmatprep.mubr.bf16.mxu0 %v478
  %860 = vmatmul.mubr.bf16.gmra.mxu0 %v477
  %v861 = vpop.f32.mrf.mxu0
  %v862 = vadd.f32 0.0, %v861
  %v863 = vpop.f32.mrf.mxu0
  %v864 = vpop.f32.mrf.mxu0
  %v865 = vadd.f32 0.0, %v864
  %v866 = vpop.f32.mrf.mxu0
  %867 = vmatprep.mubr.bf16.mxu0 %v480
  %868 = vmatmul.mubr.bf16.gmra.mxu0 %v479
  %v869 = vpop.f32.mrf.mxu0
  %v870 = vadd.f32 0.0, %v869
  %v871 = vpop.f32.mrf.mxu0
  %v872 = vpop.f32.mrf.mxu0
  %v873 = vadd.f32 0.0, %v872
  %v874 = vpop.f32.mrf.mxu0
  %875 = vmatprep.mubr.bf16.mxu0 %v482
  %876 = vmatmul.mubr.bf16.gmra.mxu0 %v481
  %v877 = vpop.f32.mrf.mxu0
  %v878 = vadd.f32 0.0, %v877
  %v879 = vpop.f32.mrf.mxu0
  %v880 = vpop.f32.mrf.mxu0
  %v881 = vadd.f32 0.0, %v880
  %v882 = vpop.f32.mrf.mxu0
  %883 = vmatprep.mubr.bf16.mxu0 %v484
  %884 = vmatmul.mubr.bf16.gmra.mxu0 %v483
  %v885 = vpop.f32.mrf.mxu0
  %v886 = vadd.f32 0.0, %v885
  %v887 = vpop.f32.mrf.mxu0
  %v888 = vpop.f32.mrf.mxu0
  %v889 = vadd.f32 0.0, %v888
  %v890 = vpop.f32.mrf.mxu0
  %891 = vmatprep.mubr.bf16.mxu0 %v486
  %892 = vmatmul.mubr.bf16.gmra.mxu0 %v485
  %v893 = vpop.f32.mrf.mxu0
  %v894 = vadd.f32 0.0, %v893
  %v895 = vpop.f32.mrf.mxu0
  %v896 = vpop.f32.mrf.mxu0
  %v897 = vadd.f32 0.0, %v896
  %v898 = vpop.f32.mrf.mxu0
  %899 = vmatprep.mubr.bf16.mxu0 %v488
  %900 = vmatmul.mubr.bf16.gmra.mxu0 %v487
  %v901 = vpop.f32.mrf.mxu0
  %v902 = vadd.f32 0.0, %v901
  %v903 = vpop.f32.mrf.mxu0
  %v904 = vpop.f32.mrf.mxu0
  %v905 = vadd.f32 0.0, %v904
  %v906 = vpop.f32.mrf.mxu0
  %907 = vmatprep.mubr.bf16.mxu0 %v490
  %908 = vmatmul.mubr.bf16.gmra.mxu0 %v489
  %v909 = vpop.f32.mrf.mxu0
  %v910 = vadd.f32 0.0, %v909
  %v911 = vpop.f32.mrf.mxu0
  %v912 = vpop.f32.mrf.mxu0
  %v913 = vadd.f32 0.0, %v912
  %v914 = vpop.f32.mrf.mxu0
  %915 = vmatprep.mubr.bf16.mxu0 %v492
  %916 = vmatmul.mubr.bf16.gmra.mxu0 %v491
  %v917 = vpop.f32.mrf.mxu0
  %v918 = vadd.f32 0.0, %v917
  %v919 = vpop.f32.mrf.mxu0
  %v920 = vpop.f32.mrf.mxu0
  %v921 = vadd.f32 0.0, %v920
  %v922 = vpop.f32.mrf.mxu0
  %923 = vmatprep.mubr.bf16.mxu0 %v494
  %924 = vmatmul.mubr.bf16.gmra.mxu0 %v493
  %v925 = vpop.f32.mrf.mxu0
  %v926 = vadd.f32 0.0, %v925
  %v927 = vpop.f32.mrf.mxu0
  %v928 = vpop.f32.mrf.mxu0
  %v929 = vadd.f32 0.0, %v928
  %v930 = vpop.f32.mrf.mxu0
  %931 = vmatprep.mubr.bf16.mxu0 %v496
  %932 = vmatmul.mubr.bf16.gmra.mxu0 %v495
  %v933 = vpop.f32.mrf.mxu0
  %v934 = vadd.f32 0.0, %v933
  %v935 = vpop.f32.mrf.mxu0
  %v936 = vpop.f32.mrf.mxu0
  %v937 = vadd.f32 0.0, %v936
  %v938 = vpop.f32.mrf.mxu0
  %939 = vmatprep.mubr.bf16.mxu0 %v498
  %940 = vmatmul.mubr.bf16.gmra.mxu0 %v497
  %v941 = vpop.f32.mrf.mxu0
  %v942 = vadd.f32 0.0, %v941
  %v943 = vpop.f32.mrf.mxu0
  %v944 = vpop.f32.mrf.mxu0
  %v945 = vadd.f32 0.0, %v944
  %v946 = vpop.f32.mrf.mxu0
  %947 = vdwg.mxu0
  %v948 = vadd.f32 %v83, %v694
  %v949 = vadd.f32 %v84, %v697
  %v950 = vadd.f32 %v85, %v702
  %v951 = vadd.f32 %v86, %v705
  %v952 = vadd.f32 %v87, %v710
  %v953 = vadd.f32 %v88, %v713
  %v954 = vadd.f32 %v89, %v718
  %v955 = vadd.f32 %v90, %v721
  %v956 = vadd.f32 %v91, %v726
  %v957 = vadd.f32 %v92, %v729
  %v958 = vadd.f32 %v93, %v734
  %v959 = vadd.f32 %v94, %v737
  %v960 = vadd.f32 %v95, %v742
  %v961 = vadd.f32 %v96, %v745
  %v962 = vadd.f32 %v97, %v750
  %v963 = vadd.f32 %v98, %v753
  %v964 = vadd.f32 %v99, %v758
  %v965 = vadd.f32 %v100, %v761
  %v966 = vadd.f32 %v101, %v766
  %v967 = vadd.f32 %v102, %v769
  %v968 = vadd.f32 %v103, %v774
  %v969 = vadd.f32 %v104, %v777
  %v970 = vadd.f32 %v105, %v782
  %v971 = vadd.f32 %v106, %v785
  %v972 = vadd.f32 %v107, %v790
  %v973 = vadd.f32 %v108, %v793
  %v974 = vadd.f32 %v109, %v798
  %v975 = vadd.f32 %v110, %v801
  %v976 = vadd.f32 %v111, %v806
  %v977 = vadd.f32 %v112, %v809
  %v978 = vadd.f32 %v113, %v814
  %v979 = vadd.f32 %v114, %v817
  %v980 = vadd.f32 %v115, %v822
  %v981 = vadd.f32 %v116, %v825
  %v982 = vadd.f32 %v117, %v830
  %v983 = vadd.f32 %v118, %v833
  %v984 = vadd.f32 %v119, %v838
  %v985 = vadd.f32 %v120, %v841
  %v986 = vadd.f32 %v121, %v846
  %v987 = vadd.f32 %v122, %v849
  %v988 = vadd.f32 %v123, %v854
  %v989 = vadd.f32 %v124, %v857
  %v990 = vadd.f32 %v125, %v862
  %v991 = vadd.f32 %v126, %v865
  %v992 = vadd.f32 %v127, %v870
  %v993 = vadd.f32 %v128, %v873
  %v994 = vadd.f32 %v129, %v878
  %v995 = vadd.f32 %v130, %v881
  %v996 = vadd.f32 %v131, %v886
  %v997 = vadd.f32 %v132, %v889
  %v998 = vadd.f32 %v133, %v894
  %v999 = vadd.f32 %v134, %v897
  %v1000 = vadd.f32 %v135, %v902
  %v1001 = vadd.f32 %v136, %v905
  %v1002 = vadd.f32 %v137, %v910
  %v1003 = vadd.f32 %v138, %v913
  %v1004 = vadd.f32 %v139, %v918
  %v1005 = vadd.f32 %v140, %v921
  %v1006 = vadd.f32 %v141, %v926
  %v1007 = vadd.f32 %v142, %v929
  %v1008 = vadd.f32 %v143, %v934
  %v1009 = vadd.f32 %v144, %v937
  %v1010 = vadd.f32 %v145, %v942
  %v1011 = vadd.f32 %v146, %v945
  %1012 = vst [vmem:[#allocation2] sm:$0xff] %v948
  %1013 = vst [vmem:[#allocation2 + $0x8] sm:$0xff] %v949
  %1014 = vst [vmem:[#allocation2 + $0x10] sm:$0xff] %v950
  %1015 = vst [vmem:[#allocation2 + $0x18] sm:$0xff] %v951
  %1016 = vst [vmem:[#allocation2 + $0x20] sm:$0xff] %v952
  %1017 = vst [vmem:[#allocation2 + $0x28] sm:$0xff] %v953
  %1018 = vst [vmem:[#allocation2 + $0x30] sm:$0xff] %v954
  %1019 = vst [vmem:[#allocation2 + $0x38] sm:$0xff] %v955
  %1020 = vst [vmem:[#allocation2 + $0x40] sm:$0xff] %v956
  %1021 = vst [vmem:[#allocation2 + $0x48] sm:$0xff] %v957
  %1022 = vst [vmem:[#allocation2 + $0x50] sm:$0xff] %v958
  %1023 = vst [vmem:[#allocation2 + $0x58] sm:$0xff] %v959
  %1024 = vst [vmem:[#allocation2 + $0x60] sm:$0xff] %v960
  %1025 = vst [vmem:[#allocation2 + $0x68] sm:$0xff] %v961
  %1026 = vst [vmem:[#allocation2 + $0x70] sm:$0xff] %v962
  %1027 = vst [vmem:[#allocation2 + $0x78] sm:$0xff] %v963
  %1028 = vst [vmem:[#allocation2 + $0x80] sm:$0xff] %v964
  %1029 = vst [vmem:[#allocation2 + $0x88] sm:$0xff] %v965
  %1030 = vst [vmem:[#allocation2 + $0x90] sm:$0xff] %v966
  %1031 = vst [vmem:[#allocation2 + $0x98] sm:$0xff] %v967
  %1032 = vst [vmem:[#allocation2 + $0xa0] sm:$0xff] %v968
  %1033 = vst [vmem:[#allocation2 + $0xa8] sm:$0xff] %v969
  %1034 = vst [vmem:[#allocation2 + $0xb0] sm:$0xff] %v970
  %1035 = vst [vmem:[#allocation2 + $0xb8] sm:$0xff] %v971
  %1036 = vst [vmem:[#allocation2 + $0xc0] sm:$0xff] %v972
  %1037 = vst [vmem:[#allocation2 + $0xc8] sm:$0xff] %v973
  %1038 = vst [vmem:[#allocation2 + $0xd0] sm:$0xff] %v974
  %1039 = vst [vmem:[#allocation2 + $0xd8] sm:$0xff] %v975
  %1040 = vst [vmem:[#allocation2 + $0xe0] sm:$0xff] %v976
  %1041 = vst [vmem:[#allocation2 + $0xe8] sm:$0xff] %v977
  %1042 = vst [vmem:[#allocation2 + $0xf0] sm:$0xff] %v978
  %1043 = vst [vmem:[#allocation2 + $0xf8] sm:$0xff] %v979
  %1044 = vst [vmem:[#allocation2 + $0x100] sm:$0xff] %v980
  %1045 = vst [vmem:[#allocation2 + $0x108] sm:$0xff] %v981
  %1046 = vst [vmem:[#allocation2 + $0x110] sm:$0xff] %v982
  %1047 = vst [vmem:[#allocation2 + $0x118] sm:$0xff] %v983
  %1048 = vst [vmem:[#allocation2 + $0x120] sm:$0xff] %v984
  %1049 = vst [vmem:[#allocation2 + $0x128] sm:$0xff] %v985
  %1050 = vst [vmem:[#allocation2 + $0x130] sm:$0xff] %v986
  %1051 = vst [vmem:[#allocation2 + $0x138] sm:$0xff] %v987
  %1052 = vst [vmem:[#allocation2 + $0x140] sm:$0xff] %v988
  %1053 = vst [vmem:[#allocation2 + $0x148] sm:$0xff] %v989
  %1054 = vst [vmem:[#allocation2 + $0x150] sm:$0xff] %v990
  %1055 = vst [vmem:[#allocation2 + $0x158] sm:$0xff] %v991
  %1056 = vst [vmem:[#allocation2 + $0x160] sm:$0xff] %v992
  %1057 = vst [vmem:[#allocation2 + $0x168] sm:$0xff] %v993
  %1058 = vst [vmem:[#allocation2 + $0x170] sm:$0xff] %v994
  %1059 = vst [vmem:[#allocation2 + $0x178] sm:$0xff] %v995
  %1060 = vst [vmem:[#allocation2 + $0x180] sm:$0xff] %v996
  %1061 = vst [vmem:[#allocation2 + $0x188] sm:$0xff] %v997
  %1062 = vst [vmem:[#allocation2 + $0x190] sm:$0xff] %v998
  %1063 = vst [vmem:[#allocation2 + $0x198] sm:$0xff] %v999
  %1064 = vst [vmem:[#allocation2 + $0x1a0] sm:$0xff] %v1000
  %1065 = vst [vmem:[#allocation2 + $0x1a8] sm:$0xff] %v1001
  %1066 = vst [vmem:[#allocation2 + $0x1b0] sm:$0xff] %v1002
  %1067 = vst [vmem:[#allocation2 + $0x1b8] sm:$0xff] %v1003
  %1068 = vst [vmem:[#allocation2 + $0x1c0] sm:$0xff] %v1004
  %1069 = vst [vmem:[#allocation2 + $0x1c8] sm:$0xff] %v1005
  %1070 = vst [vmem:[#allocation2 + $0x1d0] sm:$0xff] %v1006
  %1071 = vst [vmem:[#allocation2 + $0x1d8] sm:$0xff] %v1007
  %1072 = vst [vmem:[#allocation2 + $0x1e0] sm:$0xff] %v1008
  %1073 = vst [vmem:[#allocation2 + $0x1e8] sm:$0xff] %v1009
  %1074 = vst [vmem:[#allocation2 + $0x1f0] sm:$0xff] %v1010
  %1075 = vst [vmem:[#allocation2 + $0x1f8] sm:$0xff] %v1011
  // Predicated region
  $region18: #{_lambda_.8} parent=0 // pred_check
    %p1076 = pneg %p15
  $region19: #{_lambda_.8} parent=0 // pred_check_branch
    %1078 = sbr.rel (%p1076) target = $region21
  $region20: #{_lambda_.8} parent=0 // pred_region
    %v1079 = vld [vmem:[#allocation2] sm:$0xff]
    %v1080 = vld [vmem:[#allocation2 + $0x8] sm:$0xff]
    %v1081 = vld [vmem:[#allocation2 + $0x10] sm:$0xff]
    %v1082 = vld [vmem:[#allocation2 + $0x18] sm:$0xff]
    %v1083 = vld [vmem:[#allocation2 + $0x20] sm:$0xff]
    %v1084 = vld [vmem:[#allocation2 + $0x28] sm:$0xff]
    %v1085 = vld [vmem:[#allocation2 + $0x30] sm:$0xff]
    %v1086 = vld [vmem:[#allocation2 + $0x38] sm:$0xff]
    %v1087 = vld [vmem:[#allocation2 + $0x40] sm:$0xff]
    %v1088 = vld [vmem:[#allocation2 + $0x48] sm:$0xff]
    %v1089 = vld [vmem:[#allocation2 + $0x50] sm:$0xff]
    %v1090 = vld [vmem:[#allocation2 + $0x58] sm:$0xff]
    %v1091 = vld [vmem:[#allocation2 + $0x60] sm:$0xff]
    %v1092 = vld [vmem:[#allocation2 + $0x68] sm:$0xff]
    %v1093 = vld [vmem:[#allocation2 + $0x70] sm:$0xff]
    %v1094 = vld [vmem:[#allocation2 + $0x78] sm:$0xff]
    %v1095 = vld [vmem:[#allocation2 + $0x80] sm:$0xff]
    %v1096 = vld [vmem:[#allocation2 + $0x88] sm:$0xff]
    %v1097 = vld [vmem:[#allocation2 + $0x90] sm:$0xff]
    %v1098 = vld [vmem:[#allocation2 + $0x98] sm:$0xff]
    %v1099 = vld [vmem:[#allocation2 + $0xa0] sm:$0xff]
    %v1100 = vld [vmem:[#allocation2 + $0xa8] sm:$0xff]
    %v1101 = vld [vmem:[#allocation2 + $0xb0] sm:$0xff]
    %v1102 = vld [vmem:[#allocation2 + $0xb8] sm:$0xff]
    %v1103 = vld [vmem:[#allocation2 + $0xc0] sm:$0xff]
    %v1104 = vld [vmem:[#allocation2 + $0xc8] sm:$0xff]
    %v1105 = vld [vmem:[#allocation2 + $0xd0] sm:$0xff]
    %v1106 = vld [vmem:[#allocation2 + $0xd8] sm:$0xff]
    %v1107 = vld [vmem:[#allocation2 + $0xe0] sm:$0xff]
    %v1108 = vld [vmem:[#allocation2 + $0xe8] sm:$0xff]
    %v1109 = vld [vmem:[#allocation2 + $0xf0] sm:$0xff]
    %v1110 = vld [vmem:[#allocation2 + $0xf8] sm:$0xff]
    %v1111 = vld [vmem:[#allocation2 + $0x100] sm:$0xff]
    %v1112 = vld [vmem:[#allocation2 + $0x108] sm:$0xff]
    %v1113 = vld [vmem:[#allocation2 + $0x110] sm:$0xff]
    %v1114 = vld [vmem:[#allocation2 + $0x118] sm:$0xff]
    %v1115 = vld [vmem:[#allocation2 + $0x120] sm:$0xff]
    %v1116 = vld [vmem:[#allocation2 + $0x128] sm:$0xff]
    %v1117 = vld [vmem:[#allocation2 + $0x130] sm:$0xff]
    %v1118 = vld [vmem:[#allocation2 + $0x138] sm:$0xff]
    %v1119 = vld [vmem:[#allocation2 + $0x140] sm:$0xff]
    %v1120 = vld [vmem:[#allocation2 + $0x148] sm:$0xff]
    %v1121 = vld [vmem:[#allocation2 + $0x150] sm:$0xff]
    %v1122 = vld [vmem:[#allocation2 + $0x158] sm:$0xff]
    %v1123 = vld [vmem:[#allocation2 + $0x160] sm:$0xff]
    %v1124 = vld [vmem:[#allocation2 + $0x168] sm:$0xff]
    %v1125 = vld [vmem:[#allocation2 + $0x170] sm:$0xff]
    %v1126 = vld [vmem:[#allocation2 + $0x178] sm:$0xff]
    %v1127 = vld [vmem:[#allocation2 + $0x180] sm:$0xff]
    %v1128 = vld [vmem:[#allocation2 + $0x188] sm:$0xff]
    %v1129 = vld [vmem:[#allocation2 + $0x190] sm:$0xff]
    %v1130 = vld [vmem:[#allocation2 + $0x198] sm:$0xff]
    %v1131 = vld [vmem:[#allocation2 + $0x1a0] sm:$0xff]
    %v1132 = vld [vmem:[#allocation2 + $0x1a8] sm:$0xff]
    %v1133 = vld [vmem:[#allocation2 + $0x1b0] sm:$0xff]
    %v1134 = vld [vmem:[#allocation2 + $0x1b8] sm:$0xff]
    %v1135 = vld [vmem:[#allocation2 + $0x1c0] sm:$0xff]
    %v1136 = vld [vmem:[#allocation2 + $0x1c8] sm:$0xff]
    %v1137 = vld [vmem:[#allocation2 + $0x1d0] sm:$0xff]
    %v1138 = vld [vmem:[#allocation2 + $0x1d8] sm:$0xff]
    %v1139 = vld [vmem:[#allocation2 + $0x1e0] sm:$0xff]
    %v1140 = vld [vmem:[#allocation2 + $0x1e8] sm:$0xff]
    %v1141 = vld [vmem:[#allocation2 + $0x1f0] sm:$0xff]
    %v1142 = vld [vmem:[#allocation2 + $0x1f8] sm:$0xff]
    %v1143 = vld [vmem:[%s2] sm:$0x1]
    %v1145 = vlaneseq
    %v1146 = vshrl.u32 %v1145, 7
    %v1147 = vsub.s32 0, %v1146
    %v1148 = vrot.slane %v1143, %v1147
    %v1150 = vadd.f32 %v1079, %v1148
    %v1151 = vadd.f32 %v1080, %v1148
    %v1152 = vadd.f32 %v1081, %v1148
    %v1153 = vadd.f32 %v1082, %v1148
    %v1154 = vadd.f32 %v1083, %v1148
    %v1155 = vadd.f32 %v1084, %v1148
    %v1156 = vadd.f32 %v1085, %v1148
    %v1157 = vadd.f32 %v1086, %v1148
    %v1158 = vadd.f32 %v1087, %v1148
    %v1159 = vadd.f32 %v1088, %v1148
    %v1160 = vadd.f32 %v1089, %v1148
    %v1161 = vadd.f32 %v1090, %v1148
    %v1162 = vadd.f32 %v1091, %v1148
    %v1163 = vadd.f32 %v1092, %v1148
    %v1164 = vadd.f32 %v1093, %v1148
    %v1165 = vadd.f32 %v1094, %v1148
    %v1166 = vadd.f32 %v1095, %v1148
    %v1167 = vadd.f32 %v1096, %v1148
    %v1168 = vadd.f32 %v1097, %v1148
    %v1169 = vadd.f32 %v1098, %v1148
    %v1170 = vadd.f32 %v1099, %v1148
    %v1171 = vadd.f32 %v1100, %v1148
    %v1172 = vadd.f32 %v1101, %v1148
    %v1173 = vadd.f32 %v1102, %v1148
    %v1174 = vadd.f32 %v1103, %v1148
    %v1175 = vadd.f32 %v1104, %v1148
    %v1176 = vadd.f32 %v1105, %v1148
    %v1177 = vadd.f32 %v1106, %v1148
    %v1178 = vadd.f32 %v1107, %v1148
    %v1179 = vadd.f32 %v1108, %v1148
    %v1180 = vadd.f32 %v1109, %v1148
    %v1181 = vadd.f32 %v1110, %v1148
    %v1182 = vadd.f32 %v1111, %v1148
    %v1183 = vadd.f32 %v1112, %v1148
    %v1184 = vadd.f32 %v1113, %v1148
    %v1185 = vadd.f32 %v1114, %v1148
    %v1186 = vadd.f32 %v1115, %v1148
    %v1187 = vadd.f32 %v1116, %v1148
    %v1188 = vadd.f32 %v1117, %v1148
    %v1189 = vadd.f32 %v1118, %v1148
    %v1190 = vadd.f32 %v1119, %v1148
    %v1191 = vadd.f32 %v1120, %v1148
    %v1192 = vadd.f32 %v1121, %v1148
    %v1193 = vadd.f32 %v1122, %v1148
    %v1194 = vadd.f32 %v1123, %v1148
    %v1195 = vadd.f32 %v1124, %v1148
    %v1196 = vadd.f32 %v1125, %v1148
    %v1197 = vadd.f32 %v1126, %v1148
    %v1198 = vadd.f32 %v1127, %v1148
    %v1199 = vadd.f32 %v1128, %v1148
    %v1200 = vadd.f32 %v1129, %v1148
    %v1201 = vadd.f32 %v1130, %v1148
    %v1202 = vadd.f32 %v1131, %v1148
    %v1203 = vadd.f32 %v1132, %v1148
    %v1204 = vadd.f32 %v1133, %v1148
    %v1205 = vadd.f32 %v1134, %v1148
    %v1206 = vadd.f32 %v1135, %v1148
    %v1207 = vadd.f32 %v1136, %v1148
    %v1208 = vadd.f32 %v1137, %v1148
    %v1209 = vadd.f32 %v1138, %v1148
    %v1210 = vadd.f32 %v1139, %v1148
    %v1211 = vadd.f32 %v1140, %v1148
    %v1212 = vadd.f32 %v1141, %v1148
    %v1213 = vadd.f32 %v1142, %v1148
    %v1214 = vmax.f32 %v1150, 0.0
    %v1215 = vmax.f32 %v1151, 0.0
    %v1216 = vmax.f32 %v1152, 0.0
    %v1217 = vmax.f32 %v1153, 0.0
    %v1218 = vmax.f32 %v1154, 0.0
    %v1219 = vmax.f32 %v1155, 0.0
    %v1220 = vmax.f32 %v1156, 0.0
    %v1221 = vmax.f32 %v1157, 0.0
    %v1222 = vmax.f32 %v1158, 0.0
    %v1223 = vmax.f32 %v1159, 0.0
    %v1224 = vmax.f32 %v1160, 0.0
    %v1225 = vmax.f32 %v1161, 0.0
    %v1226 = vmax.f32 %v1162, 0.0
    %v1227 = vmax.f32 %v1163, 0.0
    %v1228 = vmax.f32 %v1164, 0.0
    %v1229 = vmax.f32 %v1165, 0.0
    %v1230 = vmax.f32 %v1166, 0.0
    %v1231 = vmax.f32 %v1167, 0.0
    %v1232 = vmax.f32 %v1168, 0.0
    %v1233 = vmax.f32 %v1169, 0.0
    %v1234 = vmax.f32 %v1170, 0.0
    %v1235 = vmax.f32 %v1171, 0.0
    %v1236 = vmax.f32 %v1172, 0.0
    %v1237 = vmax.f32 %v1173, 0.0
    %v1238 = vmax.f32 %v1174, 0.0
    %v1239 = vmax.f32 %v1175, 0.0
    %v1240 = vmax.f32 %v1176, 0.0
    %v1241 = vmax.f32 %v1177, 0.0
    %v1242 = vmax.f32 %v1178, 0.0
    %v1243 = vmax.f32 %v1179, 0.0
    %v1244 = vmax.f32 %v1180, 0.0
    %v1245 = vmax.f32 %v1181, 0.0
    %v1246 = vmax.f32 %v1182, 0.0
    %v1247 = vmax.f32 %v1183, 0.0
    %v1248 = vmax.f32 %v1184, 0.0
    %v1249 = vmax.f32 %v1185, 0.0
    %v1250 = vmax.f32 %v1186, 0.0
    %v1251 = vmax.f32 %v1187, 0.0
    %v1252 = vmax.f32 %v1188, 0.0
    %v1253 = vmax.f32 %v1189, 0.0
    %v1254 = vmax.f32 %v1190, 0.0
    %v1255 = vmax.f32 %v1191, 0.0
    %v1256 = vmax.f32 %v1192, 0.0
    %v1257 = vmax.f32 %v1193, 0.0
    %v1258 = vmax.f32 %v1194, 0.0
    %v1259 = vmax.f32 %v1195, 0.0
    %v1260 = vmax.f32 %v1196, 0.0
    %v1261 = vmax.f32 %v1197, 0.0
    %v1262 = vmax.f32 %v1198, 0.0
    %v1263 = vmax.f32 %v1199, 0.0
    %v1264 = vmax.f32 %v1200, 0.0
    %v1265 = vmax.f32 %v1201, 0.0
    %v1266 = vmax.f32 %v1202, 0.0
    %v1267 = vmax.f32 %v1203, 0.0
    %v1268 = vmax.f32 %v1204, 0.0
    %v1269 = vmax.f32 %v1205, 0.0
    %v1270 = vmax.f32 %v1206, 0.0
    %v1271 = vmax.f32 %v1207, 0.0
    %v1272 = vmax.f32 %v1208, 0.0
    %v1273 = vmax.f32 %v1209, 0.0
    %v1274 = vmax.f32 %v1210, 0.0
    %v1275 = vmax.f32 %v1211, 0.0
    %v1276 = vmax.f32 %v1212, 0.0
    %v1277 = vmax.f32 %v1213, 0.0
    %1278 = vst [vmem:[%s3] sm:$0xff] %v1214
    %1279 = vst [vmem:[%s3 + $0x8] sm:$0xff] %v1215
    %1280 = vst [vmem:[%s3 + $0x10] sm:$0xff] %v1216
    %1281 = vst [vmem:[%s3 + $0x18] sm:$0xff] %v1217
    %1282 = vst [vmem:[%s3 + $0x20] sm:$0xff] %v1218
    %1283 = vst [vmem:[%s3 + $0x28] sm:$0xff] %v1219
    %1284 = vst [vmem:[%s3 + $0x30] sm:$0xff] %v1220
    %1285 = vst [vmem:[%s3 + $0x38] sm:$0xff] %v1221
    %1286 = vst [vmem:[%s3 + $0x40] sm:$0xff] %v1222
    %1287 = vst [vmem:[%s3 + $0x48] sm:$0xff] %v1223
    %1288 = vst [vmem:[%s3 + $0x50] sm:$0xff] %v1224
    %1289 = vst [vmem:[%s3 + $0x58] sm:$0xff] %v1225
    %1290 = vst [vmem:[%s3 + $0x60] sm:$0xff] %v1226
    %1291 = vst [vmem:[%s3 + $0x68] sm:$0xff] %v1227
    %1292 = vst [vmem:[%s3 + $0x70] sm:$0xff] %v1228
    %1293 = vst [vmem:[%s3 + $0x78] sm:$0xff] %v1229
    %1294 = vst [vmem:[%s3 + $0x80] sm:$0xff] %v1230
    %1295 = vst [vmem:[%s3 + $0x88] sm:$0xff] %v1231
    %1296 = vst [vmem:[%s3 + $0x90] sm:$0xff] %v1232
    %1297 = vst [vmem:[%s3 + $0x98] sm:$0xff] %v1233
    %1298 = vst [vmem:[%s3 + $0xa0] sm:$0xff] %v1234
    %1299 = vst [vmem:[%s3 + $0xa8] sm:$0xff] %v1235
    %1300 = vst [vmem:[%s3 + $0xb0] sm:$0xff] %v1236
    %1301 = vst [vmem:[%s3 + $0xb8] sm:$0xff] %v1237
    %1302 = vst [vmem:[%s3 + $0xc0] sm:$0xff] %v1238
    %1303 = vst [vmem:[%s3 + $0xc8] sm:$0xff] %v1239
    %1304 = vst [vmem:[%s3 + $0xd0] sm:$0xff] %v1240
    %1305 = vst [vmem:[%s3 + $0xd8] sm:$0xff] %v1241
    %1306 = vst [vmem:[%s3 + $0xe0] sm:$0xff] %v1242
    %1307 = vst [vmem:[%s3 + $0xe8] sm:$0xff] %v1243
    %1308 = vst [vmem:[%s3 + $0xf0] sm:$0xff] %v1244
    %1309 = vst [vmem:[%s3 + $0xf8] sm:$0xff] %v1245
    %1310 = vst [vmem:[%s3 + $0x100] sm:$0xff] %v1246
    %1311 = vst [vmem:[%s3 + $0x108] sm:$0xff] %v1247
    %1312 = vst [vmem:[%s3 + $0x110] sm:$0xff] %v1248
    %1313 = vst [vmem:[%s3 + $0x118] sm:$0xff] %v1249
    %1314 = vst [vmem:[%s3 + $0x120] sm:$0xff] %v1250
    %1315 = vst [vmem:[%s3 + $0x128] sm:$0xff] %v1251
    %1316 = vst [vmem:[%s3 + $0x130] sm:$0xff] %v1252
    %1317 = vst [vmem:[%s3 + $0x138] sm:$0xff] %v1253
    %1318 = vst [vmem:[%s3 + $0x140] sm:$0xff] %v1254
    %1319 = vst [vmem:[%s3 + $0x148] sm:$0xff] %v1255
    %1320 = vst [vmem:[%s3 + $0x150] sm:$0xff] %v1256
    %1321 = vst [vmem:[%s3 + $0x158] sm:$0xff] %v1257
    %1322 = vst [vmem:[%s3 + $0x160] sm:$0xff] %v1258
    %1323 = vst [vmem:[%s3 + $0x168] sm:$0xff] %v1259
    %1324 = vst [vmem:[%s3 + $0x170] sm:$0xff] %v1260
    %1325 = vst [vmem:[%s3 + $0x178] sm:$0xff] %v1261
    %1326 = vst [vmem:[%s3 + $0x180] sm:$0xff] %v1262
    %1327 = vst [vmem:[%s3 + $0x188] sm:$0xff] %v1263
    %1328 = vst [vmem:[%s3 + $0x190] sm:$0xff] %v1264
    %1329 = vst [vmem:[%s3 + $0x198] sm:$0xff] %v1265
    %1330 = vst [vmem:[%s3 + $0x1a0] sm:$0xff] %v1266
    %1331 = vst [vmem:[%s3 + $0x1a8] sm:$0xff] %v1267
    %1332 = vst [vmem:[%s3 + $0x1b0] sm:$0xff] %v1268
    %1333 = vst [vmem:[%s3 + $0x1b8] sm:$0xff] %v1269
    %1334 = vst [vmem:[%s3 + $0x1c0] sm:$0xff] %v1270
    %1335 = vst [vmem:[%s3 + $0x1c8] sm:$0xff] %v1271
    %1336 = vst [vmem:[%s3 + $0x1d0] sm:$0xff] %v1272
    %1337 = vst [vmem:[%s3 + $0x1d8] sm:$0xff] %v1273
    %1338 = vst [vmem:[%s3 + $0x1e0] sm:$0xff] %v1274
    %1339 = vst [vmem:[%s3 + $0x1e8] sm:$0xff] %v1275
    %1340 = vst [vmem:[%s3 + $0x1f0] sm:$0xff] %v1276
    %1341 = vst [vmem:[%s3 + $0x1f8] sm:$0xff] %v1277
  $region21: #{_lambda_.8} parent=0 // pred_fallthru
    _
  // Predicated region
  $region22: #{_lambda_.8} parent=0 // pred_check
    _
  $region23: #{_lambda_.8} parent=0 // pred_check_branch
    %1343 = sbr.rel (0) target = $region25
  $region24: #{_lambda_.8} parent=0 // pred_region
    _
  $region25: #{_lambda_.8} parent=0 // pred_fallthru
    _
  // Predicated region
  $region26: #{_lambda_.8} parent=0 // pred_check
    _
  $region27: #{_lambda_.8} parent=0 // pred_check_branch
    %1345 = sbr.rel (0) target = $region29
  $region28: #{_lambda_.8} parent=0 // pred_region
    _
  $region29: #{_lambda_.8} parent=0 // pred_fallthru
    _

// kernel: sub.2
$region0: #{sub.2}
  #allocation0 [shape = 's32[1]{0}', space=sflag, size = 0x4, scoped, tag = 'scoped memory for sub.2']
  %s0 = inlined_call_operand.<no memory space> [shape: f32[], index: 0, kind: input, shape index: {}]
  %s1 = inlined_call_operand.vmem [shape: f32[192], index: 1, kind: output, shape index: {}]
  %v2 = vstv %s0
  %3 = vst [vmem:[%s1] sm:$0x3] %v2

// kernel: _lambda_.9
$region0: #{_lambda_.9}
  #allocation0 [shape = 'u32[]', space=smem, size = 0x4, offset = 0x4, fixed_abs, tag = 'smem constant byte address 0x4 - core index']
  #allocation1 [shape = 'u32[144,128]{1,0:T(1,128)}', space=vmem, size = 0x12000, scoped, tag = 'internal scratch']
  #allocation2 [shape = 'f32[512,128]{1,0:T(8,128)}', space=vmem, size = 0x40000, scoped, tag = 'scratch operand']
  %s0 = inlined_call_operand.vmem [shape: bf16[512,512], index: 0, kind: input, shape index: {}]
  %s1 = inlined_call_operand.vmem [shape: bf16[512,128], index: 1, kind: input, shape index: {}]
  %s2 = inlined_call_operand.vmem [shape: f32[1,128], index: 2, kind: input, shape index: {}]
  %s3 = inlined_call_operand.vmem [shape: f32[512,128], index: 3, kind: output, shape index: {}]
  %s4 = sld [smem:[#allocation0]]
  $region30: #{_lambda_.9} parent=0
    _
  %s6 = ssub.s32 1, %s4
  %s7 = scalar_select 0, %s6, %s4
  // Predicated region
  $region2: #{_lambda_.9} parent=0 // pred_check
    _
  $region3: #{_lambda_.9} parent=0 // pred_check_branch
    %9 = sbr.rel (0) target = $region5
  $region4: #{_lambda_.9} parent=0 // pred_region
    _
  $region5: #{_lambda_.9} parent=0 // pred_fallthru
    _
  // Predicated region
  $region6: #{_lambda_.9} parent=0 // pred_check
    _
  $region7: #{_lambda_.9} parent=0 // pred_check_branch
    %11 = sbr.rel (0) target = $region9
  $region8: #{_lambda_.9} parent=0 // pred_region
    _
  $region9: #{_lambda_.9} parent=0 // pred_fallthru
    _
  // Predicated region
  $region10: #{_lambda_.9} parent=0 // pred_check
    _
  $region11: #{_lambda_.9} parent=0 // pred_check_branch
    %13 = sbr.rel (0) target = $region13
  $region12: #{_lambda_.9} parent=0 // pred_region
    _
  $region13: #{_lambda_.9} parent=0 // pred_fallthru
    _
  %p15 = scmp.eq.s32.totalorder 0, 0
  // Predicated region
  $region14: #{_lambda_.9} parent=0 // pred_check
    %p16 = pneg %p15
  $region15: #{_lambda_.9} parent=0 // pred_check_branch
    %18 = sbr.rel (%p16) target = $region17
  $region16: #{_lambda_.9} parent=0 // pred_region
    %19 = vst [vmem:[#allocation2] sm:$0xff] 0.0
    %20 = vst [vmem:[#allocation2 + $0x8] sm:$0xff] 0.0
    %21 = vst [vmem:[#allocation2 + $0x10] sm:$0xff] 0.0
    %22 = vst [vmem:[#allocation2 + $0x18] sm:$0xff] 0.0
    %23 = vst [vmem:[#allocation2 + $0x20] sm:$0xff] 0.0
    %24 = vst [vmem:[#allocation2 + $0x28] sm:$0xff] 0.0
    %25 = vst [vmem:[#allocation2 + $0x30] sm:$0xff] 0.0
    %26 = vst [vmem:[#allocation2 + $0x38] sm:$0xff] 0.0
    %27 = vst [vmem:[#allocation2 + $0x40] sm:$0xff] 0.0
    %28 = vst [vmem:[#allocation2 + $0x48] sm:$0xff] 0.0
    %29 = vst [vmem:[#allocation2 + $0x50] sm:$0xff] 0.0
    %30 = vst [vmem:[#allocation2 + $0x58] sm:$0xff] 0.0
    %31 = vst [vmem:[#allocation2 + $0x60] sm:$0xff] 0.0
    %32 = vst [vmem:[#allocation2 + $0x68] sm:$0xff] 0.0
    %33 = vst [vmem:[#allocation2 + $0x70] sm:$0xff] 0.0
    %34 = vst [vmem:[#allocation2 + $0x78] sm:$0xff] 0.0
    %35 = vst [vmem:[#allocation2 + $0x80] sm:$0xff] 0.0
    %36 = vst [vmem:[#allocation2 + $0x88] sm:$0xff] 0.0
    %37 = vst [vmem:[#allocation2 + $0x90] sm:$0xff] 0.0
    %38 = vst [vmem:[#allocation2 + $0x98] sm:$0xff] 0.0
    %39 = vst [vmem:[#allocation2 + $0xa0] sm:$0xff] 0.0
    %40 = vst [vmem:[#allocation2 + $0xa8] sm:$0xff] 0.0
    %41 = vst [vmem:[#allocation2 + $0xb0] sm:$0xff] 0.0
    %42 = vst [vmem:[#allocation2 + $0xb8] sm:$0xff] 0.0
    %43 = vst [vmem:[#allocation2 + $0xc0] sm:$0xff] 0.0
    %44 = vst [vmem:[#allocation2 + $0xc8] sm:$0xff] 0.0
    %45 = vst [vmem:[#allocation2 + $0xd0] sm:$0xff] 0.0
    %46 = vst [vmem:[#allocation2 + $0xd8] sm:$0xff] 0.0
    %47 = vst [vmem:[#allocation2 + $0xe0] sm:$0xff] 0.0
    %48 = vst [vmem:[#allocation2 + $0xe8] sm:$0xff] 0.0
    %49 = vst [vmem:[#allocation2 + $0xf0] sm:$0xff] 0.0
    %50 = vst [vmem:[#allocation2 + $0xf8] sm:$0xff] 0.0
    %51 = vst [vmem:[#allocation2 + $0x100] sm:$0xff] 0.0
    %52 = vst [vmem:[#allocation2 + $0x108] sm:$0xff] 0.0
    %53 = vst [vmem:[#allocation2 + $0x110] sm:$0xff] 0.0
    %54 = vst [vmem:[#allocation2 + $0x118] sm:$0xff] 0.0
    %55 = vst [vmem:[#allocation2 + $0x120] sm:$0xff] 0.0
    %56 = vst [vmem:[#allocation2 + $0x128] sm:$0xff] 0.0
    %57 = vst [vmem:[#allocation2 + $0x130] sm:$0xff] 0.0
    %58 = vst [vmem:[#allocation2 + $0x138] sm:$0xff] 0.0
    %59 = vst [vmem:[#allocation2 + $0x140] sm:$0xff] 0.0
    %60 = vst [vmem:[#allocation2 + $0x148] sm:$0xff] 0.0
    %61 = vst [vmem:[#allocation2 + $0x150] sm:$0xff] 0.0
    %62 = vst [vmem:[#allocation2 + $0x158] sm:$0xff] 0.0
    %63 = vst [vmem:[#allocation2 + $0x160] sm:$0xff] 0.0
    %64 = vst [vmem:[#allocation2 + $0x168] sm:$0xff] 0.0
    %65 = vst [vmem:[#allocation2 + $0x170] sm:$0xff] 0.0
    %66 = vst [vmem:[#allocation2 + $0x178] sm:$0xff] 0.0
    %67 = vst [vmem:[#allocation2 + $0x180] sm:$0xff] 0.0
    %68 = vst [vmem:[#allocation2 + $0x188] sm:$0xff] 0.0
    %69 = vst [vmem:[#allocation2 + $0x190] sm:$0xff] 0.0
    %70 = vst [vmem:[#allocation2 + $0x198] sm:$0xff] 0.0
    %71 = vst [vmem:[#allocation2 + $0x1a0] sm:$0xff] 0.0
    %72 = vst [vmem:[#allocation2 + $0x1a8] sm:$0xff] 0.0
    %73 = vst [vmem:[#allocation2 + $0x1b0] sm:$0xff] 0.0
    %74 = vst [vmem:[#allocation2 + $0x1b8] sm:$0xff] 0.0
    %75 = vst [vmem:[#allocation2 + $0x1c0] sm:$0xff] 0.0
    %76 = vst [vmem:[#allocation2 + $0x1c8] sm:$0xff] 0.0
    %77 = vst [vmem:[#allocation2 + $0x1d0] sm:$0xff] 0.0
    %78 = vst [vmem:[#allocation2 + $0x1d8] sm:$0xff] 0.0
    %79 = vst [vmem:[#allocation2 + $0x1e0] sm:$0xff] 0.0
    %80 = vst [vmem:[#allocation2 + $0x1e8] sm:$0xff] 0.0
    %81 = vst [vmem:[#allocation2 + $0x1f0] sm:$0xff] 0.0
    %82 = vst [vmem:[#allocation2 + $0x1f8] sm:$0xff] 0.0
  $region17: #{_lambda_.9} parent=0 // pred_fallthru
    _
  %v83 = vld [vmem:[#allocation2] sm:$0xff]
  %v84 = vld [vmem:[#allocation2 + $0x8] sm:$0xff]
  %v85 = vld [vmem:[#allocation2 + $0x10] sm:$0xff]
  %v86 = vld [vmem:[#allocation2 + $0x18] sm:$0xff]
  %v87 = vld [vmem:[#allocation2 + $0x20] sm:$0xff]
  %v88 = vld [vmem:[#allocation2 + $0x28] sm:$0xff]
  %v89 = vld [vmem:[#allocation2 + $0x30] sm:$0xff]
  %v90 = vld [vmem:[#allocation2 + $0x38] sm:$0xff]
  %v91 = vld [vmem:[#allocation2 + $0x40] sm:$0xff]
  %v92 = vld [vmem:[#allocation2 + $0x48] sm:$0xff]
  %v93 = vld [vmem:[#allocation2 + $0x50] sm:$0xff]
  %v94 = vld [vmem:[#allocation2 + $0x58] sm:$0xff]
  %v95 = vld [vmem:[#allocation2 + $0x60] sm:$0xff]
  %v96 = vld [vmem:[#allocation2 + $0x68] sm:$0xff]
  %v97 = vld [vmem:[#allocation2 + $0x70] sm:$0xff]
  %v98 = vld [vmem:[#allocation2 + $0x78] sm:$0xff]
  %v99 = vld [vmem:[#allocation2 + $0x80] sm:$0xff]
  %v100 = vld [vmem:[#allocation2 + $0x88] sm:$0xff]
  %v101 = vld [vmem:[#allocation2 + $0x90] sm:$0xff]
  %v102 = vld [vmem:[#allocation2 + $0x98] sm:$0xff]
  %v103 = vld [vmem:[#allocation2 + $0xa0] sm:$0xff]
  %v104 = vld [vmem:[#allocation2 + $0xa8] sm:$0xff]
  %v105 = vld [vmem:[#allocation2 + $0xb0] sm:$0xff]
  %v106 = vld [vmem:[#allocation2 + $0xb8] sm:$0xff]
  %v107 = vld [vmem:[#allocation2 + $0xc0] sm:$0xff]
  %v108 = vld [vmem:[#allocation2 + $0xc8] sm:$0xff]
  %v109 = vld [vmem:[#allocation2 + $0xd0] sm:$0xff]
  %v110 = vld [vmem:[#allocation2 + $0xd8] sm:$0xff]
  %v111 = vld [vmem:[#allocation2 + $0xe0] sm:$0xff]
  %v112 = vld [vmem:[#allocation2 + $0xe8] sm:$0xff]
  %v113 = vld [vmem:[#allocation2 + $0xf0] sm:$0xff]
  %v114 = vld [vmem:[#allocation2 + $0xf8] sm:$0xff]
  %v115 = vld [vmem:[#allocation2 + $0x100] sm:$0xff]
  %v116 = vld [vmem:[#allocation2 + $0x108] sm:$0xff]
  %v117 = vld [vmem:[#allocation2 + $0x110] sm:$0xff]
  %v118 = vld [vmem:[#allocation2 + $0x118] sm:$0xff]
  %v119 = vld [vmem:[#allocation2 + $0x120] sm:$0xff]
  %v120 = vld [vmem:[#allocation2 + $0x128] sm:$0xff]
  %v121 = vld [vmem:[#allocation2 + $0x130] sm:$0xff]
  %v122 = vld [vmem:[#allocation2 + $0x138] sm:$0xff]
  %v123 = vld [vmem:[#allocation2 + $0x140] sm:$0xff]
  %v124 = vld [vmem:[#allocation2 + $0x148] sm:$0xff]
  %v125 = vld [vmem:[#allocation2 + $0x150] sm:$0xff]
  %v126 = vld [vmem:[#allocation2 + $0x158] sm:$0xff]
  %v127 = vld [vmem:[#allocation2 + $0x160] sm:$0xff]
  %v128 = vld [vmem:[#allocation2 + $0x168] sm:$0xff]
  %v129 = vld [vmem:[#allocation2 + $0x170] sm:$0xff]
  %v130 = vld [vmem:[#allocation2 + $0x178] sm:$0xff]
  %v131 = vld [vmem:[#allocation2 + $0x180] sm:$0xff]
  %v132 = vld [vmem:[#allocation2 + $0x188] sm:$0xff]
  %v133 = vld [vmem:[#allocation2 + $0x190] sm:$0xff]
  %v134 = vld [vmem:[#allocation2 + $0x198] sm:$0xff]
  %v135 = vld [vmem:[#allocation2 + $0x1a0] sm:$0xff]
  %v136 = vld [vmem:[#allocation2 + $0x1a8] sm:$0xff]
  %v137 = vld [vmem:[#allocation2 + $0x1b0] sm:$0xff]
  %v138 = vld [vmem:[#allocation2 + $0x1b8] sm:$0xff]
  %v139 = vld [vmem:[#allocation2 + $0x1c0] sm:$0xff]
  %v140 = vld [vmem:[#allocation2 + $0x1c8] sm:$0xff]
  %v141 = vld [vmem:[#allocation2 + $0x1d0] sm:$0xff]
  %v142 = vld [vmem:[#allocation2 + $0x1d8] sm:$0xff]
  %v143 = vld [vmem:[#allocation2 + $0x1e0] sm:$0xff]
  %v144 = vld [vmem:[#allocation2 + $0x1e8] sm:$0xff]
  %v145 = vld [vmem:[#allocation2 + $0x1f0] sm:$0xff]
  %v146 = vld [vmem:[#allocation2 + $0x1f8] sm:$0xff]
  %v147 = vld [vmem:[%s0] sm:$0xff]
  %v148 = vld [vmem:[%s0 + $0x8] sm:$0xff]
  %v149 = vld [vmem:[%s0 + $0x10] sm:$0xff]
  %v150 = vld [vmem:[%s0 + $0x18] sm:$0xff]
  %v151 = vld [vmem:[%s0 + $0x20] sm:$0xff]
  %v152 = vld [vmem:[%s0 + $0x28] sm:$0xff]
  %v153 = vld [vmem:[%s0 + $0x30] sm:$0xff]
  %v154 = vld [vmem:[%s0 + $0x38] sm:$0xff]
  %v155 = vld [vmem:[%s0 + $0x40] sm:$0xff]
  %v156 = vld [vmem:[%s0 + $0x48] sm:$0xff]
  %v157 = vld [vmem:[%s0 + $0x50] sm:$0xff]
  %v158 = vld [vmem:[%s0 + $0x58] sm:$0xff]
  %v159 = vld [vmem:[%s0 + $0x60] sm:$0xff]
  %v160 = vld [vmem:[%s0 + $0x68] sm:$0xff]
  %v161 = vld [vmem:[%s0 + $0x70] sm:$0xff]
  %v162 = vld [vmem:[%s0 + $0x78] sm:$0xff]
  %v163 = vld [vmem:[%s0 + $0x80] sm:$0xff]
  %v164 = vld [vmem:[%s0 + $0x88] sm:$0xff]
  %v165 = vld [vmem:[%s0 + $0x90] sm:$0xff]
  %v166 = vld [vmem:[%s0 + $0x98] sm:$0xff]
  %v167 = vld [vmem:[%s0 + $0xa0] sm:$0xff]
  %v168 = vld [vmem:[%s0 + $0xa8] sm:$0xff]
  %v169 = vld [vmem:[%s0 + $0xb0] sm:$0xff]
  %v170 = vld [vmem:[%s0 + $0xb8] sm:$0xff]
  %v171 = vld [vmem:[%s0 + $0xc0] sm:$0xff]
  %v172 = vld [vmem:[%s0 + $0xc8] sm:$0xff]
  %v173 = vld [vmem:[%s0 + $0xd0] sm:$0xff]
  %v174 = vld [vmem:[%s0 + $0xd8] sm:$0xff]
  %v175 = vld [vmem:[%s0 + $0xe0] sm:$0xff]
  %v176 = vld [vmem:[%s0 + $0xe8] sm:$0xff]
  %v177 = vld [vmem:[%s0 + $0xf0] sm:$0xff]
  %v178 = vld [vmem:[%s0 + $0xf8] sm:$0xff]
  %v179 = vld [vmem:[%s0 + $0x100] sm:$0xff]
  %v180 = vld [vmem:[%s0 + $0x108] sm:$0xff]
  %v181 = vld [vmem:[%s0 + $0x110] sm:$0xff]
  %v182 = vld [vmem:[%s0 + $0x118] sm:$0xff]
  %v183 = vld [vmem:[%s0 + $0x120] sm:$0xff]
  %v184 = vld [vmem:[%s0 + $0x128] sm:$0xff]
  %v185 = vld [vmem:[%s0 + $0x130] sm:$0xff]
  %v186 = vld [vmem:[%s0 + $0x138] sm:$0xff]
  %v187 = vld [vmem:[%s0 + $0x140] sm:$0xff]
  %v188 = vld [vmem:[%s0 + $0x148] sm:$0xff]
  %v189 = vld [vmem:[%s0 + $0x150] sm:$0xff]
  %v190 = vld [vmem:[%s0 + $0x158] sm:$0xff]
  %v191 = vld [vmem:[%s0 + $0x160] sm:$0xff]
  %v192 = vld [vmem:[%s0 + $0x168] sm:$0xff]
  %v193 = vld [vmem:[%s0 + $0x170] sm:$0xff]
  %v194 = vld [vmem:[%s0 + $0x178] sm:$0xff]
  %v195 = vld [vmem:[%s0 + $0x180] sm:$0xff]
  %v196 = vld [vmem:[%s0 + $0x188] sm:$0xff]
  %v197 = vld [vmem:[%s0 + $0x190] sm:$0xff]
  %v198 = vld [vmem:[%s0 + $0x198] sm:$0xff]
  %v199 = vld [vmem:[%s0 + $0x1a0] sm:$0xff]
  %v200 = vld [vmem:[%s0 + $0x1a8] sm:$0xff]
  %v201 = vld [vmem:[%s0 + $0x1b0] sm:$0xff]
  %v202 = vld [vmem:[%s0 + $0x1b8] sm:$0xff]
  %v203 = vld [vmem:[%s0 + $0x1c0] sm:$0xff]
  %v204 = vld [vmem:[%s0 + $0x1c8] sm:$0xff]
  %v205 = vld [vmem:[%s0 + $0x1d0] sm:$0xff]
  %v206 = vld [vmem:[%s0 + $0x1d8] sm:$0xff]
  %v207 = vld [vmem:[%s0 + $0x1e0] sm:$0xff]
  %v208 = vld [vmem:[%s0 + $0x1e8] sm:$0xff]
  %v209 = vld [vmem:[%s0 + $0x1f0] sm:$0xff]
  %v210 = vld [vmem:[%s0 + $0x1f8] sm:$0xff]
  %v211 = vld [vmem:[%s0 + $0x200] sm:$0xff]
  %v212 = vld [vmem:[%s0 + $0x208] sm:$0xff]
  %v213 = vld [vmem:[%s0 + $0x210] sm:$0xff]
  %v214 = vld [vmem:[%s0 + $0x218] sm:$0xff]
  %v215 = vld [vmem:[%s0 + $0x220] sm:$0xff]
  %v216 = vld [vmem:[%s0 + $0x228] sm:$0xff]
  %v217 = vld [vmem:[%s0 + $0x230] sm:$0xff]
  %v218 = vld [vmem:[%s0 + $0x238] sm:$0xff]
  %v219 = vld [vmem:[%s0 + $0x240] sm:$0xff]
  %v220 = vld [vmem:[%s0 + $0x248] sm:$0xff]
  %v221 = vld [vmem:[%s0 + $0x250] sm:$0xff]
  %v222 = vld [vmem:[%s0 + $0x258] sm:$0xff]
  %v223 = vld [vmem:[%s0 + $0x260] sm:$0xff]
  %v224 = vld [vmem:[%s0 + $0x268] sm:$0xff]
  %v225 = vld [vmem:[%s0 + $0x270] sm:$0xff]
  %v226 = vld [vmem:[%s0 + $0x278] sm:$0xff]
  %v227 = vld [vmem:[%s0 + $0x280] sm:$0xff]
  %v228 = vld [vmem:[%s0 + $0x288] sm:$0xff]
  %v229 = vld [vmem:[%s0 + $0x290] sm:$0xff]
  %v230 = vld [vmem:[%s0 + $0x298] sm:$0xff]
  %v231 = vld [vmem:[%s0 + $0x2a0] sm:$0xff]
  %v232 = vld [vmem:[%s0 + $0x2a8] sm:$0xff]
  %v233 = vld [vmem:[%s0 + $0x2b0] sm:$0xff]
  %v234 = vld [vmem:[%s0 + $0x2b8] sm:$0xff]
  %v235 = vld [vmem:[%s0 + $0x2c0] sm:$0xff]
  %v236 = vld [vmem:[%s0 + $0x2c8] sm:$0xff]
  %v237 = vld [vmem:[%s0 + $0x2d0] sm:$0xff]
  %v238 = vld [vmem:[%s0 + $0x2d8] sm:$0xff]
  %v239 = vld [vmem:[%s0 + $0x2e0] sm:$0xff]
  %v240 = vld [vmem:[%s0 + $0x2e8] sm:$0xff]
  %v241 = vld [vmem:[%s0 + $0x2f0] sm:$0xff]
  %v242 = vld [vmem:[%s0 + $0x2f8] sm:$0xff]
  %v243 = vld [vmem:[%s0 + $0x300] sm:$0xff]
  %v244 = vld [vmem:[%s0 + $0x308] sm:$0xff]
  %v245 = vld [vmem:[%s0 + $0x310] sm:$0xff]
  %v246 = vld [vmem:[%s0 + $0x318] sm:$0xff]
  %v247 = vld [vmem:[%s0 + $0x320] sm:$0xff]
  %v248 = vld [vmem:[%s0 + $0x328] sm:$0xff]
  %v249 = vld [vmem:[%s0 + $0x330] sm:$0xff]
  %v250 = vld [vmem:[%s0 + $0x338] sm:$0xff]
  %v251 = vld [vmem:[%s0 + $0x340] sm:$0xff]
  %v252 = vld [vmem:[%s0 + $0x348] sm:$0xff]
  %v253 = vld [vmem:[%s0 + $0x350] sm:$0xff]
  %v254 = vld [vmem:[%s0 + $0x358] sm:$0xff]
  %v255 = vld [vmem:[%s0 + $0x360] sm:$0xff]
  %v256 = vld [vmem:[%s0 + $0x368] sm:$0xff]
  %v257 = vld [vmem:[%s0 + $0x370] sm:$0xff]
  %v258 = vld [vmem:[%s0 + $0x378] sm:$0xff]
  %v259 = vld [vmem:[%s0 + $0x380] sm:$0xff]
  %v260 = vld [vmem:[%s0 + $0x388] sm:$0xff]
  %v261 = vld [vmem:[%s0 + $0x390] sm:$0xff]
  %v262 = vld [vmem:[%s0 + $0x398] sm:$0xff]
  %v263 = vld [vmem:[%s0 + $0x3a0] sm:$0xff]
  %v264 = vld [vmem:[%s0 + $0x3a8] sm:$0xff]
  %v265 = vld [vmem:[%s0 + $0x3b0] sm:$0xff]
  %v266 = vld [vmem:[%s0 + $0x3b8] sm:$0xff]
  %v267 = vld [vmem:[%s0 + $0x3c0] sm:$0xff]
  %v268 = vld [vmem:[%s0 + $0x3c8] sm:$0xff]
  %v269 = vld [vmem:[%s0 + $0x3d0] sm:$0xff]
  %v270 = vld [vmem:[%s0 + $0x3d8] sm:$0xff]
  %v271 = vld [vmem:[%s0 + $0x3e0] sm:$0xff]
  %v272 = vld [vmem:[%s0 + $0x3e8] sm:$0xff]
  %v273 = vld [vmem:[%s0 + $0x3f0] sm:$0xff]
  %v274 = vld [vmem:[%s0 + $0x3f8] sm:$0xff]
  %v275 = vld [vmem:[%s1] sm:$0xf]
  %v276 = vld [vmem:[%s1 + $0x4] sm:$0xf]
  %v277 = vld [vmem:[%s1 + $0x8] sm:$0xf]
  %v278 = vld [vmem:[%s1 + $0xc] sm:$0xf]
  %v279 = vld [vmem:[%s1 + $0x10] sm:$0xf]
  %v280 = vld [vmem:[%s1 + $0x14] sm:$0xf]
  %v281 = vld [vmem:[%s1 + $0x18] sm:$0xf]
  %v282 = vld [vmem:[%s1 + $0x1c] sm:$0xf]
  %v283 = vld [vmem:[%s1 + $0x20] sm:$0xf]
  %v284 = vld [vmem:[%s1 + $0x24] sm:$0xf]
  %v285 = vld [vmem:[%s1 + $0x28] sm:$0xf]
  %v286 = vld [vmem:[%s1 + $0x2c] sm:$0xf]
  %v287 = vld [vmem:[%s1 + $0x30] sm:$0xf]
  %v288 = vld [vmem:[%s1 + $0x34] sm:$0xf]
  %v289 = vld [vmem:[%s1 + $0x38] sm:$0xf]
  %v290 = vld [vmem:[%s1 + $0x3c] sm:$0xf]
  %v291 = vld [vmem:[%s1 + $0x40] sm:$0xf]
  %v292 = vld [vmem:[%s1 + $0x44] sm:$0xf]
  %v293 = vld [vmem:[%s1 + $0x48] sm:$0xf]
  %v294 = vld [vmem:[%s1 + $0x4c] sm:$0xf]
  %v295 = vld [vmem:[%s1 + $0x50] sm:$0xf]
  %v296 = vld [vmem:[%s1 + $0x54] sm:$0xf]
  %v297 = vld [vmem:[%s1 + $0x58] sm:$0xf]
  %v298 = vld [vmem:[%s1 + $0x5c] sm:$0xf]
  %v299 = vld [vmem:[%s1 + $0x60] sm:$0xf]
  %v300 = vld [vmem:[%s1 + $0x64] sm:$0xf]
  %v301 = vld [vmem:[%s1 + $0x68] sm:$0xf]
  %v302 = vld [vmem:[%s1 + $0x6c] sm:$0xf]
  %v303 = vld [vmem:[%s1 + $0x70] sm:$0xf]
  %v304 = vld [vmem:[%s1 + $0x74] sm:$0xf]
  %v305 = vld [vmem:[%s1 + $0x78] sm:$0xf]
  %v306 = vld [vmem:[%s1 + $0x7c] sm:$0xf]
  %v307 = vld [vmem:[%s1 + $0x80] sm:$0xf]
  %v308 = vld [vmem:[%s1 + $0x84] sm:$0xf]
  %v309 = vld [vmem:[%s1 + $0x88] sm:$0xf]
  %v310 = vld [vmem:[%s1 + $0x8c] sm:$0xf]
  %v311 = vld [vmem:[%s1 + $0x90] sm:$0xf]
  %v312 = vld [vmem:[%s1 + $0x94] sm:$0xf]
  %v313 = vld [vmem:[%s1 + $0x98] sm:$0xf]
  %v314 = vld [vmem:[%s1 + $0x9c] sm:$0xf]
  %v315 = vld [vmem:[%s1 + $0xa0] sm:$0xf]
  %v316 = vld [vmem:[%s1 + $0xa4] sm:$0xf]
  %v317 = vld [vmem:[%s1 + $0xa8] sm:$0xf]
  %v318 = vld [vmem:[%s1 + $0xac] sm:$0xf]
  %v319 = vld [vmem:[%s1 + $0xb0] sm:$0xf]
  %v320 = vld [vmem:[%s1 + $0xb4] sm:$0xf]
  %v321 = vld [vmem:[%s1 + $0xb8] sm:$0xf]
  %v322 = vld [vmem:[%s1 + $0xbc] sm:$0xf]
  %v323 = vld [vmem:[%s1 + $0xc0] sm:$0xf]
  %v324 = vld [vmem:[%s1 + $0xc4] sm:$0xf]
  %v325 = vld [vmem:[%s1 + $0xc8] sm:$0xf]
  %v326 = vld [vmem:[%s1 + $0xcc] sm:$0xf]
  %v327 = vld [vmem:[%s1 + $0xd0] sm:$0xf]
  %v328 = vld [vmem:[%s1 + $0xd4] sm:$0xf]
  %v329 = vld [vmem:[%s1 + $0xd8] sm:$0xf]
  %v330 = vld [vmem:[%s1 + $0xdc] sm:$0xf]
  %v331 = vld [vmem:[%s1 + $0xe0] sm:$0xf]
  %v332 = vld [vmem:[%s1 + $0xe4] sm:$0xf]
  %v333 = vld [vmem:[%s1 + $0xe8] sm:$0xf]
  %v334 = vld [vmem:[%s1 + $0xec] sm:$0xf]
  %v335 = vld [vmem:[%s1 + $0xf0] sm:$0xf]
  %v336 = vld [vmem:[%s1 + $0xf4] sm:$0xf]
  %v337 = vld [vmem:[%s1 + $0xf8] sm:$0xf]
  %v338 = vld [vmem:[%s1 + $0xfc] sm:$0xf]
  %v467 = vunpack.c.l.b16 %v147
  %v468 = vunpack.c.h.b16 %v147
  %v469 = vunpack.c.l.b16 %v148
  %v470 = vunpack.c.h.b16 %v148
  %v471 = vunpack.c.l.b16 %v149
  %v472 = vunpack.c.h.b16 %v149
  %v473 = vunpack.c.l.b16 %v150
  %v474 = vunpack.c.h.b16 %v150
  %v475 = vunpack.c.l.b16 %v151
  %v476 = vunpack.c.h.b16 %v151
  %v477 = vunpack.c.l.b16 %v152
  %v478 = vunpack.c.h.b16 %v152
  %v479 = vunpack.c.l.b16 %v153
  %v480 = vunpack.c.h.b16 %v153
  %v481 = vunpack.c.l.b16 %v154
  %v482 = vunpack.c.h.b16 %v154
  %v483 = vunpack.c.l.b16 %v155
  %v484 = vunpack.c.h.b16 %v155
  %v485 = vunpack.c.l.b16 %v156
  %v486 = vunpack.c.h.b16 %v156
  %v487 = vunpack.c.l.b16 %v157
  %v488 = vunpack.c.h.b16 %v157
  %v489 = vunpack.c.l.b16 %v158
  %v490 = vunpack.c.h.b16 %v158
  %v491 = vunpack.c.l.b16 %v159
  %v492 = vunpack.c.h.b16 %v159
  %v493 = vunpack.c.l.b16 %v160
  %v494 = vunpack.c.h.b16 %v160
  %v495 = vunpack.c.l.b16 %v161
  %v496 = vunpack.c.h.b16 %v161
  %v497 = vunpack.c.l.b16 %v162
  %v498 = vunpack.c.h.b16 %v162
  %v499 = vunpack.c.l.b16 %v163
  %v500 = vunpack.c.h.b16 %v163
  %v501 = vunpack.c.l.b16 %v164
  %v502 = vunpack.c.h.b16 %v164
  %v503 = vunpack.c.l.b16 %v165
  %v504 = vunpack.c.h.b16 %v165
  %v505 = vunpack.c.l.b16 %v166
  %v506 = vunpack.c.h.b16 %v166
  %v507 = vunpack.c.l.b16 %v167
  %v508 = vunpack.c.h.b16 %v167
  %v509 = vunpack.c.l.b16 %v168
  %v510 = vunpack.c.h.b16 %v168
  %v511 = vunpack.c.l.b16 %v169
  %v512 = vunpack.c.h.b16 %v169
  %v513 = vunpack.c.l.b16 %v170
  %v514 = vunpack.c.h.b16 %v170
  %v515 = vunpack.c.l.b16 %v171
  %v516 = vunpack.c.h.b16 %v171
  %v517 = vunpack.c.l.b16 %v172
  %v518 = vunpack.c.h.b16 %v172
  %v519 = vunpack.c.l.b16 %v173
  %v520 = vunpack.c.h.b16 %v173
  %v521 = vunpack.c.l.b16 %v174
  %v522 = vunpack.c.h.b16 %v174
  %v523 = vunpack.c.l.b16 %v175
  %v524 = vunpack.c.h.b16 %v175
  %v525 = vunpack.c.l.b16 %v176
  %v526 = vunpack.c.h.b16 %v176
  %v527 = vunpack.c.l.b16 %v177
  %v528 = vunpack.c.h.b16 %v177
  %v529 = vunpack.c.l.b16 %v178
  %v530 = vunpack.c.h.b16 %v178
  %v531 = vunpack.c.l.b16 %v179
  %v532 = vunpack.c.h.b16 %v179
  %v533 = vunpack.c.l.b16 %v180
  %v534 = vunpack.c.h.b16 %v180
  %v535 = vunpack.c.l.b16 %v181
  %v536 = vunpack.c.h.b16 %v181
  %v537 = vunpack.c.l.b16 %v182
  %v538 = vunpack.c.h.b16 %v182
  %v539 = vunpack.c.l.b16 %v183
  %v540 = vunpack.c.h.b16 %v183
  %v541 = vunpack.c.l.b16 %v184
  %v542 = vunpack.c.h.b16 %v184
  %v543 = vunpack.c.l.b16 %v185
  %v544 = vunpack.c.h.b16 %v185
  %v545 = vunpack.c.l.b16 %v186
  %v546 = vunpack.c.h.b16 %v186
  %v547 = vunpack.c.l.b16 %v187
  %v548 = vunpack.c.h.b16 %v187
  %v549 = vunpack.c.l.b16 %v188
  %v550 = vunpack.c.h.b16 %v188
  %v551 = vunpack.c.l.b16 %v189
  %v552 = vunpack.c.h.b16 %v189
  %v553 = vunpack.c.l.b16 %v190
  %v554 = vunpack.c.h.b16 %v190
  %v555 = vunpack.c.l.b16 %v191
  %v556 = vunpack.c.h.b16 %v191
  %v557 = vunpack.c.l.b16 %v192
  %v558 = vunpack.c.h.b16 %v192
  %v559 = vunpack.c.l.b16 %v193
  %v560 = vunpack.c.h.b16 %v193
  %v561 = vunpack.c.l.b16 %v194
  %v562 = vunpack.c.h.b16 %v194
  %v563 = vunpack.c.l.b16 %v195
  %v564 = vunpack.c.h.b16 %v195
  %v565 = vunpack.c.l.b16 %v196
  %v566 = vunpack.c.h.b16 %v196
  %v567 = vunpack.c.l.b16 %v197
  %v568 = vunpack.c.h.b16 %v197
  %v569 = vunpack.c.l.b16 %v198
  %v570 = vunpack.c.h.b16 %v198
  %v571 = vunpack.c.l.b16 %v199
  %v572 = vunpack.c.h.b16 %v199
  %v573 = vunpack.c.l.b16 %v200
  %v574 = vunpack.c.h.b16 %v200
  %v575 = vunpack.c.l.b16 %v201
  %v576 = vunpack.c.h.b16 %v201
  %v577 = vunpack.c.l.b16 %v202
  %v578 = vunpack.c.h.b16 %v202
  %v579 = vunpack.c.l.b16 %v203
  %v580 = vunpack.c.h.b16 %v203
  %v581 = vunpack.c.l.b16 %v204
  %v582 = vunpack.c.h.b16 %v204
  %v583 = vunpack.c.l.b16 %v205
  %v584 = vunpack.c.h.b16 %v205
  %v585 = vunpack.c.l.b16 %v206
  %v586 = vunpack.c.h.b16 %v206
  %v587 = vunpack.c.l.b16 %v207
  %v588 = vunpack.c.h.b16 %v207
  %v589 = vunpack.c.l.b16 %v208
  %v590 = vunpack.c.h.b16 %v208
  %v591 = vunpack.c.l.b16 %v209
  %v592 = vunpack.c.h.b16 %v209
  %v593 = vunpack.c.l.b16 %v210
  %v594 = vunpack.c.h.b16 %v210
  %v595 = vunpack.c.l.b16 %v211
  %v596 = vunpack.c.h.b16 %v211
  %v597 = vunpack.c.l.b16 %v212
  %v598 = vunpack.c.h.b16 %v212
  %v599 = vunpack.c.l.b16 %v213
  %v600 = vunpack.c.h.b16 %v213
  %v601 = vunpack.c.l.b16 %v214
  %v602 = vunpack.c.h.b16 %v214
  %v603 = vunpack.c.l.b16 %v215
  %v604 = vunpack.c.h.b16 %v215
  %v605 = vunpack.c.l.b16 %v216
  %v606 = vunpack.c.h.b16 %v216
  %v607 = vunpack.c.l.b16 %v217
  %v608 = vunpack.c.h.b16 %v217
  %v609 = vunpack.c.l.b16 %v218
  %v610 = vunpack.c.h.b16 %v218
  %v611 = vunpack.c.l.b16 %v219
  %v612 = vunpack.c.h.b16 %v219
  %v613 = vunpack.c.l.b16 %v220
  %v614 = vunpack.c.h.b16 %v220
  %v615 = vunpack.c.l.b16 %v221
  %v616 = vunpack.c.h.b16 %v221
  %v617 = vunpack.c.l.b16 %v222
  %v618 = vunpack.c.h.b16 %v222
  %v619 = vunpack.c.l.b16 %v223
  %v620 = vunpack.c.h.b16 %v223
  %v621 = vunpack.c.l.b16 %v224
  %v622 = vunpack.c.h.b16 %v224
  %v623 = vunpack.c.l.b16 %v225
  %v624 = vunpack.c.h.b16 %v225
  %v625 = vunpack.c.l.b16 %v226
  %v626 = vunpack.c.h.b16 %v226
  %v627 = vunpack.c.l.b16 %v227
  %v628 = vunpack.c.h.b16 %v227
  %v629 = vunpack.c.l.b16 %v228
  %v630 = vunpack.c.h.b16 %v228
  %v631 = vunpack.c.l.b16 %v229
  %v632 = vunpack.c.h.b16 %v229
  %v633 = vunpack.c.l.b16 %v230
  %v634 = vunpack.c.h.b16 %v230
  %v635 = vunpack.c.l.b16 %v231
  %v636 = vunpack.c.h.b16 %v231
  %v637 = vunpack.c.l.b16 %v232
  %v638 = vunpack.c.h.b16 %v232
  %v639 = vunpack.c.l.b16 %v233
  %v640 = vunpack.c.h.b16 %v233
  %v641 = vunpack.c.l.b16 %v234
  %v642 = vunpack.c.h.b16 %v234
  %v643 = vunpack.c.l.b16 %v235
  %v644 = vunpack.c.h.b16 %v235
  %v645 = vunpack.c.l.b16 %v236
  %v646 = vunpack.c.h.b16 %v236
  %v647 = vunpack.c.l.b16 %v237
  %v648 = vunpack.c.h.b16 %v237
  %v649 = vunpack.c.l.b16 %v238
  %v650 = vunpack.c.h.b16 %v238
  %v651 = vunpack.c.l.b16 %v239
  %v652 = vunpack.c.h.b16 %v239
  %v653 = vunpack.c.l.b16 %v240
  %v654 = vunpack.c.h.b16 %v240
  %v655 = vunpack.c.l.b16 %v241
  %v656 = vunpack.c.h.b16 %v241
  %v657 = vunpack.c.l.b16 %v242
  %v658 = vunpack.c.h.b16 %v242
  %v659 = vunpack.c.l.b16 %v243
  %v660 = vunpack.c.h.b16 %v243
  %v661 = vunpack.c.l.b16 %v244
  %v662 = vunpack.c.h.b16 %v244
  %v663 = vunpack.c.l.b16 %v245
  %v664 = vunpack.c.h.b16 %v245
  %v665 = vunpack.c.l.b16 %v246
  %v666 = vunpack.c.h.b16 %v246
  %v667 = vunpack.c.l.b16 %v247
  %v668 = vunpack.c.h.b16 %v247
  %v669 = vunpack.c.l.b16 %v248
  %v670 = vunpack.c.h.b16 %v248
  %v671 = vunpack.c.l.b16 %v249
  %v672 = vunpack.c.h.b16 %v249
  %v673 = vunpack.c.l.b16 %v250
  %v674 = vunpack.c.h.b16 %v250
  %v675 = vunpack.c.l.b16 %v251
  %v676 = vunpack.c.h.b16 %v251
  %v677 = vunpack.c.l.b16 %v252
  %v678 = vunpack.c.h.b16 %v252
  %v679 = vunpack.c.l.b16 %v253
  %v680 = vunpack.c.h.b16 %v253
  %v681 = vunpack.c.l.b16 %v254
  %v682 = vunpack.c.h.b16 %v254
  %v683 = vunpack.c.l.b16 %v255
  %v684 = vunpack.c.h.b16 %v255
  %v685 = vunpack.c.l.b16 %v256
  %v686 = vunpack.c.h.b16 %v256
  %v687 = vunpack.c.l.b16 %v257
  %v688 = vunpack.c.h.b16 %v257
  %v689 = vunpack.c.l.b16 %v258
  %v690 = vunpack.c.h.b16 %v258
  %v691 = vunpack.c.l.b16 %v259
  %v692 = vunpack.c.h.b16 %v259
  %v693 = vunpack.c.l.b16 %v260
  %v694 = vunpack.c.h.b16 %v260
  %v695 = vunpack.c.l.b16 %v261
  %v696 = vunpack.c.h.b16 %v261
  %v697 = vunpack.c.l.b16 %v262
  %v698 = vunpack.c.h.b16 %v262
  %v699 = vunpack.c.l.b16 %v263
  %v700 = vunpack.c.h.b16 %v263
  %v701 = vunpack.c.l.b16 %v264
  %v702 = vunpack.c.h.b16 %v264
  %v703 = vunpack.c.l.b16 %v265
  %v704 = vunpack.c.h.b16 %v265
  %v705 = vunpack.c.l.b16 %v266
  %v706 = vunpack.c.h.b16 %v266
  %v707 = vunpack.c.l.b16 %v267
  %v708 = vunpack.c.h.b16 %v267
  %v709 = vunpack.c.l.b16 %v268
  %v710 = vunpack.c.h.b16 %v268
  %v711 = vunpack.c.l.b16 %v269
  %v712 = vunpack.c.h.b16 %v269
  %v713 = vunpack.c.l.b16 %v270
  %v714 = vunpack.c.h.b16 %v270
  %v715 = vunpack.c.l.b16 %v271
  %v716 = vunpack.c.h.b16 %v271
  %v717 = vunpack.c.l.b16 %v272
  %v718 = vunpack.c.h.b16 %v272
  %v719 = vunpack.c.l.b16 %v273
  %v720 = vunpack.c.h.b16 %v273
  %v721 = vunpack.c.l.b16 %v274
  %v722 = vunpack.c.h.b16 %v274
  %v723 = vpack.c.b16 %v471, %v467
  %v724 = vpack.c.b16 %v472, %v468
  %v725 = vpack.c.b16 %v473, %v469
  %v726 = vpack.c.b16 %v474, %v470
  %v727 = vpack.c.b16 %v479, %v475
  %v728 = vpack.c.b16 %v480, %v476
  %v729 = vpack.c.b16 %v481, %v477
  %v730 = vpack.c.b16 %v482, %v478
  %v731 = vpack.c.b16 %v487, %v483
  %v732 = vpack.c.b16 %v488, %v484
  %v733 = vpack.c.b16 %v489, %v485
  %v734 = vpack.c.b16 %v490, %v486
  %v735 = vpack.c.b16 %v495, %v491
  %v736 = vpack.c.b16 %v496, %v492
  %v737 = vpack.c.b16 %v497, %v493
  %v738 = vpack.c.b16 %v498, %v494
  %v739 = vpack.c.b16 %v503, %v499
  %v740 = vpack.c.b16 %v504, %v500
  %v741 = vpack.c.b16 %v505, %v501
  %v742 = vpack.c.b16 %v506, %v502
  %v743 = vpack.c.b16 %v511, %v507
  %v744 = vpack.c.b16 %v512, %v508
  %v745 = vpack.c.b16 %v513, %v509
  %v746 = vpack.c.b16 %v514, %v510
  %v747 = vpack.c.b16 %v519, %v515
  %v748 = vpack.c.b16 %v520, %v516
  %v749 = vpack.c.b16 %v521, %v517
  %v750 = vpack.c.b16 %v522, %v518
  %v751 = vpack.c.b16 %v527, %v523
  %v752 = vpack.c.b16 %v528, %v524
  %v753 = vpack.c.b16 %v529, %v525
  %v754 = vpack.c.b16 %v530, %v526
  %v755 = vpack.c.b16 %v535, %v531
  %v756 = vpack.c.b16 %v536, %v532
  %v757 = vpack.c.b16 %v537, %v533
  %v758 = vpack.c.b16 %v538, %v534
  %v759 = vpack.c.b16 %v543, %v539
  %v760 = vpack.c.b16 %v544, %v540
  %v761 = vpack.c.b16 %v545, %v541
  %v762 = vpack.c.b16 %v546, %v542
  %v763 = vpack.c.b16 %v551, %v547
  %v764 = vpack.c.b16 %v552, %v548
  %v765 = vpack.c.b16 %v553, %v549
  %v766 = vpack.c.b16 %v554, %v550
  %v767 = vpack.c.b16 %v559, %v555
  %v768 = vpack.c.b16 %v560, %v556
  %v769 = vpack.c.b16 %v561, %v557
  %v770 = vpack.c.b16 %v562, %v558
  %v771 = vpack.c.b16 %v567, %v563
  %v772 = vpack.c.b16 %v568, %v564
  %v773 = vpack.c.b16 %v569, %v565
  %v774 = vpack.c.b16 %v570, %v566
  %v775 = vpack.c.b16 %v575, %v571
  %v776 = vpack.c.b16 %v576, %v572
  %v777 = vpack.c.b16 %v577, %v573
  %v778 = vpack.c.b16 %v578, %v574
  %v779 = vpack.c.b16 %v583, %v579
  %v780 = vpack.c.b16 %v584, %v580
  %v781 = vpack.c.b16 %v585, %v581
  %v782 = vpack.c.b16 %v586, %v582
  %v783 = vpack.c.b16 %v591, %v587
  %v784 = vpack.c.b16 %v592, %v588
  %v785 = vpack.c.b16 %v593, %v589
  %v786 = vpack.c.b16 %v594, %v590
  %v787 = vpack.c.b16 %v599, %v595
  %v788 = vpack.c.b16 %v600, %v596
  %v789 = vpack.c.b16 %v601, %v597
  %v790 = vpack.c.b16 %v602, %v598
  %v791 = vpack.c.b16 %v607, %v603
  %v792 = vpack.c.b16 %v608, %v604
  %v793 = vpack.c.b16 %v609, %v605
  %v794 = vpack.c.b16 %v610, %v606
  %v795 = vpack.c.b16 %v615, %v611
  %v796 = vpack.c.b16 %v616, %v612
  %v797 = vpack.c.b16 %v617, %v613
  %v798 = vpack.c.b16 %v618, %v614
  %v799 = vpack.c.b16 %v623, %v619
  %v800 = vpack.c.b16 %v624, %v620
  %v801 = vpack.c.b16 %v625, %v621
  %v802 = vpack.c.b16 %v626, %v622
  %v803 = vpack.c.b16 %v631, %v627
  %v804 = vpack.c.b16 %v632, %v628
  %v805 = vpack.c.b16 %v633, %v629
  %v806 = vpack.c.b16 %v634, %v630
  %v807 = vpack.c.b16 %v639, %v635
  %v808 = vpack.c.b16 %v640, %v636
  %v809 = vpack.c.b16 %v641, %v637
  %v810 = vpack.c.b16 %v642, %v638
  %v811 = vpack.c.b16 %v647, %v643
  %v812 = vpack.c.b16 %v648, %v644
  %v813 = vpack.c.b16 %v649, %v645
  %v814 = vpack.c.b16 %v650, %v646
  %v815 = vpack.c.b16 %v655, %v651
  %v816 = vpack.c.b16 %v656, %v652
  %v817 = vpack.c.b16 %v657, %v653
  %v818 = vpack.c.b16 %v658, %v654
  %v819 = vpack.c.b16 %v663, %v659
  %v820 = vpack.c.b16 %v664, %v660
  %v821 = vpack.c.b16 %v665, %v661
  %v822 = vpack.c.b16 %v666, %v662
  %v823 = vpack.c.b16 %v671, %v667
  %v824 = vpack.c.b16 %v672, %v668
  %v825 = vpack.c.b16 %v673, %v669
  %v826 = vpack.c.b16 %v674, %v670
  %v827 = vpack.c.b16 %v679, %v675
  %v828 = vpack.c.b16 %v680, %v676
  %v829 = vpack.c.b16 %v681, %v677
  %v830 = vpack.c.b16 %v682, %v678
  %v831 = vpack.c.b16 %v687, %v683
  %v832 = vpack.c.b16 %v688, %v684
  %v833 = vpack.c.b16 %v689, %v685
  %v834 = vpack.c.b16 %v690, %v686
  %v835 = vpack.c.b16 %v695, %v691
  %v836 = vpack.c.b16 %v696, %v692
  %v837 = vpack.c.b16 %v697, %v693
  %v838 = vpack.c.b16 %v698, %v694
  %v839 = vpack.c.b16 %v703, %v699
  %v840 = vpack.c.b16 %v704, %v700
  %v841 = vpack.c.b16 %v705, %v701
  %v842 = vpack.c.b16 %v706, %v702
  %v843 = vpack.c.b16 %v711, %v707
  %v844 = vpack.c.b16 %v712, %v708
  %v845 = vpack.c.b16 %v713, %v709
  %v846 = vpack.c.b16 %v714, %v710
  %v847 = vpack.c.b16 %v719, %v715
  %v848 = vpack.c.b16 %v720, %v716
  %v849 = vpack.c.b16 %v721, %v717
  %v850 = vpack.c.b16 %v722, %v718
  %v1043 = vunpack.c.l.b16 %v275
  %v1044 = vunpack.c.l.b16 %v276
  %v1045 = vunpack.c.l.b16 %v277
  %v1046 = vunpack.c.l.b16 %v278
  %v1047 = vunpack.c.l.b16 %v279
  %v1048 = vunpack.c.l.b16 %v280
  %v1049 = vunpack.c.l.b16 %v281
  %v1050 = vunpack.c.l.b16 %v282
  %v1051 = vunpack.c.l.b16 %v283
  %v1052 = vunpack.c.l.b16 %v284
  %v1053 = vunpack.c.l.b16 %v285
  %v1054 = vunpack.c.l.b16 %v286
  %v1055 = vunpack.c.l.b16 %v287
  %v1056 = vunpack.c.l.b16 %v288
  %v1057 = vunpack.c.l.b16 %v289
  %v1058 = vunpack.c.l.b16 %v290
  %v1059 = vunpack.c.l.b16 %v291
  %v1060 = vunpack.c.l.b16 %v292
  %v1061 = vunpack.c.l.b16 %v293
  %v1062 = vunpack.c.l.b16 %v294
  %v1063 = vunpack.c.l.b16 %v295
  %v1064 = vunpack.c.l.b16 %v296
  %v1065 = vunpack.c.l.b16 %v297
  %v1066 = vunpack.c.l.b16 %v298
  %v1067 = vunpack.c.l.b16 %v299
  %v1068 = vunpack.c.l.b16 %v300
  %v1069 = vunpack.c.l.b16 %v301
  %v1070 = vunpack.c.l.b16 %v302
  %v1071 = vunpack.c.l.b16 %v303
  %v1072 = vunpack.c.l.b16 %v304
  %v1073 = vunpack.c.l.b16 %v305
  %v1074 = vunpack.c.l.b16 %v306
  %v1075 = vunpack.c.l.b16 %v307
  %v1076 = vunpack.c.l.b16 %v308
  %v1077 = vunpack.c.l.b16 %v309
  %v1078 = vunpack.c.l.b16 %v310
  %v1079 = vunpack.c.l.b16 %v311
  %v1080 = vunpack.c.l.b16 %v312
  %v1081 = vunpack.c.l.b16 %v313
  %v1082 = vunpack.c.l.b16 %v314
  %v1083 = vunpack.c.l.b16 %v315
  %v1084 = vunpack.c.l.b16 %v316
  %v1085 = vunpack.c.l.b16 %v317
  %v1086 = vunpack.c.l.b16 %v318
  %v1087 = vunpack.c.l.b16 %v319
  %v1088 = vunpack.c.l.b16 %v320
  %v1089 = vunpack.c.l.b16 %v321
  %v1090 = vunpack.c.l.b16 %v322
  %v1091 = vunpack.c.l.b16 %v323
  %v1092 = vunpack.c.l.b16 %v324
  %v1093 = vunpack.c.l.b16 %v325
  %v1094 = vunpack.c.l.b16 %v326
  %v1095 = vunpack.c.l.b16 %v327
  %v1096 = vunpack.c.l.b16 %v328
  %v1097 = vunpack.c.l.b16 %v329
  %v1098 = vunpack.c.l.b16 %v330
  %v1099 = vunpack.c.l.b16 %v331
  %v1100 = vunpack.c.l.b16 %v332
  %v1101 = vunpack.c.l.b16 %v333
  %v1102 = vunpack.c.l.b16 %v334
  %v1103 = vunpack.c.l.b16 %v335
  %v1104 = vunpack.c.l.b16 %v336
  %v1105 = vunpack.c.l.b16 %v337
  %v1106 = vunpack.c.l.b16 %v338
  %v1107 = vpack.c.b16 %v1044, %v1043
  %v1108 = vpack.c.b16 %v1046, %v1045
  %v1109 = vpack.c.b16 %v1048, %v1047
  %v1110 = vpack.c.b16 %v1050, %v1049
  %v1111 = vpack.c.b16 %v1052, %v1051
  %v1112 = vpack.c.b16 %v1054, %v1053
  %v1113 = vpack.c.b16 %v1056, %v1055
  %v1114 = vpack.c.b16 %v1058, %v1057
  %v1115 = vpack.c.b16 %v1060, %v1059
  %v1116 = vpack.c.b16 %v1062, %v1061
  %v1117 = vpack.c.b16 %v1064, %v1063
  %v1118 = vpack.c.b16 %v1066, %v1065
  %v1119 = vpack.c.b16 %v1068, %v1067
  %v1120 = vpack.c.b16 %v1070, %v1069
  %v1121 = vpack.c.b16 %v1072, %v1071
  %v1122 = vpack.c.b16 %v1074, %v1073
  %v1123 = vpack.c.b16 %v1076, %v1075
  %v1124 = vpack.c.b16 %v1078, %v1077
  %v1125 = vpack.c.b16 %v1080, %v1079
  %v1126 = vpack.c.b16 %v1082, %v1081
  %v1127 = vpack.c.b16 %v1084, %v1083
  %v1128 = vpack.c.b16 %v1086, %v1085
  %v1129 = vpack.c.b16 %v1088, %v1087
  %v1130 = vpack.c.b16 %v1090, %v1089
  %v1131 = vpack.c.b16 %v1092, %v1091
  %v1132 = vpack.c.b16 %v1094, %v1093
  %v1133 = vpack.c.b16 %v1096, %v1095
  %v1134 = vpack.c.b16 %v1098, %v1097
  %v1135 = vpack.c.b16 %v1100, %v1099
  %v1136 = vpack.c.b16 %v1102, %v1101
  %v1137 = vpack.c.b16 %v1104, %v1103
  %v1138 = vpack.c.b16 %v1106, %v1105
  %1171 = vmatprep.subr.bf16.mxu0 0
  %1172 = vmatpush1.bf16.msra.mxu0 %v1114
  %1173 = vmatprep.subr.bf16.mxu0 0
  %1174 = vmatpush1.bf16.msra.mxu0 %v1113
  %1175 = vmatprep.subr.bf16.mxu0 0
  %1176 = vmatpush1.bf16.msra.mxu0 %v1112
  %1177 = vmatprep.subr.bf16.mxu0 0
  %1178 = vmatpush1.bf16.msra.mxu0 %v1111
  %1179 = vmatprep.subr.bf16.mxu0 0
  %1180 = vmatpush1.bf16.msra.mxu0 %v1110
  %1181 = vmatprep.subr.bf16.mxu0 0
  %1182 = vmatpush1.bf16.msra.mxu0 %v1109
  %1183 = vmatprep.subr.bf16.mxu0 0
  %1184 = vmatpush1.bf16.msra.mxu0 %v1108
  %1185 = vmatprep.subr.bf16.mxu0 0
  %1186 = vmatpush1.bf16.msra.mxu0 %v1107
  %1187 = vmatprep.subr.bf16.mxu0 0
  %1188 = vmatpush2.bf16.msra.mxu0 %v1122
  %1189 = vmatprep.subr.bf16.mxu0 0
  %1190 = vmatpush2.bf16.msra.mxu0 %v1121
  %1191 = vmatprep.subr.bf16.mxu0 0
  %1192 = vmatpush2.bf16.msra.mxu0 %v1120
  %1193 = vmatprep.subr.bf16.mxu0 0
  %1194 = vmatpush2.bf16.msra.mxu0 %v1119
  %1195 = vmatprep.subr.bf16.mxu0 0
  %1196 = vmatpush2.bf16.msra.mxu0 %v1118
  %1197 = vmatprep.subr.bf16.mxu0 0
  %1198 = vmatpush2.bf16.msra.mxu0 %v1117
  %1199 = vmatprep.subr.bf16.mxu0 0
  %1200 = vmatpush2.bf16.msra.mxu0 %v1116
  %1201 = vmatprep.subr.bf16.mxu0 0
  %1202 = vmatpush2.bf16.msra.mxu0 %v1115
  %1203 = vmatprep.mubr.bf16.mxu0 %v724
  %1204 = vmatmul.mubr.bf16.gmra.mxu0 %v723
  %v1205 = vpop.f32.mrf.mxu0
  %v1206 = vadd.f32 0.0, %v1205
  %v1207 = vpop.f32.mrf.mxu0
  %v1208 = vpop.f32.mrf.mxu0
  %v1209 = vadd.f32 0.0, %v1208
  %v1210 = vpop.f32.mrf.mxu0
  %1211 = vmatprep.mubr.bf16.mxu0 %v728
  %1212 = vmatmul.mubr.bf16.gmra.mxu0 %v727
  %v1213 = vpop.f32.mrf.mxu0
  %v1214 = vadd.f32 0.0, %v1213
  %v1215 = vpop.f32.mrf.mxu0
  %v1216 = vpop.f32.mrf.mxu0
  %v1217 = vadd.f32 0.0, %v1216
  %v1218 = vpop.f32.mrf.mxu0
  %1219 = vmatprep.mubr.bf16.mxu0 %v732
  %1220 = vmatmul.mubr.bf16.gmra.mxu0 %v731
  %v1221 = vpop.f32.mrf.mxu0
  %v1222 = vadd.f32 0.0, %v1221
  %v1223 = vpop.f32.mrf.mxu0
  %v1224 = vpop.f32.mrf.mxu0
  %v1225 = vadd.f32 0.0, %v1224
  %v1226 = vpop.f32.mrf.mxu0
  %1227 = vmatprep.mubr.bf16.mxu0 %v736
  %1228 = vmatmul.mubr.bf16.gmra.mxu0 %v735
  %v1229 = vpop.f32.mrf.mxu0
  %v1230 = vadd.f32 0.0, %v1229
  %v1231 = vpop.f32.mrf.mxu0
  %v1232 = vpop.f32.mrf.mxu0
  %v1233 = vadd.f32 0.0, %v1232
  %v1234 = vpop.f32.mrf.mxu0
  %1235 = vmatprep.mubr.bf16.mxu0 %v740
  %1236 = vmatmul.mubr.bf16.gmra.mxu0 %v739
  %v1237 = vpop.f32.mrf.mxu0
  %v1238 = vadd.f32 0.0, %v1237
  %v1239 = vpop.f32.mrf.mxu0
  %v1240 = vpop.f32.mrf.mxu0
  %v1241 = vadd.f32 0.0, %v1240
  %v1242 = vpop.f32.mrf.mxu0
  %1243 = vmatprep.mubr.bf16.mxu0 %v744
  %1244 = vmatmul.mubr.bf16.gmra.mxu0 %v743
  %v1245 = vpop.f32.mrf.mxu0
  %v1246 = vadd.f32 0.0, %v1245
  %v1247 = vpop.f32.mrf.mxu0
  %v1248 = vpop.f32.mrf.mxu0
  %v1249 = vadd.f32 0.0, %v1248
  %v1250 = vpop.f32.mrf.mxu0
  %1251 = vmatprep.mubr.bf16.mxu0 %v748
  %1252 = vmatmul.mubr.bf16.gmra.mxu0 %v747
  %v1253 = vpop.f32.mrf.mxu0
  %v1254 = vadd.f32 0.0, %v1253
  %v1255 = vpop.f32.mrf.mxu0
  %v1256 = vpop.f32.mrf.mxu0
  %v1257 = vadd.f32 0.0, %v1256
  %v1258 = vpop.f32.mrf.mxu0
  %1259 = vmatprep.mubr.bf16.mxu0 %v752
  %1260 = vmatmul.mubr.bf16.gmra.mxu0 %v751
  %v1261 = vpop.f32.mrf.mxu0
  %v1262 = vadd.f32 0.0, %v1261
  %v1263 = vpop.f32.mrf.mxu0
  %v1264 = vpop.f32.mrf.mxu0
  %v1265 = vadd.f32 0.0, %v1264
  %v1266 = vpop.f32.mrf.mxu0
  %1267 = vmatprep.mubr.bf16.mxu0 %v756
  %1268 = vmatmul.mubr.bf16.gmra.mxu0 %v755
  %v1269 = vpop.f32.mrf.mxu0
  %v1270 = vadd.f32 0.0, %v1269
  %v1271 = vpop.f32.mrf.mxu0
  %v1272 = vpop.f32.mrf.mxu0
  %v1273 = vadd.f32 0.0, %v1272
  %v1274 = vpop.f32.mrf.mxu0
  %1275 = vmatprep.mubr.bf16.mxu0 %v760
  %1276 = vmatmul.mubr.bf16.gmra.mxu0 %v759
  %v1277 = vpop.f32.mrf.mxu0
  %v1278 = vadd.f32 0.0, %v1277
  %v1279 = vpop.f32.mrf.mxu0
  %v1280 = vpop.f32.mrf.mxu0
  %v1281 = vadd.f32 0.0, %v1280
  %v1282 = vpop.f32.mrf.mxu0
  %1283 = vmatprep.mubr.bf16.mxu0 %v764
  %1284 = vmatmul.mubr.bf16.gmra.mxu0 %v763
  %v1285 = vpop.f32.mrf.mxu0
  %v1286 = vadd.f32 0.0, %v1285
  %v1287 = vpop.f32.mrf.mxu0
  %v1288 = vpop.f32.mrf.mxu0
  %v1289 = vadd.f32 0.0, %v1288
  %v1290 = vpop.f32.mrf.mxu0
  %1291 = vmatprep.mubr.bf16.mxu0 %v768
  %1292 = vmatmul.mubr.bf16.gmra.mxu0 %v767
  %v1293 = vpop.f32.mrf.mxu0
  %v1294 = vadd.f32 0.0, %v1293
  %v1295 = vpop.f32.mrf.mxu0
  %v1296 = vpop.f32.mrf.mxu0
  %v1297 = vadd.f32 0.0, %v1296
  %v1298 = vpop.f32.mrf.mxu0
  %1299 = vmatprep.mubr.bf16.mxu0 %v772
  %1300 = vmatmul.mubr.bf16.gmra.mxu0 %v771
  %v1301 = vpop.f32.mrf.mxu0
  %v1302 = vadd.f32 0.0, %v1301
  %v1303 = vpop.f32.mrf.mxu0
  %v1304 = vpop.f32.mrf.mxu0
  %v1305 = vadd.f32 0.0, %v1304
  %v1306 = vpop.f32.mrf.mxu0
  %1307 = vmatprep.mubr.bf16.mxu0 %v776
  %1308 = vmatmul.mubr.bf16.gmra.mxu0 %v775
  %v1309 = vpop.f32.mrf.mxu0
  %v1310 = vadd.f32 0.0, %v1309
  %v1311 = vpop.f32.mrf.mxu0
  %v1312 = vpop.f32.mrf.mxu0
  %v1313 = vadd.f32 0.0, %v1312
  %v1314 = vpop.f32.mrf.mxu0
  %1315 = vmatprep.mubr.bf16.mxu0 %v780
  %1316 = vmatmul.mubr.bf16.gmra.mxu0 %v779
  %v1317 = vpop.f32.mrf.mxu0
  %v1318 = vadd.f32 0.0, %v1317
  %v1319 = vpop.f32.mrf.mxu0
  %v1320 = vpop.f32.mrf.mxu0
  %v1321 = vadd.f32 0.0, %v1320
  %v1322 = vpop.f32.mrf.mxu0
  %1323 = vmatprep.mubr.bf16.mxu0 %v784
  %1324 = vmatmul.mubr.bf16.gmra.mxu0 %v783
  %v1325 = vpop.f32.mrf.mxu0
  %v1326 = vadd.f32 0.0, %v1325
  %v1327 = vpop.f32.mrf.mxu0
  %v1328 = vpop.f32.mrf.mxu0
  %v1329 = vadd.f32 0.0, %v1328
  %v1330 = vpop.f32.mrf.mxu0
  %1331 = vmatprep.mubr.bf16.mxu0 %v788
  %1332 = vmatmul.mubr.bf16.gmra.mxu0 %v787
  %v1333 = vpop.f32.mrf.mxu0
  %v1334 = vadd.f32 0.0, %v1333
  %v1335 = vpop.f32.mrf.mxu0
  %v1336 = vpop.f32.mrf.mxu0
  %v1337 = vadd.f32 0.0, %v1336
  %v1338 = vpop.f32.mrf.mxu0
  %1339 = vmatprep.mubr.bf16.mxu0 %v792
  %1340 = vmatmul.mubr.bf16.gmra.mxu0 %v791
  %v1341 = vpop.f32.mrf.mxu0
  %v1342 = vadd.f32 0.0, %v1341
  %v1343 = vpop.f32.mrf.mxu0
  %v1344 = vpop.f32.mrf.mxu0
  %v1345 = vadd.f32 0.0, %v1344
  %v1346 = vpop.f32.mrf.mxu0
  %1347 = vmatprep.mubr.bf16.mxu0 %v796
  %1348 = vmatmul.mubr.bf16.gmra.mxu0 %v795
  %v1349 = vpop.f32.mrf.mxu0
  %v1350 = vadd.f32 0.0, %v1349
  %v1351 = vpop.f32.mrf.mxu0
  %v1352 = vpop.f32.mrf.mxu0
  %v1353 = vadd.f32 0.0, %v1352
  %v1354 = vpop.f32.mrf.mxu0
  %1355 = vmatprep.mubr.bf16.mxu0 %v800
  %1356 = vmatmul.mubr.bf16.gmra.mxu0 %v799
  %v1357 = vpop.f32.mrf.mxu0
  %v1358 = vadd.f32 0.0, %v1357
  %v1359 = vpop.f32.mrf.mxu0
  %v1360 = vpop.f32.mrf.mxu0
  %v1361 = vadd.f32 0.0, %v1360
  %v1362 = vpop.f32.mrf.mxu0
  %1363 = vmatprep.mubr.bf16.mxu0 %v804
  %1364 = vmatmul.mubr.bf16.gmra.mxu0 %v803
  %v1365 = vpop.f32.mrf.mxu0
  %v1366 = vadd.f32 0.0, %v1365
  %v1367 = vpop.f32.mrf.mxu0
  %v1368 = vpop.f32.mrf.mxu0
  %v1369 = vadd.f32 0.0, %v1368
  %v1370 = vpop.f32.mrf.mxu0
  %1371 = vmatprep.mubr.bf16.mxu0 %v808
  %1372 = vmatmul.mubr.bf16.gmra.mxu0 %v807
  %v1373 = vpop.f32.mrf.mxu0
  %v1374 = vadd.f32 0.0, %v1373
  %v1375 = vpop.f32.mrf.mxu0
  %v1376 = vpop.f32.mrf.mxu0
  %v1377 = vadd.f32 0.0, %v1376
  %v1378 = vpop.f32.mrf.mxu0
  %1379 = vmatprep.mubr.bf16.mxu0 %v812
  %1380 = vmatmul.mubr.bf16.gmra.mxu0 %v811
  %v1381 = vpop.f32.mrf.mxu0
  %v1382 = vadd.f32 0.0, %v1381
  %v1383 = vpop.f32.mrf.mxu0
  %v1384 = vpop.f32.mrf.mxu0
  %v1385 = vadd.f32 0.0, %v1384
  %v1386 = vpop.f32.mrf.mxu0
  %1387 = vmatprep.mubr.bf16.mxu0 %v816
  %1388 = vmatmul.mubr.bf16.gmra.mxu0 %v815
  %v1389 = vpop.f32.mrf.mxu0
  %v1390 = vadd.f32 0.0, %v1389
  %v1391 = vpop.f32.mrf.mxu0
  %v1392 = vpop.f32.mrf.mxu0
  %v1393 = vadd.f32 0.0, %v1392
  %v1394 = vpop.f32.mrf.mxu0
  %1395 = vmatprep.mubr.bf16.mxu0 %v820
  %1396 = vmatmul.mubr.bf16.gmra.mxu0 %v819
  %v1397 = vpop.f32.mrf.mxu0
  %v1398 = vadd.f32 0.0, %v1397
  %v1399 = vpop.f32.mrf.mxu0
  %v1400 = vpop.f32.mrf.mxu0
  %v1401 = vadd.f32 0.0, %v1400
  %v1402 = vpop.f32.mrf.mxu0
  %1403 = vmatprep.mubr.bf16.mxu0 %v824
  %1404 = vmatmul.mubr.bf16.gmra.mxu0 %v823
  %v1405 = vpop.f32.mrf.mxu0
  %v1406 = vadd.f32 0.0, %v1405
  %v1407 = vpop.f32.mrf.mxu0
  %v1408 = vpop.f32.mrf.mxu0
  %v1409 = vadd.f32 0.0, %v1408
  %v1410 = vpop.f32.mrf.mxu0
  %1411 = vmatprep.mubr.bf16.mxu0 %v828
  %1412 = vmatmul.mubr.bf16.gmra.mxu0 %v827
  %v1413 = vpop.f32.mrf.mxu0
  %v1414 = vadd.f32 0.0, %v1413
  %v1415 = vpop.f32.mrf.mxu0
  %v1416 = vpop.f32.mrf.mxu0
  %v1417 = vadd.f32 0.0, %v1416
  %v1418 = vpop.f32.mrf.mxu0
  %1419 = vmatprep.mubr.bf16.mxu0 %v832
  %1420 = vmatmul.mubr.bf16.gmra.mxu0 %v831
  %v1421 = vpop.f32.mrf.mxu0
  %v1422 = vadd.f32 0.0, %v1421
  %v1423 = vpop.f32.mrf.mxu0
  %v1424 = vpop.f32.mrf.mxu0
  %v1425 = vadd.f32 0.0, %v1424
  %v1426 = vpop.f32.mrf.mxu0
  %1427 = vmatprep.mubr.bf16.mxu0 %v836
  %1428 = vmatmul.mubr.bf16.gmra.mxu0 %v835
  %v1429 = vpop.f32.mrf.mxu0
  %v1430 = vadd.f32 0.0, %v1429
  %v1431 = vpop.f32.mrf.mxu0
  %v1432 = vpop.f32.mrf.mxu0
  %v1433 = vadd.f32 0.0, %v1432
  %v1434 = vpop.f32.mrf.mxu0
  %1435 = vmatprep.mubr.bf16.mxu0 %v840
  %1436 = vmatmul.mubr.bf16.gmra.mxu0 %v839
  %v1437 = vpop.f32.mrf.mxu0
  %v1438 = vadd.f32 0.0, %v1437
  %v1439 = vpop.f32.mrf.mxu0
  %v1440 = vpop.f32.mrf.mxu0
  %v1441 = vadd.f32 0.0, %v1440
  %v1442 = vpop.f32.mrf.mxu0
  %1443 = vmatprep.mubr.bf16.mxu0 %v844
  %1444 = vmatmul.mubr.bf16.gmra.mxu0 %v843
  %v1445 = vpop.f32.mrf.mxu0
  %v1446 = vadd.f32 0.0, %v1445
  %v1447 = vpop.f32.mrf.mxu0
  %v1448 = vpop.f32.mrf.mxu0
  %v1449 = vadd.f32 0.0, %v1448
  %v1450 = vpop.f32.mrf.mxu0
  %1451 = vmatprep.mubr.bf16.mxu0 %v848
  %1452 = vmatmul.mubr.bf16.gmra.mxu0 %v847
  %v1453 = vpop.f32.mrf.mxu0
  %v1454 = vadd.f32 0.0, %v1453
  %v1455 = vpop.f32.mrf.mxu0
  %v1456 = vpop.f32.mrf.mxu0
  %v1457 = vadd.f32 0.0, %v1456
  %v1458 = vpop.f32.mrf.mxu0
  %1459 = vdwg.mxu0
  %1460 = vmatprep.subr.bf16.mxu0 0
  %1461 = vmatpush1.bf16.msra.mxu0 %v1130
  %1462 = vmatprep.subr.bf16.mxu0 0
  %1463 = vmatpush1.bf16.msra.mxu0 %v1129
  %1464 = vmatprep.subr.bf16.mxu0 0
  %1465 = vmatpush1.bf16.msra.mxu0 %v1128
  %1466 = vmatprep.subr.bf16.mxu0 0
  %1467 = vmatpush1.bf16.msra.mxu0 %v1127
  %1468 = vmatprep.subr.bf16.mxu0 0
  %1469 = vmatpush1.bf16.msra.mxu0 %v1126
  %1470 = vmatprep.subr.bf16.mxu0 0
  %1471 = vmatpush1.bf16.msra.mxu0 %v1125
  %1472 = vmatprep.subr.bf16.mxu0 0
  %1473 = vmatpush1.bf16.msra.mxu0 %v1124
  %1474 = vmatprep.subr.bf16.mxu0 0
  %1475 = vmatpush1.bf16.msra.mxu0 %v1123
  %1476 = vmatprep.subr.bf16.mxu0 0
  %1477 = vmatpush2.bf16.msra.mxu0 %v1138
  %1478 = vmatprep.subr.bf16.mxu0 0
  %1479 = vmatpush2.bf16.msra.mxu0 %v1137
  %1480 = vmatprep.subr.bf16.mxu0 0
  %1481 = vmatpush2.bf16.msra.mxu0 %v1136
  %1482 = vmatprep.subr.bf16.mxu0 0
  %1483 = vmatpush2.bf16.msra.mxu0 %v1135
  %1484 = vmatprep.subr.bf16.mxu0 0
  %1485 = vmatpush2.bf16.msra.mxu0 %v1134
  %1486 = vmatprep.subr.bf16.mxu0 0
  %1487 = vmatpush2.bf16.msra.mxu0 %v1133
  %1488 = vmatprep.subr.bf16.mxu0 0
  %1489 = vmatpush2.bf16.msra.mxu0 %v1132
  %1490 = vmatprep.subr.bf16.mxu0 0
  %1491 = vmatpush2.bf16.msra.mxu0 %v1131
  %1492 = vmatprep.mubr.bf16.mxu0 %v726
  %1493 = vmatmul.mubr.bf16.gmra.mxu0 %v725
  %v1494 = vpop.f32.mrf.mxu0
  %v1495 = vadd.f32 %v1206, %v1494
  %v1496 = vpop.f32.mrf.mxu0
  %v1497 = vpop.f32.mrf.mxu0
  %v1498 = vadd.f32 %v1209, %v1497
  %v1499 = vpop.f32.mrf.mxu0
  %1500 = vmatprep.mubr.bf16.mxu0 %v730
  %1501 = vmatmul.mubr.bf16.gmra.mxu0 %v729
  %v1502 = vpop.f32.mrf.mxu0
  %v1503 = vadd.f32 %v1214, %v1502
  %v1504 = vpop.f32.mrf.mxu0
  %v1505 = vpop.f32.mrf.mxu0
  %v1506 = vadd.f32 %v1217, %v1505
  %v1507 = vpop.f32.mrf.mxu0
  %1508 = vmatprep.mubr.bf16.mxu0 %v734
  %1509 = vmatmul.mubr.bf16.gmra.mxu0 %v733
  %v1510 = vpop.f32.mrf.mxu0
  %v1511 = vadd.f32 %v1222, %v1510
  %v1512 = vpop.f32.mrf.mxu0
  %v1513 = vpop.f32.mrf.mxu0
  %v1514 = vadd.f32 %v1225, %v1513
  %v1515 = vpop.f32.mrf.mxu0
  %1516 = vmatprep.mubr.bf16.mxu0 %v738
  %1517 = vmatmul.mubr.bf16.gmra.mxu0 %v737
  %v1518 = vpop.f32.mrf.mxu0
  %v1519 = vadd.f32 %v1230, %v1518
  %v1520 = vpop.f32.mrf.mxu0
  %v1521 = vpop.f32.mrf.mxu0
  %v1522 = vadd.f32 %v1233, %v1521
  %v1523 = vpop.f32.mrf.mxu0
  %1524 = vmatprep.mubr.bf16.mxu0 %v742
  %1525 = vmatmul.mubr.bf16.gmra.mxu0 %v741
  %v1526 = vpop.f32.mrf.mxu0
  %v1527 = vadd.f32 %v1238, %v1526
  %v1528 = vpop.f32.mrf.mxu0
  %v1529 = vpop.f32.mrf.mxu0
  %v1530 = vadd.f32 %v1241, %v1529
  %v1531 = vpop.f32.mrf.mxu0
  %1532 = vmatprep.mubr.bf16.mxu0 %v746
  %1533 = vmatmul.mubr.bf16.gmra.mxu0 %v745
  %v1534 = vpop.f32.mrf.mxu0
  %v1535 = vadd.f32 %v1246, %v1534
  %v1536 = vpop.f32.mrf.mxu0
  %v1537 = vpop.f32.mrf.mxu0
  %v1538 = vadd.f32 %v1249, %v1537
  %v1539 = vpop.f32.mrf.mxu0
  %1540 = vmatprep.mubr.bf16.mxu0 %v750
  %1541 = vmatmul.mubr.bf16.gmra.mxu0 %v749
  %v1542 = vpop.f32.mrf.mxu0
  %v1543 = vadd.f32 %v1254, %v1542
  %v1544 = vpop.f32.mrf.mxu0
  %v1545 = vpop.f32.mrf.mxu0
  %v1546 = vadd.f32 %v1257, %v1545
  %v1547 = vpop.f32.mrf.mxu0
  %1548 = vmatprep.mubr.bf16.mxu0 %v754
  %1549 = vmatmul.mubr.bf16.gmra.mxu0 %v753
  %v1550 = vpop.f32.mrf.mxu0
  %v1551 = vadd.f32 %v1262, %v1550
  %v1552 = vpop.f32.mrf.mxu0
  %v1553 = vpop.f32.mrf.mxu0
  %v1554 = vadd.f32 %v1265, %v1553
  %v1555 = vpop.f32.mrf.mxu0
  %1556 = vmatprep.mubr.bf16.mxu0 %v758
  %1557 = vmatmul.mubr.bf16.gmra.mxu0 %v757
  %v1558 = vpop.f32.mrf.mxu0
  %v1559 = vadd.f32 %v1270, %v1558
  %v1560 = vpop.f32.mrf.mxu0
  %v1561 = vpop.f32.mrf.mxu0
  %v1562 = vadd.f32 %v1273, %v1561
  %v1563 = vpop.f32.mrf.mxu0
  %1564 = vmatprep.mubr.bf16.mxu0 %v762
  %1565 = vmatmul.mubr.bf16.gmra.mxu0 %v761
  %v1566 = vpop.f32.mrf.mxu0
  %v1567 = vadd.f32 %v1278, %v1566
  %v1568 = vpop.f32.mrf.mxu0
  %v1569 = vpop.f32.mrf.mxu0
  %v1570 = vadd.f32 %v1281, %v1569
  %v1571 = vpop.f32.mrf.mxu0
  %1572 = vmatprep.mubr.bf16.mxu0 %v766
  %1573 = vmatmul.mubr.bf16.gmra.mxu0 %v765
  %v1574 = vpop.f32.mrf.mxu0
  %v1575 = vadd.f32 %v1286, %v1574
  %v1576 = vpop.f32.mrf.mxu0
  %v1577 = vpop.f32.mrf.mxu0
  %v1578 = vadd.f32 %v1289, %v1577
  %v1579 = vpop.f32.mrf.mxu0
  %1580 = vmatprep.mubr.bf16.mxu0 %v770
  %1581 = vmatmul.mubr.bf16.gmra.mxu0 %v769
  %v1582 = vpop.f32.mrf.mxu0
  %v1583 = vadd.f32 %v1294, %v1582
  %v1584 = vpop.f32.mrf.mxu0
  %v1585 = vpop.f32.mrf.mxu0
  %v1586 = vadd.f32 %v1297, %v1585
  %v1587 = vpop.f32.mrf.mxu0
  %1588 = vmatprep.mubr.bf16.mxu0 %v774
  %1589 = vmatmul.mubr.bf16.gmra.mxu0 %v773
  %v1590 = vpop.f32.mrf.mxu0
  %v1591 = vadd.f32 %v1302, %v1590
  %v1592 = vpop.f32.mrf.mxu0
  %v1593 = vpop.f32.mrf.mxu0
  %v1594 = vadd.f32 %v1305, %v1593
  %v1595 = vpop.f32.mrf.mxu0
  %1596 = vmatprep.mubr.bf16.mxu0 %v778
  %1597 = vmatmul.mubr.bf16.gmra.mxu0 %v777
  %v1598 = vpop.f32.mrf.mxu0
  %v1599 = vadd.f32 %v1310, %v1598
  %v1600 = vpop.f32.mrf.mxu0
  %v1601 = vpop.f32.mrf.mxu0
  %v1602 = vadd.f32 %v1313, %v1601
  %v1603 = vpop.f32.mrf.mxu0
  %1604 = vmatprep.mubr.bf16.mxu0 %v782
  %1605 = vmatmul.mubr.bf16.gmra.mxu0 %v781
  %v1606 = vpop.f32.mrf.mxu0
  %v1607 = vadd.f32 %v1318, %v1606
  %v1608 = vpop.f32.mrf.mxu0
  %v1609 = vpop.f32.mrf.mxu0
  %v1610 = vadd.f32 %v1321, %v1609
  %v1611 = vpop.f32.mrf.mxu0
  %1612 = vmatprep.mubr.bf16.mxu0 %v786
  %1613 = vmatmul.mubr.bf16.gmra.mxu0 %v785
  %v1614 = vpop.f32.mrf.mxu0
  %v1615 = vadd.f32 %v1326, %v1614
  %v1616 = vpop.f32.mrf.mxu0
  %v1617 = vpop.f32.mrf.mxu0
  %v1618 = vadd.f32 %v1329, %v1617
  %v1619 = vpop.f32.mrf.mxu0
  %1620 = vmatprep.mubr.bf16.mxu0 %v790
  %1621 = vmatmul.mubr.bf16.gmra.mxu0 %v789
  %v1622 = vpop.f32.mrf.mxu0
  %v1623 = vadd.f32 %v1334, %v1622
  %v1624 = vpop.f32.mrf.mxu0
  %v1625 = vpop.f32.mrf.mxu0
  %v1626 = vadd.f32 %v1337, %v1625
  %v1627 = vpop.f32.mrf.mxu0
  %1628 = vmatprep.mubr.bf16.mxu0 %v794
  %1629 = vmatmul.mubr.bf16.gmra.mxu0 %v793
  %v1630 = vpop.f32.mrf.mxu0
  %v1631 = vadd.f32 %v1342, %v1630
  %v1632 = vpop.f32.mrf.mxu0
  %v1633 = vpop.f32.mrf.mxu0
  %v1634 = vadd.f32 %v1345, %v1633
  %v1635 = vpop.f32.mrf.mxu0
  %1636 = vmatprep.mubr.bf16.mxu0 %v798
  %1637 = vmatmul.mubr.bf16.gmra.mxu0 %v797
  %v1638 = vpop.f32.mrf.mxu0
  %v1639 = vadd.f32 %v1350, %v1638
  %v1640 = vpop.f32.mrf.mxu0
  %v1641 = vpop.f32.mrf.mxu0
  %v1642 = vadd.f32 %v1353, %v1641
  %v1643 = vpop.f32.mrf.mxu0
  %1644 = vmatprep.mubr.bf16.mxu0 %v802
  %1645 = vmatmul.mubr.bf16.gmra.mxu0 %v801
  %v1646 = vpop.f32.mrf.mxu0
  %v1647 = vadd.f32 %v1358, %v1646
  %v1648 = vpop.f32.mrf.mxu0
  %v1649 = vpop.f32.mrf.mxu0
  %v1650 = vadd.f32 %v1361, %v1649
  %v1651 = vpop.f32.mrf.mxu0
  %1652 = vmatprep.mubr.bf16.mxu0 %v806
  %1653 = vmatmul.mubr.bf16.gmra.mxu0 %v805
  %v1654 = vpop.f32.mrf.mxu0
  %v1655 = vadd.f32 %v1366, %v1654
  %v1656 = vpop.f32.mrf.mxu0
  %v1657 = vpop.f32.mrf.mxu0
  %v1658 = vadd.f32 %v1369, %v1657
  %v1659 = vpop.f32.mrf.mxu0
  %1660 = vmatprep.mubr.bf16.mxu0 %v810
  %1661 = vmatmul.mubr.bf16.gmra.mxu0 %v809
  %v1662 = vpop.f32.mrf.mxu0
  %v1663 = vadd.f32 %v1374, %v1662
  %v1664 = vpop.f32.mrf.mxu0
  %v1665 = vpop.f32.mrf.mxu0
  %v1666 = vadd.f32 %v1377, %v1665
  %v1667 = vpop.f32.mrf.mxu0
  %1668 = vmatprep.mubr.bf16.mxu0 %v814
  %1669 = vmatmul.mubr.bf16.gmra.mxu0 %v813
  %v1670 = vpop.f32.mrf.mxu0
  %v1671 = vadd.f32 %v1382, %v1670
  %v1672 = vpop.f32.mrf.mxu0
  %v1673 = vpop.f32.mrf.mxu0
  %v1674 = vadd.f32 %v1385, %v1673
  %v1675 = vpop.f32.mrf.mxu0
  %1676 = vmatprep.mubr.bf16.mxu0 %v818
  %1677 = vmatmul.mubr.bf16.gmra.mxu0 %v817
  %v1678 = vpop.f32.mrf.mxu0
  %v1679 = vadd.f32 %v1390, %v1678
  %v1680 = vpop.f32.mrf.mxu0
  %v1681 = vpop.f32.mrf.mxu0
  %v1682 = vadd.f32 %v1393, %v1681
  %v1683 = vpop.f32.mrf.mxu0
  %1684 = vmatprep.mubr.bf16.mxu0 %v822
  %1685 = vmatmul.mubr.bf16.gmra.mxu0 %v821
  %v1686 = vpop.f32.mrf.mxu0
  %v1687 = vadd.f32 %v1398, %v1686
  %v1688 = vpop.f32.mrf.mxu0
  %v1689 = vpop.f32.mrf.mxu0
  %v1690 = vadd.f32 %v1401, %v1689
  %v1691 = vpop.f32.mrf.mxu0
  %1692 = vmatprep.mubr.bf16.mxu0 %v826
  %1693 = vmatmul.mubr.bf16.gmra.mxu0 %v825
  %v1694 = vpop.f32.mrf.mxu0
  %v1695 = vadd.f32 %v1406, %v1694
  %v1696 = vpop.f32.mrf.mxu0
  %v1697 = vpop.f32.mrf.mxu0
  %v1698 = vadd.f32 %v1409, %v1697
  %v1699 = vpop.f32.mrf.mxu0
  %1700 = vmatprep.mubr.bf16.mxu0 %v830
  %1701 = vmatmul.mubr.bf16.gmra.mxu0 %v829
  %v1702 = vpop.f32.mrf.mxu0
  %v1703 = vadd.f32 %v1414, %v1702
  %v1704 = vpop.f32.mrf.mxu0
  %v1705 = vpop.f32.mrf.mxu0
  %v1706 = vadd.f32 %v1417, %v1705
  %v1707 = vpop.f32.mrf.mxu0
  %1708 = vmatprep.mubr.bf16.mxu0 %v834
  %1709 = vmatmul.mubr.bf16.gmra.mxu0 %v833
  %v1710 = vpop.f32.mrf.mxu0
  %v1711 = vadd.f32 %v1422, %v1710
  %v1712 = vpop.f32.mrf.mxu0
  %v1713 = vpop.f32.mrf.mxu0
  %v1714 = vadd.f32 %v1425, %v1713
  %v1715 = vpop.f32.mrf.mxu0
  %1716 = vmatprep.mubr.bf16.mxu0 %v838
  %1717 = vmatmul.mubr.bf16.gmra.mxu0 %v837
  %v1718 = vpop.f32.mrf.mxu0
  %v1719 = vadd.f32 %v1430, %v1718
  %v1720 = vpop.f32.mrf.mxu0
  %v1721 = vpop.f32.mrf.mxu0
  %v1722 = vadd.f32 %v1433, %v1721
  %v1723 = vpop.f32.mrf.mxu0
  %1724 = vmatprep.mubr.bf16.mxu0 %v842
  %1725 = vmatmul.mubr.bf16.gmra.mxu0 %v841
  %v1726 = vpop.f32.mrf.mxu0
  %v1727 = vadd.f32 %v1438, %v1726
  %v1728 = vpop.f32.mrf.mxu0
  %v1729 = vpop.f32.mrf.mxu0
  %v1730 = vadd.f32 %v1441, %v1729
  %v1731 = vpop.f32.mrf.mxu0
  %1732 = vmatprep.mubr.bf16.mxu0 %v846
  %1733 = vmatmul.mubr.bf16.gmra.mxu0 %v845
  %v1734 = vpop.f32.mrf.mxu0
  %v1735 = vadd.f32 %v1446, %v1734
  %v1736 = vpop.f32.mrf.mxu0
  %v1737 = vpop.f32.mrf.mxu0
  %v1738 = vadd.f32 %v1449, %v1737
  %v1739 = vpop.f32.mrf.mxu0
  %1740 = vmatprep.mubr.bf16.mxu0 %v850
  %1741 = vmatmul.mubr.bf16.gmra.mxu0 %v849
  %v1742 = vpop.f32.mrf.mxu0
  %v1743 = vadd.f32 %v1454, %v1742
  %v1744 = vpop.f32.mrf.mxu0
  %v1745 = vpop.f32.mrf.mxu0
  %v1746 = vadd.f32 %v1457, %v1745
  %v1747 = vpop.f32.mrf.mxu0
  %1748 = vdwg.mxu0
  %v1749 = vadd.f32 %v83, %v1495
  %v1750 = vadd.f32 %v84, %v1498
  %v1751 = vadd.f32 %v85, %v1503
  %v1752 = vadd.f32 %v86, %v1506
  %v1753 = vadd.f32 %v87, %v1511
  %v1754 = vadd.f32 %v88, %v1514
  %v1755 = vadd.f32 %v89, %v1519
  %v1756 = vadd.f32 %v90, %v1522
  %v1757 = vadd.f32 %v91, %v1527
  %v1758 = vadd.f32 %v92, %v1530
  %v1759 = vadd.f32 %v93, %v1535
  %v1760 = vadd.f32 %v94, %v1538
  %v1761 = vadd.f32 %v95, %v1543
  %v1762 = vadd.f32 %v96, %v1546
  %v1763 = vadd.f32 %v97, %v1551
  %v1764 = vadd.f32 %v98, %v1554
  %v1765 = vadd.f32 %v99, %v1559
  %v1766 = vadd.f32 %v100, %v1562
  %v1767 = vadd.f32 %v101, %v1567
  %v1768 = vadd.f32 %v102, %v1570
  %v1769 = vadd.f32 %v103, %v1575
  %v1770 = vadd.f32 %v104, %v1578
  %v1771 = vadd.f32 %v105, %v1583
  %v1772 = vadd.f32 %v106, %v1586
  %v1773 = vadd.f32 %v107, %v1591
  %v1774 = vadd.f32 %v108, %v1594
  %v1775 = vadd.f32 %v109, %v1599
  %v1776 = vadd.f32 %v110, %v1602
  %v1777 = vadd.f32 %v111, %v1607
  %v1778 = vadd.f32 %v112, %v1610
  %v1779 = vadd.f32 %v113, %v1615
  %v1780 = vadd.f32 %v114, %v1618
  %v1781 = vadd.f32 %v115, %v1623
  %v1782 = vadd.f32 %v116, %v1626
  %v1783 = vadd.f32 %v117, %v1631
  %v1784 = vadd.f32 %v118, %v1634
  %v1785 = vadd.f32 %v119, %v1639
  %v1786 = vadd.f32 %v120, %v1642
  %v1787 = vadd.f32 %v121, %v1647
  %v1788 = vadd.f32 %v122, %v1650
  %v1789 = vadd.f32 %v123, %v1655
  %v1790 = vadd.f32 %v124, %v1658
  %v1791 = vadd.f32 %v125, %v1663
  %v1792 = vadd.f32 %v126, %v1666
  %v1793 = vadd.f32 %v127, %v1671
  %v1794 = vadd.f32 %v128, %v1674
  %v1795 = vadd.f32 %v129, %v1679
  %v1796 = vadd.f32 %v130, %v1682
  %v1797 = vadd.f32 %v131, %v1687
  %v1798 = vadd.f32 %v132, %v1690
  %v1799 = vadd.f32 %v133, %v1695
  %v1800 = vadd.f32 %v134, %v1698
  %v1801 = vadd.f32 %v135, %v1703
  %v1802 = vadd.f32 %v136, %v1706
  %v1803 = vadd.f32 %v137, %v1711
  %v1804 = vadd.f32 %v138, %v1714
  %v1805 = vadd.f32 %v139, %v1719
  %v1806 = vadd.f32 %v140, %v1722
  %v1807 = vadd.f32 %v141, %v1727
  %v1808 = vadd.f32 %v142, %v1730
  %v1809 = vadd.f32 %v143, %v1735
  %v1810 = vadd.f32 %v144, %v1738
  %v1811 = vadd.f32 %v145, %v1743
  %v1812 = vadd.f32 %v146, %v1746
  %1813 = vst [vmem:[#allocation2] sm:$0xff] %v1749
  %1814 = vst [vmem:[#allocation2 + $0x8] sm:$0xff] %v1750
  %1815 = vst [vmem:[#allocation2 + $0x10] sm:$0xff] %v1751
  %1816 = vst [vmem:[#allocation2 + $0x18] sm:$0xff] %v1752
  %1817 = vst [vmem:[#allocation2 + $0x20] sm:$0xff] %v1753
  %1818 = vst [vmem:[#allocation2 + $0x28] sm:$0xff] %v1754
  %1819 = vst [vmem:[#allocation2 + $0x30] sm:$0xff] %v1755
  %1820 = vst [vmem:[#allocation2 + $0x38] sm:$0xff] %v1756
  %1821 = vst [vmem:[#allocation2 + $0x40] sm:$0xff] %v1757
  %1822 = vst [vmem:[#allocation2 + $0x48] sm:$0xff] %v1758
  %1823 = vst [vmem:[#allocation2 + $0x50] sm:$0xff] %v1759
  %1824 = vst [vmem:[#allocation2 + $0x58] sm:$0xff] %v1760
  %1825 = vst [vmem:[#allocation2 + $0x60] sm:$0xff] %v1761
  %1826 = vst [vmem:[#allocation2 + $0x68] sm:$0xff] %v1762
  %1827 = vst [vmem:[#allocation2 + $0x70] sm:$0xff] %v1763
  %1828 = vst [vmem:[#allocation2 + $0x78] sm:$0xff] %v1764
  %1829 = vst [vmem:[#allocation2 + $0x80] sm:$0xff] %v1765
  %1830 = vst [vmem:[#allocation2 + $0x88] sm:$0xff] %v1766
  %1831 = vst [vmem:[#allocation2 + $0x90] sm:$0xff] %v1767
  %1832 = vst [vmem:[#allocation2 + $0x98] sm:$0xff] %v1768
  %1833 = vst [vmem:[#allocation2 + $0xa0] sm:$0xff] %v1769
  %1834 = vst [vmem:[#allocation2 + $0xa8] sm:$0xff] %v1770
  %1835 = vst [vmem:[#allocation2 + $0xb0] sm:$0xff] %v1771
  %1836 = vst [vmem:[#allocation2 + $0xb8] sm:$0xff] %v1772
  %1837 = vst [vmem:[#allocation2 + $0xc0] sm:$0xff] %v1773
  %1838 = vst [vmem:[#allocation2 + $0xc8] sm:$0xff] %v1774
  %1839 = vst [vmem:[#allocation2 + $0xd0] sm:$0xff] %v1775
  %1840 = vst [vmem:[#allocation2 + $0xd8] sm:$0xff] %v1776
  %1841 = vst [vmem:[#allocation2 + $0xe0] sm:$0xff] %v1777
  %1842 = vst [vmem:[#allocation2 + $0xe8] sm:$0xff] %v1778
  %1843 = vst [vmem:[#allocation2 + $0xf0] sm:$0xff] %v1779
  %1844 = vst [vmem:[#allocation2 + $0xf8] sm:$0xff] %v1780
  %1845 = vst [vmem:[#allocation2 + $0x100] sm:$0xff] %v1781
  %1846 = vst [vmem:[#allocation2 + $0x108] sm:$0xff] %v1782
  %1847 = vst [vmem:[#allocation2 + $0x110] sm:$0xff] %v1783
  %1848 = vst [vmem:[#allocation2 + $0x118] sm:$0xff] %v1784
  %1849 = vst [vmem:[#allocation2 + $0x120] sm:$0xff] %v1785
  %1850 = vst [vmem:[#allocation2 + $0x128] sm:$0xff] %v1786
  %1851 = vst [vmem:[#allocation2 + $0x130] sm:$0xff] %v1787
  %1852 = vst [vmem:[#allocation2 + $0x138] sm:$0xff] %v1788
  %1853 = vst [vmem:[#allocation2 + $0x140] sm:$0xff] %v1789
  %1854 = vst [vmem:[#allocation2 + $0x148] sm:$0xff] %v1790
  %1855 = vst [vmem:[#allocation2 + $0x150] sm:$0xff] %v1791
  %1856 = vst [vmem:[#allocation2 + $0x158] sm:$0xff] %v1792
  %1857 = vst [vmem:[#allocation2 + $0x160] sm:$0xff] %v1793
  %1858 = vst [vmem:[#allocation2 + $0x168] sm:$0xff] %v1794
  %1859 = vst [vmem:[#allocation2 + $0x170] sm:$0xff] %v1795
  %1860 = vst [vmem:[#allocation2 + $0x178] sm:$0xff] %v1796
  %1861 = vst [vmem:[#allocation2 + $0x180] sm:$0xff] %v1797
  %1862 = vst [vmem:[#allocation2 + $0x188] sm:$0xff] %v1798
  %1863 = vst [vmem:[#allocation2 + $0x190] sm:$0xff] %v1799
  %1864 = vst [vmem:[#allocation2 + $0x198] sm:$0xff] %v1800
  %1865 = vst [vmem:[#allocation2 + $0x1a0] sm:$0xff] %v1801
  %1866 = vst [vmem:[#allocation2 + $0x1a8] sm:$0xff] %v1802
  %1867 = vst [vmem:[#allocation2 + $0x1b0] sm:$0xff] %v1803
  %1868 = vst [vmem:[#allocation2 + $0x1b8] sm:$0xff] %v1804
  %1869 = vst [vmem:[#allocation2 + $0x1c0] sm:$0xff] %v1805
  %1870 = vst [vmem:[#allocation2 + $0x1c8] sm:$0xff] %v1806
  %1871 = vst [vmem:[#allocation2 + $0x1d0] sm:$0xff] %v1807
  %1872 = vst [vmem:[#allocation2 + $0x1d8] sm:$0xff] %v1808
  %1873 = vst [vmem:[#allocation2 + $0x1e0] sm:$0xff] %v1809
  %1874 = vst [vmem:[#allocation2 + $0x1e8] sm:$0xff] %v1810
  %1875 = vst [vmem:[#allocation2 + $0x1f0] sm:$0xff] %v1811
  %1876 = vst [vmem:[#allocation2 + $0x1f8] sm:$0xff] %v1812
  // Predicated region
  $region18: #{_lambda_.9} parent=0 // pred_check
    %p1877 = pneg %p15
  $region19: #{_lambda_.9} parent=0 // pred_check_branch
    %1879 = sbr.rel (%p1877) target = $region21
  $region20: #{_lambda_.9} parent=0 // pred_region
    %v1880 = vld [vmem:[#allocation2] sm:$0xff]
    %v1881 = vld [vmem:[#allocation2 + $0x8] sm:$0xff]
    %v1882 = vld [vmem:[#allocation2 + $0x10] sm:$0xff]
    %v1883 = vld [vmem:[#allocation2 + $0x18] sm:$0xff]
    %v1884 = vld [vmem:[#allocation2 + $0x20] sm:$0xff]
    %v1885 = vld [vmem:[#allocation2 + $0x28] sm:$0xff]
    %v1886 = vld [vmem:[#allocation2 + $0x30] sm:$0xff]
    %v1887 = vld [vmem:[#allocation2 + $0x38] sm:$0xff]
    %v1888 = vld [vmem:[#allocation2 + $0x40] sm:$0xff]
    %v1889 = vld [vmem:[#allocation2 + $0x48] sm:$0xff]
    %v1890 = vld [vmem:[#allocation2 + $0x50] sm:$0xff]
    %v1891 = vld [vmem:[#allocation2 + $0x58] sm:$0xff]
    %v1892 = vld [vmem:[#allocation2 + $0x60] sm:$0xff]
    %v1893 = vld [vmem:[#allocation2 + $0x68] sm:$0xff]
    %v1894 = vld [vmem:[#allocation2 + $0x70] sm:$0xff]
    %v1895 = vld [vmem:[#allocation2 + $0x78] sm:$0xff]
    %v1896 = vld [vmem:[#allocation2 + $0x80] sm:$0xff]
    %v1897 = vld [vmem:[#allocation2 + $0x88] sm:$0xff]
    %v1898 = vld [vmem:[#allocation2 + $0x90] sm:$0xff]
    %v1899 = vld [vmem:[#allocation2 + $0x98] sm:$0xff]
    %v1900 = vld [vmem:[#allocation2 + $0xa0] sm:$0xff]
    %v1901 = vld [vmem:[#allocation2 + $0xa8] sm:$0xff]
    %v1902 = vld [vmem:[#allocation2 + $0xb0] sm:$0xff]
    %v1903 = vld [vmem:[#allocation2 + $0xb8] sm:$0xff]
    %v1904 = vld [vmem:[#allocation2 + $0xc0] sm:$0xff]
    %v1905 = vld [vmem:[#allocation2 + $0xc8] sm:$0xff]
    %v1906 = vld [vmem:[#allocation2 + $0xd0] sm:$0xff]
    %v1907 = vld [vmem:[#allocation2 + $0xd8] sm:$0xff]
    %v1908 = vld [vmem:[#allocation2 + $0xe0] sm:$0xff]
    %v1909 = vld [vmem:[#allocation2 + $0xe8] sm:$0xff]
    %v1910 = vld [vmem:[#allocation2 + $0xf0] sm:$0xff]
    %v1911 = vld [vmem:[#allocation2 + $0xf8] sm:$0xff]
    %v1912 = vld [vmem:[#allocation2 + $0x100] sm:$0xff]
    %v1913 = vld [vmem:[#allocation2 + $0x108] sm:$0xff]
    %v1914 = vld [vmem:[#allocation2 + $0x110] sm:$0xff]
    %v1915 = vld [vmem:[#allocation2 + $0x118] sm:$0xff]
    %v1916 = vld [vmem:[#allocation2 + $0x120] sm:$0xff]
    %v1917 = vld [vmem:[#allocation2 + $0x128] sm:$0xff]
    %v1918 = vld [vmem:[#allocation2 + $0x130] sm:$0xff]
    %v1919 = vld [vmem:[#allocation2 + $0x138] sm:$0xff]
    %v1920 = vld [vmem:[#allocation2 + $0x140] sm:$0xff]
    %v1921 = vld [vmem:[#allocation2 + $0x148] sm:$0xff]
    %v1922 = vld [vmem:[#allocation2 + $0x150] sm:$0xff]
    %v1923 = vld [vmem:[#allocation2 + $0x158] sm:$0xff]
    %v1924 = vld [vmem:[#allocation2 + $0x160] sm:$0xff]
    %v1925 = vld [vmem:[#allocation2 + $0x168] sm:$0xff]
    %v1926 = vld [vmem:[#allocation2 + $0x170] sm:$0xff]
    %v1927 = vld [vmem:[#allocation2 + $0x178] sm:$0xff]
    %v1928 = vld [vmem:[#allocation2 + $0x180] sm:$0xff]
    %v1929 = vld [vmem:[#allocation2 + $0x188] sm:$0xff]
    %v1930 = vld [vmem:[#allocation2 + $0x190] sm:$0xff]
    %v1931 = vld [vmem:[#allocation2 + $0x198] sm:$0xff]
    %v1932 = vld [vmem:[#allocation2 + $0x1a0] sm:$0xff]
    %v1933 = vld [vmem:[#allocation2 + $0x1a8] sm:$0xff]
    %v1934 = vld [vmem:[#allocation2 + $0x1b0] sm:$0xff]
    %v1935 = vld [vmem:[#allocation2 + $0x1b8] sm:$0xff]
    %v1936 = vld [vmem:[#allocation2 + $0x1c0] sm:$0xff]
    %v1937 = vld [vmem:[#allocation2 + $0x1c8] sm:$0xff]
    %v1938 = vld [vmem:[#allocation2 + $0x1d0] sm:$0xff]
    %v1939 = vld [vmem:[#allocation2 + $0x1d8] sm:$0xff]
    %v1940 = vld [vmem:[#allocation2 + $0x1e0] sm:$0xff]
    %v1941 = vld [vmem:[#allocation2 + $0x1e8] sm:$0xff]
    %v1942 = vld [vmem:[#allocation2 + $0x1f0] sm:$0xff]
    %v1943 = vld [vmem:[#allocation2 + $0x1f8] sm:$0xff]
    %v1944 = vld [vmem:[%s2] sm:$0x1]
    %v1946 = vlaneseq
    %v1947 = vshrl.u32 %v1946, 7
    %v1948 = vsub.s32 0, %v1947
    %v1949 = vrot.slane %v1944, %v1948
    %v1951 = vadd.f32 %v1880, %v1949
    %v1952 = vadd.f32 %v1881, %v1949
    %v1953 = vadd.f32 %v1882, %v1949
    %v1954 = vadd.f32 %v1883, %v1949
    %v1955 = vadd.f32 %v1884, %v1949
    %v1956 = vadd.f32 %v1885, %v1949
    %v1957 = vadd.f32 %v1886, %v1949
    %v1958 = vadd.f32 %v1887, %v1949
    %v1959 = vadd.f32 %v1888, %v1949
    %v1960 = vadd.f32 %v1889, %v1949
    %v1961 = vadd.f32 %v1890, %v1949
    %v1962 = vadd.f32 %v1891, %v1949
    %v1963 = vadd.f32 %v1892, %v1949
    %v1964 = vadd.f32 %v1893, %v1949
    %v1965 = vadd.f32 %v1894, %v1949
    %v1966 = vadd.f32 %v1895, %v1949
    %v1967 = vadd.f32 %v1896, %v1949
    %v1968 = vadd.f32 %v1897, %v1949
    %v1969 = vadd.f32 %v1898, %v1949
    %v1970 = vadd.f32 %v1899, %v1949
    %v1971 = vadd.f32 %v1900, %v1949
    %v1972 = vadd.f32 %v1901, %v1949
    %v1973 = vadd.f32 %v1902, %v1949
    %v1974 = vadd.f32 %v1903, %v1949
    %v1975 = vadd.f32 %v1904, %v1949
    %v1976 = vadd.f32 %v1905, %v1949
    %v1977 = vadd.f32 %v1906, %v1949
    %v1978 = vadd.f32 %v1907, %v1949
    %v1979 = vadd.f32 %v1908, %v1949
    %v1980 = vadd.f32 %v1909, %v1949
    %v1981 = vadd.f32 %v1910, %v1949
    %v1982 = vadd.f32 %v1911, %v1949
    %v1983 = vadd.f32 %v1912, %v1949
    %v1984 = vadd.f32 %v1913, %v1949
    %v1985 = vadd.f32 %v1914, %v1949
    %v1986 = vadd.f32 %v1915, %v1949
    %v1987 = vadd.f32 %v1916, %v1949
    %v1988 = vadd.f32 %v1917, %v1949
    %v1989 = vadd.f32 %v1918, %v1949
    %v1990 = vadd.f32 %v1919, %v1949
    %v1991 = vadd.f32 %v1920, %v1949
    %v1992 = vadd.f32 %v1921, %v1949
    %v1993 = vadd.f32 %v1922, %v1949
    %v1994 = vadd.f32 %v1923, %v1949
    %v1995 = vadd.f32 %v1924, %v1949
    %v1996 = vadd.f32 %v1925, %v1949
    %v1997 = vadd.f32 %v1926, %v1949
    %v1998 = vadd.f32 %v1927, %v1949
    %v1999 = vadd.f32 %v1928, %v1949
    %v2000 = vadd.f32 %v1929, %v1949
    %v2001 = vadd.f32 %v1930, %v1949
    %v2002 = vadd.f32 %v1931, %v1949
    %v2003 = vadd.f32 %v1932, %v1949
    %v2004 = vadd.f32 %v1933, %v1949
    %v2005 = vadd.f32 %v1934, %v1949
    %v2006 = vadd.f32 %v1935, %v1949
    %v2007 = vadd.f32 %v1936, %v1949
    %v2008 = vadd.f32 %v1937, %v1949
    %v2009 = vadd.f32 %v1938, %v1949
    %v2010 = vadd.f32 %v1939, %v1949
    %v2011 = vadd.f32 %v1940, %v1949
    %v2012 = vadd.f32 %v1941, %v1949
    %v2013 = vadd.f32 %v1942, %v1949
    %v2014 = vadd.f32 %v1943, %v1949
    %v2015 = vmax.f32 %v1951, 0.0
    %v2016 = vmax.f32 %v1952, 0.0
    %v2017 = vmax.f32 %v1953, 0.0
    %v2018 = vmax.f32 %v1954, 0.0
    %v2019 = vmax.f32 %v1955, 0.0
    %v2020 = vmax.f32 %v1956, 0.0
    %v2021 = vmax.f32 %v1957, 0.0
    %v2022 = vmax.f32 %v1958, 0.0
    %v2023 = vmax.f32 %v1959, 0.0
    %v2024 = vmax.f32 %v1960, 0.0
    %v2025 = vmax.f32 %v1961, 0.0
    %v2026 = vmax.f32 %v1962, 0.0
    %v2027 = vmax.f32 %v1963, 0.0
    %v2028 = vmax.f32 %v1964, 0.0
    %v2029 = vmax.f32 %v1965, 0.0
    %v2030 = vmax.f32 %v1966, 0.0
    %v2031 = vmax.f32 %v1967, 0.0
    %v2032 = vmax.f32 %v1968, 0.0
    %v2033 = vmax.f32 %v1969, 0.0
    %v2034 = vmax.f32 %v1970, 0.0
    %v2035 = vmax.f32 %v1971, 0.0
    %v2036 = vmax.f32 %v1972, 0.0
    %v2037 = vmax.f32 %v1973, 0.0
    %v2038 = vmax.f32 %v1974, 0.0
    %v2039 = vmax.f32 %v1975, 0.0
    %v2040 = vmax.f32 %v1976, 0.0
    %v2041 = vmax.f32 %v1977, 0.0
    %v2042 = vmax.f32 %v1978, 0.0
    %v2043 = vmax.f32 %v1979, 0.0
    %v2044 = vmax.f32 %v1980, 0.0
    %v2045 = vmax.f32 %v1981, 0.0
    %v2046 = vmax.f32 %v1982, 0.0
    %v2047 = vmax.f32 %v1983, 0.0
    %v2048 = vmax.f32 %v1984, 0.0
    %v2049 = vmax.f32 %v1985, 0.0
    %v2050 = vmax.f32 %v1986, 0.0
    %v2051 = vmax.f32 %v1987, 0.0
    %v2052 = vmax.f32 %v1988, 0.0
    %v2053 = vmax.f32 %v1989, 0.0
    %v2054 = vmax.f32 %v1990, 0.0
    %v2055 = vmax.f32 %v1991, 0.0
    %v2056 = vmax.f32 %v1992, 0.0
    %v2057 = vmax.f32 %v1993, 0.0
    %v2058 = vmax.f32 %v1994, 0.0
    %v2059 = vmax.f32 %v1995, 0.0
    %v2060 = vmax.f32 %v1996, 0.0
    %v2061 = vmax.f32 %v1997, 0.0
    %v2062 = vmax.f32 %v1998, 0.0
    %v2063 = vmax.f32 %v1999, 0.0
    %v2064 = vmax.f32 %v2000, 0.0
    %v2065 = vmax.f32 %v2001, 0.0
    %v2066 = vmax.f32 %v2002, 0.0
    %v2067 = vmax.f32 %v2003, 0.0
    %v2068 = vmax.f32 %v2004, 0.0
    %v2069 = vmax.f32 %v2005, 0.0
    %v2070 = vmax.f32 %v2006, 0.0
    %v2071 = vmax.f32 %v2007, 0.0
    %v2072 = vmax.f32 %v2008, 0.0
    %v2073 = vmax.f32 %v2009, 0.0
    %v2074 = vmax.f32 %v2010, 0.0
    %v2075 = vmax.f32 %v2011, 0.0
    %v2076 = vmax.f32 %v2012, 0.0
    %v2077 = vmax.f32 %v2013, 0.0
    %v2078 = vmax.f32 %v2014, 0.0
    %2079 = vst [vmem:[%s3] sm:$0xff] %v2015
    %2080 = vst [vmem:[%s3 + $0x8] sm:$0xff] %v2016
    %2081 = vst [vmem:[%s3 + $0x10] sm:$0xff] %v2017
    %2082 = vst [vmem:[%s3 + $0x18] sm:$0xff] %v2018
    %2083 = vst [vmem:[%s3 + $0x20] sm:$0xff] %v2019
    %2084 = vst [vmem:[%s3 + $0x28] sm:$0xff] %v2020
    %2085 = vst [vmem:[%s3 + $0x30] sm:$0xff] %v2021
    %2086 = vst [vmem:[%s3 + $0x38] sm:$0xff] %v2022
    %2087 = vst [vmem:[%s3 + $0x40] sm:$0xff] %v2023
    %2088 = vst [vmem:[%s3 + $0x48] sm:$0xff] %v2024
    %2089 = vst [vmem:[%s3 + $0x50] sm:$0xff] %v2025
    %2090 = vst [vmem:[%s3 + $0x58] sm:$0xff] %v2026
    %2091 = vst [vmem:[%s3 + $0x60] sm:$0xff] %v2027
    %2092 = vst [vmem:[%s3 + $0x68] sm:$0xff] %v2028
    %2093 = vst [vmem:[%s3 + $0x70] sm:$0xff] %v2029
    %2094 = vst [vmem:[%s3 + $0x78] sm:$0xff] %v2030
    %2095 = vst [vmem:[%s3 + $0x80] sm:$0xff] %v2031
    %2096 = vst [vmem:[%s3 + $0x88] sm:$0xff] %v2032
    %2097 = vst [vmem:[%s3 + $0x90] sm:$0xff] %v2033
    %2098 = vst [vmem:[%s3 + $0x98] sm:$0xff] %v2034
    %2099 = vst [vmem:[%s3 + $0xa0] sm:$0xff] %v2035
    %2100 = vst [vmem:[%s3 + $0xa8] sm:$0xff] %v2036
    %2101 = vst [vmem:[%s3 + $0xb0] sm:$0xff] %v2037
    %2102 = vst [vmem:[%s3 + $0xb8] sm:$0xff] %v2038
    %2103 = vst [vmem:[%s3 + $0xc0] sm:$0xff] %v2039
    %2104 = vst [vmem:[%s3 + $0xc8] sm:$0xff] %v2040
    %2105 = vst [vmem:[%s3 + $0xd0] sm:$0xff] %v2041
    %2106 = vst [vmem:[%s3 + $0xd8] sm:$0xff] %v2042
    %2107 = vst [vmem:[%s3 + $0xe0] sm:$0xff] %v2043
    %2108 = vst [vmem:[%s3 + $0xe8] sm:$0xff] %v2044
    %2109 = vst [vmem:[%s3 + $0xf0] sm:$0xff] %v2045
    %2110 = vst [vmem:[%s3 + $0xf8] sm:$0xff] %v2046
    %2111 = vst [vmem:[%s3 + $0x100] sm:$0xff] %v2047
    %2112 = vst [vmem:[%s3 + $0x108] sm:$0xff] %v2048
    %2113 = vst [vmem:[%s3 + $0x110] sm:$0xff] %v2049
    %2114 = vst [vmem:[%s3 + $0x118] sm:$0xff] %v2050
    %2115 = vst [vmem:[%s3 + $0x120] sm:$0xff] %v2051
    %2116 = vst [vmem:[%s3 + $0x128] sm:$0xff] %v2052
    %2117 = vst [vmem:[%s3 + $0x130] sm:$0xff] %v2053
    %2118 = vst [vmem:[%s3 + $0x138] sm:$0xff] %v2054
    %2119 = vst [vmem:[%s3 + $0x140] sm:$0xff] %v2055
    %2120 = vst [vmem:[%s3 + $0x148] sm:$0xff] %v2056
    %2121 = vst [vmem:[%s3 + $0x150] sm:$0xff] %v2057
    %2122 = vst [vmem:[%s3 + $0x158] sm:$0xff] %v2058
    %2123 = vst [vmem:[%s3 + $0x160] sm:$0xff] %v2059
    %2124 = vst [vmem:[%s3 + $0x168] sm:$0xff] %v2060
    %2125 = vst [vmem:[%s3 + $0x170] sm:$0xff] %v2061
    %2126 = vst [vmem:[%s3 + $0x178] sm:$0xff] %v2062
    %2127 = vst [vmem:[%s3 + $0x180] sm:$0xff] %v2063
    %2128 = vst [vmem:[%s3 + $0x188] sm:$0xff] %v2064
    %2129 = vst [vmem:[%s3 + $0x190] sm:$0xff] %v2065
    %2130 = vst [vmem:[%s3 + $0x198] sm:$0xff] %v2066
    %2131 = vst [vmem:[%s3 + $0x1a0] sm:$0xff] %v2067
    %2132 = vst [vmem:[%s3 + $0x1a8] sm:$0xff] %v2068
    %2133 = vst [vmem:[%s3 + $0x1b0] sm:$0xff] %v2069
    %2134 = vst [vmem:[%s3 + $0x1b8] sm:$0xff] %v2070
    %2135 = vst [vmem:[%s3 + $0x1c0] sm:$0xff] %v2071
    %2136 = vst [vmem:[%s3 + $0x1c8] sm:$0xff] %v2072
    %2137 = vst [vmem:[%s3 + $0x1d0] sm:$0xff] %v2073
    %2138 = vst [vmem:[%s3 + $0x1d8] sm:$0xff] %v2074
    %2139 = vst [vmem:[%s3 + $0x1e0] sm:$0xff] %v2075
    %2140 = vst [vmem:[%s3 + $0x1e8] sm:$0xff] %v2076
    %2141 = vst [vmem:[%s3 + $0x1f0] sm:$0xff] %v2077
    %2142 = vst [vmem:[%s3 + $0x1f8] sm:$0xff] %v2078
  $region21: #{_lambda_.9} parent=0 // pred_fallthru
    _
  // Predicated region
  $region22: #{_lambda_.9} parent=0 // pred_check
    _
  $region23: #{_lambda_.9} parent=0 // pred_check_branch
    %2144 = sbr.rel (0) target = $region25
  $region24: #{_lambda_.9} parent=0 // pred_region
    _
  $region25: #{_lambda_.9} parent=0 // pred_fallthru
    _
  // Predicated region
  $region26: #{_lambda_.9} parent=0 // pred_check
    _
  $region27: #{_lambda_.9} parent=0 // pred_check_branch
    %2146 = sbr.rel (0) target = $region29
  $region28: #{_lambda_.9} parent=0 // pred_region
    _
  $region29: #{_lambda_.9} parent=0 // pred_fallthru
    _

// kernel: _lambda_.10
$region0: #{_lambda_.10}
  #allocation0 [shape = 'u32[]', space=smem, size = 0x4, offset = 0x4, fixed_abs, tag = 'smem constant byte address 0x4 - core index']
  #allocation1 [shape = 'u32[144,128]{1,0:T(1,128)}', space=vmem, size = 0x12000, scoped, tag = 'internal scratch']
  #allocation2 [shape = 'f32[104,256]{1,0:T(8,128)}', space=vmem, size = 0x1a000, scoped, tag = 'scratch operand']
  %s0 = inlined_call_operand.vmem [shape: bf16[104,1152], index: 0, kind: input, shape index: {}]
  %s1 = inlined_call_operand.vmem [shape: bf16[1152,256], index: 1, kind: input, shape index: {}]
  %s2 = inlined_call_operand.vmem [shape: f32[1,256], index: 2, kind: input, shape index: {}]
  %s3 = inlined_call_operand.vmem [shape: f32[104,256], index: 3, kind: output, shape index: {}]
  %s4 = sld [smem:[#allocation0]]
  $region79: #{_lambda_.10} parent=0
    _
  %s6 = ssub.s32 1, %s4
  %s7 = scalar_select 0, %s6, %s4
  $region1: #{_lambda_.10} parent=0
    #allocation3 [shape = 'u8[159744]{0}', space=vmem, size = 0x27000, scoped, tag = 'input window, operand 0']
    loop: start=0, step=1, limit=5
    $region2: #{_lambda_.10} parent=1 // loop_pre_header
      _
    $region3: #{_lambda_.10} parent=1 // loop_header
      %s9 = sphi 0, %s13
      %p10 = scmp.ge.s32.totalorder %s9, 5
      %s16 = sphi 0, %s35
      %s17 = sphi 0, %s31
      %s18 = sphi 0, %s27
      %s19 = sphi 0, %s16
      %s20 = sphi 0, %s17
      %s21 = sphi 0, %s18
      %s22 = sphi 0, %s19
      %s23 = sphi 0, %s20
      %s24 = sphi 0, %s21
      %s40 = sphi 0, %s42
      %s43 = sphi 0, %s40
      %s44 = sphi 0, %s43
      %s60 = sphi 0, %s44
      %s68 = sphi 0, %s70
      %s71 = sphi 0, %s68
      %s72 = sphi 0, %s71
      %s88 = sphi 0, %s72
      %s94 = sphi 0, %s96
      %s97 = sphi 0, %s94
      %s98 = sphi 0, %s97
      %s114 = sphi 0, %s98
      %s122 = sphi 0, %s124
      %s125 = sphi 0, %s122
      %s126 = sphi 0, %s125
      %s142 = sphi 0, %s126
    $region4: #{_lambda_.10} parent=1 // loop_header_branch
      %12 = sbr.rel (%p10) target = $region8
    $region5: #{_lambda_.10} parent=1 // loop_body
      %s14 = ssub.s32 %s9, 1
      %s15 = ssub.s32 %s9, 2
      %s25 = sadd.s32 1, %s18
      %p26 = scmp.ge.s32.totalorder %s25, 3
      %s27 = scalar_select %p26, 0, %s25
      %s28 = sadd.s32 1, %s17
      %s29 = scalar_select %p26, %s28, %s17
      %p30 = scmp.ge.s32.totalorder %s29, 1
      %s31 = scalar_select %p30, 0, %s29
      %s32 = sadd.s32 1, %s16
      %s33 = scalar_select %p30, %s32, %s16
      %p34 = scmp.ge.s32.totalorder %s33, 1
      %s35 = scalar_select %p34, 0, %s33
      %s36 = ssub.s32 %s16, %s35
      %s37 = ssub.s32 %s18, %s27
      %s38 = sor.u32 %s36, %s37
      %p39 = scmp.eq.s32.totalorder %s38, 0
      %s41 = sadd.s32 %s40, 1
      %s42 = scalar_select %p39, %s40, %s41
      %p45 = pneg %p39
      %p46 = scmp.eq.s32.totalorder %s9, 2
      %p47 = por %p45, %p46
      %p48 = scmp.ne.s32.totalorder %s40, %s43
      %p49 = scmp.eq.s32.totalorder %s9, 0
      %p50 = por %p48, %p49
      %p51 = scmp.ne.s32.totalorder %s40, %s43
      %p52 = scmp.eq.s32.totalorder %s14, 2
      %p53 = por %p51, %p52
      %p54 = scmp.ne.s32.totalorder %s43, %s44
      %p55 = scmp.eq.s32.totalorder %s14, 0
      %p56 = por %p54, %p55
      %p57 = scmp.ne.s32.totalorder %s43, %s44
      %p58 = scmp.eq.s32.totalorder %s15, 2
      %p59 = por %p57, %p58
      %p61 = scmp.ne.s32.totalorder %s44, %s60
      %p62 = scmp.eq.s32.totalorder %s15, 0
      %p63 = por %p61, %p62
      %s64 = ssub.s32 %s18, %s27
      %s65 = ssub.s32 %s17, %s31
      %s66 = sor.u32 %s64, %s65
      %p67 = scmp.eq.s32.totalorder %s66, 0
      %s69 = sadd.s32 %s68, 1
      %s70 = scalar_select %p67, %s68, %s69
      %p73 = pneg %p67
      %p74 = scmp.eq.s32.totalorder %s9, 2
      %p75 = por %p73, %p74
      %p76 = scmp.ne.s32.totalorder %s68, %s71
      %p77 = scmp.eq.s32.totalorder %s9, 0
      %p78 = por %p76, %p77
      %p79 = scmp.ne.s32.totalorder %s68, %s71
      %p80 = scmp.eq.s32.totalorder %s14, 2
      %p81 = por %p79, %p80
      %p82 = scmp.ne.s32.totalorder %s71, %s72
      %p83 = scmp.eq.s32.totalorder %s14, 0
      %p84 = por %p82, %p83
      %p85 = scmp.ne.s32.totalorder %s71, %s72
      %p86 = scmp.eq.s32.totalorder %s15, 2
      %p87 = por %p85, %p86
      %p89 = scmp.ne.s32.totalorder %s72, %s88
      %p90 = scmp.eq.s32.totalorder %s15, 0
      %p91 = por %p89, %p90
      %s92 = ssub.s32 %s17, %s31
      %p93 = scmp.eq.s32.totalorder %s92, 0
      %s95 = sadd.s32 %s94, 1
      %s96 = scalar_select %p93, %s94, %s95
      %p99 = pneg %p93
      %p100 = scmp.eq.s32.totalorder %s9, 2
      %p101 = por %p99, %p100
      %p102 = scmp.ne.s32.totalorder %s94, %s97
      %p103 = scmp.eq.s32.totalorder %s9, 0
      %p104 = por %p102, %p103
      %p105 = scmp.ne.s32.totalorder %s94, %s97
      %p106 = scmp.eq.s32.totalorder %s14, 2
      %p107 = por %p105, %p106
      %p108 = scmp.ne.s32.totalorder %s97, %s98
      %p109 = scmp.eq.s32.totalorder %s14, 0
      %p110 = por %p108, %p109
      %p111 = scmp.ne.s32.totalorder %s97, %s98
      %p112 = scmp.eq.s32.totalorder %s15, 2
      %p113 = por %p111, %p112
      %p115 = scmp.ne.s32.totalorder %s98, %s114
      %p116 = scmp.eq.s32.totalorder %s15, 0
      %p117 = por %p115, %p116
      %s118 = ssub.s32 %s16, %s35
      %s119 = ssub.s32 %s17, %s31
      %s120 = sor.u32 %s118, %s119
      %p121 = scmp.eq.s32.totalorder %s120, 0
      %s123 = sadd.s32 %s122, 1
      %s124 = scalar_select %p121, %s122, %s123
      %p127 = pneg %p121
      %p128 = scmp.eq.s32.totalorder %s9, 2
      %p129 = por %p127, %p128
      %p130 = scmp.ne.s32.totalorder %s122, %s125
      %p131 = scmp.eq.s32.totalorder %s9, 0
      %p132 = por %p130, %p131
      %p133 = scmp.ne.s32.totalorder %s122, %s125
      %p134 = scmp.eq.s32.totalorder %s14, 2
      %p135 = por %p133, %p134
      %p136 = scmp.ne.s32.totalorder %s125, %s126
      %p137 = scmp.eq.s32.totalorder %s14, 0
      %p138 = por %p136, %p137
      %p139 = scmp.ne.s32.totalorder %s125, %s126
      %p140 = scmp.eq.s32.totalorder %s15, 2
      %p141 = por %p139, %p140
      %p143 = scmp.ne.s32.totalorder %s126, %s142
      %p144 = scmp.eq.s32.totalorder %s15, 0
      %p145 = por %p143, %p144
      %p146 = scmp.le.s32.totalorder 1, %s9
      %p147 = scmp.lt.s32.totalorder %s9, 4
      %p148 = pnand %p146, %p147
      %p149 = pneg %p148
      // Predicated region
      $region9: #{_lambda_.10} parent=5 // pred_check
        _
      $region10: #{_lambda_.10} parent=5 // pred_check_branch
        %151 = sbr.rel (%p148) target = $region12
      $region11: #{_lambda_.10} parent=5 // pred_region
        %s152 = ssub.s32 %s9, 1
        // Predicated region
        $region13: #{_lambda_.10} parent=11 // pred_check
          %p153 = pneg %p110
        $region14: #{_lambda_.10} parent=11 // pred_check_branch
          %155 = sbr.rel (%p153) target = $region16
        $region15: #{_lambda_.10} parent=11 // pred_region
          %s156 = smul.u32 2, %s20
          %p157 = scmp.lt.s32.totalorder %s156, 1
          %s158 = scalar_select %p157, %s156, 1
          %s159 = scalar_lea.vmem %s2, %s158
          %s160 = smul.u32 2, %s20
        $region16: #{_lambda_.10} parent=11 // pred_fallthru
          _
      $region12: #{_lambda_.10} parent=5 // pred_fallthru
        _
      %p161 = scmp.lt.s32.totalorder %s9, 3
      // Predicated region
      $region17: #{_lambda_.10} parent=5 // pred_check
        %p162 = pneg %p161
      $region18: #{_lambda_.10} parent=5 // pred_check_branch
        %164 = sbr.rel (%p162) target = $region20
      $region19: #{_lambda_.10} parent=5 // pred_region
        // Predicated region
        $region21: #{_lambda_.10} parent=19 // pred_check
          %p165 = pneg %p50
        $region22: #{_lambda_.10} parent=19 // pred_check_branch
          %167 = sbr.rel (%p165) target = $region24
        $region23: #{_lambda_.10} parent=19 // pred_region
          %s168 = sand.u32 %s40, 1
          %s169 = sand.u32 %s40, 1
          %s170 = smul.addr %s169, 156
          %s171 = scalar_lea.vmem [#allocation3], %s170
          %s172 = smul.u32 13, %s16
          %s173 = smul.u32 3, %s18
          %s174 = smul.addr %s172, 9
          %s175 = sadd.s32 %s173, %s174
          %s176 = smul.addr %s175, 4
          %s177 = scalar_lea.vmem %s0, %s176
          // Predicated region
          $region25: #{_lambda_.10} parent=23 // pred_check
            _
          $region26: #{_lambda_.10} parent=23 // pred_check_branch
            %179 = sbr.rel (0) target = $region28
          $region27: #{_lambda_.10} parent=23 // pred_region
            // Predicated region
            $region29: #{_lambda_.10} parent=27 // pred_check
              _
            $region30: #{_lambda_.10} parent=27 // pred_check_branch
              %181 = sbr.rel (0) target = $region32
            $region31: #{_lambda_.10} parent=27 // pred_region
              %s182 = scalar_lea.vmem %s177, 8
              %s183 = scalar_lea.vmem %s171, 8 [#allocation3]
              loop: start=0, step=1, limit=1
              $region33: #{_lambda_.10} parent=31 // loop_pre_header
                _
              $region34: #{_lambda_.10} parent=31 // loop_header
                %s185 = sphi 0, %s189
                %p186 = scmp.ge.s32.totalorder %s185, 1
                %s190 = sphi %s177, %s177
                %s191 = sphi %s171, %s171
              $region35: #{_lambda_.10} parent=31 // loop_header_branch
                %188 = sbr.rel (%p186) target = $region39
              $region36: #{_lambda_.10} parent=31 // loop_body
                %v192 = vld [vmem:[%s190] sm:$0xff]
                %193 = vst [vmem:[%s191] sm:$0xff] %v192
                %v194 = vld [vmem:[%s190 + $0x24] sm:$0xff]
                %195 = vst [vmem:[%s191 + $0xc] sm:$0xff] %v194
                %v196 = vld [vmem:[%s190 + $0x48] sm:$0xff]
                %197 = vst [vmem:[%s191 + $0x18] sm:$0xff] %v196
                %v198 = vld [vmem:[%s190 + $0x6c] sm:$0xff]
                %199 = vst [vmem:[%s191 + $0x24] sm:$0xff] %v198
                %v200 = vld [vmem:[%s190 + $0x90] sm:$0xff]
                %201 = vst [vmem:[%s191 + $0x30] sm:$0xff] %v200
                %v202 = vld [vmem:[%s190 + $0xb4] sm:$0xff]
                %203 = vst [vmem:[%s191 + $0x3c] sm:$0xff] %v202
                %v204 = vld [vmem:[%s190 + $0xd8] sm:$0xff]
                %205 = vst [vmem:[%s191 + $0x48] sm:$0xff] %v204
                %v206 = vld [vmem:[%s190 + $0xfc] sm:$0xff]
                %207 = vst [vmem:[%s191 + $0x54] sm:$0xff] %v206
                %v208 = vld [vmem:[%s190 + $0x120] sm:$0xff]
                %209 = vst [vmem:[%s191 + $0x60] sm:$0xff] %v208
                %v210 = vld [vmem:[%s190 + $0x144] sm:$0xff]
                %211 = vst [vmem:[%s191 + $0x6c] sm:$0xff] %v210
                %v212 = vld [vmem:[%s190 + $0x168] sm:$0xff]
                %213 = vst [vmem:[%s191 + $0x78] sm:$0xff] %v212
                %v214 = vld [vmem:[%s190 + $0x18c] sm:$0xff]
                %215 = vst [vmem:[%s191 + $0x84] sm:$0xff] %v214
                %v216 = vld [vmem:[%s190 + $0x1b0] sm:$0xff]
                %217 = vst [vmem:[%s191 + $0x90] sm:$0xff] %v216
              $region37: #{_lambda_.10} parent=31 // loop_footer
                %s189 = sadd.s32 1, %s185
              $region38: #{_lambda_.10} parent=31 // loop_footer_branch
                %184 = sbr.rel target = $region34
              $region39: #{_lambda_.10} parent=31 // loop_exit
                _
              %s219 = ssub.s32 16, 1
              loop: start=0, step=1, limit=1
              $region40: #{_lambda_.10} parent=31 // loop_pre_header
                _
              $region41: #{_lambda_.10} parent=31 // loop_header
                %s221 = sphi 0, %s225
                %p222 = scmp.ge.s32.totalorder %s221, 1
                %s226 = sphi %s182, %s182
                %s227 = sphi %s183, %s183
              $region42: #{_lambda_.10} parent=31 // loop_header_branch
                %224 = sbr.rel (%p222) target = $region46
              $region43: #{_lambda_.10} parent=31 // loop_body
                %v228 = vld [vmem:[%s226] sm:%s219]
                %229 = vst [vmem:[%s227] sm:%s219] %v228
                %v230 = vld [vmem:[%s226 + $0x24] sm:%s219]
                %231 = vst [vmem:[%s227 + $0xc] sm:%s219] %v230
                %v232 = vld [vmem:[%s226 + $0x48] sm:%s219]
                %233 = vst [vmem:[%s227 + $0x18] sm:%s219] %v232
                %v234 = vld [vmem:[%s226 + $0x6c] sm:%s219]
                %235 = vst [vmem:[%s227 + $0x24] sm:%s219] %v234
                %v236 = vld [vmem:[%s226 + $0x90] sm:%s219]
                %237 = vst [vmem:[%s227 + $0x30] sm:%s219] %v236
                %v238 = vld [vmem:[%s226 + $0xb4] sm:%s219]
                %239 = vst [vmem:[%s227 + $0x3c] sm:%s219] %v238
                %v240 = vld [vmem:[%s226 + $0xd8] sm:%s219]
                %241 = vst [vmem:[%s227 + $0x48] sm:%s219] %v240
                %v242 = vld [vmem:[%s226 + $0xfc] sm:%s219]
                %243 = vst [vmem:[%s227 + $0x54] sm:%s219] %v242
                %v244 = vld [vmem:[%s226 + $0x120] sm:%s219]
                %245 = vst [vmem:[%s227 + $0x60] sm:%s219] %v244
                %v246 = vld [vmem:[%s226 + $0x144] sm:%s219]
                %247 = vst [vmem:[%s227 + $0x6c] sm:%s219] %v246
                %v248 = vld [vmem:[%s226 + $0x168] sm:%s219]
                %249 = vst [vmem:[%s227 + $0x78] sm:%s219] %v248
                %v250 = vld [vmem:[%s226 + $0x18c] sm:%s219]
                %251 = vst [vmem:[%s227 + $0x84] sm:%s219] %v250
                %v252 = vld [vmem:[%s226 + $0x1b0] sm:%s219]
                %253 = vst [vmem:[%s227 + $0x90] sm:%s219] %v252
              $region44: #{_lambda_.10} parent=31 // loop_footer
                %s225 = sadd.s32 1, %s221
              $region45: #{_lambda_.10} parent=31 // loop_footer_branch
                %220 = sbr.rel target = $region41
              $region46: #{_lambda_.10} parent=31 // loop_exit
                _
            $region32: #{_lambda_.10} parent=27 // pred_fallthru
              _
          $region28: #{_lambda_.10} parent=23 // pred_fallthru
            _
          %254 = vnop
        $region24: #{_lambda_.10} parent=19 // pred_fallthru
          _
        // Predicated region
        $region47: #{_lambda_.10} parent=19 // pred_check
          %p255 = pneg %p78
        $region48: #{_lambda_.10} parent=19 // pred_check_branch
          %257 = sbr.rel (%p255) target = $region50
        $region49: #{_lambda_.10} parent=19 // pred_region
          %s258 = smul.u32 48, %s18
          %s259 = smul.u32 2, %s17
          %p260 = scmp.lt.s32.totalorder %s258, 143
          %s261 = scalar_select %p260, %s258, 143
          %p262 = scmp.lt.s32.totalorder %s259, 1
          %s263 = scalar_select %p262, %s259, 1
          %s264 = smul.addr %s261, 2
          %s265 = sadd.s32 %s263, %s264
          %s266 = smul.addr %s265, 4
          %s267 = scalar_lea.vmem %s1, %s266
          %s268 = smul.u32 48, %s18
          %s269 = smul.u32 2, %s17
        $region50: #{_lambda_.10} parent=19 // pred_fallthru
          _
      $region20: #{_lambda_.10} parent=5 // pred_fallthru
        _
      %p270 = scmp.le.s32.totalorder 1, %s9
      %p271 = scmp.lt.s32.totalorder %s9, 4
      %p272 = pnand %p270, %p271
      %p273 = pneg %p272
      // Predicated region
      $region51: #{_lambda_.10} parent=5 // pred_check
        _
      $region52: #{_lambda_.10} parent=5 // pred_check_branch
        %275 = sbr.rel (%p272) target = $region54
      $region53: #{_lambda_.10} parent=5 // pred_region
        %s276 = ssub.s32 %s9, 1
        %s277 = sand.u32 %s43, 1
        %s278 = sand.u32 %s43, 1
        %s279 = smul.addr %s278, 156
        %s280 = scalar_lea.vmem [#allocation3], %s279
        // Predicated region
        $region55: #{_lambda_.10} parent=53 // pred_check
          %p281 = pneg %p56
        $region56: #{_lambda_.10} parent=53 // pred_check_branch
          %283 = sbr.rel (%p281) target = $region58
        $region57: #{_lambda_.10} parent=53 // pred_region
          _
        $region58: #{_lambda_.10} parent=53 // pred_fallthru
          _
        %s284 = sand.u32 %s43, 1
        %s285 = sand.u32 %s43, 1
        %s286 = smul.addr %s285, 156
        %s287 = scalar_lea.vmem [#allocation3], %s286
        %p288 = pneg %p56
        %p289 = pneg %p53
        %s290 = smul.u32 48, %s21
        %s291 = smul.u32 2, %s20
        %p292 = scmp.lt.s32.totalorder %s290, 143
        %s293 = scalar_select %p292, %s290, 143
        %p294 = scmp.lt.s32.totalorder %s291, 1
        %s295 = scalar_select %p294, %s291, 1
        %s296 = smul.addr %s293, 2
        %s297 = sadd.s32 %s295, %s296
        %s298 = smul.addr %s297, 4
        %s299 = scalar_lea.vmem %s1, %s298
        %p300 = pneg %p84
        %p301 = pneg %p81
        %s302 = smul.u32 2, %s20
        %p303 = scmp.lt.s32.totalorder %s302, 1
        %s304 = scalar_select %p303, %s302, 1
        %s305 = scalar_lea.vmem %s2, %s304
        %p306 = pneg %p110
        %p307 = pneg %p107
        %p308 = pneg %p138
        %p309 = pneg %p135
        %s310 = smul.u32 13, %s19
        %s311 = smul.u32 2, %s20
        %p312 = scmp.lt.s32.totalorder %s310, 12
        %s313 = scalar_select %p312, %s310, 12
        %p314 = scmp.lt.s32.totalorder %s311, 1
        %s315 = scalar_select %p314, %s311, 1
        %s316 = smul.addr %s313, 2
        %s317 = sadd.s32 %s315, %s316
        %s318 = smul.addr %s317, 8
        %s319 = scalar_lea.vmem %s3, %s318
        %s320 = smul.u32 13, %s19
        %s321 = smul.u32 3, %s21
        %s322 = smul.u32 48, %s21
        %s323 = smul.u32 2, %s20
        %p324 = scmp.lt.s32.totalorder %s322, 143
        %s325 = scalar_select %p324, %s322, 143
        %p326 = scmp.lt.s32.totalorder %s323, 1
        %s327 = scalar_select %p326, %s323, 1
        %s328 = smul.addr %s325, 2
        %s329 = sadd.s32 %s327, %s328
        %s330 = smul.addr %s329, 4
        %s331 = scalar_lea.vmem %s1, %s330
        %s332 = smul.u32 48, %s21
        %s333 = smul.u32 2, %s20
        %s334 = smul.u32 2, %s20
        %p335 = scmp.lt.s32.totalorder %s334, 1
        %s336 = scalar_select %p335, %s334, 1
        %s337 = scalar_lea.vmem %s2, %s336
        %s338 = smul.u32 2, %s20
        %s339 = smul.u32 13, %s19
        %s340 = smul.u32 2, %s20
        %p341 = scmp.lt.s32.totalorder %s339, 12
        %s342 = scalar_select %p341, %s339, 12
        %p343 = scmp.lt.s32.totalorder %s340, 1
        %s344 = scalar_select %p343, %s340, 1
        %s345 = smul.addr %s342, 2
        %s346 = sadd.s32 %s344, %s345
        %s347 = smul.addr %s346, 8
        %s348 = scalar_lea.vmem %s3, %s347
        %s349 = smul.u32 13, %s19
        %s350 = smul.u32 2, %s20
        %p352 = scmp.eq.s32.totalorder %s21, 0
        // Predicated region
        $region59: #{_lambda_.10} parent=53 // pred_check
          %p353 = pneg %p352
        $region60: #{_lambda_.10} parent=53 // pred_check_branch
          %355 = sbr.rel (%p353) target = $region62
        $region61: #{_lambda_.10} parent=53 // pred_region
          %356 = vst [vmem:[#allocation2] sm:$0xff] 0.0
          %357 = vst [vmem:[#allocation2 + $0x8] sm:$0xff] 0.0
          %358 = vst [vmem:[#allocation2 + $0x10] sm:$0xff] 0.0
          %359 = vst [vmem:[#allocation2 + $0x18] sm:$0xff] 0.0
          %360 = vst [vmem:[#allocation2 + $0x20] sm:$0xff] 0.0
          %361 = vst [vmem:[#allocation2 + $0x28] sm:$0xff] 0.0
          %362 = vst [vmem:[#allocation2 + $0x30] sm:$0xff] 0.0
          %363 = vst [vmem:[#allocation2 + $0x38] sm:$0xff] 0.0
          %364 = vst [vmem:[#allocation2 + $0x40] sm:$0xff] 0.0
          %365 = vst [vmem:[#allocation2 + $0x48] sm:$0xff] 0.0
          %366 = vst [vmem:[#allocation2 + $0x50] sm:$0xff] 0.0
          %367 = vst [vmem:[#allocation2 + $0x58] sm:$0xff] 0.0
          %368 = vst [vmem:[#allocation2 + $0x60] sm:$0xff] 0.0
          %369 = vst [vmem:[#allocation2 + $0x68] sm:$0xff] 0.0
          %370 = vst [vmem:[#allocation2 + $0x70] sm:$0xff] 0.0
          %371 = vst [vmem:[#allocation2 + $0x78] sm:$0xff] 0.0
          %372 = vst [vmem:[#allocation2 + $0x80] sm:$0xff] 0.0
          %373 = vst [vmem:[#allocation2 + $0x88] sm:$0xff] 0.0
          %374 = vst [vmem:[#allocation2 + $0x90] sm:$0xff] 0.0
          %375 = vst [vmem:[#allocation2 + $0x98] sm:$0xff] 0.0
          %376 = vst [vmem:[#allocation2 + $0xa0] sm:$0xff] 0.0
          %377 = vst [vmem:[#allocation2 + $0xa8] sm:$0xff] 0.0
          %378 = vst [vmem:[#allocation2 + $0xb0] sm:$0xff] 0.0
          %379 = vst [vmem:[#allocation2 + $0xb8] sm:$0xff] 0.0
          %380 = vst [vmem:[#allocation2 + $0xc0] sm:$0xff] 0.0
          %381 = vst [vmem:[#allocation2 + $0xc8] sm:$0xff] 0.0
        $region62: #{_lambda_.10} parent=53 // pred_fallthru
          _
        %v382 = vld [vmem:[#allocation2] sm:$0xff]
        %v383 = vld [vmem:[#allocation2 + $0x8] sm:$0xff]
        %v384 = vld [vmem:[#allocation2 + $0x10] sm:$0xff]
        %v385 = vld [vmem:[#allocation2 + $0x18] sm:$0xff]
        %v386 = vld [vmem:[#allocation2 + $0x20] sm:$0xff]
        %v387 = vld [vmem:[#allocation2 + $0x28] sm:$0xff]
        %v388 = vld [vmem:[#allocation2 + $0x30] sm:$0xff]
        %v389 = vld [vmem:[#allocation2 + $0x38] sm:$0xff]
        %v390 = vld [vmem:[#allocation2 + $0x40] sm:$0xff]
        %v391 = vld [vmem:[#allocation2 + $0x48] sm:$0xff]
        %v392 = vld [vmem:[#allocation2 + $0x50] sm:$0xff]
        %v393 = vld [vmem:[#allocation2 + $0x58] sm:$0xff]
        %v394 = vld [vmem:[#allocation2 + $0x60] sm:$0xff]
        %v395 = vld [vmem:[#allocation2 + $0x68] sm:$0xff]
        %v396 = vld [vmem:[#allocation2 + $0x70] sm:$0xff]
        %v397 = vld [vmem:[#allocation2 + $0x78] sm:$0xff]
        %v398 = vld [vmem:[#allocation2 + $0x80] sm:$0xff]
        %v399 = vld [vmem:[#allocation2 + $0x88] sm:$0xff]
        %v400 = vld [vmem:[#allocation2 + $0x90] sm:$0xff]
        %v401 = vld [vmem:[#allocation2 + $0x98] sm:$0xff]
        %v402 = vld [vmem:[#allocation2 + $0xa0] sm:$0xff]
        %v403 = vld [vmem:[#allocation2 + $0xa8] sm:$0xff]
        %v404 = vld [vmem:[#allocation2 + $0xb0] sm:$0xff]
        %v405 = vld [vmem:[#allocation2 + $0xb8] sm:$0xff]
        %v406 = vld [vmem:[#allocation2 + $0xc0] sm:$0xff]
        %v407 = vld [vmem:[#allocation2 + $0xc8] sm:$0xff]
        %v408 = vld [vmem:[%s280] sm:$0xff]
        %v409 = vld [vmem:[%s280 + $0x8] sm:$0xf]
        %v410 = vld [vmem:[%s280 + $0xc] sm:$0xff]
        %v411 = vld [vmem:[%s280 + $0x14] sm:$0xf]
        %v412 = vld [vmem:[%s280 + $0x18] sm:$0xff]
        %v413 = vld [vmem:[%s280 + $0x20] sm:$0xf]
        %v414 = vld [vmem:[%s280 + $0x24] sm:$0xff]
        %v415 = vld [vmem:[%s280 + $0x2c] sm:$0xf]
        %v416 = vld [vmem:[%s280 + $0x30] sm:$0xff]
        %v417 = vld [vmem:[%s280 + $0x38] sm:$0xf]
        %v418 = vld [vmem:[%s280 + $0x3c] sm:$0xff]
        %v419 = vld [vmem:[%s280 + $0x44] sm:$0xf]
        %v420 = vld [vmem:[%s280 + $0x48] sm:$0xff]
        %v421 = vld [vmem:[%s280 + $0x50] sm:$0xf]
        %v422 = vld [vmem:[%s280 + $0x54] sm:$0xff]
        %v423 = vld [vmem:[%s280 + $0x5c] sm:$0xf]
        %v424 = vld [vmem:[%s280 + $0x60] sm:$0xff]
        %v425 = vld [vmem:[%s280 + $0x68] sm:$0xf]
        %v426 = vld [vmem:[%s280 + $0x6c] sm:$0xff]
        %v427 = vld [vmem:[%s280 + $0x74] sm:$0xf]
        %v428 = vld [vmem:[%s280 + $0x78] sm:$0xff]
        %v429 = vld [vmem:[%s280 + $0x80] sm:$0xf]
        %v430 = vld [vmem:[%s280 + $0x84] sm:$0xff]
        %v431 = vld [vmem:[%s280 + $0x8c] sm:$0xf]
        %v432 = vld [vmem:[%s280 + $0x90] sm:$0xff]
        %v433 = vld [vmem:[%s280 + $0x98] sm:$0xf]
        %v434 = vld [vmem:[%s331] sm:$0xff]
        %v435 = vld [vmem:[%s331 + $0x8] sm:$0xff]
        %v436 = vld [vmem:[%s331 + $0x10] sm:$0xff]
        %v437 = vld [vmem:[%s331 + $0x18] sm:$0xff]
        %v438 = vld [vmem:[%s331 + $0x20] sm:$0xff]
        %v439 = vld [vmem:[%s331 + $0x28] sm:$0xff]
        %v440 = vld [vmem:[%s331 + $0x30] sm:$0xff]
        %v441 = vld [vmem:[%s331 + $0x38] sm:$0xff]
        %v442 = vld [vmem:[%s331 + $0x40] sm:$0xff]
        %v443 = vld [vmem:[%s331 + $0x48] sm:$0xff]
        %v444 = vld [vmem:[%s331 + $0x50] sm:$0xff]
        %v445 = vld [vmem:[%s331 + $0x58] sm:$0xff]
        %v446 = vld [vmem:[%s331 + $0x60] sm:$0xff]
        %v447 = vld [vmem:[%s331 + $0x68] sm:$0xff]
        %v448 = vld [vmem:[%s331 + $0x70] sm:$0xff]
        %v449 = vld [vmem:[%s331 + $0x78] sm:$0xff]
        %v450 = vld [vmem:[%s331 + $0x80] sm:$0xff]
        %v451 = vld [vmem:[%s331 + $0x88] sm:$0xff]
        %v452 = vld [vmem:[%s331 + $0x90] sm:$0xff]
        %v453 = vld [vmem:[%s331 + $0x98] sm:$0xff]
        %v454 = vld [vmem:[%s331 + $0xa0] sm:$0xff]
        %v455 = vld [vmem:[%s331 + $0xa8] sm:$0xff]
        %v456 = vld [vmem:[%s331 + $0xb0] sm:$0xff]
        %v457 = vld [vmem:[%s331 + $0xb8] sm:$0xff]
        %v458 = vld [vmem:[%s331 + $0xc0] sm:$0xff]
        %v459 = vld [vmem:[%s331 + $0xc8] sm:$0xff]
        %v460 = vld [vmem:[%s331 + $0xd0] sm:$0xff]
        %v461 = vld [vmem:[%s331 + $0xd8] sm:$0xff]
        %v462 = vld [vmem:[%s331 + $0xe0] sm:$0xff]
        %v463 = vld [vmem:[%s331 + $0xe8] sm:$0xff]
        %v464 = vld [vmem:[%s331 + $0xf0] sm:$0xff]
        %v465 = vld [vmem:[%s331 + $0xf8] sm:$0xff]
        %v466 = vld [vmem:[%s331 + $0x100] sm:$0xff]
        %v467 = vld [vmem:[%s331 + $0x108] sm:$0xff]
        %v468 = vld [vmem:[%s331 + $0x110] sm:$0xff]
        %v469 = vld [vmem:[%s331 + $0x118] sm:$0xff]
        %v470 = vld [vmem:[%s331 + $0x120] sm:$0xff]
        %v471 = vld [vmem:[%s331 + $0x128] sm:$0xff]
        %v472 = vld [vmem:[%s331 + $0x130] sm:$0xff]
        %v473 = vld [vmem:[%s331 + $0x138] sm:$0xff]
        %v474 = vld [vmem:[%s331 + $0x140] sm:$0xff]
        %v475 = vld [vmem:[%s331 + $0x148] sm:$0xff]
        %v476 = vld [vmem:[%s331 + $0x150] sm:$0xff]
        %v477 = vld [vmem:[%s331 + $0x158] sm:$0xff]
        %v478 = vld [vmem:[%s331 + $0x160] sm:$0xff]
        %v479 = vld [vmem:[%s331 + $0x168] sm:$0xff]
        %v480 = vld [vmem:[%s331 + $0x170] sm:$0xff]
        %v481 = vld [vmem:[%s331 + $0x178] sm:$0xff]
        %v508 = vunpack.c.l.b16 %v408
        %v509 = vunpack.c.h.b16 %v408
        %v510 = vunpack.c.l.b16 %v409
        %v511 = vunpack.c.l.b16 %v410
        %v512 = vunpack.c.h.b16 %v410
        %v513 = vunpack.c.l.b16 %v411
        %v514 = vunpack.c.l.b16 %v412
        %v515 = vunpack.c.h.b16 %v412
        %v516 = vunpack.c.l.b16 %v413
        %v517 = vunpack.c.l.b16 %v414
        %v518 = vunpack.c.h.b16 %v414
        %v519 = vunpack.c.l.b16 %v415
        %v520 = vunpack.c.l.b16 %v416
        %v521 = vunpack.c.h.b16 %v416
        %v522 = vunpack.c.l.b16 %v417
        %v523 = vunpack.c.l.b16 %v418
        %v524 = vunpack.c.h.b16 %v418
        %v525 = vunpack.c.l.b16 %v419
        %v526 = vunpack.c.l.b16 %v420
        %v527 = vunpack.c.h.b16 %v420
        %v528 = vunpack.c.l.b16 %v421
        %v529 = vunpack.c.l.b16 %v422
        %v530 = vunpack.c.h.b16 %v422
        %v531 = vunpack.c.l.b16 %v423
        %v532 = vunpack.c.l.b16 %v424
        %v533 = vunpack.c.h.b16 %v424
        %v534 = vunpack.c.l.b16 %v425
        %v535 = vunpack.c.l.b16 %v426
        %v536 = vunpack.c.h.b16 %v426
        %v537 = vunpack.c.l.b16 %v427
        %v538 = vunpack.c.l.b16 %v428
        %v539 = vunpack.c.h.b16 %v428
        %v540 = vunpack.c.l.b16 %v429
        %v541 = vunpack.c.l.b16 %v430
        %v542 = vunpack.c.h.b16 %v430
        %v543 = vunpack.c.l.b16 %v431
        %v544 = vunpack.c.l.b16 %v432
        %v545 = vunpack.c.h.b16 %v432
        %v546 = vunpack.c.l.b16 %v433
        %v547 = vpack.c.b16 %v511, %v508
        %v548 = vpack.c.b16 %v512, %v509
        %v549 = vpack.c.b16 %v513, %v510
        %v550 = vpack.c.b16 %v517, %v514
        %v551 = vpack.c.b16 %v518, %v515
        %v552 = vpack.c.b16 %v519, %v516
        %v553 = vpack.c.b16 %v523, %v520
        %v554 = vpack.c.b16 %v524, %v521
        %v555 = vpack.c.b16 %v525, %v522
        %v556 = vpack.c.b16 %v529, %v526
        %v557 = vpack.c.b16 %v530, %v527
        %v558 = vpack.c.b16 %v531, %v528
        %v559 = vpack.c.b16 %v535, %v532
        %v560 = vpack.c.b16 %v536, %v533
        %v561 = vpack.c.b16 %v537, %v534
        %v562 = vpack.c.b16 %v541, %v538
        %v563 = vpack.c.b16 %v542, %v539
        %v564 = vpack.c.b16 %v543, %v540
        %v565 = vpack.c.b16 %v544, %v544
        %v566 = vpack.c.b16 %v545, %v545
        %v567 = vpack.c.b16 %v546, %v546
        %v637 = vunpack.c.l.b16 %v434
        %v638 = vunpack.c.h.b16 %v434
        %v639 = vunpack.c.l.b16 %v435
        %v640 = vunpack.c.h.b16 %v435
        %v641 = vunpack.c.l.b16 %v436
        %v642 = vunpack.c.h.b16 %v436
        %v643 = vunpack.c.l.b16 %v437
        %v644 = vunpack.c.h.b16 %v437
        %v645 = vunpack.c.l.b16 %v438
        %v646 = vunpack.c.h.b16 %v438
        %v647 = vunpack.c.l.b16 %v439
        %v648 = vunpack.c.h.b16 %v439
        %v649 = vunpack.c.l.b16 %v440
        %v650 = vunpack.c.h.b16 %v440
        %v651 = vunpack.c.l.b16 %v441
        %v652 = vunpack.c.h.b16 %v441
        %v653 = vunpack.c.l.b16 %v442
        %v654 = vunpack.c.h.b16 %v442
        %v655 = vunpack.c.l.b16 %v443
        %v656 = vunpack.c.h.b16 %v443
        %v657 = vunpack.c.l.b16 %v444
        %v658 = vunpack.c.h.b16 %v444
        %v659 = vunpack.c.l.b16 %v445
        %v660 = vunpack.c.h.b16 %v445
        %v661 = vunpack.c.l.b16 %v446
        %v662 = vunpack.c.h.b16 %v446
        %v663 = vunpack.c.l.b16 %v447
        %v664 = vunpack.c.h.b16 %v447
        %v665 = vunpack.c.l.b16 %v448
        %v666 = vunpack.c.h.b16 %v448
        %v667 = vunpack.c.l.b16 %v449
        %v668 = vunpack.c.h.b16 %v449
        %v669 = vunpack.c.l.b16 %v450
        %v670 = vunpack.c.h.b16 %v450
        %v671 = vunpack.c.l.b16 %v451
        %v672 = vunpack.c.h.b16 %v451
        %v673 = vunpack.c.l.b16 %v452
        %v674 = vunpack.c.h.b16 %v452
        %v675 = vunpack.c.l.b16 %v453
        %v676 = vunpack.c.h.b16 %v453
        %v677 = vunpack.c.l.b16 %v454
        %v678 = vunpack.c.h.b16 %v454
        %v679 = vunpack.c.l.b16 %v455
        %v680 = vunpack.c.h.b16 %v455
        %v681 = vunpack.c.l.b16 %v456
        %v682 = vunpack.c.h.b16 %v456
        %v683 = vunpack.c.l.b16 %v457
        %v684 = vunpack.c.h.b16 %v457
        %v685 = vunpack.c.l.b16 %v458
        %v686 = vunpack.c.h.b16 %v458
        %v687 = vunpack.c.l.b16 %v459
        %v688 = vunpack.c.h.b16 %v459
        %v689 = vunpack.c.l.b16 %v460
        %v690 = vunpack.c.h.b16 %v460
        %v691 = vunpack.c.l.b16 %v461
        %v692 = vunpack.c.h.b16 %v461
        %v693 = vunpack.c.l.b16 %v462
        %v694 = vunpack.c.h.b16 %v462
        %v695 = vunpack.c.l.b16 %v463
        %v696 = vunpack.c.h.b16 %v463
        %v697 = vunpack.c.l.b16 %v464
        %v698 = vunpack.c.h.b16 %v464
        %v699 = vunpack.c.l.b16 %v465
        %v700 = vunpack.c.h.b16 %v465
        %v701 = vunpack.c.l.b16 %v466
        %v702 = vunpack.c.h.b16 %v466
        %v703 = vunpack.c.l.b16 %v467
        %v704 = vunpack.c.h.b16 %v467
        %v705 = vunpack.c.l.b16 %v468
        %v706 = vunpack.c.h.b16 %v468
        %v707 = vunpack.c.l.b16 %v469
        %v708 = vunpack.c.h.b16 %v469
        %v709 = vunpack.c.l.b16 %v470
        %v710 = vunpack.c.h.b16 %v470
        %v711 = vunpack.c.l.b16 %v471
        %v712 = vunpack.c.h.b16 %v471
        %v713 = vunpack.c.l.b16 %v472
        %v714 = vunpack.c.h.b16 %v472
        %v715 = vunpack.c.l.b16 %v473
        %v716 = vunpack.c.h.b16 %v473
        %v717 = vunpack.c.l.b16 %v474
        %v718 = vunpack.c.h.b16 %v474
        %v719 = vunpack.c.l.b16 %v475
        %v720 = vunpack.c.h.b16 %v475
        %v721 = vunpack.c.l.b16 %v476
        %v722 = vunpack.c.h.b16 %v476
        %v723 = vunpack.c.l.b16 %v477
        %v724 = vunpack.c.h.b16 %v477
        %v725 = vunpack.c.l.b16 %v478
        %v726 = vunpack.c.h.b16 %v478
        %v727 = vunpack.c.l.b16 %v479
        %v728 = vunpack.c.h.b16 %v479
        %v729 = vunpack.c.l.b16 %v480
        %v730 = vunpack.c.h.b16 %v480
        %v731 = vunpack.c.l.b16 %v481
        %v732 = vunpack.c.h.b16 %v481
        %v733 = vpack.c.b16 %v639, %v637
        %v734 = vpack.c.b16 %v640, %v638
        %v735 = vpack.c.b16 %v643, %v641
        %v736 = vpack.c.b16 %v644, %v642
        %v737 = vpack.c.b16 %v647, %v645
        %v738 = vpack.c.b16 %v648, %v646
        %v739 = vpack.c.b16 %v651, %v649
        %v740 = vpack.c.b16 %v652, %v650
        %v741 = vpack.c.b16 %v655, %v653
        %v742 = vpack.c.b16 %v656, %v654
        %v743 = vpack.c.b16 %v659, %v657
        %v744 = vpack.c.b16 %v660, %v658
        %v745 = vpack.c.b16 %v663, %v661
        %v746 = vpack.c.b16 %v664, %v662
        %v747 = vpack.c.b16 %v667, %v665
        %v748 = vpack.c.b16 %v668, %v666
        %v749 = vpack.c.b16 %v671, %v669
        %v750 = vpack.c.b16 %v672, %v670
        %v751 = vpack.c.b16 %v675, %v673
        %v752 = vpack.c.b16 %v676, %v674
        %v753 = vpack.c.b16 %v679, %v677
        %v754 = vpack.c.b16 %v680, %v678
        %v755 = vpack.c.b16 %v683, %v681
        %v756 = vpack.c.b16 %v684, %v682
        %v757 = vpack.c.b16 %v687, %v685
        %v758 = vpack.c.b16 %v688, %v686
        %v759 = vpack.c.b16 %v691, %v689
        %v760 = vpack.c.b16 %v692, %v690
        %v761 = vpack.c.b16 %v695, %v693
        %v762 = vpack.c.b16 %v696, %v694
        %v763 = vpack.c.b16 %v699, %v697
        %v764 = vpack.c.b16 %v700, %v698
        %v765 = vpack.c.b16 %v703, %v701
        %v766 = vpack.c.b16 %v704, %v702
        %v767 = vpack.c.b16 %v707, %v705
        %v768 = vpack.c.b16 %v708, %v706
        %v769 = vpack.c.b16 %v711, %v709
        %v770 = vpack.c.b16 %v712, %v710
        %v771 = vpack.c.b16 %v715, %v713
        %v772 = vpack.c.b16 %v716, %v714
        %v773 = vpack.c.b16 %v719, %v717
        %v774 = vpack.c.b16 %v720, %v718
        %v775 = vpack.c.b16 %v723, %v721
        %v776 = vpack.c.b16 %v724, %v722
        %v777 = vpack.c.b16 %v727, %v725
        %v778 = vpack.c.b16 %v728, %v726
        %v779 = vpack.c.b16 %v731, %v729
        %v780 = vpack.c.b16 %v732, %v730
        %829 = vmatprep.subr.bf16.mxu0 %v748
        %830 = vmatpush1.bf16.msra.mxu0 %v747
        %831 = vmatprep.subr.bf16.mxu0 %v746
        %832 = vmatpush1.bf16.msra.mxu0 %v745
        %833 = vmatprep.subr.bf16.mxu0 %v744
        %834 = vmatpush1.bf16.msra.mxu0 %v743
        %835 = vmatprep.subr.bf16.mxu0 %v742
        %836 = vmatpush1.bf16.msra.mxu0 %v741
        %837 = vmatprep.subr.bf16.mxu0 %v740
        %838 = vmatpush1.bf16.msra.mxu0 %v739
        %839 = vmatprep.subr.bf16.mxu0 %v738
        %840 = vmatpush1.bf16.msra.mxu0 %v737
        %841 = vmatprep.subr.bf16.mxu0 %v736
        %842 = vmatpush1.bf16.msra.mxu0 %v735
        %843 = vmatprep.subr.bf16.mxu0 %v734
        %844 = vmatpush1.bf16.msra.mxu0 %v733
        %845 = vmatprep.subr.bf16.mxu0 %v764
        %846 = vmatpush2.bf16.msra.mxu0 %v763
        %847 = vmatprep.subr.bf16.mxu0 %v762
        %848 = vmatpush2.bf16.msra.mxu0 %v761
        %849 = vmatprep.subr.bf16.mxu0 %v760
        %850 = vmatpush2.bf16.msra.mxu0 %v759
        %851 = vmatprep.subr.bf16.mxu0 %v758
        %852 = vmatpush2.bf16.msra.mxu0 %v757
        %853 = vmatprep.subr.bf16.mxu0 %v756
        %854 = vmatpush2.bf16.msra.mxu0 %v755
        %855 = vmatprep.subr.bf16.mxu0 %v754
        %856 = vmatpush2.bf16.msra.mxu0 %v753
        %857 = vmatprep.subr.bf16.mxu0 %v752
        %858 = vmatpush2.bf16.msra.mxu0 %v751
        %859 = vmatprep.subr.bf16.mxu0 %v750
        %860 = vmatpush2.bf16.msra.mxu0 %v749
        %861 = vmatprep.mubr.bf16.mxu0 %v548
        %862 = vmatmul.mubr.bf16.gmra.mxu0 %v547
        %v863 = vpop.f32.mrf.mxu0
        %v864 = vadd.f32 0.0, %v863
        %v865 = vpop.f32.mrf.mxu0
        %v866 = vadd.f32 0.0, %v865
        %v867 = vpop.f32.mrf.mxu0
        %v868 = vadd.f32 0.0, %v867
        %v869 = vpop.f32.mrf.mxu0
        %v870 = vadd.f32 0.0, %v869
        %871 = vmatprep.mubr.bf16.mxu0 %v551
        %872 = vmatmul.mubr.bf16.gmra.mxu0 %v550
        %v873 = vpop.f32.mrf.mxu0
        %v874 = vadd.f32 0.0, %v873
        %v875 = vpop.f32.mrf.mxu0
        %v876 = vadd.f32 0.0, %v875
        %v877 = vpop.f32.mrf.mxu0
        %v878 = vadd.f32 0.0, %v877
        %v879 = vpop.f32.mrf.mxu0
        %v880 = vadd.f32 0.0, %v879
        %881 = vmatprep.mubr.bf16.mxu0 %v554
        %882 = vmatmul.mubr.bf16.gmra.mxu0 %v553
        %v883 = vpop.f32.mrf.mxu0
        %v884 = vadd.f32 0.0, %v883
        %v885 = vpop.f32.mrf.mxu0
        %v886 = vadd.f32 0.0, %v885
        %v887 = vpop.f32.mrf.mxu0
        %v888 = vadd.f32 0.0, %v887
        %v889 = vpop.f32.mrf.mxu0
        %v890 = vadd.f32 0.0, %v889
        %891 = vmatprep.mubr.bf16.mxu0 %v557
        %892 = vmatmul.mubr.bf16.gmra.mxu0 %v556
        %v893 = vpop.f32.mrf.mxu0
        %v894 = vadd.f32 0.0, %v893
        %v895 = vpop.f32.mrf.mxu0
        %v896 = vadd.f32 0.0, %v895
        %v897 = vpop.f32.mrf.mxu0
        %v898 = vadd.f32 0.0, %v897
        %v899 = vpop.f32.mrf.mxu0
        %v900 = vadd.f32 0.0, %v899
        %901 = vmatprep.mubr.bf16.mxu0 %v560
        %902 = vmatmul.mubr.bf16.gmra.mxu0 %v559
        %v903 = vpop.f32.mrf.mxu0
        %v904 = vadd.f32 0.0, %v903
        %v905 = vpop.f32.mrf.mxu0
        %v906 = vadd.f32 0.0, %v905
        %v907 = vpop.f32.mrf.mxu0
        %v908 = vadd.f32 0.0, %v907
        %v909 = vpop.f32.mrf.mxu0
        %v910 = vadd.f32 0.0, %v909
        %911 = vmatprep.mubr.bf16.mxu0 %v563
        %912 = vmatmul.mubr.bf16.gmra.mxu0 %v562
        %v913 = vpop.f32.mrf.mxu0
        %v914 = vadd.f32 0.0, %v913
        %v915 = vpop.f32.mrf.mxu0
        %v916 = vadd.f32 0.0, %v915
        %v917 = vpop.f32.mrf.mxu0
        %v918 = vadd.f32 0.0, %v917
        %v919 = vpop.f32.mrf.mxu0
        %v920 = vadd.f32 0.0, %v919
        %921 = vmatprep.mubr.bf16.mxu0 %v566
        %922 = vmatmul.mubr.bf16.gmra.mxu0 %v565
        %v923 = vpop.f32.mrf.mxu0
        %v924 = vadd.f32 0.0, %v923
        %v925 = vpop.f32.mrf.mxu0
        %v926 = vadd.f32 0.0, %v925
        %v927 = vpop.f32.mrf.mxu0
        %v928 = vpop.f32.mrf.mxu0
        %929 = vdwg.mxu0
        %930 = vmatprep.subr.bf16.mxu0 %v780
        %931 = vmatpush1.bf16.msra.mxu0 %v779
        %932 = vmatprep.subr.bf16.mxu0 %v778
        %933 = vmatpush1.bf16.msra.mxu0 %v777
        %934 = vmatprep.subr.bf16.mxu0 %v776
        %935 = vmatpush1.bf16.msra.mxu0 %v775
        %936 = vmatprep.subr.bf16.mxu0 %v774
        %937 = vmatpush1.bf16.msra.mxu0 %v773
        %938 = vmatprep.subr.bf16.mxu0 %v772
        %939 = vmatpush1.bf16.msra.mxu0 %v771
        %940 = vmatprep.subr.bf16.mxu0 %v770
        %941 = vmatpush1.bf16.msra.mxu0 %v769
        %942 = vmatprep.subr.bf16.mxu0 %v768
        %943 = vmatpush1.bf16.msra.mxu0 %v767
        %944 = vmatprep.subr.bf16.mxu0 %v766
        %945 = vmatpush1.bf16.msra.mxu0 %v765
        %946 = vmatprep.subr.bf16.mxu0 0
        %947 = vmatpush2.bf16.msra.mxu0 0
        %948 = vmatprep.subr.bf16.mxu0 0
        %949 = vmatpush2.bf16.msra.mxu0 0
        %950 = vmatprep.subr.bf16.mxu0 0
        %951 = vmatpush2.bf16.msra.mxu0 0
        %952 = vmatprep.subr.bf16.mxu0 0
        %953 = vmatpush2.bf16.msra.mxu0 0
        %954 = vmatprep.subr.bf16.mxu0 0
        %955 = vmatpush2.bf16.msra.mxu0 0
        %956 = vmatprep.subr.bf16.mxu0 0
        %957 = vmatpush2.bf16.msra.mxu0 0
        %958 = vmatprep.subr.bf16.mxu0 0
        %959 = vmatpush2.bf16.msra.mxu0 0
        %960 = vmatprep.subr.bf16.mxu0 0
        %961 = vmatpush2.bf16.msra.mxu0 0
        %962 = vmatprep.mubr.bf16.mxu0 0
        %963 = vmatmul.mubr.bf16.gmra.mxu0 %v549
        %v964 = vpop.f32.mrf.mxu0
        %v965 = vadd.f32 %v864, %v964
        %v966 = vpop.f32.mrf.mxu0
        %v967 = vadd.f32 %v866, %v966
        %v968 = vpop.f32.mrf.mxu0
        %v969 = vadd.f32 %v868, %v968
        %v970 = vpop.f32.mrf.mxu0
        %v971 = vadd.f32 %v870, %v970
        %972 = vmatprep.mubr.bf16.mxu0 0
        %973 = vmatmul.mubr.bf16.gmra.mxu0 %v552
        %v974 = vpop.f32.mrf.mxu0
        %v975 = vadd.f32 %v874, %v974
        %v976 = vpop.f32.mrf.mxu0
        %v977 = vadd.f32 %v876, %v976
        %v978 = vpop.f32.mrf.mxu0
        %v979 = vadd.f32 %v878, %v978
        %v980 = vpop.f32.mrf.mxu0
        %v981 = vadd.f32 %v880, %v980
        %982 = vmatprep.mubr.bf16.mxu0 0
        %983 = vmatmul.mubr.bf16.gmra.mxu0 %v555
        %v984 = vpop.f32.mrf.mxu0
        %v985 = vadd.f32 %v884, %v984
        %v986 = vpop.f32.mrf.mxu0
        %v987 = vadd.f32 %v886, %v986
        %v988 = vpop.f32.mrf.mxu0
        %v989 = vadd.f32 %v888, %v988
        %v990 = vpop.f32.mrf.mxu0
        %v991 = vadd.f32 %v890, %v990
        %992 = vmatprep.mubr.bf16.mxu0 0
        %993 = vmatmul.mubr.bf16.gmra.mxu0 %v558
        %v994 = vpop.f32.mrf.mxu0
        %v995 = vadd.f32 %v894, %v994
        %v996 = vpop.f32.mrf.mxu0
        %v997 = vadd.f32 %v896, %v996
        %v998 = vpop.f32.mrf.mxu0
        %v999 = vadd.f32 %v898, %v998
        %v1000 = vpop.f32.mrf.mxu0
        %v1001 = vadd.f32 %v900, %v1000
        %1002 = vmatprep.mubr.bf16.mxu0 0
        %1003 = vmatmul.mubr.bf16.gmra.mxu0 %v561
        %v1004 = vpop.f32.mrf.mxu0
        %v1005 = vadd.f32 %v904, %v1004
        %v1006 = vpop.f32.mrf.mxu0
        %v1007 = vadd.f32 %v906, %v1006
        %v1008 = vpop.f32.mrf.mxu0
        %v1009 = vadd.f32 %v908, %v1008
        %v1010 = vpop.f32.mrf.mxu0
        %v1011 = vadd.f32 %v910, %v1010
        %1012 = vmatprep.mubr.bf16.mxu0 0
        %1013 = vmatmul.mubr.bf16.gmra.mxu0 %v564
        %v1014 = vpop.f32.mrf.mxu0
        %v1015 = vadd.f32 %v914, %v1014
        %v1016 = vpop.f32.mrf.mxu0
        %v1017 = vadd.f32 %v916, %v1016
        %v1018 = vpop.f32.mrf.mxu0
        %v1019 = vadd.f32 %v918, %v1018
        %v1020 = vpop.f32.mrf.mxu0
        %v1021 = vadd.f32 %v920, %v1020
        %1022 = vmatprep.mubr.bf16.mxu0 0
        %1023 = vmatmul.mubr.bf16.gmra.mxu0 %v567
        %v1024 = vpop.f32.mrf.mxu0
        %v1025 = vadd.f32 %v924, %v1024
        %v1026 = vpop.f32.mrf.mxu0
        %v1027 = vadd.f32 %v926, %v1026
        %v1028 = vpop.f32.mrf.mxu0
        %v1029 = vpop.f32.mrf.mxu0
        %1030 = vdwg.mxu0
        %v1031 = vadd.f32 %v382, %v965
        %v1032 = vadd.f32 %v383, %v967
        %v1033 = vadd.f32 %v384, %v969
        %v1034 = vadd.f32 %v385, %v971
        %v1035 = vadd.f32 %v386, %v975
        %v1036 = vadd.f32 %v387, %v977
        %v1037 = vadd.f32 %v388, %v979
        %v1038 = vadd.f32 %v389, %v981
        %v1039 = vadd.f32 %v390, %v985
        %v1040 = vadd.f32 %v391, %v987
        %v1041 = vadd.f32 %v392, %v989
        %v1042 = vadd.f32 %v393, %v991
        %v1043 = vadd.f32 %v394, %v995
        %v1044 = vadd.f32 %v395, %v997
        %v1045 = vadd.f32 %v396, %v999
        %v1046 = vadd.f32 %v397, %v1001
        %v1047 = vadd.f32 %v398, %v1005
        %v1048 = vadd.f32 %v399, %v1007
        %v1049 = vadd.f32 %v400, %v1009
        %v1050 = vadd.f32 %v401, %v1011
        %v1051 = vadd.f32 %v402, %v1015
        %v1052 = vadd.f32 %v403, %v1017
        %v1053 = vadd.f32 %v404, %v1019
        %v1054 = vadd.f32 %v405, %v1021
        %v1055 = vadd.f32 %v406, %v1025
        %v1056 = vadd.f32 %v407, %v1027
        %1057 = vst [vmem:[#allocation2] sm:$0xff] %v1031
        %1058 = vst [vmem:[#allocation2 + $0x8] sm:$0xff] %v1032
        %1059 = vst [vmem:[#allocation2 + $0x10] sm:$0xff] %v1033
        %1060 = vst [vmem:[#allocation2 + $0x18] sm:$0xff] %v1034
        %1061 = vst [vmem:[#allocation2 + $0x20] sm:$0xff] %v1035
        %1062 = vst [vmem:[#allocation2 + $0x28] sm:$0xff] %v1036
        %1063 = vst [vmem:[#allocation2 + $0x30] sm:$0xff] %v1037
        %1064 = vst [vmem:[#allocation2 + $0x38] sm:$0xff] %v1038
        %1065 = vst [vmem:[#allocation2 + $0x40] sm:$0xff] %v1039
        %1066 = vst [vmem:[#allocation2 + $0x48] sm:$0xff] %v1040
        %1067 = vst [vmem:[#allocation2 + $0x50] sm:$0xff] %v1041
        %1068 = vst [vmem:[#allocation2 + $0x58] sm:$0xff] %v1042
        %1069 = vst [vmem:[#allocation2 + $0x60] sm:$0xff] %v1043
        %1070 = vst [vmem:[#allocation2 + $0x68] sm:$0xff] %v1044
        %1071 = vst [vmem:[#allocation2 + $0x70] sm:$0xff] %v1045
        %1072 = vst [vmem:[#allocation2 + $0x78] sm:$0xff] %v1046
        %1073 = vst [vmem:[#allocation2 + $0x80] sm:$0xff] %v1047
        %1074 = vst [vmem:[#allocation2 + $0x88] sm:$0xff] %v1048
        %1075 = vst [vmem:[#allocation2 + $0x90] sm:$0xff] %v1049
        %1076 = vst [vmem:[#allocation2 + $0x98] sm:$0xff] %v1050
        %1077 = vst [vmem:[#allocation2 + $0xa0] sm:$0xff] %v1051
        %1078 = vst [vmem:[#allocation2 + $0xa8] sm:$0xff] %v1052
        %1079 = vst [vmem:[#allocation2 + $0xb0] sm:$0xff] %v1053
        %1080 = vst [vmem:[#allocation2 + $0xb8] sm:$0xff] %v1054
        %1081 = vst [vmem:[#allocation2 + $0xc0] sm:$0xff] %v1055
        %1082 = vst [vmem:[#allocation2 + $0xc8] sm:$0xff] %v1056
        %p1083 = scmp.eq.s32.totalorder %s21, 2
        // Predicated region
        $region63: #{_lambda_.10} parent=53 // pred_check
          %p1084 = pneg %p1083
        $region64: #{_lambda_.10} parent=53 // pred_check_branch
          %1086 = sbr.rel (%p1084) target = $region66
        $region65: #{_lambda_.10} parent=53 // pred_region
          %v1087 = vld [vmem:[#allocation2] sm:$0xff]
          %v1088 = vld [vmem:[#allocation2 + $0x8] sm:$0xff]
          %v1089 = vld [vmem:[#allocation2 + $0x10] sm:$0xff]
          %v1090 = vld [vmem:[#allocation2 + $0x18] sm:$0xff]
          %v1091 = vld [vmem:[#allocation2 + $0x20] sm:$0xff]
          %v1092 = vld [vmem:[#allocation2 + $0x28] sm:$0xff]
          %v1093 = vld [vmem:[#allocation2 + $0x30] sm:$0xff]
          %v1094 = vld [vmem:[#allocation2 + $0x38] sm:$0xff]
          %v1095 = vld [vmem:[#allocation2 + $0x40] sm:$0xff]
          %v1096 = vld [vmem:[#allocation2 + $0x48] sm:$0xff]
          %v1097 = vld [vmem:[#allocation2 + $0x50] sm:$0xff]
          %v1098 = vld [vmem:[#allocation2 + $0x58] sm:$0xff]
          %v1099 = vld [vmem:[#allocation2 + $0x60] sm:$0xff]
          %v1100 = vld [vmem:[#allocation2 + $0x68] sm:$0xff]
          %v1101 = vld [vmem:[#allocation2 + $0x70] sm:$0xff]
          %v1102 = vld [vmem:[#allocation2 + $0x78] sm:$0xff]
          %v1103 = vld [vmem:[#allocation2 + $0x80] sm:$0xff]
          %v1104 = vld [vmem:[#allocation2 + $0x88] sm:$0xff]
          %v1105 = vld [vmem:[#allocation2 + $0x90] sm:$0xff]
          %v1106 = vld [vmem:[#allocation2 + $0x98] sm:$0xff]
          %v1107 = vld [vmem:[#allocation2 + $0xa0] sm:$0xff]
          %v1108 = vld [vmem:[#allocation2 + $0xa8] sm:$0xff]
          %v1109 = vld [vmem:[#allocation2 + $0xb0] sm:$0xff]
          %v1110 = vld [vmem:[#allocation2 + $0xb8] sm:$0xff]
          %v1111 = vld [vmem:[#allocation2 + $0xc0] sm:$0xff]
          %v1112 = vld [vmem:[#allocation2 + $0xc8] sm:$0xff]
          %v1113 = vld [vmem:[%s337] sm:$0x3]
          %v1115 = vlaneseq
          %v1116 = vshrl.u32 %v1115, 7
          %v1117 = vsub.s32 0, %v1116
          %v1118 = vrot.slane %v1113, %v1117
          %v1119 = vlaneseq
          %v1120 = vshrl.u32 %v1119, 7
          %v1121 = vsub.s32 1, %v1120
          %v1122 = vrot.slane %v1113, %v1121
          %v1125 = vadd.f32 %v1087, %v1118
          %v1126 = vadd.f32 %v1088, %v1122
          %v1127 = vadd.f32 %v1089, %v1118
          %v1128 = vadd.f32 %v1090, %v1122
          %v1129 = vadd.f32 %v1091, %v1118
          %v1130 = vadd.f32 %v1092, %v1122
          %v1131 = vadd.f32 %v1093, %v1118
          %v1132 = vadd.f32 %v1094, %v1122
          %v1133 = vadd.f32 %v1095, %v1118
          %v1134 = vadd.f32 %v1096, %v1122
          %v1135 = vadd.f32 %v1097, %v1118
          %v1136 = vadd.f32 %v1098, %v1122
          %v1137 = vadd.f32 %v1099, %v1118
          %v1138 = vadd.f32 %v1100, %v1122
          %v1139 = vadd.f32 %v1101, %v1118
          %v1140 = vadd.f32 %v1102, %v1122
          %v1141 = vadd.f32 %v1103, %v1118
          %v1142 = vadd.f32 %v1104, %v1122
          %v1143 = vadd.f32 %v1105, %v1118
          %v1144 = vadd.f32 %v1106, %v1122
          %v1145 = vadd.f32 %v1107, %v1118
          %v1146 = vadd.f32 %v1108, %v1122
          %v1147 = vadd.f32 %v1109, %v1118
          %v1148 = vadd.f32 %v1110, %v1122
          %v1149 = vadd.f32 %v1111, %v1118
          %v1150 = vadd.f32 %v1112, %v1122
          %v1151 = vmax.f32 %v1125, 0.0
          %v1152 = vmax.f32 %v1126, 0.0
          %v1153 = vmax.f32 %v1127, 0.0
          %v1154 = vmax.f32 %v1128, 0.0
          %v1155 = vmax.f32 %v1129, 0.0
          %v1156 = vmax.f32 %v1130, 0.0
          %v1157 = vmax.f32 %v1131, 0.0
          %v1158 = vmax.f32 %v1132, 0.0
          %v1159 = vmax.f32 %v1133, 0.0
          %v1160 = vmax.f32 %v1134, 0.0
          %v1161 = vmax.f32 %v1135, 0.0
          %v1162 = vmax.f32 %v1136, 0.0
          %v1163 = vmax.f32 %v1137, 0.0
          %v1164 = vmax.f32 %v1138, 0.0
          %v1165 = vmax.f32 %v1139, 0.0
          %v1166 = vmax.f32 %v1140, 0.0
          %v1167 = vmax.f32 %v1141, 0.0
          %v1168 = vmax.f32 %v1142, 0.0
          %v1169 = vmax.f32 %v1143, 0.0
          %v1170 = vmax.f32 %v1144, 0.0
          %v1171 = vmax.f32 %v1145, 0.0
          %v1172 = vmax.f32 %v1146, 0.0
          %v1173 = vmax.f32 %v1147, 0.0
          %v1174 = vmax.f32 %v1148, 0.0
          %v1175 = vmax.f32 %v1149, 0.0
          %v1176 = vmax.f32 %v1150, 0.0
          %1177 = vst [vmem:[%s348] sm:$0xff] %v1151
          %1178 = vst [vmem:[%s348 + $0x8] sm:$0xff] %v1152
          %1179 = vst [vmem:[%s348 + $0x10] sm:$0xff] %v1153
          %1180 = vst [vmem:[%s348 + $0x18] sm:$0xff] %v1154
          %1181 = vst [vmem:[%s348 + $0x20] sm:$0xff] %v1155
          %1182 = vst [vmem:[%s348 + $0x28] sm:$0xff] %v1156
          %1183 = vst [vmem:[%s348 + $0x30] sm:$0xff] %v1157
          %1184 = vst [vmem:[%s348 + $0x38] sm:$0xff] %v1158
          %1185 = vst [vmem:[%s348 + $0x40] sm:$0xff] %v1159
          %1186 = vst [vmem:[%s348 + $0x48] sm:$0xff] %v1160
          %1187 = vst [vmem:[%s348 + $0x50] sm:$0xff] %v1161
          %1188 = vst [vmem:[%s348 + $0x58] sm:$0xff] %v1162
          %1189 = vst [vmem:[%s348 + $0x60] sm:$0xff] %v1163
          %1190 = vst [vmem:[%s348 + $0x68] sm:$0xff] %v1164
          %1191 = vst [vmem:[%s348 + $0x70] sm:$0xff] %v1165
          %1192 = vst [vmem:[%s348 + $0x78] sm:$0xff] %v1166
          %1193 = vst [vmem:[%s348 + $0x80] sm:$0xff] %v1167
          %1194 = vst [vmem:[%s348 + $0x88] sm:$0xff] %v1168
          %1195 = vst [vmem:[%s348 + $0x90] sm:$0xff] %v1169
          %1196 = vst [vmem:[%s348 + $0x98] sm:$0xff] %v1170
          %1197 = vst [vmem:[%s348 + $0xa0] sm:$0xff] %v1171
          %1198 = vst [vmem:[%s348 + $0xa8] sm:$0xff] %v1172
          %1199 = vst [vmem:[%s348 + $0xb0] sm:$0xff] %v1173
          %1200 = vst [vmem:[%s348 + $0xb8] sm:$0xff] %v1174
          %1201 = vst [vmem:[%s348 + $0xc0] sm:$0xff] %v1175
          %1202 = vst [vmem:[%s348 + $0xc8] sm:$0xff] %v1176
        $region66: #{_lambda_.10} parent=53 // pred_fallthru
          _
        %s1203 = smul.u32 13, %s19
        %s1204 = smul.u32 2, %s20
        %p1205 = scmp.lt.s32.totalorder %s1203, 12
        %s1206 = scalar_select %p1205, %s1203, 12
        %p1207 = scmp.lt.s32.totalorder %s1204, 1
        %s1208 = scalar_select %p1207, %s1204, 1
        %s1209 = smul.addr %s1206, 2
        %s1210 = sadd.s32 %s1208, %s1209
        %s1211 = smul.addr %s1210, 8
        %s1212 = scalar_lea.vmem %s3, %s1211
        // Predicated region
        $region67: #{_lambda_.10} parent=53 // pred_check
          %p1213 = pneg %p135
        $region68: #{_lambda_.10} parent=53 // pred_check_branch
          %1215 = sbr.rel (%p1213) target = $region70
        $region69: #{_lambda_.10} parent=53 // pred_region
          %s1216 = smul.u32 13, %s19
          %s1217 = smul.u32 2, %s20
        $region70: #{_lambda_.10} parent=53 // pred_fallthru
          _
        // Predicated region
        $region71: #{_lambda_.10} parent=53 // pred_check
          %p1218 = pneg %p135
        $region72: #{_lambda_.10} parent=53 // pred_check_branch
          %1220 = sbr.rel (%p1218) target = $region74
        $region73: #{_lambda_.10} parent=53 // pred_region
          %s1221 = smul.u32 13, %s19
          %s1222 = smul.u32 2, %s20
          %p1223 = scmp.lt.s32.totalorder %s1221, 12
          %s1224 = scalar_select %p1223, %s1221, 12
          %p1225 = scmp.lt.s32.totalorder %s1222, 1
          %s1226 = scalar_select %p1225, %s1222, 1
          %s1227 = smul.addr %s1224, 2
          %s1228 = sadd.s32 %s1226, %s1227
          %s1229 = smul.addr %s1228, 8
          %s1230 = scalar_lea.vmem %s3, %s1229
        $region74: #{_lambda_.10} parent=53 // pred_fallthru
          _
      $region54: #{_lambda_.10} parent=5 // pred_fallthru
        _
      %p1231 = scmp.le.s32.totalorder 2, %s9
      // Predicated region
      $region75: #{_lambda_.10} parent=5 // pred_check
        %p1232 = pneg %p1231
      $region76: #{_lambda_.10} parent=5 // pred_check_branch
        %1234 = sbr.rel (%p1232) target = $region78
      $region77: #{_lambda_.10} parent=5 // pred_region
        %s1235 = ssub.s32 %s9, 2
      $region78: #{_lambda_.10} parent=5 // pred_fallthru
        _
    $region6: #{_lambda_.10} parent=1 // loop_footer
      %s13 = sadd.s32 1, %s9
    $region7: #{_lambda_.10} parent=1 // loop_footer_branch
      %8 = sbr.rel target = $region3
    $region8: #{_lambda_.10} parent=1 // loop_exit
      _

// kernel: _lambda_.7
$region0: #{_lambda_.7}
  #allocation0 [shape = 'u32[]', space=smem, size = 0x4, offset = 0x4, fixed_abs, tag = 'smem constant byte address 0x4 - core index']
  #allocation1 [shape = 'u32[144,128]{1,0:T(1,128)}', space=vmem, size = 0x12000, scoped, tag = 'internal scratch']
  #allocation2 [shape = 'f32[104,128]{1,0:T(8,128)}', space=vmem, size = 0xd000, scoped, tag = 'scratch operand']
  %s0 = inlined_call_operand.vmem [shape: bf16[104,384], index: 0, kind: input, shape index: {}]
  %s1 = inlined_call_operand.vmem [shape: bf16[384,128], index: 1, kind: input, shape index: {}]
  %s2 = inlined_call_operand.vmem [shape: f32[1,128], index: 2, kind: input, shape index: {}]
  %s3 = inlined_call_operand.vmem [shape: f32[104,128], index: 3, kind: output, shape index: {}]
  %s4 = sld [smem:[#allocation0]]
  $region30: #{_lambda_.7} parent=0
    _
  %s6 = ssub.s32 1, %s4
  %s7 = scalar_select 0, %s6, %s4
  // Predicated region
  $region2: #{_lambda_.7} parent=0 // pred_check
    _
  $region3: #{_lambda_.7} parent=0 // pred_check_branch
    %9 = sbr.rel (0) target = $region5
  $region4: #{_lambda_.7} parent=0 // pred_region
    _
  $region5: #{_lambda_.7} parent=0 // pred_fallthru
    _
  // Predicated region
  $region6: #{_lambda_.7} parent=0 // pred_check
    _
  $region7: #{_lambda_.7} parent=0 // pred_check_branch
    %11 = sbr.rel (0) target = $region9
  $region8: #{_lambda_.7} parent=0 // pred_region
    _
  $region9: #{_lambda_.7} parent=0 // pred_fallthru
    _
  // Predicated region
  $region10: #{_lambda_.7} parent=0 // pred_check
    _
  $region11: #{_lambda_.7} parent=0 // pred_check_branch
    %13 = sbr.rel (0) target = $region13
  $region12: #{_lambda_.7} parent=0 // pred_region
    _
  $region13: #{_lambda_.7} parent=0 // pred_fallthru
    _
  %p15 = scmp.eq.s32.totalorder 0, 0
  // Predicated region
  $region14: #{_lambda_.7} parent=0 // pred_check
    %p16 = pneg %p15
  $region15: #{_lambda_.7} parent=0 // pred_check_branch
    %18 = sbr.rel (%p16) target = $region17
  $region16: #{_lambda_.7} parent=0 // pred_region
    %19 = vst [vmem:[#allocation2] sm:$0xff] 0.0
    %20 = vst [vmem:[#allocation2 + $0x8] sm:$0xff] 0.0
    %21 = vst [vmem:[#allocation2 + $0x10] sm:$0xff] 0.0
    %22 = vst [vmem:[#allocation2 + $0x18] sm:$0xff] 0.0
    %23 = vst [vmem:[#allocation2 + $0x20] sm:$0xff] 0.0
    %24 = vst [vmem:[#allocation2 + $0x28] sm:$0xff] 0.0
    %25 = vst [vmem:[#allocation2 + $0x30] sm:$0xff] 0.0
    %26 = vst [vmem:[#allocation2 + $0x38] sm:$0xff] 0.0
    %27 = vst [vmem:[#allocation2 + $0x40] sm:$0xff] 0.0
    %28 = vst [vmem:[#allocation2 + $0x48] sm:$0xff] 0.0
    %29 = vst [vmem:[#allocation2 + $0x50] sm:$0xff] 0.0
    %30 = vst [vmem:[#allocation2 + $0x58] sm:$0xff] 0.0
    %31 = vst [vmem:[#allocation2 + $0x60] sm:$0xff] 0.0
  $region17: #{_lambda_.7} parent=0 // pred_fallthru
    _
  %v32 = vld [vmem:[#allocation2] sm:$0xff]
  %v33 = vld [vmem:[#allocation2 + $0x8] sm:$0xff]
  %v34 = vld [vmem:[#allocation2 + $0x10] sm:$0xff]
  %v35 = vld [vmem:[#allocation2 + $0x18] sm:$0xff]
  %v36 = vld [vmem:[#allocation2 + $0x20] sm:$0xff]
  %v37 = vld [vmem:[#allocation2 + $0x28] sm:$0xff]
  %v38 = vld [vmem:[#allocation2 + $0x30] sm:$0xff]
  %v39 = vld [vmem:[#allocation2 + $0x38] sm:$0xff]
  %v40 = vld [vmem:[#allocation2 + $0x40] sm:$0xff]
  %v41 = vld [vmem:[#allocation2 + $0x48] sm:$0xff]
  %v42 = vld [vmem:[#allocation2 + $0x50] sm:$0xff]
  %v43 = vld [vmem:[#allocation2 + $0x58] sm:$0xff]
  %v44 = vld [vmem:[#allocation2 + $0x60] sm:$0xff]
  %v45 = vld [vmem:[%s0] sm:$0xff]
  %v46 = vld [vmem:[%s0 + $0x8] sm:$0xf]
  %v47 = vld [vmem:[%s0 + $0xc] sm:$0xff]
  %v48 = vld [vmem:[%s0 + $0x14] sm:$0xf]
  %v49 = vld [vmem:[%s0 + $0x18] sm:$0xff]
  %v50 = vld [vmem:[%s0 + $0x20] sm:$0xf]
  %v51 = vld [vmem:[%s0 + $0x24] sm:$0xff]
  %v52 = vld [vmem:[%s0 + $0x2c] sm:$0xf]
  %v53 = vld [vmem:[%s0 + $0x30] sm:$0xff]
  %v54 = vld [vmem:[%s0 + $0x38] sm:$0xf]
  %v55 = vld [vmem:[%s0 + $0x3c] sm:$0xff]
  %v56 = vld [vmem:[%s0 + $0x44] sm:$0xf]
  %v57 = vld [vmem:[%s0 + $0x48] sm:$0xff]
  %v58 = vld [vmem:[%s0 + $0x50] sm:$0xf]
  %v59 = vld [vmem:[%s0 + $0x54] sm:$0xff]
  %v60 = vld [vmem:[%s0 + $0x5c] sm:$0xf]
  %v61 = vld [vmem:[%s0 + $0x60] sm:$0xff]
  %v62 = vld [vmem:[%s0 + $0x68] sm:$0xf]
  %v63 = vld [vmem:[%s0 + $0x6c] sm:$0xff]
  %v64 = vld [vmem:[%s0 + $0x74] sm:$0xf]
  %v65 = vld [vmem:[%s0 + $0x78] sm:$0xff]
  %v66 = vld [vmem:[%s0 + $0x80] sm:$0xf]
  %v67 = vld [vmem:[%s0 + $0x84] sm:$0xff]
  %v68 = vld [vmem:[%s0 + $0x8c] sm:$0xf]
  %v69 = vld [vmem:[%s0 + $0x90] sm:$0xff]
  %v70 = vld [vmem:[%s0 + $0x98] sm:$0xf]
  %v71 = vld [vmem:[%s1] sm:$0xf]
  %v72 = vld [vmem:[%s1 + $0x4] sm:$0xf]
  %v73 = vld [vmem:[%s1 + $0x8] sm:$0xf]
  %v74 = vld [vmem:[%s1 + $0xc] sm:$0xf]
  %v75 = vld [vmem:[%s1 + $0x10] sm:$0xf]
  %v76 = vld [vmem:[%s1 + $0x14] sm:$0xf]
  %v77 = vld [vmem:[%s1 + $0x18] sm:$0xf]
  %v78 = vld [vmem:[%s1 + $0x1c] sm:$0xf]
  %v79 = vld [vmem:[%s1 + $0x20] sm:$0xf]
  %v80 = vld [vmem:[%s1 + $0x24] sm:$0xf]
  %v81 = vld [vmem:[%s1 + $0x28] sm:$0xf]
  %v82 = vld [vmem:[%s1 + $0x2c] sm:$0xf]
  %v83 = vld [vmem:[%s1 + $0x30] sm:$0xf]
  %v84 = vld [vmem:[%s1 + $0x34] sm:$0xf]
  %v85 = vld [vmem:[%s1 + $0x38] sm:$0xf]
  %v86 = vld [vmem:[%s1 + $0x3c] sm:$0xf]
  %v87 = vld [vmem:[%s1 + $0x40] sm:$0xf]
  %v88 = vld [vmem:[%s1 + $0x44] sm:$0xf]
  %v89 = vld [vmem:[%s1 + $0x48] sm:$0xf]
  %v90 = vld [vmem:[%s1 + $0x4c] sm:$0xf]
  %v91 = vld [vmem:[%s1 + $0x50] sm:$0xf]
  %v92 = vld [vmem:[%s1 + $0x54] sm:$0xf]
  %v93 = vld [vmem:[%s1 + $0x58] sm:$0xf]
  %v94 = vld [vmem:[%s1 + $0x5c] sm:$0xf]
  %v95 = vld [vmem:[%s1 + $0x60] sm:$0xf]
  %v96 = vld [vmem:[%s1 + $0x64] sm:$0xf]
  %v97 = vld [vmem:[%s1 + $0x68] sm:$0xf]
  %v98 = vld [vmem:[%s1 + $0x6c] sm:$0xf]
  %v99 = vld [vmem:[%s1 + $0x70] sm:$0xf]
  %v100 = vld [vmem:[%s1 + $0x74] sm:$0xf]
  %v101 = vld [vmem:[%s1 + $0x78] sm:$0xf]
  %v102 = vld [vmem:[%s1 + $0x7c] sm:$0xf]
  %v103 = vld [vmem:[%s1 + $0x80] sm:$0xf]
  %v104 = vld [vmem:[%s1 + $0x84] sm:$0xf]
  %v105 = vld [vmem:[%s1 + $0x88] sm:$0xf]
  %v106 = vld [vmem:[%s1 + $0x8c] sm:$0xf]
  %v107 = vld [vmem:[%s1 + $0x90] sm:$0xf]
  %v108 = vld [vmem:[%s1 + $0x94] sm:$0xf]
  %v109 = vld [vmem:[%s1 + $0x98] sm:$0xf]
  %v110 = vld [vmem:[%s1 + $0x9c] sm:$0xf]
  %v111 = vld [vmem:[%s1 + $0xa0] sm:$0xf]
  %v112 = vld [vmem:[%s1 + $0xa4] sm:$0xf]
  %v113 = vld [vmem:[%s1 + $0xa8] sm:$0xf]
  %v114 = vld [vmem:[%s1 + $0xac] sm:$0xf]
  %v115 = vld [vmem:[%s1 + $0xb0] sm:$0xf]
  %v116 = vld [vmem:[%s1 + $0xb4] sm:$0xf]
  %v117 = vld [vmem:[%s1 + $0xb8] sm:$0xf]
  %v118 = vld [vmem:[%s1 + $0xbc] sm:$0xf]
  %v145 = vunpack.c.l.b16 %v45
  %v146 = vunpack.c.h.b16 %v45
  %v147 = vunpack.c.l.b16 %v46
  %v148 = vunpack.c.l.b16 %v47
  %v149 = vunpack.c.h.b16 %v47
  %v150 = vunpack.c.l.b16 %v48
  %v151 = vunpack.c.l.b16 %v49
  %v152 = vunpack.c.h.b16 %v49
  %v153 = vunpack.c.l.b16 %v50
  %v154 = vunpack.c.l.b16 %v51
  %v155 = vunpack.c.h.b16 %v51
  %v156 = vunpack.c.l.b16 %v52
  %v157 = vunpack.c.l.b16 %v53
  %v158 = vunpack.c.h.b16 %v53
  %v159 = vunpack.c.l.b16 %v54
  %v160 = vunpack.c.l.b16 %v55
  %v161 = vunpack.c.h.b16 %v55
  %v162 = vunpack.c.l.b16 %v56
  %v163 = vunpack.c.l.b16 %v57
  %v164 = vunpack.c.h.b16 %v57
  %v165 = vunpack.c.l.b16 %v58
  %v166 = vunpack.c.l.b16 %v59
  %v167 = vunpack.c.h.b16 %v59
  %v168 = vunpack.c.l.b16 %v60
  %v169 = vunpack.c.l.b16 %v61
  %v170 = vunpack.c.h.b16 %v61
  %v171 = vunpack.c.l.b16 %v62
  %v172 = vunpack.c.l.b16 %v63
  %v173 = vunpack.c.h.b16 %v63
  %v174 = vunpack.c.l.b16 %v64
  %v175 = vunpack.c.l.b16 %v65
  %v176 = vunpack.c.h.b16 %v65
  %v177 = vunpack.c.l.b16 %v66
  %v178 = vunpack.c.l.b16 %v67
  %v179 = vunpack.c.h.b16 %v67
  %v180 = vunpack.c.l.b16 %v68
  %v181 = vunpack.c.l.b16 %v69
  %v182 = vunpack.c.h.b16 %v69
  %v183 = vunpack.c.l.b16 %v70
  %v184 = vpack.c.b16 %v148, %v145
  %v185 = vpack.c.b16 %v149, %v146
  %v186 = vpack.c.b16 %v150, %v147
  %v187 = vpack.c.b16 %v154, %v151
  %v188 = vpack.c.b16 %v155, %v152
  %v189 = vpack.c.b16 %v156, %v153
  %v190 = vpack.c.b16 %v160, %v157
  %v191 = vpack.c.b16 %v161, %v158
  %v192 = vpack.c.b16 %v162, %v159
  %v193 = vpack.c.b16 %v166, %v163
  %v194 = vpack.c.b16 %v167, %v164
  %v195 = vpack.c.b16 %v168, %v165
  %v196 = vpack.c.b16 %v172, %v169
  %v197 = vpack.c.b16 %v173, %v170
  %v198 = vpack.c.b16 %v174, %v171
  %v199 = vpack.c.b16 %v178, %v175
  %v200 = vpack.c.b16 %v179, %v176
  %v201 = vpack.c.b16 %v180, %v177
  %v202 = vpack.c.b16 %v181, %v181
  %v203 = vpack.c.b16 %v182, %v182
  %v204 = vpack.c.b16 %v183, %v183
  %v274 = vunpack.c.l.b16 %v71
  %v275 = vunpack.c.l.b16 %v72
  %v276 = vunpack.c.l.b16 %v73
  %v277 = vunpack.c.l.b16 %v74
  %v278 = vunpack.c.l.b16 %v75
  %v279 = vunpack.c.l.b16 %v76
  %v280 = vunpack.c.l.b16 %v77
  %v281 = vunpack.c.l.b16 %v78
  %v282 = vunpack.c.l.b16 %v79
  %v283 = vunpack.c.l.b16 %v80
  %v284 = vunpack.c.l.b16 %v81
  %v285 = vunpack.c.l.b16 %v82
  %v286 = vunpack.c.l.b16 %v83
  %v287 = vunpack.c.l.b16 %v84
  %v288 = vunpack.c.l.b16 %v85
  %v289 = vunpack.c.l.b16 %v86
  %v290 = vunpack.c.l.b16 %v87
  %v291 = vunpack.c.l.b16 %v88
  %v292 = vunpack.c.l.b16 %v89
  %v293 = vunpack.c.l.b16 %v90
  %v294 = vunpack.c.l.b16 %v91
  %v295 = vunpack.c.l.b16 %v92
  %v296 = vunpack.c.l.b16 %v93
  %v297 = vunpack.c.l.b16 %v94
  %v298 = vunpack.c.l.b16 %v95
  %v299 = vunpack.c.l.b16 %v96
  %v300 = vunpack.c.l.b16 %v97
  %v301 = vunpack.c.l.b16 %v98
  %v302 = vunpack.c.l.b16 %v99
  %v303 = vunpack.c.l.b16 %v100
  %v304 = vunpack.c.l.b16 %v101
  %v305 = vunpack.c.l.b16 %v102
  %v306 = vunpack.c.l.b16 %v103
  %v307 = vunpack.c.l.b16 %v104
  %v308 = vunpack.c.l.b16 %v105
  %v309 = vunpack.c.l.b16 %v106
  %v310 = vunpack.c.l.b16 %v107
  %v311 = vunpack.c.l.b16 %v108
  %v312 = vunpack.c.l.b16 %v109
  %v313 = vunpack.c.l.b16 %v110
  %v314 = vunpack.c.l.b16 %v111
  %v315 = vunpack.c.l.b16 %v112
  %v316 = vunpack.c.l.b16 %v113
  %v317 = vunpack.c.l.b16 %v114
  %v318 = vunpack.c.l.b16 %v115
  %v319 = vunpack.c.l.b16 %v116
  %v320 = vunpack.c.l.b16 %v117
  %v321 = vunpack.c.l.b16 %v118
  %v322 = vpack.c.b16 %v275, %v274
  %v323 = vpack.c.b16 %v277, %v276
  %v324 = vpack.c.b16 %v279, %v278
  %v325 = vpack.c.b16 %v281, %v280
  %v326 = vpack.c.b16 %v283, %v282
  %v327 = vpack.c.b16 %v285, %v284
  %v328 = vpack.c.b16 %v287, %v286
  %v329 = vpack.c.b16 %v289, %v288
  %v330 = vpack.c.b16 %v291, %v290
  %v331 = vpack.c.b16 %v293, %v292
  %v332 = vpack.c.b16 %v295, %v294
  %v333 = vpack.c.b16 %v297, %v296
  %v334 = vpack.c.b16 %v299, %v298
  %v335 = vpack.c.b16 %v301, %v300
  %v336 = vpack.c.b16 %v303, %v302
  %v337 = vpack.c.b16 %v305, %v304
  %v338 = vpack.c.b16 %v307, %v306
  %v339 = vpack.c.b16 %v309, %v308
  %v340 = vpack.c.b16 %v311, %v310
  %v341 = vpack.c.b16 %v313, %v312
  %v342 = vpack.c.b16 %v315, %v314
  %v343 = vpack.c.b16 %v317, %v316
  %v344 = vpack.c.b16 %v319, %v318
  %v345 = vpack.c.b16 %v321, %v320
  %370 = vmatprep.subr.bf16.mxu0 0
  %371 = vmatpush1.bf16.msra.mxu0 %v329
  %372 = vmatprep.subr.bf16.mxu0 0
  %373 = vmatpush1.bf16.msra.mxu0 %v328
  %374 = vmatprep.subr.bf16.mxu0 0
  %375 = vmatpush1.bf16.msra.mxu0 %v327
  %376 = vmatprep.subr.bf16.mxu0 0
  %377 = vmatpush1.bf16.msra.mxu0 %v326
  %378 = vmatprep.subr.bf16.mxu0 0
  %379 = vmatpush1.bf16.msra.mxu0 %v325
  %380 = vmatprep.subr.bf16.mxu0 0
  %381 = vmatpush1.bf16.msra.mxu0 %v324
  %382 = vmatprep.subr.bf16.mxu0 0
  %383 = vmatpush1.bf16.msra.mxu0 %v323
  %384 = vmatprep.subr.bf16.mxu0 0
  %385 = vmatpush1.bf16.msra.mxu0 %v322
  %386 = vmatprep.subr.bf16.mxu0 0
  %387 = vmatpush2.bf16.msra.mxu0 %v337
  %388 = vmatprep.subr.bf16.mxu0 0
  %389 = vmatpush2.bf16.msra.mxu0 %v336
  %390 = vmatprep.subr.bf16.mxu0 0
  %391 = vmatpush2.bf16.msra.mxu0 %v335
  %392 = vmatprep.subr.bf16.mxu0 0
  %393 = vmatpush2.bf16.msra.mxu0 %v334
  %394 = vmatprep.subr.bf16.mxu0 0
  %395 = vmatpush2.bf16.msra.mxu0 %v333
  %396 = vmatprep.subr.bf16.mxu0 0
  %397 = vmatpush2.bf16.msra.mxu0 %v332
  %398 = vmatprep.subr.bf16.mxu0 0
  %399 = vmatpush2.bf16.msra.mxu0 %v331
  %400 = vmatprep.subr.bf16.mxu0 0
  %401 = vmatpush2.bf16.msra.mxu0 %v330
  %402 = vmatprep.mubr.bf16.mxu0 %v185
  %403 = vmatmul.mubr.bf16.gmra.mxu0 %v184
  %v404 = vpop.f32.mrf.mxu0
  %v405 = vadd.f32 0.0, %v404
  %v406 = vpop.f32.mrf.mxu0
  %v407 = vpop.f32.mrf.mxu0
  %v408 = vadd.f32 0.0, %v407
  %v409 = vpop.f32.mrf.mxu0
  %410 = vmatprep.mubr.bf16.mxu0 %v188
  %411 = vmatmul.mubr.bf16.gmra.mxu0 %v187
  %v412 = vpop.f32.mrf.mxu0
  %v413 = vadd.f32 0.0, %v412
  %v414 = vpop.f32.mrf.mxu0
  %v415 = vpop.f32.mrf.mxu0
  %v416 = vadd.f32 0.0, %v415
  %v417 = vpop.f32.mrf.mxu0
  %418 = vmatprep.mubr.bf16.mxu0 %v191
  %419 = vmatmul.mubr.bf16.gmra.mxu0 %v190
  %v420 = vpop.f32.mrf.mxu0
  %v421 = vadd.f32 0.0, %v420
  %v422 = vpop.f32.mrf.mxu0
  %v423 = vpop.f32.mrf.mxu0
  %v424 = vadd.f32 0.0, %v423
  %v425 = vpop.f32.mrf.mxu0
  %426 = vmatprep.mubr.bf16.mxu0 %v194
  %427 = vmatmul.mubr.bf16.gmra.mxu0 %v193
  %v428 = vpop.f32.mrf.mxu0
  %v429 = vadd.f32 0.0, %v428
  %v430 = vpop.f32.mrf.mxu0
  %v431 = vpop.f32.mrf.mxu0
  %v432 = vadd.f32 0.0, %v431
  %v433 = vpop.f32.mrf.mxu0
  %434 = vmatprep.mubr.bf16.mxu0 %v197
  %435 = vmatmul.mubr.bf16.gmra.mxu0 %v196
  %v436 = vpop.f32.mrf.mxu0
  %v437 = vadd.f32 0.0, %v436
  %v438 = vpop.f32.mrf.mxu0
  %v439 = vpop.f32.mrf.mxu0
  %v440 = vadd.f32 0.0, %v439
  %v441 = vpop.f32.mrf.mxu0
  %442 = vmatprep.mubr.bf16.mxu0 %v200
  %443 = vmatmul.mubr.bf16.gmra.mxu0 %v199
  %v444 = vpop.f32.mrf.mxu0
  %v445 = vadd.f32 0.0, %v444
  %v446 = vpop.f32.mrf.mxu0
  %v447 = vpop.f32.mrf.mxu0
  %v448 = vadd.f32 0.0, %v447
  %v449 = vpop.f32.mrf.mxu0
  %450 = vmatprep.mubr.bf16.mxu0 %v203
  %451 = vmatmul.mubr.bf16.gmra.mxu0 %v202
  %v452 = vpop.f32.mrf.mxu0
  %v453 = vadd.f32 0.0, %v452
  %v454 = vpop.f32.mrf.mxu0
  %v455 = vpop.f32.mrf.mxu0
  %v456 = vpop.f32.mrf.mxu0
  %457 = vdwg.mxu0
  %458 = vmatprep.subr.bf16.mxu0 0
  %459 = vmatpush1.bf16.msra.mxu0 %v345
  %460 = vmatprep.subr.bf16.mxu0 0
  %461 = vmatpush1.bf16.msra.mxu0 %v344
  %462 = vmatprep.subr.bf16.mxu0 0
  %463 = vmatpush1.bf16.msra.mxu0 %v343
  %464 = vmatprep.subr.bf16.mxu0 0
  %465 = vmatpush1.bf16.msra.mxu0 %v342
  %466 = vmatprep.subr.bf16.mxu0 0
  %467 = vmatpush1.bf16.msra.mxu0 %v341
  %468 = vmatprep.subr.bf16.mxu0 0
  %469 = vmatpush1.bf16.msra.mxu0 %v340
  %470 = vmatprep.subr.bf16.mxu0 0
  %471 = vmatpush1.bf16.msra.mxu0 %v339
  %472 = vmatprep.subr.bf16.mxu0 0
  %473 = vmatpush1.bf16.msra.mxu0 %v338
  %474 = vmatprep.subr.bf16.mxu0 0
  %475 = vmatpush2.bf16.msra.mxu0 0
  %476 = vmatprep.subr.bf16.mxu0 0
  %477 = vmatpush2.bf16.msra.mxu0 0
  %478 = vmatprep.subr.bf16.mxu0 0
  %479 = vmatpush2.bf16.msra.mxu0 0
  %480 = vmatprep.subr.bf16.mxu0 0
  %481 = vmatpush2.bf16.msra.mxu0 0
  %482 = vmatprep.subr.bf16.mxu0 0
  %483 = vmatpush2.bf16.msra.mxu0 0
  %484 = vmatprep.subr.bf16.mxu0 0
  %485 = vmatpush2.bf16.msra.mxu0 0
  %486 = vmatprep.subr.bf16.mxu0 0
  %487 = vmatpush2.bf16.msra.mxu0 0
  %488 = vmatprep.subr.bf16.mxu0 0
  %489 = vmatpush2.bf16.msra.mxu0 0
  %490 = vmatprep.mubr.bf16.mxu0 0
  %491 = vmatmul.mubr.bf16.gmra.mxu0 %v186
  %v492 = vpop.f32.mrf.mxu0
  %v493 = vadd.f32 %v405, %v492
  %v494 = vpop.f32.mrf.mxu0
  %v495 = vpop.f32.mrf.mxu0
  %v496 = vadd.f32 %v408, %v495
  %v497 = vpop.f32.mrf.mxu0
  %498 = vmatprep.mubr.bf16.mxu0 0
  %499 = vmatmul.mubr.bf16.gmra.mxu0 %v189
  %v500 = vpop.f32.mrf.mxu0
  %v501 = vadd.f32 %v413, %v500
  %v502 = vpop.f32.mrf.mxu0
  %v503 = vpop.f32.mrf.mxu0
  %v504 = vadd.f32 %v416, %v503
  %v505 = vpop.f32.mrf.mxu0
  %506 = vmatprep.mubr.bf16.mxu0 0
  %507 = vmatmul.mubr.bf16.gmra.mxu0 %v192
  %v508 = vpop.f32.mrf.mxu0
  %v509 = vadd.f32 %v421, %v508
  %v510 = vpop.f32.mrf.mxu0
  %v511 = vpop.f32.mrf.mxu0
  %v512 = vadd.f32 %v424, %v511
  %v513 = vpop.f32.mrf.mxu0
  %514 = vmatprep.mubr.bf16.mxu0 0
  %515 = vmatmul.mubr.bf16.gmra.mxu0 %v195
  %v516 = vpop.f32.mrf.mxu0
  %v517 = vadd.f32 %v429, %v516
  %v518 = vpop.f32.mrf.mxu0
  %v519 = vpop.f32.mrf.mxu0
  %v520 = vadd.f32 %v432, %v519
  %v521 = vpop.f32.mrf.mxu0
  %522 = vmatprep.mubr.bf16.mxu0 0
  %523 = vmatmul.mubr.bf16.gmra.mxu0 %v198
  %v524 = vpop.f32.mrf.mxu0
  %v525 = vadd.f32 %v437, %v524
  %v526 = vpop.f32.mrf.mxu0
  %v527 = vpop.f32.mrf.mxu0
  %v528 = vadd.f32 %v440, %v527
  %v529 = vpop.f32.mrf.mxu0
  %530 = vmatprep.mubr.bf16.mxu0 0
  %531 = vmatmul.mubr.bf16.gmra.mxu0 %v201
  %v532 = vpop.f32.mrf.mxu0
  %v533 = vadd.f32 %v445, %v532
  %v534 = vpop.f32.mrf.mxu0
  %v535 = vpop.f32.mrf.mxu0
  %v536 = vadd.f32 %v448, %v535
  %v537 = vpop.f32.mrf.mxu0
  %538 = vmatprep.mubr.bf16.mxu0 0
  %539 = vmatmul.mubr.bf16.gmra.mxu0 %v204
  %v540 = vpop.f32.mrf.mxu0
  %v541 = vadd.f32 %v453, %v540
  %v542 = vpop.f32.mrf.mxu0
  %v543 = vpop.f32.mrf.mxu0
  %v544 = vpop.f32.mrf.mxu0
  %545 = vdwg.mxu0
  %v546 = vadd.f32 %v32, %v493
  %v547 = vadd.f32 %v33, %v496
  %v548 = vadd.f32 %v34, %v501
  %v549 = vadd.f32 %v35, %v504
  %v550 = vadd.f32 %v36, %v509
  %v551 = vadd.f32 %v37, %v512
  %v552 = vadd.f32 %v38, %v517
  %v553 = vadd.f32 %v39, %v520
  %v554 = vadd.f32 %v40, %v525
  %v555 = vadd.f32 %v41, %v528
  %v556 = vadd.f32 %v42, %v533
  %v557 = vadd.f32 %v43, %v536
  %v558 = vadd.f32 %v44, %v541
  %559 = vst [vmem:[#allocation2] sm:$0xff] %v546
  %560 = vst [vmem:[#allocation2 + $0x8] sm:$0xff] %v547
  %561 = vst [vmem:[#allocation2 + $0x10] sm:$0xff] %v548
  %562 = vst [vmem:[#allocation2 + $0x18] sm:$0xff] %v549
  %563 = vst [vmem:[#allocation2 + $0x20] sm:$0xff] %v550
  %564 = vst [vmem:[#allocation2 + $0x28] sm:$0xff] %v551
  %565 = vst [vmem:[#allocation2 + $0x30] sm:$0xff] %v552
  %566 = vst [vmem:[#allocation2 + $0x38] sm:$0xff] %v553
  %567 = vst [vmem:[#allocation2 + $0x40] sm:$0xff] %v554
  %568 = vst [vmem:[#allocation2 + $0x48] sm:$0xff] %v555
  %569 = vst [vmem:[#allocation2 + $0x50] sm:$0xff] %v556
  %570 = vst [vmem:[#allocation2 + $0x58] sm:$0xff] %v557
  %571 = vst [vmem:[#allocation2 + $0x60] sm:$0xff] %v558
  // Predicated region
  $region18: #{_lambda_.7} parent=0 // pred_check
    %p572 = pneg %p15
  $region19: #{_lambda_.7} parent=0 // pred_check_branch
    %574 = sbr.rel (%p572) target = $region21
  $region20: #{_lambda_.7} parent=0 // pred_region
    %v575 = vld [vmem:[#allocation2] sm:$0xff]
    %v576 = vld [vmem:[#allocation2 + $0x8] sm:$0xff]
    %v577 = vld [vmem:[#allocation2 + $0x10] sm:$0xff]
    %v578 = vld [vmem:[#allocation2 + $0x18] sm:$0xff]
    %v579 = vld [vmem:[#allocation2 + $0x20] sm:$0xff]
    %v580 = vld [vmem:[#allocation2 + $0x28] sm:$0xff]
    %v581 = vld [vmem:[#allocation2 + $0x30] sm:$0xff]
    %v582 = vld [vmem:[#allocation2 + $0x38] sm:$0xff]
    %v583 = vld [vmem:[#allocation2 + $0x40] sm:$0xff]
    %v584 = vld [vmem:[#allocation2 + $0x48] sm:$0xff]
    %v585 = vld [vmem:[#allocation2 + $0x50] sm:$0xff]
    %v586 = vld [vmem:[#allocation2 + $0x58] sm:$0xff]
    %v587 = vld [vmem:[#allocation2 + $0x60] sm:$0xff]
    %v588 = vld [vmem:[%s2] sm:$0x1]
    %v590 = vlaneseq
    %v591 = vshrl.u32 %v590, 7
    %v592 = vsub.s32 0, %v591
    %v593 = vrot.slane %v588, %v592
    %v595 = vadd.f32 %v575, %v593
    %v596 = vadd.f32 %v576, %v593
    %v597 = vadd.f32 %v577, %v593
    %v598 = vadd.f32 %v578, %v593
    %v599 = vadd.f32 %v579, %v593
    %v600 = vadd.f32 %v580, %v593
    %v601 = vadd.f32 %v581, %v593
    %v602 = vadd.f32 %v582, %v593
    %v603 = vadd.f32 %v583, %v593
    %v604 = vadd.f32 %v584, %v593
    %v605 = vadd.f32 %v585, %v593
    %v606 = vadd.f32 %v586, %v593
    %v607 = vadd.f32 %v587, %v593
    %v608 = vmax.f32 %v595, 0.0
    %v609 = vmax.f32 %v596, 0.0
    %v610 = vmax.f32 %v597, 0.0
    %v611 = vmax.f32 %v598, 0.0
    %v612 = vmax.f32 %v599, 0.0
    %v613 = vmax.f32 %v600, 0.0
    %v614 = vmax.f32 %v601, 0.0
    %v615 = vmax.f32 %v602, 0.0
    %v616 = vmax.f32 %v603, 0.0
    %v617 = vmax.f32 %v604, 0.0
    %v618 = vmax.f32 %v605, 0.0
    %v619 = vmax.f32 %v606, 0.0
    %v620 = vmax.f32 %v607, 0.0
    %621 = vst [vmem:[%s3] sm:$0xff] %v608
    %622 = vst [vmem:[%s3 + $0x8] sm:$0xff] %v609
    %623 = vst [vmem:[%s3 + $0x10] sm:$0xff] %v610
    %624 = vst [vmem:[%s3 + $0x18] sm:$0xff] %v611
    %625 = vst [vmem:[%s3 + $0x20] sm:$0xff] %v612
    %626 = vst [vmem:[%s3 + $0x28] sm:$0xff] %v613
    %627 = vst [vmem:[%s3 + $0x30] sm:$0xff] %v614
    %628 = vst [vmem:[%s3 + $0x38] sm:$0xff] %v615
    %629 = vst [vmem:[%s3 + $0x40] sm:$0xff] %v616
    %630 = vst [vmem:[%s3 + $0x48] sm:$0xff] %v617
    %631 = vst [vmem:[%s3 + $0x50] sm:$0xff] %v618
    %632 = vst [vmem:[%s3 + $0x58] sm:$0xff] %v619
    %633 = vst [vmem:[%s3 + $0x60] sm:$0xff] %v620
  $region21: #{_lambda_.7} parent=0 // pred_fallthru
    _
  // Predicated region
  $region22: #{_lambda_.7} parent=0 // pred_check
    _
  $region23: #{_lambda_.7} parent=0 // pred_check_branch
    %635 = sbr.rel (0) target = $region25
  $region24: #{_lambda_.7} parent=0 // pred_region
    _
  $region25: #{_lambda_.7} parent=0 // pred_fallthru
    _
  // Predicated region
  $region26: #{_lambda_.7} parent=0 // pred_check
    _
  $region27: #{_lambda_.7} parent=0 // pred_check_branch
    %637 = sbr.rel (0) target = $region29
  $region28: #{_lambda_.7} parent=0 // pred_region
    _
  $region29: #{_lambda_.7} parent=0 // pred_fallthru
    _

// kernel: _lambda_.11
$region0: #{_lambda_.11}
  #allocation0 [shape = 'u32[]', space=smem, size = 0x4, offset = 0x4, fixed_abs, tag = 'smem constant byte address 0x4 - core index']
  #allocation1 [shape = 'u32[144,128]{1,0:T(1,128)}', space=vmem, size = 0x12000, scoped, tag = 'internal scratch']
  %s0 = inlined_call_operand.vmem [shape: f32[9,104,128], index: 0, kind: input, shape index: {}]
  %s1 = inlined_call_operand.vmem [shape: f32[104,128], index: 1, kind: output, shape index: {}]
  %s2 = sld [smem:[#allocation0]]
  $region14: #{_lambda_.11} parent=0
    _
  %s4 = ssub.s32 1, %s2
  %s5 = scalar_select 0, %s4, %s2
  // Predicated region
  $region2: #{_lambda_.11} parent=0 // pred_check
    _
  $region3: #{_lambda_.11} parent=0 // pred_check_branch
    %7 = sbr.rel (0) target = $region5
  $region4: #{_lambda_.11} parent=0 // pred_region
    _
  $region5: #{_lambda_.11} parent=0 // pred_fallthru
    _
  %v8 = vld [vmem:[%s0] sm:$0xff]
  %v9 = vld [vmem:[%s0 + $0x8] sm:$0xff]
  %v10 = vld [vmem:[%s0 + $0x10] sm:$0xff]
  %v11 = vld [vmem:[%s0 + $0x18] sm:$0xff]
  %v12 = vld [vmem:[%s0 + $0x20] sm:$0xff]
  %v13 = vld [vmem:[%s0 + $0x28] sm:$0xff]
  %v14 = vld [vmem:[%s0 + $0x30] sm:$0xff]
  %v15 = vld [vmem:[%s0 + $0x38] sm:$0xff]
  %v16 = vld [vmem:[%s0 + $0x40] sm:$0xff]
  %v17 = vld [vmem:[%s0 + $0x48] sm:$0xff]
  %v18 = vld [vmem:[%s0 + $0x50] sm:$0xff]
  %v19 = vld [vmem:[%s0 + $0x58] sm:$0xff]
  %v20 = vld [vmem:[%s0 + $0x60] sm:$0xff]
  %v21 = vld [vmem:[%s0 + $0x68] sm:$0xff]
  %v22 = vld [vmem:[%s0 + $0x70] sm:$0xff]
  %v23 = vld [vmem:[%s0 + $0x78] sm:$0xff]
  %v24 = vld [vmem:[%s0 + $0x80] sm:$0xff]
  %v25 = vld [vmem:[%s0 + $0x88] sm:$0xff]
  %v26 = vld [vmem:[%s0 + $0x90] sm:$0xff]
  %v27 = vld [vmem:[%s0 + $0x98] sm:$0xff]
  %v28 = vld [vmem:[%s0 + $0xa0] sm:$0xff]
  %v29 = vld [vmem:[%s0 + $0xa8] sm:$0xff]
  %v30 = vld [vmem:[%s0 + $0xb0] sm:$0xff]
  %v31 = vld [vmem:[%s0 + $0xb8] sm:$0xff]
  %v32 = vld [vmem:[%s0 + $0xc0] sm:$0xff]
  %v33 = vld [vmem:[%s0 + $0xc8] sm:$0xff]
  %v34 = vld [vmem:[%s0 + $0xd0] sm:$0xff]
  %v35 = vld [vmem:[%s0 + $0xd8] sm:$0xff]
  %v36 = vld [vmem:[%s0 + $0xe0] sm:$0xff]
  %v37 = vld [vmem:[%s0 + $0xe8] sm:$0xff]
  %v38 = vld [vmem:[%s0 + $0xf0] sm:$0xff]
  %v39 = vld [vmem:[%s0 + $0xf8] sm:$0xff]
  %v40 = vld [vmem:[%s0 + $0x100] sm:$0xff]
  %v41 = vld [vmem:[%s0 + $0x108] sm:$0xff]
  %v42 = vld [vmem:[%s0 + $0x110] sm:$0xff]
  %v43 = vld [vmem:[%s0 + $0x118] sm:$0xff]
  %v44 = vld [vmem:[%s0 + $0x120] sm:$0xff]
  %v45 = vld [vmem:[%s0 + $0x128] sm:$0xff]
  %v46 = vld [vmem:[%s0 + $0x130] sm:$0xff]
  %v47 = vld [vmem:[%s0 + $0x138] sm:$0xff]
  %v48 = vld [vmem:[%s0 + $0x140] sm:$0xff]
  %v49 = vld [vmem:[%s0 + $0x148] sm:$0xff]
  %v50 = vld [vmem:[%s0 + $0x150] sm:$0xff]
  %v51 = vld [vmem:[%s0 + $0x158] sm:$0xff]
  %v52 = vld [vmem:[%s0 + $0x160] sm:$0xff]
  %v53 = vld [vmem:[%s0 + $0x168] sm:$0xff]
  %v54 = vld [vmem:[%s0 + $0x170] sm:$0xff]
  %v55 = vld [vmem:[%s0 + $0x178] sm:$0xff]
  %v56 = vld [vmem:[%s0 + $0x180] sm:$0xff]
  %v57 = vld [vmem:[%s0 + $0x188] sm:$0xff]
  %v58 = vld [vmem:[%s0 + $0x190] sm:$0xff]
  %v59 = vld [vmem:[%s0 + $0x198] sm:$0xff]
  %v60 = vld [vmem:[%s0 + $0x1a0] sm:$0xff]
  %v61 = vld [vmem:[%s0 + $0x1a8] sm:$0xff]
  %v62 = vld [vmem:[%s0 + $0x1b0] sm:$0xff]
  %v63 = vld [vmem:[%s0 + $0x1b8] sm:$0xff]
  %v64 = vld [vmem:[%s0 + $0x1c0] sm:$0xff]
  %v65 = vld [vmem:[%s0 + $0x1c8] sm:$0xff]
  %v66 = vld [vmem:[%s0 + $0x1d0] sm:$0xff]
  %v67 = vld [vmem:[%s0 + $0x1d8] sm:$0xff]
  %v68 = vld [vmem:[%s0 + $0x1e0] sm:$0xff]
  %v69 = vld [vmem:[%s0 + $0x1e8] sm:$0xff]
  %v70 = vld [vmem:[%s0 + $0x1f0] sm:$0xff]
  %v71 = vld [vmem:[%s0 + $0x1f8] sm:$0xff]
  %v72 = vld [vmem:[%s0 + $0x200] sm:$0xff]
  %v73 = vld [vmem:[%s0 + $0x208] sm:$0xff]
  %v74 = vld [vmem:[%s0 + $0x210] sm:$0xff]
  %v75 = vld [vmem:[%s0 + $0x218] sm:$0xff]
  %v76 = vld [vmem:[%s0 + $0x220] sm:$0xff]
  %v77 = vld [vmem:[%s0 + $0x228] sm:$0xff]
  %v78 = vld [vmem:[%s0 + $0x230] sm:$0xff]
  %v79 = vld [vmem:[%s0 + $0x238] sm:$0xff]
  %v80 = vld [vmem:[%s0 + $0x240] sm:$0xff]
  %v81 = vld [vmem:[%s0 + $0x248] sm:$0xff]
  %v82 = vld [vmem:[%s0 + $0x250] sm:$0xff]
  %v83 = vld [vmem:[%s0 + $0x258] sm:$0xff]
  %v84 = vld [vmem:[%s0 + $0x260] sm:$0xff]
  %v85 = vld [vmem:[%s0 + $0x268] sm:$0xff]
  %v86 = vld [vmem:[%s0 + $0x270] sm:$0xff]
  %v87 = vld [vmem:[%s0 + $0x278] sm:$0xff]
  %v88 = vld [vmem:[%s0 + $0x280] sm:$0xff]
  %v89 = vld [vmem:[%s0 + $0x288] sm:$0xff]
  %v90 = vld [vmem:[%s0 + $0x290] sm:$0xff]
  %v91 = vld [vmem:[%s0 + $0x298] sm:$0xff]
  %v92 = vld [vmem:[%s0 + $0x2a0] sm:$0xff]
  %v93 = vld [vmem:[%s0 + $0x2a8] sm:$0xff]
  %v94 = vld [vmem:[%s0 + $0x2b0] sm:$0xff]
  %v95 = vld [vmem:[%s0 + $0x2b8] sm:$0xff]
  %v96 = vld [vmem:[%s0 + $0x2c0] sm:$0xff]
  %v97 = vld [vmem:[%s0 + $0x2c8] sm:$0xff]
  %v98 = vld [vmem:[%s0 + $0x2d0] sm:$0xff]
  %v99 = vld [vmem:[%s0 + $0x2d8] sm:$0xff]
  %v100 = vld [vmem:[%s0 + $0x2e0] sm:$0xff]
  %v101 = vld [vmem:[%s0 + $0x2e8] sm:$0xff]
  %v102 = vld [vmem:[%s0 + $0x2f0] sm:$0xff]
  %v103 = vld [vmem:[%s0 + $0x2f8] sm:$0xff]
  %v104 = vld [vmem:[%s0 + $0x300] sm:$0xff]
  %v105 = vld [vmem:[%s0 + $0x308] sm:$0xff]
  %v106 = vld [vmem:[%s0 + $0x310] sm:$0xff]
  %v107 = vld [vmem:[%s0 + $0x318] sm:$0xff]
  %v108 = vld [vmem:[%s0 + $0x320] sm:$0xff]
  %v109 = vld [vmem:[%s0 + $0x328] sm:$0xff]
  %v110 = vld [vmem:[%s0 + $0x330] sm:$0xff]
  %v111 = vld [vmem:[%s0 + $0x338] sm:$0xff]
  %v112 = vld [vmem:[%s0 + $0x340] sm:$0xff]
  %v113 = vld [vmem:[%s0 + $0x348] sm:$0xff]
  %v114 = vld [vmem:[%s0 + $0x350] sm:$0xff]
  %v115 = vld [vmem:[%s0 + $0x358] sm:$0xff]
  %v116 = vld [vmem:[%s0 + $0x360] sm:$0xff]
  %v117 = vld [vmem:[%s0 + $0x368] sm:$0xff]
  %v118 = vld [vmem:[%s0 + $0x370] sm:$0xff]
  %v119 = vld [vmem:[%s0 + $0x378] sm:$0xff]
  %v120 = vld [vmem:[%s0 + $0x380] sm:$0xff]
  %v121 = vld [vmem:[%s0 + $0x388] sm:$0xff]
  %v122 = vld [vmem:[%s0 + $0x390] sm:$0xff]
  %v123 = vld [vmem:[%s0 + $0x398] sm:$0xff]
  %v124 = vld [vmem:[%s0 + $0x3a0] sm:$0xff]
  %v125 = vmax.f32 %v8, %v21
  %v126 = vmax.f32 %v125, %v34
  %v127 = vmax.f32 %v126, %v47
  %v128 = vmax.f32 %v127, %v60
  %v129 = vmax.f32 %v128, %v73
  %v130 = vmax.f32 %v129, %v86
  %v131 = vmax.f32 %v130, %v99
  %v132 = vmax.f32 %v131, %v112
  %v133 = vmax.f32 %v9, %v22
  %v134 = vmax.f32 %v133, %v35
  %v135 = vmax.f32 %v134, %v48
  %v136 = vmax.f32 %v135, %v61
  %v137 = vmax.f32 %v136, %v74
  %v138 = vmax.f32 %v137, %v87
  %v139 = vmax.f32 %v138, %v100
  %v140 = vmax.f32 %v139, %v113
  %v141 = vmax.f32 %v10, %v23
  %v142 = vmax.f32 %v141, %v36
  %v143 = vmax.f32 %v142, %v49
  %v144 = vmax.f32 %v143, %v62
  %v145 = vmax.f32 %v144, %v75
  %v146 = vmax.f32 %v145, %v88
  %v147 = vmax.f32 %v146, %v101
  %v148 = vmax.f32 %v147, %v114
  %v149 = vmax.f32 %v11, %v24
  %v150 = vmax.f32 %v149, %v37
  %v151 = vmax.f32 %v150, %v50
  %v152 = vmax.f32 %v151, %v63
  %v153 = vmax.f32 %v152, %v76
  %v154 = vmax.f32 %v153, %v89
  %v155 = vmax.f32 %v154, %v102
  %v156 = vmax.f32 %v155, %v115
  %v157 = vmax.f32 %v12, %v25
  %v158 = vmax.f32 %v157, %v38
  %v159 = vmax.f32 %v158, %v51
  %v160 = vmax.f32 %v159, %v64
  %v161 = vmax.f32 %v160, %v77
  %v162 = vmax.f32 %v161, %v90
  %v163 = vmax.f32 %v162, %v103
  %v164 = vmax.f32 %v163, %v116
  %v165 = vmax.f32 %v13, %v26
  %v166 = vmax.f32 %v165, %v39
  %v167 = vmax.f32 %v166, %v52
  %v168 = vmax.f32 %v167, %v65
  %v169 = vmax.f32 %v168, %v78
  %v170 = vmax.f32 %v169, %v91
  %v171 = vmax.f32 %v170, %v104
  %v172 = vmax.f32 %v171, %v117
  %v173 = vmax.f32 %v14, %v27
  %v174 = vmax.f32 %v173, %v40
  %v175 = vmax.f32 %v174, %v53
  %v176 = vmax.f32 %v175, %v66
  %v177 = vmax.f32 %v176, %v79
  %v178 = vmax.f32 %v177, %v92
  %v179 = vmax.f32 %v178, %v105
  %v180 = vmax.f32 %v179, %v118
  %v181 = vmax.f32 %v15, %v28
  %v182 = vmax.f32 %v181, %v41
  %v183 = vmax.f32 %v182, %v54
  %v184 = vmax.f32 %v183, %v67
  %v185 = vmax.f32 %v184, %v80
  %v186 = vmax.f32 %v185, %v93
  %v187 = vmax.f32 %v186, %v106
  %v188 = vmax.f32 %v187, %v119
  %v189 = vmax.f32 %v16, %v29
  %v190 = vmax.f32 %v189, %v42
  %v191 = vmax.f32 %v190, %v55
  %v192 = vmax.f32 %v191, %v68
  %v193 = vmax.f32 %v192, %v81
  %v194 = vmax.f32 %v193, %v94
  %v195 = vmax.f32 %v194, %v107
  %v196 = vmax.f32 %v195, %v120
  %v197 = vmax.f32 %v17, %v30
  %v198 = vmax.f32 %v197, %v43
  %v199 = vmax.f32 %v198, %v56
  %v200 = vmax.f32 %v199, %v69
  %v201 = vmax.f32 %v200, %v82
  %v202 = vmax.f32 %v201, %v95
  %v203 = vmax.f32 %v202, %v108
  %v204 = vmax.f32 %v203, %v121
  %v205 = vmax.f32 %v18, %v31
  %v206 = vmax.f32 %v205, %v44
  %v207 = vmax.f32 %v206, %v57
  %v208 = vmax.f32 %v207, %v70
  %v209 = vmax.f32 %v208, %v83
  %v210 = vmax.f32 %v209, %v96
  %v211 = vmax.f32 %v210, %v109
  %v212 = vmax.f32 %v211, %v122
  %v213 = vmax.f32 %v19, %v32
  %v214 = vmax.f32 %v213, %v45
  %v215 = vmax.f32 %v214, %v58
  %v216 = vmax.f32 %v215, %v71
  %v217 = vmax.f32 %v216, %v84
  %v218 = vmax.f32 %v217, %v97
  %v219 = vmax.f32 %v218, %v110
  %v220 = vmax.f32 %v219, %v123
  %v221 = vmax.f32 %v20, %v33
  %v222 = vmax.f32 %v221, %v46
  %v223 = vmax.f32 %v222, %v59
  %v224 = vmax.f32 %v223, %v72
  %v225 = vmax.f32 %v224, %v85
  %v226 = vmax.f32 %v225, %v98
  %v227 = vmax.f32 %v226, %v111
  %v228 = vmax.f32 %v227, %v124
  %229 = vst [vmem:[%s1] sm:$0xff] %v132
  %230 = vst [vmem:[%s1 + $0x8] sm:$0xff] %v140
  %231 = vst [vmem:[%s1 + $0x10] sm:$0xff] %v148
  %232 = vst [vmem:[%s1 + $0x18] sm:$0xff] %v156
  %233 = vst [vmem:[%s1 + $0x20] sm:$0xff] %v164
  %234 = vst [vmem:[%s1 + $0x28] sm:$0xff] %v172
  %235 = vst [vmem:[%s1 + $0x30] sm:$0xff] %v180
  %236 = vst [vmem:[%s1 + $0x38] sm:$0xff] %v188
  %237 = vst [vmem:[%s1 + $0x40] sm:$0xff] %v196
  %238 = vst [vmem:[%s1 + $0x48] sm:$0xff] %v204
  %239 = vst [vmem:[%s1 + $0x50] sm:$0xff] %v212
  %240 = vst [vmem:[%s1 + $0x58] sm:$0xff] %v220
  %241 = vst [vmem:[%s1 + $0x60] sm:$0xff] %v228
  // Predicated region
  $region6: #{_lambda_.11} parent=0 // pred_check
    _
  $region7: #{_lambda_.11} parent=0 // pred_check_branch
    %243 = sbr.rel (0) target = $region9
  $region8: #{_lambda_.11} parent=0 // pred_region
    _
  $region9: #{_lambda_.11} parent=0 // pred_fallthru
    _
  // Predicated region
  $region10: #{_lambda_.11} parent=0 // pred_check
    _
  $region11: #{_lambda_.11} parent=0 // pred_check_branch
    %245 = sbr.rel (0) target = $region13
  $region12: #{_lambda_.11} parent=0 // pred_region
    _
  $region13: #{_lambda_.11} parent=0 // pred_fallthru
    _

</llo_original>
